<compile_context>
chip_gen: v5e
topology: v5e:2x2
jax: 0.10.0
libtpu: 0.0.40
codegen_flags: <defaults>
</compile_context>

<pallas_src>
import jax
import jax.numpy as jnp
from jax.experimental import pallas as pl
from jax.experimental.pallas import tpu as pltpu


def _round_up(v, m):
    return (v + m - 1) // m * m


def basic_block_kernel(x_ref, w1_ref, w2_ref, o_ref, pad_ref):
    N, H, W, CP = x_ref.shape
    Wp = pad_ref.shape[2]            # sublane-aligned padded width (>= W+1, mult of 8)
    L = N * H * Wp                   # MXU rows per kh tap (padded-width grid)
    NHW = N * H * W
    eps = 1e-5
    inv_nhw = 1.0 / NHW

    # ---- zero the halo of the bf16 padded scratch once: top/bottom rows and the
    #      zero columns [W, Wp). The interior ([1:H+1, 0:W]) is overwritten before
    #      each conv and never touches the halo, so this is done a single time. ----
    pad_ref[:, 0:1, :, :] = jnp.zeros((N, 1, Wp, CP), jnp.bfloat16)
    pad_ref[:, H + 1:H + 2, :, :] = jnp.zeros((N, 1, Wp, CP), jnp.bfloat16)
    pad_ref[:, :, W:Wp, :] = jnp.zeros((N, H + 2, Wp - W, CP), jnp.bfloat16)

    def conv3x3(w_ref):
        # Shifted-window conv, no im2col: for each kh, one bf16 MXU matmul whose LHS
        # is the pad_ref row-slice read directly and whose RHS holds the 3 kw taps
        # concatenated along the output (CP, 3*CP).  The +-1 column shift of each kw
        # block is applied to the f32 matmul result with an XLU roll; wrapped elements
        # land in / come from zero halo columns, so the roll is exact.
        acc = jnp.zeros((L, CP), jnp.float32)
        for kh in range(3):
            lhs = pad_ref[:, kh:kh + H, :, :].reshape(L, CP)               # bf16 rows
            z = jnp.dot(lhs, w_ref[kh], preferred_element_type=jnp.float32)  # (L, 3*CP)
            for kw in range(3):
                zb = z[:, kw * CP:(kw + 1) * CP]
                dw = kw - 1
                if dw != 0:
                    zb = pltpu.roll(zb, shift=(-dw) % L, axis=0)   # out[l] += z[l+dw]
                acc = acc + zb
        return acc

    def valid(a):
        # (L, CP) padded-width grid -> (NHW, CP) valid pixels (columns [0, W)).
        return a.reshape(N, H, Wp, CP)[:, :, 0:W, :].reshape(NHW, CP)

    def batchnorm(v):
        # training-mode batch stats, affine = identity; centered two-pass variance
        mean = jnp.sum(v, axis=0, keepdims=True) * inv_nhw
        d = v - mean
        var = jnp.sum(d * d, axis=0, keepdims=True) * inv_nhw
        return d * jax.lax.rsqrt(var + eps)

    # ---- conv1 -> BN1 -> ReLU ----
    xv = x_ref[...]                                          # (N, H, W, CP) f32
    pad_ref[:, 1:H + 1, 0:W, :] = xv.astype(jnp.bfloat16)    # aligned interior write
    h1 = jnp.maximum(batchnorm(valid(conv3x3(w1_ref))), 0.0)

    # ---- conv2 -> BN2 (skip_gain = 1) -> + identity shortcut -> ReLU ----
    pad_ref[:, 1:H + 1, 0:W, :] = h1.reshape(N, H, W, CP).astype(jnp.bfloat16)
    bn2 = batchnorm(valid(conv3x3(w2_ref)))
    out = jnp.maximum(bn2 + xv.reshape(NHW, CP), 0.0)
    o_ref[...] = out.reshape(N, H, W, CP).astype(o_ref.dtype)


def basic_block(x_nchw, w1_oihw, w2_oihw):
    """x: (N, Cin, H, W) float32; w: (Cout, Cin, 3, 3). Returns (N, Cout, H, W)."""
    N, Cin, H, W = x_nchw.shape
    Cout = w1_oihw.shape[0]
    assert Cin == Cout, "identity-shortcut path requires in_planes == planes"
    C = Cin
    CP = _round_up(C, 128)          # lane-dense channel padding
    Wp = _round_up(W + 1, 8)        # sublane-aligned padded width (interior at offset 0)

    # TODO(synk): in a full network keep activations NHWC / CP-padded across blocks and
    # convert layouts only at entry/exit instead of a per-block transpose + pad.
    x = jnp.transpose(x_nchw, (0, 2, 3, 1)).astype(jnp.float32)
    x = jnp.pad(x, ((0, 0), (0, 0), (0, 0), (0, CP - C)))

    def prep_weight(w_oihw):
        w = jnp.transpose(w_oihw, (2, 3, 1, 0)).astype(jnp.float32)       # HWIO (3,3,C,C)
        w = jnp.pad(w, ((0, 0), (0, 0), (0, CP - C), (0, CP - C)))        # (3,3,CP,CP)
        # (kh,kw,ci,co) -> (kh,ci,kw,co) -> (3, CP, 3*CP): 3 kw taps concatenated along
        # the matmul output so each kh needs a single MXU matmul.
        return jnp.transpose(w, (0, 2, 1, 3)).reshape(3, CP, 3 * CP).astype(jnp.bfloat16)

    w1 = prep_weight(w1_oihw)
    w2 = prep_weight(w2_oihw)

    # per-generation VMEM ceiling (v7x has 64 MiB / TensorCore; v5e/v6e have 128 MiB)
    kind = jax.devices()[0].device_kind.lower()
    is_v7 = ("v7" in kind) or ("7x" in kind)
    vmem_limit = (48 << 20) if is_v7 else (100 << 20)

    flops = 2 * (2 * N * H * W * 9 * CP * CP)                 # two 3x3 convs
    bytes_accessed = (x.size + N * H * W * CP) * 4 + (w1.size + w2.size) * 2
    cost = pl.CostEstimate(flops=flops, transcendentals=2 * CP,
                           bytes_accessed=bytes_accessed)

    # TODO(synk): for real ResNet shapes, replace this single-tile invocation with a
    # two-phase tiled grid (phase 1: conv1 + per-channel sum/sumsq partials; phase 2:
    # normalize, conv2, BN2, skip-add) with 'parallel' spatial axes for v7x megacore
    # sharding and per-generation tile-size budgeting.
    out = pl.pallas_call(
        basic_block_kernel,
        out_shape=jax.ShapeDtypeStruct((N, H, W, CP), jnp.float32),
        in_specs=[
            pl.BlockSpec(memory_space=pltpu.MemorySpace.VMEM),
            pl.BlockSpec(memory_space=pltpu.MemorySpace.VMEM),
            pl.BlockSpec(memory_space=pltpu.MemorySpace.VMEM),
        ],
        out_specs=pl.BlockSpec(memory_space=pltpu.MemorySpace.VMEM),
        scratch_shapes=[
            pltpu.VMEM((N, H + 2, Wp, CP), jnp.bfloat16),   # shared bf16 padded buffer
        ],
        compiler_params=pltpu.CompilerParams(vmem_limit_bytes=vmem_limit),
        cost_estimate=cost,
    )(x, w1, w2)

    out = out[..., :Cout]                                     # drop lane padding
    return jnp.transpose(out, (0, 3, 1, 2))                   # back to NCHW


if __name__ == "__main__":
    key = jax.random.PRNGKey(0)
    kx, kw1, kw2 = jax.random.split(key, 3)

    N, C, H, W = 2, 4, 16, 16
    x = jax.random.normal(kx, (N, C, H, W), jnp.float32)

    # kaiming_normal_(mode='fan_in', nonlinearity='relu'): std = sqrt(2 / fan_in)
    fan_in = C * 3 * 3
    std = (2.0 / fan_in) ** 0.5
    w1 = jax.random.normal(kw1, (C, C, 3, 3), jnp.float32) * std
    w2 = jax.random.normal(kw2, (C, C, 3, 3), jnp.float32) * std

    y = basic_block(x, w1, w2)
    jax.block_until_ready(y)
    assert y.shape == (N, C, H, W)
    assert bool(jnp.all(jnp.isfinite(y)))
    print("KERNEL_OK")
</pallas_src>

<mosaic_0001>
module attributes {stable_mosaic.version = 11 : i64} {
  func.func @basic_block_kernel(%arg0: memref<2x16x16x128xf32, #tpu.memory_space<vmem>>, %arg1: memref<3x128x384xbf16, #tpu.memory_space<vmem>>, %arg2: memref<3x128x384xbf16, #tpu.memory_space<vmem>>, %arg3: memref<2x16x16x128xf32, #tpu.memory_space<vmem>>, %arg4: memref<2x18x24x128xbf16, #tpu.memory_space<vmem>>) attributes {dimension_semantics = [], scalar_prefetch = 0 : i64, scratch_operands = 1 : i64, tpu.core_type = #tpu.core_type<tc>} {
    %cst = arith.constant 0.000000e+00 : bf16
    %0 = vector.broadcast %cst : bf16 to vector<2x1x24x128xbf16>
    %c0 = arith.constant 0 : index
    %c0_0 = arith.constant 0 : index
    %c0_1 = arith.constant 0 : index
    %c0_2 = arith.constant 0 : index
    %1 = vector.load %arg4[%c0, %c0_0, %c0_1, %c0_2] : memref<2x18x24x128xbf16, #tpu.memory_space<vmem>>, vector<2x1x24x128xbf16>
    tpu.vector_store %arg4[%c0, %c0_0, %c0_1, %c0_2], %0 {strides = array<i32>} : memref<2x18x24x128xbf16, #tpu.memory_space<vmem>>, vector<2x1x24x128xbf16>,
    %cst_3 = arith.constant 0.000000e+00 : bf16
    %2 = vector.broadcast %cst_3 : bf16 to vector<2x1x24x128xbf16>
    %c0_4 = arith.constant 0 : index
    %c17 = arith.constant 17 : index
    %c0_5 = arith.constant 0 : index
    %c0_6 = arith.constant 0 : index
    %3 = vector.load %arg4[%c0_4, %c17, %c0_5, %c0_6] : memref<2x18x24x128xbf16, #tpu.memory_space<vmem>>, vector<2x1x24x128xbf16>
    tpu.vector_store %arg4[%c0_4, %c17, %c0_5, %c0_6], %2 {strides = array<i32>} : memref<2x18x24x128xbf16, #tpu.memory_space<vmem>>, vector<2x1x24x128xbf16>,
    %cst_7 = arith.constant 0.000000e+00 : bf16
    %4 = vector.broadcast %cst_7 : bf16 to vector<2x18x8x128xbf16>
    %c0_8 = arith.constant 0 : index
    %c0_9 = arith.constant 0 : index
    %c16 = arith.constant 16 : index
    %c0_10 = arith.constant 0 : index
    %5 = vector.load %arg4[%c0_8, %c0_9, %c16, %c0_10] : memref<2x18x24x128xbf16, #tpu.memory_space<vmem>>, vector<2x18x8x128xbf16>
    tpu.vector_store %arg4[%c0_8, %c0_9, %c16, %c0_10], %4 {strides = array<i32>} : memref<2x18x24x128xbf16, #tpu.memory_space<vmem>>, vector<2x18x8x128xbf16>,
    %c0_11 = arith.constant 0 : index
    %c0_12 = arith.constant 0 : index
    %c0_13 = arith.constant 0 : index
    %c0_14 = arith.constant 0 : index
    %6 = vector.load %arg0[%c0_11, %c0_12, %c0_13, %c0_14] : memref<2x16x16x128xf32, #tpu.memory_space<vmem>>, vector<2x16x16x128xf32>
    %7 = arith.truncf %6 : vector<2x16x16x128xf32> to vector<2x16x16x128xbf16>
    %c0_15 = arith.constant 0 : index
    %c1 = arith.constant 1 : index
    %c0_16 = arith.constant 0 : index
    %c0_17 = arith.constant 0 : index
    %8 = vector.load %arg4[%c0_15, %c1, %c0_16, %c0_17] : memref<2x18x24x128xbf16, #tpu.memory_space<vmem>>, vector<2x16x16x128xbf16>
    tpu.vector_store %arg4[%c0_15, %c1, %c0_16, %c0_17], %7 {strides = array<i32>} : memref<2x18x24x128xbf16, #tpu.memory_space<vmem>>, vector<2x16x16x128xbf16>,
    %cst_18 = arith.constant 0.000000e+00 : f32
    %9 = vector.broadcast %cst_18 : f32 to vector<768x128xf32>
    %c0_19 = arith.constant 0 : index
    %c0_20 = arith.constant 0 : index
    %c0_21 = arith.constant 0 : index
    %c0_22 = arith.constant 0 : index
    %10 = vector.load %arg4[%c0_19, %c0_20, %c0_21, %c0_22] : memref<2x18x24x128xbf16, #tpu.memory_space<vmem>>, vector<2x16x24x128xbf16>
    %11 = vector.shape_cast %10 : vector<2x16x24x128xbf16> to vector<768x128xbf16>
    %c0_23 = arith.constant 0 : index
    %c0_24 = arith.constant 0 : index
    %c0_25 = arith.constant 0 : index
    %12 = vector.load %arg1[%c0_23, %c0_24, %c0_25] : memref<3x128x384xbf16, #tpu.memory_space<vmem>>, vector<1x128x384xbf16>
    %13 = vector.shape_cast %12 : vector<1x128x384xbf16> to vector<128x384xbf16>
    %cst_26 = arith.constant dense<0.000000e+00> : vector<768x384xf32>
    %14 = tpu.matmul %11, %13, %cst_26 {dimension_numbers = #tpu.dot_dimension_numbers<[1], [0], [0], [1], [0, 0, 1, 1], [], []>} : vector<768x128xbf16>, vector<128x384xbf16>, vector<768x384xf32> -> vector<768x384xf32>
    %15 = vector.extract_strided_slice %14 {offsets = [0, 0], sizes = [768, 128], strides = [1, 1]} : vector<768x384xf32> to vector<768x128xf32>
    %c1_i32 = arith.constant 1 : i32
    %16 = tpu.dynamic_rotate %15 by %c1_i32 dim 0 : vector<768x128xf32>, i32 -> vector<768x128xf32>
    %17 = arith.addf %9, %16 : vector<768x128xf32>
    %18 = vector.extract_strided_slice %14 {offsets = [0, 128], sizes = [768, 128], strides = [1, 1]} : vector<768x384xf32> to vector<768x128xf32>
    %19 = arith.addf %17, %18 : vector<768x128xf32>
    %20 = vector.extract_strided_slice %14 {offsets = [0, 256], sizes = [768, 128], strides = [1, 1]} : vector<768x384xf32> to vector<768x128xf32>
    %c767_i32 = arith.constant 767 : i32
    %21 = tpu.dynamic_rotate %20 by %c767_i32 dim 0 : vector<768x128xf32>, i32 -> vector<768x128xf32>
    %22 = arith.addf %19, %21 : vector<768x128xf32>
    %c0_27 = arith.constant 0 : index
    %c1_28 = arith.constant 1 : index
    %c0_29 = arith.constant 0 : index
    %c0_30 = arith.constant 0 : index
    %23 = vector.load %arg4[%c0_27, %c1_28, %c0_29, %c0_30] : memref<2x18x24x128xbf16, #tpu.memory_space<vmem>>, vector<2x16x24x128xbf16>
    %24 = vector.shape_cast %23 : vector<2x16x24x128xbf16> to vector<768x128xbf16>
    %c1_31 = arith.constant 1 : index
    %c0_32 = arith.constant 0 : index
    %c0_33 = arith.constant 0 : index
    %25 = vector.load %arg1[%c1_31, %c0_32, %c0_33] : memref<3x128x384xbf16, #tpu.memory_space<vmem>>, vector<1x128x384xbf16>
    %26 = vector.shape_cast %25 : vector<1x128x384xbf16> to vector<128x384xbf16>
    %cst_34 = arith.constant dense<0.000000e+00> : vector<768x384xf32>
    %27 = tpu.matmul %24, %26, %cst_34 {dimension_numbers = #tpu.dot_dimension_numbers<[1], [0], [0], [1], [0, 0, 1, 1], [], []>} : vector<768x128xbf16>, vector<128x384xbf16>, vector<768x384xf32> -> vector<768x384xf32>
    %28 = vector.extract_strided_slice %27 {offsets = [0, 0], sizes = [768, 128], strides = [1, 1]} : vector<768x384xf32> to vector<768x128xf32>
    %c1_i32_35 = arith.constant 1 : i32
    %29 = tpu.dynamic_rotate %28 by %c1_i32_35 dim 0 : vector<768x128xf32>, i32 -> vector<768x128xf32>
    %30 = arith.addf %22, %29 : vector<768x128xf32>
    %31 = vector.extract_strided_slice %27 {offsets = [0, 128], sizes = [768, 128], strides = [1, 1]} : vector<768x384xf32> to vector<768x128xf32>
    %32 = arith.addf %30, %31 : vector<768x128xf32>
    %33 = vector.extract_strided_slice %27 {offsets = [0, 256], sizes = [768, 128], strides = [1, 1]} : vector<768x384xf32> to vector<768x128xf32>
    %c767_i32_36 = arith.constant 767 : i32
    %34 = tpu.dynamic_rotate %33 by %c767_i32_36 dim 0 : vector<768x128xf32>, i32 -> vector<768x128xf32>
    %35 = arith.addf %32, %34 : vector<768x128xf32>
    %c0_37 = arith.constant 0 : index
    %c2 = arith.constant 2 : index
    %c0_38 = arith.constant 0 : index
    %c0_39 = arith.constant 0 : index
    %36 = vector.load %arg4[%c0_37, %c2, %c0_38, %c0_39] : memref<2x18x24x128xbf16, #tpu.memory_space<vmem>>, vector<2x16x24x128xbf16>
    %37 = vector.shape_cast %36 : vector<2x16x24x128xbf16> to vector<768x128xbf16>
    %c2_40 = arith.constant 2 : index
    %c0_41 = arith.constant 0 : index
    %c0_42 = arith.constant 0 : index
    %38 = vector.load %arg1[%c2_40, %c0_41, %c0_42] : memref<3x128x384xbf16, #tpu.memory_space<vmem>>, vector<1x128x384xbf16>
    %39 = vector.shape_cast %38 : vector<1x128x384xbf16> to vector<128x384xbf16>
    %cst_43 = arith.constant dense<0.000000e+00> : vector<768x384xf32>
    %40 = tpu.matmul %37, %39, %cst_43 {dimension_numbers = #tpu.dot_dimension_numbers<[1], [0], [0], [1], [0, 0, 1, 1], [], []>} : vector<768x128xbf16>, vector<128x384xbf16>, vector<768x384xf32> -> vector<768x384xf32>
    %41 = vector.extract_strided_slice %40 {offsets = [0, 0], sizes = [768, 128], strides = [1, 1]} : vector<768x384xf32> to vector<768x128xf32>
    %c1_i32_44 = arith.constant 1 : i32
    %42 = tpu.dynamic_rotate %41 by %c1_i32_44 dim 0 : vector<768x128xf32>, i32 -> vector<768x128xf32>
    %43 = arith.addf %35, %42 : vector<768x128xf32>
    %44 = vector.extract_strided_slice %40 {offsets = [0, 128], sizes = [768, 128], strides = [1, 1]} : vector<768x384xf32> to vector<768x128xf32>
    %45 = arith.addf %43, %44 : vector<768x128xf32>
    %46 = vector.extract_strided_slice %40 {offsets = [0, 256], sizes = [768, 128], strides = [1, 1]} : vector<768x384xf32> to vector<768x128xf32>
    %c767_i32_45 = arith.constant 767 : i32
    %47 = tpu.dynamic_rotate %46 by %c767_i32_45 dim 0 : vector<768x128xf32>, i32 -> vector<768x128xf32>
    %48 = arith.addf %45, %47 : vector<768x128xf32>
    %49 = vector.shape_cast %48 : vector<768x128xf32> to vector<2x16x24x128xf32>
    %50 = vector.extract_strided_slice %49 {offsets = [0, 0, 0, 0], sizes = [2, 16, 16, 128], strides = [1, 1, 1, 1]} : vector<2x16x24x128xf32> to vector<2x16x16x128xf32>
    %51 = vector.shape_cast %50 : vector<2x16x16x128xf32> to vector<512x128xf32>
    %cst_46 = arith.constant dense<0.000000e+00> : vector<128xf32>
    %52 = vector.multi_reduction <add>, %51, %cst_46 [0] : vector<512x128xf32> to vector<128xf32>
    %53 = vector.shape_cast %52 : vector<128xf32> to vector<1x128xf32>
    %cst_47 = arith.constant 0.001953125 : f32
    %54 = vector.broadcast %cst_47 : f32 to vector<1x128xf32>
    %55 = arith.mulf %53, %54 : vector<1x128xf32>
    %56 = vector.broadcast %55 : vector<1x128xf32> to vector<512x128xf32>
    %57 = arith.subf %51, %56 : vector<512x128xf32>
    %58 = arith.mulf %57, %57 : vector<512x128xf32>
    %cst_48 = arith.constant dense<0.000000e+00> : vector<128xf32>
    %59 = vector.multi_reduction <add>, %58, %cst_48 [0] : vector<512x128xf32> to vector<128xf32>
    %60 = vector.shape_cast %59 : vector<128xf32> to vector<1x128xf32>
    %cst_49 = arith.constant 0.001953125 : f32
    %61 = vector.broadcast %cst_49 : f32 to vector<1x128xf32>
    %62 = arith.mulf %60, %61 : vector<1x128xf32>
    %cst_50 = arith.constant 9.99999974E-6 : f32
    %63 = vector.broadcast %cst_50 : f32 to vector<1x128xf32>
    %64 = arith.addf %62, %63 : vector<1x128xf32>
    %65 = math.rsqrt %64 : vector<1x128xf32>
    %66 = vector.broadcast %65 : vector<1x128xf32> to vector<512x128xf32>
    %67 = arith.mulf %57, %66 : vector<512x128xf32>
    %cst_51 = arith.constant 0.000000e+00 : f32
    %68 = vector.broadcast %cst_51 : f32 to vector<512x128xf32>
    %69 = arith.maximumf %67, %68 : vector<512x128xf32>
    %70 = vector.shape_cast %69 : vector<512x128xf32> to vector<2x16x16x128xf32>
    %71 = arith.truncf %70 : vector<2x16x16x128xf32> to vector<2x16x16x128xbf16>
    %c0_52 = arith.constant 0 : index
    %c1_53 = arith.constant 1 : index
    %c0_54 = arith.constant 0 : index
    %c0_55 = arith.constant 0 : index
    %72 = vector.load %arg4[%c0_52, %c1_53, %c0_54, %c0_55] : memref<2x18x24x128xbf16, #tpu.memory_space<vmem>>, vector<2x16x16x128xbf16>
    tpu.vector_store %arg4[%c0_52, %c1_53, %c0_54, %c0_55], %71 {strides = array<i32>} : memref<2x18x24x128xbf16, #tpu.memory_space<vmem>>, vector<2x16x16x128xbf16>,
    %cst_56 = arith.constant 0.000000e+00 : f32
    %73 = vector.broadcast %cst_56 : f32 to vector<768x128xf32>
    %c0_57 = arith.constant 0 : index
    %c0_58 = arith.constant 0 : index
    %c0_59 = arith.constant 0 : index
    %c0_60 = arith.constant 0 : index
    %74 = vector.load %arg4[%c0_57, %c0_58, %c0_59, %c0_60] : memref<2x18x24x128xbf16, #tpu.memory_space<vmem>>, vector<2x16x24x128xbf16>
    %75 = vector.shape_cast %74 : vector<2x16x24x128xbf16> to vector<768x128xbf16>
    %c0_61 = arith.constant 0 : index
    %c0_62 = arith.constant 0 : index
    %c0_63 = arith.constant 0 : index
    %76 = vector.load %arg2[%c0_61, %c0_62, %c0_63] : memref<3x128x384xbf16, #tpu.memory_space<vmem>>, vector<1x128x384xbf16>
    %77 = vector.shape_cast %76 : vector<1x128x384xbf16> to vector<128x384xbf16>
    %cst_64 = arith.constant dense<0.000000e+00> : vector<768x384xf32>
    %78 = tpu.matmul %75, %77, %cst_64 {dimension_numbers = #tpu.dot_dimension_numbers<[1], [0], [0], [1], [0, 0, 1, 1], [], []>} : vector<768x128xbf16>, vector<128x384xbf16>, vector<768x384xf32> -> vector<768x384xf32>
    %79 = vector.extract_strided_slice %78 {offsets = [0, 0], sizes = [768, 128], strides = [1, 1]} : vector<768x384xf32> to vector<768x128xf32>
    %c1_i32_65 = arith.constant 1 : i32
    %80 = tpu.dynamic_rotate %79 by %c1_i32_65 dim 0 : vector<768x128xf32>, i32 -> vector<768x128xf32>
    %81 = arith.addf %73, %80 : vector<768x128xf32>
    %82 = vector.extract_strided_slice %78 {offsets = [0, 128], sizes = [768, 128], strides = [1, 1]} : vector<768x384xf32> to vector<768x128xf32>
    %83 = arith.addf %81, %82 : vector<768x128xf32>
    %84 = vector.extract_strided_slice %78 {offsets = [0, 256], sizes = [768, 128], strides = [1, 1]} : vector<768x384xf32> to vector<768x128xf32>
    %c767_i32_66 = arith.constant 767 : i32
    %85 = tpu.dynamic_rotate %84 by %c767_i32_66 dim 0 : vector<768x128xf32>, i32 -> vector<768x128xf32>
    %86 = arith.addf %83, %85 : vector<768x128xf32>
    %c0_67 = arith.constant 0 : index
    %c1_68 = arith.constant 1 : index
    %c0_69 = arith.constant 0 : index
    %c0_70 = arith.constant 0 : index
    %87 = vector.load %arg4[%c0_67, %c1_68, %c0_69, %c0_70] : memref<2x18x24x128xbf16, #tpu.memory_space<vmem>>, vector<2x16x24x128xbf16>
    %88 = vector.shape_cast %87 : vector<2x16x24x128xbf16> to vector<768x128xbf16>
    %c1_71 = arith.constant 1 : index
    %c0_72 = arith.constant 0 : index
    %c0_73 = arith.constant 0 : index
    %89 = vector.load %arg2[%c1_71, %c0_72, %c0_73] : memref<3x128x384xbf16, #tpu.memory_space<vmem>>, vector<1x128x384xbf16>
    %90 = vector.shape_cast %89 : vector<1x128x384xbf16> to vector<128x384xbf16>
    %cst_74 = arith.constant dense<0.000000e+00> : vector<768x384xf32>
    %91 = tpu.matmul %88, %90, %cst_74 {dimension_numbers = #tpu.dot_dimension_numbers<[1], [0], [0], [1], [0, 0, 1, 1], [], []>} : vector<768x128xbf16>, vector<128x384xbf16>, vector<768x384xf32> -> vector<768x384xf32>
    %92 = vector.extract_strided_slice %91 {offsets = [0, 0], sizes = [768, 128], strides = [1, 1]} : vector<768x384xf32> to vector<768x128xf32>
    %c1_i32_75 = arith.constant 1 : i32
    %93 = tpu.dynamic_rotate %92 by %c1_i32_75 dim 0 : vector<768x128xf32>, i32 -> vector<768x128xf32>
    %94 = arith.addf %86, %93 : vector<768x128xf32>
    %95 = vector.extract_strided_slice %91 {offsets = [0, 128], sizes = [768, 128], strides = [1, 1]} : vector<768x384xf32> to vector<768x128xf32>
    %96 = arith.addf %94, %95 : vector<768x128xf32>
    %97 = vector.extract_strided_slice %91 {offsets = [0, 256], sizes = [768, 128], strides = [1, 1]} : vector<768x384xf32> to vector<768x128xf32>
    %c767_i32_76 = arith.constant 767 : i32
    %98 = tpu.dynamic_rotate %97 by %c767_i32_76 dim 0 : vector<768x128xf32>, i32 -> vector<768x128xf32>
    %99 = arith.addf %96, %98 : vector<768x128xf32>
    %c0_77 = arith.constant 0 : index
    %c2_78 = arith.constant 2 : index
    %c0_79 = arith.constant 0 : index
    %c0_80 = arith.constant 0 : index
    %100 = vector.load %arg4[%c0_77, %c2_78, %c0_79, %c0_80] : memref<2x18x24x128xbf16, #tpu.memory_space<vmem>>, vector<2x16x24x128xbf16>
    %101 = vector.shape_cast %100 : vector<2x16x24x128xbf16> to vector<768x128xbf16>
    %c2_81 = arith.constant 2 : index
    %c0_82 = arith.constant 0 : index
    %c0_83 = arith.constant 0 : index
    %102 = vector.load %arg2[%c2_81, %c0_82, %c0_83] : memref<3x128x384xbf16, #tpu.memory_space<vmem>>, vector<1x128x384xbf16>
    %103 = vector.shape_cast %102 : vector<1x128x384xbf16> to vector<128x384xbf16>
    %cst_84 = arith.constant dense<0.000000e+00> : vector<768x384xf32>
    %104 = tpu.matmul %101, %103, %cst_84 {dimension_numbers = #tpu.dot_dimension_numbers<[1], [0], [0], [1], [0, 0, 1, 1], [], []>} : vector<768x128xbf16>, vector<128x384xbf16>, vector<768x384xf32> -> vector<768x384xf32>
    %105 = vector.extract_strided_slice %104 {offsets = [0, 0], sizes = [768, 128], strides = [1, 1]} : vector<768x384xf32> to vector<768x128xf32>
    %c1_i32_85 = arith.constant 1 : i32
    %106 = tpu.dynamic_rotate %105 by %c1_i32_85 dim 0 : vector<768x128xf32>, i32 -> vector<768x128xf32>
    %107 = arith.addf %99, %106 : vector<768x128xf32>
    %108 = vector.extract_strided_slice %104 {offsets = [0, 128], sizes = [768, 128], strides = [1, 1]} : vector<768x384xf32> to vector<768x128xf32>
    %109 = arith.addf %107, %108 : vector<768x128xf32>
    %110 = vector.extract_strided_slice %104 {offsets = [0, 256], sizes = [768, 128], strides = [1, 1]} : vector<768x384xf32> to vector<768x128xf32>
    %c767_i32_86 = arith.constant 767 : i32
    %111 = tpu.dynamic_rotate %110 by %c767_i32_86 dim 0 : vector<768x128xf32>, i32 -> vector<768x128xf32>
    %112 = arith.addf %109, %111 : vector<768x128xf32>
    %113 = vector.shape_cast %112 : vector<768x128xf32> to vector<2x16x24x128xf32>
    %114 = vector.extract_strided_slice %113 {offsets = [0, 0, 0, 0], sizes = [2, 16, 16, 128], strides = [1, 1, 1, 1]} : vector<2x16x24x128xf32> to vector<2x16x16x128xf32>
    %115 = vector.shape_cast %114 : vector<2x16x16x128xf32> to vector<512x128xf32>
    %cst_87 = arith.constant dense<0.000000e+00> : vector<128xf32>
    %116 = vector.multi_reduction <add>, %115, %cst_87 [0] : vector<512x128xf32> to vector<128xf32>
    %117 = vector.shape_cast %116 : vector<128xf32> to vector<1x128xf32>
    %cst_88 = arith.constant 0.001953125 : f32
    %118 = vector.broadcast %cst_88 : f32 to vector<1x128xf32>
    %119 = arith.mulf %117, %118 : vector<1x128xf32>
    %120 = vector.broadcast %119 : vector<1x128xf32> to vector<512x128xf32>
    %121 = arith.subf %115, %120 : vector<512x128xf32>
    %122 = arith.mulf %121, %121 : vector<512x128xf32>
    %cst_89 = arith.constant dense<0.000000e+00> : vector<128xf32>
    %123 = vector.multi_reduction <add>, %122, %cst_89 [0] : vector<512x128xf32> to vector<128xf32>
    %124 = vector.shape_cast %123 : vector<128xf32> to vector<1x128xf32>
    %cst_90 = arith.constant 0.001953125 : f32
    %125 = vector.broadcast %cst_90 : f32 to vector<1x128xf32>
    %126 = arith.mulf %124, %125 : vector<1x128xf32>
    %cst_91 = arith.constant 9.99999974E-6 : f32
    %127 = vector.broadcast %cst_91 : f32 to vector<1x128xf32>
    %128 = arith.addf %126, %127 : vector<1x128xf32>
    %129 = math.rsqrt %128 : vector<1x128xf32>
    %130 = vector.broadcast %129 : vector<1x128xf32> to vector<512x128xf32>
    %131 = arith.mulf %121, %130 : vector<512x128xf32>
    %132 = vector.shape_cast %6 : vector<2x16x16x128xf32> to vector<512x128xf32>
    %133 = arith.addf %131, %132 : vector<512x128xf32>
    %cst_92 = arith.constant 0.000000e+00 : f32
    %134 = vector.broadcast %cst_92 : f32 to vector<512x128xf32>
    %135 = arith.maximumf %133, %134 : vector<512x128xf32>
    %136 = vector.shape_cast %135 : vector<512x128xf32> to vector<2x16x16x128xf32>
    %c0_93 = arith.constant 0 : index
    %c0_94 = arith.constant 0 : index
    %c0_95 = arith.constant 0 : index
    %c0_96 = arith.constant 0 : index
    %137 = vector.load %arg3[%c0_93, %c0_94, %c0_95, %c0_96] : memref<2x16x16x128xf32, #tpu.memory_space<vmem>>, vector<2x16x16x128xf32>
    tpu.vector_store %arg3[%c0_93, %c0_94, %c0_95, %c0_96], %136 {strides = array<i32>} : memref<2x16x16x128xf32, #tpu.memory_space<vmem>>, vector<2x16x16x128xf32>,
    return
  }
}

</mosaic_0001>

<llo_original>
// kernel: tpu_custom_call.1
$region0: #{tpu_custom_call.1}
  #allocation0 [shape = 'u32[]', space=smem, size = 0x4, offset = 0x4, fixed_abs, tag = 'smem constant byte address 0x4 - core index']
  #allocation1 [shape = 'u32[72,128]{1,0:T(1,128)}', space=vmem, size = 0x9000, scoped, tag = 'internal scratch']
  #allocation2 [shape = 'bf16[2,18,24,128]{3,2,1,0:T(8,128)(2,1)}', space=vmem, size = 0x36000, scoped, tag = 'scratch operand']
  %s0 = inlined_call_operand.hbm [shape: f32[2,16,16,128], index: 0, kind: input, shape index: {}]
  %s1 = inlined_call_operand.hbm [shape: bf16[3,128,384], index: 1, kind: input, shape index: {}]
  %s2 = inlined_call_operand.hbm [shape: bf16[3,128,384], index: 2, kind: input, shape index: {}]
  %s3 = inlined_call_operand.hbm [shape: f32[2,16,16,128], index: 3, kind: output, shape index: {}]
  %s4 = sld [smem:[#allocation0]]
  $region34: #{tpu_custom_call.1} parent=0
    _
  %s6 = ssub.s32 1, %s4
  %s7 = scalar_select 0, %s6, %s4
  $region1: #{tpu_custom_call.1} parent=0
    #allocation3 [shape = 'u8[262144]{0}', space=vmem, size = 0x40000, scoped, tag = 'input window, operand 0, single buffered']
    #allocation4 [shape = 's32[1]{0}', space=sflag, size = 0x4, scoped, tag = 'scoped memory for tpu_custom_call.1']
    #allocation5 [shape = 's32[1]{0}', space=sflag, size = 0x4, scoped, tag = 'scoped memory for tpu_custom_call.1']
    #allocation6 [shape = 'u8[294912]{0}', space=vmem, size = 0x48000, scoped, tag = 'input window, operand 1, single buffered']
    #allocation7 [shape = 's32[1]{0}', space=sflag, size = 0x4, scoped, tag = 'scoped memory for tpu_custom_call.1']
    #allocation8 [shape = 'u8[294912]{0}', space=vmem, size = 0x48000, scoped, tag = 'input window, operand 2, single buffered']
    #allocation9 [shape = 'u8[262144]{0}', space=vmem, size = 0x40000, scoped, tag = 'output window, operand 0, single buffered']
    %8 = vsyncpa [#allocation4], 0
    %9 = vsyncpa [#allocation7], 0
    %10 = vsyncpa [#allocation5], 0
    // Predicated region
    $region2: #{tpu_custom_call.1} parent=1 // pred_check
      _
    $region3: #{tpu_custom_call.1} parent=1 // pred_check_branch
      %12 = sbr.rel (0) target = $region5
    $region4: #{tpu_custom_call.1} parent=1 // pred_region
      %14 = vsyncadd [#allocation4], 0
      %s15 = sshll.u32 %s0, 4
      %s16 = int_to_ptr.hbm [resolvable:$true] %s15
      %s17 = sshll.u32 [#allocation3], 4
      %s18 = int_to_ptr.vmem [resolvable:$true] %s17
      %23 = dma.hbm_to_vmem [thread:$0]  %s16, 8192, %s18, [#allocation4], 128, 128, 8
    $region5: #{tpu_custom_call.1} parent=1 // pred_fallthru
      _
    // Predicated region
    $region6: #{tpu_custom_call.1} parent=1 // pred_check
      _
    $region7: #{tpu_custom_call.1} parent=1 // pred_check_branch
      %25 = sbr.rel (0) target = $region9
    $region8: #{tpu_custom_call.1} parent=1 // pred_region
      %27 = vsyncadd [#allocation7], 0
      %s28 = sshll.u32 %s1, 4
      %s29 = int_to_ptr.hbm [resolvable:$true] %s28
      %s30 = sshll.u32 [#allocation6], 4
      %s31 = int_to_ptr.vmem [resolvable:$true] %s30
      %36 = dma.hbm_to_vmem [thread:$0]  %s29, 9216, %s31, [#allocation7], 192, 192, 12
    $region9: #{tpu_custom_call.1} parent=1 // pred_fallthru
      _
    // Predicated region
    $region10: #{tpu_custom_call.1} parent=1 // pred_check
      _
    $region11: #{tpu_custom_call.1} parent=1 // pred_check_branch
      %38 = sbr.rel (0) target = $region13
    $region12: #{tpu_custom_call.1} parent=1 // pred_region
      %40 = vsyncadd [#allocation7], 0
      %s41 = sshll.u32 %s2, 4
      %s42 = int_to_ptr.hbm [resolvable:$true] %s41
      %s43 = sshll.u32 [#allocation8], 4
      %s44 = int_to_ptr.vmem [resolvable:$true] %s43
      %49 = dma.hbm_to_vmem [thread:$0]  %s42, 9216, %s44, [#allocation7], 192, 192, 12
    $region13: #{tpu_custom_call.1} parent=1 // pred_fallthru
      _
    // Predicated region
    $region14: #{tpu_custom_call.1} parent=1 // pred_check
      _
    $region15: #{tpu_custom_call.1} parent=1 // pred_check_branch
      %51 = sbr.rel (0) target = $region17
    $region16: #{tpu_custom_call.1} parent=1 // pred_region
      %53 = dma.done [#allocation4], 8192
    $region17: #{tpu_custom_call.1} parent=1 // pred_fallthru
      _
    // Predicated region
    $region18: #{tpu_custom_call.1} parent=1 // pred_check
      _
    $region19: #{tpu_custom_call.1} parent=1 // pred_check_branch
      %55 = sbr.rel (0) target = $region21
    $region20: #{tpu_custom_call.1} parent=1 // pred_region
      %57 = dma.done [#allocation7], 9216
    $region21: #{tpu_custom_call.1} parent=1 // pred_fallthru
      _
    // Predicated region
    $region22: #{tpu_custom_call.1} parent=1 // pred_check
      _
    $region23: #{tpu_custom_call.1} parent=1 // pred_check_branch
      %59 = sbr.rel (0) target = $region25
    $region24: #{tpu_custom_call.1} parent=1 // pred_region
      %61 = dma.done [#allocation7], 9216
    $region25: #{tpu_custom_call.1} parent=1 // pred_fallthru
      _
    %63 = vst [vmem:[#allocation2] sm:$0xf] 0
    %64 = vst [vmem:[#allocation2 + $0x4] sm:$0xf] 0
    %65 = vst [vmem:[#allocation2 + $0x8] sm:$0xf] 0
    %66 = vst [vmem:[#allocation2 + $0xd8] sm:$0xf] 0
    %67 = vst [vmem:[#allocation2 + $0xdc] sm:$0xf] 0
    %68 = vst [vmem:[#allocation2 + $0xe0] sm:$0xf] 0
    %s69 = scalar_lea.vmem [#allocation2], 204
    %70 = vst [vmem:[%s69] sm:$0xf] 0
    %71 = vst [vmem:[%s69 + $0x4] sm:$0xf] 0
    %72 = vst [vmem:[%s69 + $0x8] sm:$0xf] 0
    %73 = vst [vmem:[%s69 + $0xd8] sm:$0xf] 0
    %74 = vst [vmem:[%s69 + $0xdc] sm:$0xf] 0
    %75 = vst [vmem:[%s69 + $0xe0] sm:$0xf] 0
    %76 = vst [vmem:[#allocation2 + $0x8] sm:$0xf] 0
    %77 = vst [vmem:[#allocation2 + $0x14] sm:$0xf] 0
    %78 = vst [vmem:[#allocation2 + $0x20] sm:$0xf] 0
    %79 = vst [vmem:[#allocation2 + $0x2c] sm:$0xf] 0
    %80 = vst [vmem:[#allocation2 + $0x38] sm:$0xf] 0
    %81 = vst [vmem:[#allocation2 + $0x44] sm:$0xf] 0
    %82 = vst [vmem:[#allocation2 + $0x50] sm:$0xf] 0
    %83 = vst [vmem:[#allocation2 + $0x5c] sm:$0xf] 0
    %84 = vst [vmem:[#allocation2 + $0x68] sm:$0xf] 0
    %85 = vst [vmem:[#allocation2 + $0x74] sm:$0xf] 0
    %86 = vst [vmem:[#allocation2 + $0x80] sm:$0xf] 0
    %87 = vst [vmem:[#allocation2 + $0x8c] sm:$0xf] 0
    %88 = vst [vmem:[#allocation2 + $0x98] sm:$0xf] 0
    %89 = vst [vmem:[#allocation2 + $0xa4] sm:$0xf] 0
    %90 = vst [vmem:[#allocation2 + $0xb0] sm:$0xf] 0
    %91 = vst [vmem:[#allocation2 + $0xbc] sm:$0xf] 0
    %92 = vst [vmem:[#allocation2 + $0xc8] sm:$0xf] 0
    %93 = vst [vmem:[#allocation2 + $0xd4] sm:$0xf] 0
    %94 = vst [vmem:[#allocation2 + $0xe0] sm:$0xf] 0
    %95 = vst [vmem:[#allocation2 + $0xec] sm:$0xf] 0
    %96 = vst [vmem:[#allocation2 + $0xf8] sm:$0xf] 0
    %97 = vst [vmem:[#allocation2 + $0x104] sm:$0xf] 0
    %98 = vst [vmem:[#allocation2 + $0x110] sm:$0xf] 0
    %99 = vst [vmem:[#allocation2 + $0x11c] sm:$0xf] 0
    %100 = vst [vmem:[#allocation2 + $0x128] sm:$0xf] 0
    %101 = vst [vmem:[#allocation2 + $0x134] sm:$0xf] 0
    %102 = vst [vmem:[#allocation2 + $0x140] sm:$0xf] 0
    %103 = vst [vmem:[#allocation2 + $0x14c] sm:$0xf] 0
    %104 = vst [vmem:[#allocation2 + $0x158] sm:$0xf] 0
    %105 = vst [vmem:[#allocation2 + $0x164] sm:$0xf] 0
    %106 = vst [vmem:[#allocation2 + $0x170] sm:$0xf] 0
    %107 = vst [vmem:[#allocation2 + $0x17c] sm:$0xf] 0
    %108 = vst [vmem:[#allocation2 + $0x188] sm:$0xf] 0
    %109 = vst [vmem:[#allocation2 + $0x194] sm:$0xf] 0
    %110 = vst [vmem:[#allocation2 + $0x1a0] sm:$0xf] 0
    %111 = vst [vmem:[#allocation2 + $0x1ac] sm:$0xf] 0
    %v112 = vld [vmem:[#allocation3] sm:$0xff]
    %v113 = vld [vmem:[#allocation3 + $0x8] sm:$0xff]
    %v114 = vld [vmem:[#allocation3 + $0x10] sm:$0xff]
    %v115 = vld [vmem:[#allocation3 + $0x18] sm:$0xff]
    %v116 = vld [vmem:[#allocation3 + $0x20] sm:$0xff]
    %v117 = vld [vmem:[#allocation3 + $0x28] sm:$0xff]
    %v118 = vld [vmem:[#allocation3 + $0x30] sm:$0xff]
    %v119 = vld [vmem:[#allocation3 + $0x38] sm:$0xff]
    %v120 = vld [vmem:[#allocation3 + $0x40] sm:$0xff]
    %v121 = vld [vmem:[#allocation3 + $0x48] sm:$0xff]
    %v122 = vld [vmem:[#allocation3 + $0x50] sm:$0xff]
    %v123 = vld [vmem:[#allocation3 + $0x58] sm:$0xff]
    %v124 = vld [vmem:[#allocation3 + $0x60] sm:$0xff]
    %v125 = vld [vmem:[#allocation3 + $0x68] sm:$0xff]
    %v126 = vld [vmem:[#allocation3 + $0x70] sm:$0xff]
    %v127 = vld [vmem:[#allocation3 + $0x78] sm:$0xff]
    %v128 = vld [vmem:[#allocation3 + $0x80] sm:$0xff]
    %v129 = vld [vmem:[#allocation3 + $0x88] sm:$0xff]
    %v130 = vld [vmem:[#allocation3 + $0x90] sm:$0xff]
    %v131 = vld [vmem:[#allocation3 + $0x98] sm:$0xff]
    %v132 = vld [vmem:[#allocation3 + $0xa0] sm:$0xff]
    %v133 = vld [vmem:[#allocation3 + $0xa8] sm:$0xff]
    %v134 = vld [vmem:[#allocation3 + $0xb0] sm:$0xff]
    %v135 = vld [vmem:[#allocation3 + $0xb8] sm:$0xff]
    %v136 = vld [vmem:[#allocation3 + $0xc0] sm:$0xff]
    %v137 = vld [vmem:[#allocation3 + $0xc8] sm:$0xff]
    %v138 = vld [vmem:[#allocation3 + $0xd0] sm:$0xff]
    %v139 = vld [vmem:[#allocation3 + $0xd8] sm:$0xff]
    %v140 = vld [vmem:[#allocation3 + $0xe0] sm:$0xff]
    %v141 = vld [vmem:[#allocation3 + $0xe8] sm:$0xff]
    %v142 = vld [vmem:[#allocation3 + $0xf0] sm:$0xff]
    %v143 = vld [vmem:[#allocation3 + $0xf8] sm:$0xff]
    %v144 = vld [vmem:[#allocation3 + $0x100] sm:$0xff]
    %v145 = vld [vmem:[#allocation3 + $0x108] sm:$0xff]
    %v146 = vld [vmem:[#allocation3 + $0x110] sm:$0xff]
    %v147 = vld [vmem:[#allocation3 + $0x118] sm:$0xff]
    %v148 = vld [vmem:[#allocation3 + $0x120] sm:$0xff]
    %v149 = vld [vmem:[#allocation3 + $0x128] sm:$0xff]
    %v150 = vld [vmem:[#allocation3 + $0x130] sm:$0xff]
    %v151 = vld [vmem:[#allocation3 + $0x138] sm:$0xff]
    %v152 = vld [vmem:[#allocation3 + $0x140] sm:$0xff]
    %v153 = vld [vmem:[#allocation3 + $0x148] sm:$0xff]
    %v154 = vld [vmem:[#allocation3 + $0x150] sm:$0xff]
    %v155 = vld [vmem:[#allocation3 + $0x158] sm:$0xff]
    %v156 = vld [vmem:[#allocation3 + $0x160] sm:$0xff]
    %v157 = vld [vmem:[#allocation3 + $0x168] sm:$0xff]
    %v158 = vld [vmem:[#allocation3 + $0x170] sm:$0xff]
    %v159 = vld [vmem:[#allocation3 + $0x178] sm:$0xff]
    %v160 = vld [vmem:[#allocation3 + $0x180] sm:$0xff]
    %v161 = vld [vmem:[#allocation3 + $0x188] sm:$0xff]
    %v162 = vld [vmem:[#allocation3 + $0x190] sm:$0xff]
    %v163 = vld [vmem:[#allocation3 + $0x198] sm:$0xff]
    %v164 = vld [vmem:[#allocation3 + $0x1a0] sm:$0xff]
    %v165 = vld [vmem:[#allocation3 + $0x1a8] sm:$0xff]
    %v166 = vld [vmem:[#allocation3 + $0x1b0] sm:$0xff]
    %v167 = vld [vmem:[#allocation3 + $0x1b8] sm:$0xff]
    %v168 = vld [vmem:[#allocation3 + $0x1c0] sm:$0xff]
    %v169 = vld [vmem:[#allocation3 + $0x1c8] sm:$0xff]
    %v170 = vld [vmem:[#allocation3 + $0x1d0] sm:$0xff]
    %v171 = vld [vmem:[#allocation3 + $0x1d8] sm:$0xff]
    %v172 = vld [vmem:[#allocation3 + $0x1e0] sm:$0xff]
    %v173 = vld [vmem:[#allocation3 + $0x1e8] sm:$0xff]
    %v174 = vld [vmem:[#allocation3 + $0x1f0] sm:$0xff]
    %v175 = vld [vmem:[#allocation3 + $0x1f8] sm:$0xff]
    %v176 = vpack.c.bf16 %v112, %v112
    %v177 = vpack.c.bf16 %v113, %v113
    %v178 = vpack.c.bf16 %v114, %v114
    %v179 = vpack.c.bf16 %v115, %v115
    %v180 = vpack.c.bf16 %v116, %v116
    %v181 = vpack.c.bf16 %v117, %v117
    %v182 = vpack.c.bf16 %v118, %v118
    %v183 = vpack.c.bf16 %v119, %v119
    %v184 = vpack.c.bf16 %v120, %v120
    %v185 = vpack.c.bf16 %v121, %v121
    %v186 = vpack.c.bf16 %v122, %v122
    %v187 = vpack.c.bf16 %v123, %v123
    %v188 = vpack.c.bf16 %v124, %v124
    %v189 = vpack.c.bf16 %v125, %v125
    %v190 = vpack.c.bf16 %v126, %v126
    %v191 = vpack.c.bf16 %v127, %v127
    %v192 = vpack.c.bf16 %v128, %v128
    %v193 = vpack.c.bf16 %v129, %v129
    %v194 = vpack.c.bf16 %v130, %v130
    %v195 = vpack.c.bf16 %v131, %v131
    %v196 = vpack.c.bf16 %v132, %v132
    %v197 = vpack.c.bf16 %v133, %v133
    %v198 = vpack.c.bf16 %v134, %v134
    %v199 = vpack.c.bf16 %v135, %v135
    %v200 = vpack.c.bf16 %v136, %v136
    %v201 = vpack.c.bf16 %v137, %v137
    %v202 = vpack.c.bf16 %v138, %v138
    %v203 = vpack.c.bf16 %v139, %v139
    %v204 = vpack.c.bf16 %v140, %v140
    %v205 = vpack.c.bf16 %v141, %v141
    %v206 = vpack.c.bf16 %v142, %v142
    %v207 = vpack.c.bf16 %v143, %v143
    %v208 = vpack.c.bf16 %v144, %v144
    %v209 = vpack.c.bf16 %v145, %v145
    %v210 = vpack.c.bf16 %v146, %v146
    %v211 = vpack.c.bf16 %v147, %v147
    %v212 = vpack.c.bf16 %v148, %v148
    %v213 = vpack.c.bf16 %v149, %v149
    %v214 = vpack.c.bf16 %v150, %v150
    %v215 = vpack.c.bf16 %v151, %v151
    %v216 = vpack.c.bf16 %v152, %v152
    %v217 = vpack.c.bf16 %v153, %v153
    %v218 = vpack.c.bf16 %v154, %v154
    %v219 = vpack.c.bf16 %v155, %v155
    %v220 = vpack.c.bf16 %v156, %v156
    %v221 = vpack.c.bf16 %v157, %v157
    %v222 = vpack.c.bf16 %v158, %v158
    %v223 = vpack.c.bf16 %v159, %v159
    %v224 = vpack.c.bf16 %v160, %v160
    %v225 = vpack.c.bf16 %v161, %v161
    %v226 = vpack.c.bf16 %v162, %v162
    %v227 = vpack.c.bf16 %v163, %v163
    %v228 = vpack.c.bf16 %v164, %v164
    %v229 = vpack.c.bf16 %v165, %v165
    %v230 = vpack.c.bf16 %v166, %v166
    %v231 = vpack.c.bf16 %v167, %v167
    %v232 = vpack.c.bf16 %v168, %v168
    %v233 = vpack.c.bf16 %v169, %v169
    %v234 = vpack.c.bf16 %v170, %v170
    %v235 = vpack.c.bf16 %v171, %v171
    %v236 = vpack.c.bf16 %v172, %v172
    %v237 = vpack.c.bf16 %v173, %v173
    %v238 = vpack.c.bf16 %v174, %v174
    %v239 = vpack.c.bf16 %v175, %v175
    %s240 = scalar_lea.vmem [#allocation2], 12
    %241 = vst [vmem:[%s240] sm:$0xf] %v176
    %242 = vst [vmem:[%s240 + $0x4] sm:$0xf] %v177
    %243 = vst [vmem:[%s240 + $0xc] sm:$0xf] %v178
    %244 = vst [vmem:[%s240 + $0x10] sm:$0xf] %v179
    %245 = vst [vmem:[%s240 + $0x18] sm:$0xf] %v180
    %246 = vst [vmem:[%s240 + $0x1c] sm:$0xf] %v181
    %247 = vst [vmem:[%s240 + $0x24] sm:$0xf] %v182
    %248 = vst [vmem:[%s240 + $0x28] sm:$0xf] %v183
    %249 = vst [vmem:[%s240 + $0x30] sm:$0xf] %v184
    %250 = vst [vmem:[%s240 + $0x34] sm:$0xf] %v185
    %251 = vst [vmem:[%s240 + $0x3c] sm:$0xf] %v186
    %252 = vst [vmem:[%s240 + $0x40] sm:$0xf] %v187
    %253 = vst [vmem:[%s240 + $0x48] sm:$0xf] %v188
    %254 = vst [vmem:[%s240 + $0x4c] sm:$0xf] %v189
    %255 = vst [vmem:[%s240 + $0x54] sm:$0xf] %v190
    %256 = vst [vmem:[%s240 + $0x58] sm:$0xf] %v191
    %257 = vst [vmem:[%s240 + $0x60] sm:$0xf] %v192
    %258 = vst [vmem:[%s240 + $0x64] sm:$0xf] %v193
    %259 = vst [vmem:[%s240 + $0x6c] sm:$0xf] %v194
    %260 = vst [vmem:[%s240 + $0x70] sm:$0xf] %v195
    %261 = vst [vmem:[%s240 + $0x78] sm:$0xf] %v196
    %262 = vst [vmem:[%s240 + $0x7c] sm:$0xf] %v197
    %263 = vst [vmem:[%s240 + $0x84] sm:$0xf] %v198
    %264 = vst [vmem:[%s240 + $0x88] sm:$0xf] %v199
    %265 = vst [vmem:[%s240 + $0x90] sm:$0xf] %v200
    %266 = vst [vmem:[%s240 + $0x94] sm:$0xf] %v201
    %267 = vst [vmem:[%s240 + $0x9c] sm:$0xf] %v202
    %268 = vst [vmem:[%s240 + $0xa0] sm:$0xf] %v203
    %269 = vst [vmem:[%s240 + $0xa8] sm:$0xf] %v204
    %270 = vst [vmem:[%s240 + $0xac] sm:$0xf] %v205
    %271 = vst [vmem:[%s240 + $0xb4] sm:$0xf] %v206
    %272 = vst [vmem:[%s240 + $0xb8] sm:$0xf] %v207
    %273 = vst [vmem:[%s240 + $0xd8] sm:$0xf] %v208
    %274 = vst [vmem:[%s240 + $0xdc] sm:$0xf] %v209
    %275 = vst [vmem:[%s240 + $0xe4] sm:$0xf] %v210
    %276 = vst [vmem:[%s240 + $0xe8] sm:$0xf] %v211
    %277 = vst [vmem:[%s240 + $0xf0] sm:$0xf] %v212
    %278 = vst [vmem:[%s240 + $0xf4] sm:$0xf] %v213
    %279 = vst [vmem:[%s240 + $0xfc] sm:$0xf] %v214
    %280 = vst [vmem:[%s240 + $0x100] sm:$0xf] %v215
    %281 = vst [vmem:[%s240 + $0x108] sm:$0xf] %v216
    %282 = vst [vmem:[%s240 + $0x10c] sm:$0xf] %v217
    %283 = vst [vmem:[%s240 + $0x114] sm:$0xf] %v218
    %284 = vst [vmem:[%s240 + $0x118] sm:$0xf] %v219
    %285 = vst [vmem:[%s240 + $0x120] sm:$0xf] %v220
    %286 = vst [vmem:[%s240 + $0x124] sm:$0xf] %v221
    %287 = vst [vmem:[%s240 + $0x12c] sm:$0xf] %v222
    %288 = vst [vmem:[%s240 + $0x130] sm:$0xf] %v223
    %289 = vst [vmem:[%s240 + $0x138] sm:$0xf] %v224
    %290 = vst [vmem:[%s240 + $0x13c] sm:$0xf] %v225
    %291 = vst [vmem:[%s240 + $0x144] sm:$0xf] %v226
    %292 = vst [vmem:[%s240 + $0x148] sm:$0xf] %v227
    %293 = vst [vmem:[%s240 + $0x150] sm:$0xf] %v228
    %294 = vst [vmem:[%s240 + $0x154] sm:$0xf] %v229
    %295 = vst [vmem:[%s240 + $0x15c] sm:$0xf] %v230
    %296 = vst [vmem:[%s240 + $0x160] sm:$0xf] %v231
    %297 = vst [vmem:[%s240 + $0x168] sm:$0xf] %v232
    %298 = vst [vmem:[%s240 + $0x16c] sm:$0xf] %v233
    %299 = vst [vmem:[%s240 + $0x174] sm:$0xf] %v234
    %300 = vst [vmem:[%s240 + $0x178] sm:$0xf] %v235
    %301 = vst [vmem:[%s240 + $0x180] sm:$0xf] %v236
    %302 = vst [vmem:[%s240 + $0x184] sm:$0xf] %v237
    %303 = vst [vmem:[%s240 + $0x18c] sm:$0xf] %v238
    %304 = vst [vmem:[%s240 + $0x190] sm:$0xf] %v239
    %v305 = vld [vmem:[#allocation2] sm:$0xf]
    %v306 = vld [vmem:[#allocation2 + $0x4] sm:$0xf]
    %v307 = vld [vmem:[#allocation2 + $0x8] sm:$0xf]
    %v308 = vld [vmem:[#allocation2 + $0xc] sm:$0xf]
    %v309 = vld [vmem:[#allocation2 + $0x10] sm:$0xf]
    %v310 = vld [vmem:[#allocation2 + $0x14] sm:$0xf]
    %v311 = vld [vmem:[#allocation2 + $0x18] sm:$0xf]
    %v312 = vld [vmem:[#allocation2 + $0x1c] sm:$0xf]
    %v313 = vld [vmem:[#allocation2 + $0x20] sm:$0xf]
    %v314 = vld [vmem:[#allocation2 + $0x24] sm:$0xf]
    %v315 = vld [vmem:[#allocation2 + $0x28] sm:$0xf]
    %v316 = vld [vmem:[#allocation2 + $0x2c] sm:$0xf]
    %v317 = vld [vmem:[#allocation2 + $0x30] sm:$0xf]
    %v318 = vld [vmem:[#allocation2 + $0x34] sm:$0xf]
    %v319 = vld [vmem:[#allocation2 + $0x38] sm:$0xf]
    %v320 = vld [vmem:[#allocation2 + $0x3c] sm:$0xf]
    %v321 = vld [vmem:[#allocation2 + $0x40] sm:$0xf]
    %v322 = vld [vmem:[#allocation2 + $0x44] sm:$0xf]
    %v323 = vld [vmem:[#allocation2 + $0x48] sm:$0xf]
    %v324 = vld [vmem:[#allocation2 + $0x4c] sm:$0xf]
    %v325 = vld [vmem:[#allocation2 + $0x50] sm:$0xf]
    %v326 = vld [vmem:[#allocation2 + $0x54] sm:$0xf]
    %v327 = vld [vmem:[#allocation2 + $0x58] sm:$0xf]
    %v328 = vld [vmem:[#allocation2 + $0x5c] sm:$0xf]
    %v329 = vld [vmem:[#allocation2 + $0x60] sm:$0xf]
    %v330 = vld [vmem:[#allocation2 + $0x64] sm:$0xf]
    %v331 = vld [vmem:[#allocation2 + $0x68] sm:$0xf]
    %v332 = vld [vmem:[#allocation2 + $0x6c] sm:$0xf]
    %v333 = vld [vmem:[#allocation2 + $0x70] sm:$0xf]
    %v334 = vld [vmem:[#allocation2 + $0x74] sm:$0xf]
    %v335 = vld [vmem:[#allocation2 + $0x78] sm:$0xf]
    %v336 = vld [vmem:[#allocation2 + $0x7c] sm:$0xf]
    %v337 = vld [vmem:[#allocation2 + $0x80] sm:$0xf]
    %v338 = vld [vmem:[#allocation2 + $0x84] sm:$0xf]
    %v339 = vld [vmem:[#allocation2 + $0x88] sm:$0xf]
    %v340 = vld [vmem:[#allocation2 + $0x8c] sm:$0xf]
    %v341 = vld [vmem:[#allocation2 + $0x90] sm:$0xf]
    %v342 = vld [vmem:[#allocation2 + $0x94] sm:$0xf]
    %v343 = vld [vmem:[#allocation2 + $0x98] sm:$0xf]
    %v344 = vld [vmem:[#allocation2 + $0x9c] sm:$0xf]
    %v345 = vld [vmem:[#allocation2 + $0xa0] sm:$0xf]
    %v346 = vld [vmem:[#allocation2 + $0xa4] sm:$0xf]
    %v347 = vld [vmem:[#allocation2 + $0xa8] sm:$0xf]
    %v348 = vld [vmem:[#allocation2 + $0xac] sm:$0xf]
    %v349 = vld [vmem:[#allocation2 + $0xb0] sm:$0xf]
    %v350 = vld [vmem:[#allocation2 + $0xb4] sm:$0xf]
    %v351 = vld [vmem:[#allocation2 + $0xb8] sm:$0xf]
    %v352 = vld [vmem:[#allocation2 + $0xbc] sm:$0xf]
    %v353 = vld [vmem:[#allocation2 + $0xd8] sm:$0xf]
    %v354 = vld [vmem:[#allocation2 + $0xdc] sm:$0xf]
    %v355 = vld [vmem:[#allocation2 + $0xe0] sm:$0xf]
    %v356 = vld [vmem:[#allocation2 + $0xe4] sm:$0xf]
    %v357 = vld [vmem:[#allocation2 + $0xe8] sm:$0xf]
    %v358 = vld [vmem:[#allocation2 + $0xec] sm:$0xf]
    %v359 = vld [vmem:[#allocation2 + $0xf0] sm:$0xf]
    %v360 = vld [vmem:[#allocation2 + $0xf4] sm:$0xf]
    %v361 = vld [vmem:[#allocation2 + $0xf8] sm:$0xf]
    %v362 = vld [vmem:[#allocation2 + $0xfc] sm:$0xf]
    %v363 = vld [vmem:[#allocation2 + $0x100] sm:$0xf]
    %v364 = vld [vmem:[#allocation2 + $0x104] sm:$0xf]
    %v365 = vld [vmem:[#allocation2 + $0x108] sm:$0xf]
    %v366 = vld [vmem:[#allocation2 + $0x10c] sm:$0xf]
    %v367 = vld [vmem:[#allocation2 + $0x110] sm:$0xf]
    %v368 = vld [vmem:[#allocation2 + $0x114] sm:$0xf]
    %v369 = vld [vmem:[#allocation2 + $0x118] sm:$0xf]
    %v370 = vld [vmem:[#allocation2 + $0x11c] sm:$0xf]
    %v371 = vld [vmem:[#allocation2 + $0x120] sm:$0xf]
    %v372 = vld [vmem:[#allocation2 + $0x124] sm:$0xf]
    %v373 = vld [vmem:[#allocation2 + $0x128] sm:$0xf]
    %v374 = vld [vmem:[#allocation2 + $0x12c] sm:$0xf]
    %v375 = vld [vmem:[#allocation2 + $0x130] sm:$0xf]
    %v376 = vld [vmem:[#allocation2 + $0x134] sm:$0xf]
    %v377 = vld [vmem:[#allocation2 + $0x138] sm:$0xf]
    %v378 = vld [vmem:[#allocation2 + $0x13c] sm:$0xf]
    %v379 = vld [vmem:[#allocation2 + $0x140] sm:$0xf]
    %v380 = vld [vmem:[#allocation2 + $0x144] sm:$0xf]
    %v381 = vld [vmem:[#allocation2 + $0x148] sm:$0xf]
    %v382 = vld [vmem:[#allocation2 + $0x14c] sm:$0xf]
    %v383 = vld [vmem:[#allocation2 + $0x150] sm:$0xf]
    %v384 = vld [vmem:[#allocation2 + $0x154] sm:$0xf]
    %v385 = vld [vmem:[#allocation2 + $0x158] sm:$0xf]
    %v386 = vld [vmem:[#allocation2 + $0x15c] sm:$0xf]
    %v387 = vld [vmem:[#allocation2 + $0x160] sm:$0xf]
    %v388 = vld [vmem:[#allocation2 + $0x164] sm:$0xf]
    %v389 = vld [vmem:[#allocation2 + $0x168] sm:$0xf]
    %v390 = vld [vmem:[#allocation2 + $0x16c] sm:$0xf]
    %v391 = vld [vmem:[#allocation2 + $0x170] sm:$0xf]
    %v392 = vld [vmem:[#allocation2 + $0x174] sm:$0xf]
    %v393 = vld [vmem:[#allocation2 + $0x178] sm:$0xf]
    %v394 = vld [vmem:[#allocation2 + $0x17c] sm:$0xf]
    %v395 = vld [vmem:[#allocation2 + $0x180] sm:$0xf]
    %v396 = vld [vmem:[#allocation2 + $0x184] sm:$0xf]
    %v397 = vld [vmem:[#allocation2 + $0x188] sm:$0xf]
    %v398 = vld [vmem:[#allocation2 + $0x18c] sm:$0xf]
    %v399 = vld [vmem:[#allocation2 + $0x190] sm:$0xf]
    %v400 = vld [vmem:[#allocation2 + $0x194] sm:$0xf]
    %v401 = vld [vmem:[#allocation6] sm:$0xff]
    %v402 = vld [vmem:[#allocation6 + $0x8] sm:$0xf]
    %v403 = vld [vmem:[#allocation6 + $0xc] sm:$0xff]
    %v404 = vld [vmem:[#allocation6 + $0x14] sm:$0xf]
    %v405 = vld [vmem:[#allocation6 + $0x18] sm:$0xff]
    %v406 = vld [vmem:[#allocation6 + $0x20] sm:$0xf]
    %v407 = vld [vmem:[#allocation6 + $0x24] sm:$0xff]
    %v408 = vld [vmem:[#allocation6 + $0x2c] sm:$0xf]
    %v409 = vld [vmem:[#allocation6 + $0x30] sm:$0xff]
    %v410 = vld [vmem:[#allocation6 + $0x38] sm:$0xf]
    %v411 = vld [vmem:[#allocation6 + $0x3c] sm:$0xff]
    %v412 = vld [vmem:[#allocation6 + $0x44] sm:$0xf]
    %v413 = vld [vmem:[#allocation6 + $0x48] sm:$0xff]
    %v414 = vld [vmem:[#allocation6 + $0x50] sm:$0xf]
    %v415 = vld [vmem:[#allocation6 + $0x54] sm:$0xff]
    %v416 = vld [vmem:[#allocation6 + $0x5c] sm:$0xf]
    %v417 = vld [vmem:[#allocation6 + $0x60] sm:$0xff]
    %v418 = vld [vmem:[#allocation6 + $0x68] sm:$0xf]
    %v419 = vld [vmem:[#allocation6 + $0x6c] sm:$0xff]
    %v420 = vld [vmem:[#allocation6 + $0x74] sm:$0xf]
    %v421 = vld [vmem:[#allocation6 + $0x78] sm:$0xff]
    %v422 = vld [vmem:[#allocation6 + $0x80] sm:$0xf]
    %v423 = vld [vmem:[#allocation6 + $0x84] sm:$0xff]
    %v424 = vld [vmem:[#allocation6 + $0x8c] sm:$0xf]
    %v425 = vld [vmem:[#allocation6 + $0x90] sm:$0xff]
    %v426 = vld [vmem:[#allocation6 + $0x98] sm:$0xf]
    %v427 = vld [vmem:[#allocation6 + $0x9c] sm:$0xff]
    %v428 = vld [vmem:[#allocation6 + $0xa4] sm:$0xf]
    %v429 = vld [vmem:[#allocation6 + $0xa8] sm:$0xff]
    %v430 = vld [vmem:[#allocation6 + $0xb0] sm:$0xf]
    %v431 = vld [vmem:[#allocation6 + $0xb4] sm:$0xff]
    %v432 = vld [vmem:[#allocation6 + $0xbc] sm:$0xf]
    %v529 = vunpack.c.l.b16 %v305
    %v530 = vunpack.c.l.b16 %v306
    %v531 = vunpack.c.l.b16 %v307
    %v532 = vunpack.c.l.b16 %v308
    %v533 = vunpack.c.l.b16 %v309
    %v534 = vunpack.c.l.b16 %v310
    %v535 = vunpack.c.l.b16 %v311
    %v536 = vunpack.c.l.b16 %v312
    %v537 = vunpack.c.l.b16 %v313
    %v538 = vunpack.c.l.b16 %v314
    %v539 = vunpack.c.l.b16 %v315
    %v540 = vunpack.c.l.b16 %v316
    %v541 = vunpack.c.l.b16 %v317
    %v542 = vunpack.c.l.b16 %v318
    %v543 = vunpack.c.l.b16 %v319
    %v544 = vunpack.c.l.b16 %v320
    %v545 = vunpack.c.l.b16 %v321
    %v546 = vunpack.c.l.b16 %v322
    %v547 = vunpack.c.l.b16 %v323
    %v548 = vunpack.c.l.b16 %v324
    %v549 = vunpack.c.l.b16 %v325
    %v550 = vunpack.c.l.b16 %v326
    %v551 = vunpack.c.l.b16 %v327
    %v552 = vunpack.c.l.b16 %v328
    %v553 = vunpack.c.l.b16 %v329
    %v554 = vunpack.c.l.b16 %v330
    %v555 = vunpack.c.l.b16 %v331
    %v556 = vunpack.c.l.b16 %v332
    %v557 = vunpack.c.l.b16 %v333
    %v558 = vunpack.c.l.b16 %v334
    %v559 = vunpack.c.l.b16 %v335
    %v560 = vunpack.c.l.b16 %v336
    %v561 = vunpack.c.l.b16 %v337
    %v562 = vunpack.c.l.b16 %v338
    %v563 = vunpack.c.l.b16 %v339
    %v564 = vunpack.c.l.b16 %v340
    %v565 = vunpack.c.l.b16 %v341
    %v566 = vunpack.c.l.b16 %v342
    %v567 = vunpack.c.l.b16 %v343
    %v568 = vunpack.c.l.b16 %v344
    %v569 = vunpack.c.l.b16 %v345
    %v570 = vunpack.c.l.b16 %v346
    %v571 = vunpack.c.l.b16 %v347
    %v572 = vunpack.c.l.b16 %v348
    %v573 = vunpack.c.l.b16 %v349
    %v574 = vunpack.c.l.b16 %v350
    %v575 = vunpack.c.l.b16 %v351
    %v576 = vunpack.c.l.b16 %v352
    %v577 = vunpack.c.l.b16 %v353
    %v578 = vunpack.c.l.b16 %v354
    %v579 = vunpack.c.l.b16 %v355
    %v580 = vunpack.c.l.b16 %v356
    %v581 = vunpack.c.l.b16 %v357
    %v582 = vunpack.c.l.b16 %v358
    %v583 = vunpack.c.l.b16 %v359
    %v584 = vunpack.c.l.b16 %v360
    %v585 = vunpack.c.l.b16 %v361
    %v586 = vunpack.c.l.b16 %v362
    %v587 = vunpack.c.l.b16 %v363
    %v588 = vunpack.c.l.b16 %v364
    %v589 = vunpack.c.l.b16 %v365
    %v590 = vunpack.c.l.b16 %v366
    %v591 = vunpack.c.l.b16 %v367
    %v592 = vunpack.c.l.b16 %v368
    %v593 = vunpack.c.l.b16 %v369
    %v594 = vunpack.c.l.b16 %v370
    %v595 = vunpack.c.l.b16 %v371
    %v596 = vunpack.c.l.b16 %v372
    %v597 = vunpack.c.l.b16 %v373
    %v598 = vunpack.c.l.b16 %v374
    %v599 = vunpack.c.l.b16 %v375
    %v600 = vunpack.c.l.b16 %v376
    %v601 = vunpack.c.l.b16 %v377
    %v602 = vunpack.c.l.b16 %v378
    %v603 = vunpack.c.l.b16 %v379
    %v604 = vunpack.c.l.b16 %v380
    %v605 = vunpack.c.l.b16 %v381
    %v606 = vunpack.c.l.b16 %v382
    %v607 = vunpack.c.l.b16 %v383
    %v608 = vunpack.c.l.b16 %v384
    %v609 = vunpack.c.l.b16 %v385
    %v610 = vunpack.c.l.b16 %v386
    %v611 = vunpack.c.l.b16 %v387
    %v612 = vunpack.c.l.b16 %v388
    %v613 = vunpack.c.l.b16 %v389
    %v614 = vunpack.c.l.b16 %v390
    %v615 = vunpack.c.l.b16 %v391
    %v616 = vunpack.c.l.b16 %v392
    %v617 = vunpack.c.l.b16 %v393
    %v618 = vunpack.c.l.b16 %v394
    %v619 = vunpack.c.l.b16 %v395
    %v620 = vunpack.c.l.b16 %v396
    %v621 = vunpack.c.l.b16 %v397
    %v622 = vunpack.c.l.b16 %v398
    %v623 = vunpack.c.l.b16 %v399
    %v624 = vunpack.c.l.b16 %v400
    %v625 = vpack.c.b16 %v530, %v529
    %v626 = vpack.c.b16 %v532, %v531
    %v627 = vpack.c.b16 %v534, %v533
    %v628 = vpack.c.b16 %v536, %v535
    %v629 = vpack.c.b16 %v538, %v537
    %v630 = vpack.c.b16 %v540, %v539
    %v631 = vpack.c.b16 %v542, %v541
    %v632 = vpack.c.b16 %v544, %v543
    %v633 = vpack.c.b16 %v546, %v545
    %v634 = vpack.c.b16 %v548, %v547
    %v635 = vpack.c.b16 %v550, %v549
    %v636 = vpack.c.b16 %v552, %v551
    %v637 = vpack.c.b16 %v554, %v553
    %v638 = vpack.c.b16 %v556, %v555
    %v639 = vpack.c.b16 %v558, %v557
    %v640 = vpack.c.b16 %v560, %v559
    %v641 = vpack.c.b16 %v562, %v561
    %v642 = vpack.c.b16 %v564, %v563
    %v643 = vpack.c.b16 %v566, %v565
    %v644 = vpack.c.b16 %v568, %v567
    %v645 = vpack.c.b16 %v570, %v569
    %v646 = vpack.c.b16 %v572, %v571
    %v647 = vpack.c.b16 %v574, %v573
    %v648 = vpack.c.b16 %v576, %v575
    %v649 = vpack.c.b16 %v578, %v577
    %v650 = vpack.c.b16 %v580, %v579
    %v651 = vpack.c.b16 %v582, %v581
    %v652 = vpack.c.b16 %v584, %v583
    %v653 = vpack.c.b16 %v586, %v585
    %v654 = vpack.c.b16 %v588, %v587
    %v655 = vpack.c.b16 %v590, %v589
    %v656 = vpack.c.b16 %v592, %v591
    %v657 = vpack.c.b16 %v594, %v593
    %v658 = vpack.c.b16 %v596, %v595
    %v659 = vpack.c.b16 %v598, %v597
    %v660 = vpack.c.b16 %v600, %v599
    %v661 = vpack.c.b16 %v602, %v601
    %v662 = vpack.c.b16 %v604, %v603
    %v663 = vpack.c.b16 %v606, %v605
    %v664 = vpack.c.b16 %v608, %v607
    %v665 = vpack.c.b16 %v610, %v609
    %v666 = vpack.c.b16 %v612, %v611
    %v667 = vpack.c.b16 %v614, %v613
    %v668 = vpack.c.b16 %v616, %v615
    %v669 = vpack.c.b16 %v618, %v617
    %v670 = vpack.c.b16 %v620, %v619
    %v671 = vpack.c.b16 %v622, %v621
    %v672 = vpack.c.b16 %v624, %v623
    %v753 = vunpack.c.l.b16 %v401
    %v754 = vunpack.c.h.b16 %v401
    %v755 = vunpack.c.l.b16 %v402
    %v756 = vunpack.c.l.b16 %v403
    %v757 = vunpack.c.h.b16 %v403
    %v758 = vunpack.c.l.b16 %v404
    %v759 = vunpack.c.l.b16 %v405
    %v760 = vunpack.c.h.b16 %v405
    %v761 = vunpack.c.l.b16 %v406
    %v762 = vunpack.c.l.b16 %v407
    %v763 = vunpack.c.h.b16 %v407
    %v764 = vunpack.c.l.b16 %v408
    %v765 = vunpack.c.l.b16 %v409
    %v766 = vunpack.c.h.b16 %v409
    %v767 = vunpack.c.l.b16 %v410
    %v768 = vunpack.c.l.b16 %v411
    %v769 = vunpack.c.h.b16 %v411
    %v770 = vunpack.c.l.b16 %v412
    %v771 = vunpack.c.l.b16 %v413
    %v772 = vunpack.c.h.b16 %v413
    %v773 = vunpack.c.l.b16 %v414
    %v774 = vunpack.c.l.b16 %v415
    %v775 = vunpack.c.h.b16 %v415
    %v776 = vunpack.c.l.b16 %v416
    %v777 = vunpack.c.l.b16 %v417
    %v778 = vunpack.c.h.b16 %v417
    %v779 = vunpack.c.l.b16 %v418
    %v780 = vunpack.c.l.b16 %v419
    %v781 = vunpack.c.h.b16 %v419
    %v782 = vunpack.c.l.b16 %v420
    %v783 = vunpack.c.l.b16 %v421
    %v784 = vunpack.c.h.b16 %v421
    %v785 = vunpack.c.l.b16 %v422
    %v786 = vunpack.c.l.b16 %v423
    %v787 = vunpack.c.h.b16 %v423
    %v788 = vunpack.c.l.b16 %v424
    %v789 = vunpack.c.l.b16 %v425
    %v790 = vunpack.c.h.b16 %v425
    %v791 = vunpack.c.l.b16 %v426
    %v792 = vunpack.c.l.b16 %v427
    %v793 = vunpack.c.h.b16 %v427
    %v794 = vunpack.c.l.b16 %v428
    %v795 = vunpack.c.l.b16 %v429
    %v796 = vunpack.c.h.b16 %v429
    %v797 = vunpack.c.l.b16 %v430
    %v798 = vunpack.c.l.b16 %v431
    %v799 = vunpack.c.h.b16 %v431
    %v800 = vunpack.c.l.b16 %v432
    %v801 = vpack.c.b16 %v756, %v753
    %v802 = vpack.c.b16 %v757, %v754
    %v803 = vpack.c.b16 %v758, %v755
    %v804 = vpack.c.b16 %v762, %v759
    %v805 = vpack.c.b16 %v763, %v760
    %v806 = vpack.c.b16 %v764, %v761
    %v807 = vpack.c.b16 %v768, %v765
    %v808 = vpack.c.b16 %v769, %v766
    %v809 = vpack.c.b16 %v770, %v767
    %v810 = vpack.c.b16 %v774, %v771
    %v811 = vpack.c.b16 %v775, %v772
    %v812 = vpack.c.b16 %v776, %v773
    %v813 = vpack.c.b16 %v780, %v777
    %v814 = vpack.c.b16 %v781, %v778
    %v815 = vpack.c.b16 %v782, %v779
    %v816 = vpack.c.b16 %v786, %v783
    %v817 = vpack.c.b16 %v787, %v784
    %v818 = vpack.c.b16 %v788, %v785
    %v819 = vpack.c.b16 %v792, %v789
    %v820 = vpack.c.b16 %v793, %v790
    %v821 = vpack.c.b16 %v794, %v791
    %v822 = vpack.c.b16 %v798, %v795
    %v823 = vpack.c.b16 %v799, %v796
    %v824 = vpack.c.b16 %v800, %v797
    %849 = vmatpush.bf16.msra.mxu0 %v822
    %850 = vmatpush.bf16.msra.mxu0 %v819
    %851 = vmatpush.bf16.msra.mxu0 %v816
    %852 = vmatpush.bf16.msra.mxu0 %v813
    %853 = vmatpush.bf16.msra.mxu0 %v810
    %854 = vmatpush.bf16.msra.mxu0 %v807
    %855 = vmatpush.bf16.msra.mxu0 %v804
    %856 = vmatpush.bf16.msra.mxu0 %v801
    %857 = vmatmul.bf16.gmra.mxu0 %v625
    %v858 = vpop.f32.mrf.mxu0
    %v859 = vadd.f32 0.0, %v858
    %v860 = vpop.f32.mrf.mxu0
    %v861 = vadd.f32 0.0, %v860
    %862 = vmatmul.bf16.gmra.mxu0 %v626
    %v863 = vpop.f32.mrf.mxu0
    %v864 = vadd.f32 0.0, %v863
    %v865 = vpop.f32.mrf.mxu0
    %v866 = vadd.f32 0.0, %v865
    %867 = vmatmul.bf16.gmra.mxu0 %v627
    %v868 = vpop.f32.mrf.mxu0
    %v869 = vadd.f32 0.0, %v868
    %v870 = vpop.f32.mrf.mxu0
    %v871 = vadd.f32 0.0, %v870
    %872 = vmatmul.bf16.gmra.mxu0 %v628
    %v873 = vpop.f32.mrf.mxu0
    %v874 = vadd.f32 0.0, %v873
    %v875 = vpop.f32.mrf.mxu0
    %v876 = vadd.f32 0.0, %v875
    %877 = vmatmul.bf16.gmra.mxu0 %v629
    %v878 = vpop.f32.mrf.mxu0
    %v879 = vadd.f32 0.0, %v878
    %v880 = vpop.f32.mrf.mxu0
    %v881 = vadd.f32 0.0, %v880
    %882 = vmatmul.bf16.gmra.mxu0 %v630
    %v883 = vpop.f32.mrf.mxu0
    %v884 = vadd.f32 0.0, %v883
    %v885 = vpop.f32.mrf.mxu0
    %v886 = vadd.f32 0.0, %v885
    %887 = vmatmul.bf16.gmra.mxu0 %v631
    %v888 = vpop.f32.mrf.mxu0
    %v889 = vadd.f32 0.0, %v888
    %v890 = vpop.f32.mrf.mxu0
    %v891 = vadd.f32 0.0, %v890
    %892 = vmatmul.bf16.gmra.mxu0 %v632
    %v893 = vpop.f32.mrf.mxu0
    %v894 = vadd.f32 0.0, %v893
    %v895 = vpop.f32.mrf.mxu0
    %v896 = vadd.f32 0.0, %v895
    %897 = vmatmul.bf16.gmra.mxu0 %v633
    %v898 = vpop.f32.mrf.mxu0
    %v899 = vadd.f32 0.0, %v898
    %v900 = vpop.f32.mrf.mxu0
    %v901 = vadd.f32 0.0, %v900
    %902 = vmatmul.bf16.gmra.mxu0 %v634
    %v903 = vpop.f32.mrf.mxu0
    %v904 = vadd.f32 0.0, %v903
    %v905 = vpop.f32.mrf.mxu0
    %v906 = vadd.f32 0.0, %v905
    %907 = vmatmul.bf16.gmra.mxu0 %v635
    %v908 = vpop.f32.mrf.mxu0
    %v909 = vadd.f32 0.0, %v908
    %v910 = vpop.f32.mrf.mxu0
    %v911 = vadd.f32 0.0, %v910
    %912 = vmatmul.bf16.gmra.mxu0 %v636
    %v913 = vpop.f32.mrf.mxu0
    %v914 = vadd.f32 0.0, %v913
    %v915 = vpop.f32.mrf.mxu0
    %v916 = vadd.f32 0.0, %v915
    %917 = vmatmul.bf16.gmra.mxu0 %v637
    %v918 = vpop.f32.mrf.mxu0
    %v919 = vadd.f32 0.0, %v918
    %v920 = vpop.f32.mrf.mxu0
    %v921 = vadd.f32 0.0, %v920
    %922 = vmatmul.bf16.gmra.mxu0 %v638
    %v923 = vpop.f32.mrf.mxu0
    %v924 = vadd.f32 0.0, %v923
    %v925 = vpop.f32.mrf.mxu0
    %v926 = vadd.f32 0.0, %v925
    %927 = vmatmul.bf16.gmra.mxu0 %v639
    %v928 = vpop.f32.mrf.mxu0
    %v929 = vadd.f32 0.0, %v928
    %v930 = vpop.f32.mrf.mxu0
    %v931 = vadd.f32 0.0, %v930
    %932 = vmatmul.bf16.gmra.mxu0 %v640
    %v933 = vpop.f32.mrf.mxu0
    %v934 = vadd.f32 0.0, %v933
    %v935 = vpop.f32.mrf.mxu0
    %v936 = vadd.f32 0.0, %v935
    %937 = vmatmul.bf16.gmra.mxu0 %v641
    %v938 = vpop.f32.mrf.mxu0
    %v939 = vadd.f32 0.0, %v938
    %v940 = vpop.f32.mrf.mxu0
    %v941 = vadd.f32 0.0, %v940
    %942 = vmatmul.bf16.gmra.mxu0 %v642
    %v943 = vpop.f32.mrf.mxu0
    %v944 = vadd.f32 0.0, %v943
    %v945 = vpop.f32.mrf.mxu0
    %v946 = vadd.f32 0.0, %v945
    %947 = vmatmul.bf16.gmra.mxu0 %v643
    %v948 = vpop.f32.mrf.mxu0
    %v949 = vadd.f32 0.0, %v948
    %v950 = vpop.f32.mrf.mxu0
    %v951 = vadd.f32 0.0, %v950
    %952 = vmatmul.bf16.gmra.mxu0 %v644
    %v953 = vpop.f32.mrf.mxu0
    %v954 = vadd.f32 0.0, %v953
    %v955 = vpop.f32.mrf.mxu0
    %v956 = vadd.f32 0.0, %v955
    %957 = vmatmul.bf16.gmra.mxu0 %v645
    %v958 = vpop.f32.mrf.mxu0
    %v959 = vadd.f32 0.0, %v958
    %v960 = vpop.f32.mrf.mxu0
    %v961 = vadd.f32 0.0, %v960
    %962 = vmatmul.bf16.gmra.mxu0 %v646
    %v963 = vpop.f32.mrf.mxu0
    %v964 = vadd.f32 0.0, %v963
    %v965 = vpop.f32.mrf.mxu0
    %v966 = vadd.f32 0.0, %v965
    %967 = vmatmul.bf16.gmra.mxu0 %v647
    %v968 = vpop.f32.mrf.mxu0
    %v969 = vadd.f32 0.0, %v968
    %v970 = vpop.f32.mrf.mxu0
    %v971 = vadd.f32 0.0, %v970
    %972 = vmatmul.bf16.gmra.mxu0 %v648
    %v973 = vpop.f32.mrf.mxu0
    %v974 = vadd.f32 0.0, %v973
    %v975 = vpop.f32.mrf.mxu0
    %v976 = vadd.f32 0.0, %v975
    %977 = vmatmul.bf16.gmra.mxu0 %v649
    %v978 = vpop.f32.mrf.mxu0
    %v979 = vadd.f32 0.0, %v978
    %v980 = vpop.f32.mrf.mxu0
    %v981 = vadd.f32 0.0, %v980
    %982 = vmatmul.bf16.gmra.mxu0 %v650
    %v983 = vpop.f32.mrf.mxu0
    %v984 = vadd.f32 0.0, %v983
    %v985 = vpop.f32.mrf.mxu0
    %v986 = vadd.f32 0.0, %v985
    %987 = vmatmul.bf16.gmra.mxu0 %v651
    %v988 = vpop.f32.mrf.mxu0
    %v989 = vadd.f32 0.0, %v988
    %v990 = vpop.f32.mrf.mxu0
    %v991 = vadd.f32 0.0, %v990
    %992 = vmatmul.bf16.gmra.mxu0 %v652
    %v993 = vpop.f32.mrf.mxu0
    %v994 = vadd.f32 0.0, %v993
    %v995 = vpop.f32.mrf.mxu0
    %v996 = vadd.f32 0.0, %v995
    %997 = vmatmul.bf16.gmra.mxu0 %v653
    %v998 = vpop.f32.mrf.mxu0
    %v999 = vadd.f32 0.0, %v998
    %v1000 = vpop.f32.mrf.mxu0
    %v1001 = vadd.f32 0.0, %v1000
    %1002 = vmatmul.bf16.gmra.mxu0 %v654
    %v1003 = vpop.f32.mrf.mxu0
    %v1004 = vadd.f32 0.0, %v1003
    %v1005 = vpop.f32.mrf.mxu0
    %v1006 = vadd.f32 0.0, %v1005
    %1007 = vmatmul.bf16.gmra.mxu0 %v655
    %v1008 = vpop.f32.mrf.mxu0
    %v1009 = vadd.f32 0.0, %v1008
    %v1010 = vpop.f32.mrf.mxu0
    %v1011 = vadd.f32 0.0, %v1010
    %1012 = vmatmul.bf16.gmra.mxu0 %v656
    %v1013 = vpop.f32.mrf.mxu0
    %v1014 = vadd.f32 0.0, %v1013
    %v1015 = vpop.f32.mrf.mxu0
    %v1016 = vadd.f32 0.0, %v1015
    %1017 = vmatmul.bf16.gmra.mxu0 %v657
    %v1018 = vpop.f32.mrf.mxu0
    %v1019 = vadd.f32 0.0, %v1018
    %v1020 = vpop.f32.mrf.mxu0
    %v1021 = vadd.f32 0.0, %v1020
    %1022 = vmatmul.bf16.gmra.mxu0 %v658
    %v1023 = vpop.f32.mrf.mxu0
    %v1024 = vadd.f32 0.0, %v1023
    %v1025 = vpop.f32.mrf.mxu0
    %v1026 = vadd.f32 0.0, %v1025
    %1027 = vmatmul.bf16.gmra.mxu0 %v659
    %v1028 = vpop.f32.mrf.mxu0
    %v1029 = vadd.f32 0.0, %v1028
    %v1030 = vpop.f32.mrf.mxu0
    %v1031 = vadd.f32 0.0, %v1030
    %1032 = vmatmul.bf16.gmra.mxu0 %v660
    %v1033 = vpop.f32.mrf.mxu0
    %v1034 = vadd.f32 0.0, %v1033
    %v1035 = vpop.f32.mrf.mxu0
    %v1036 = vadd.f32 0.0, %v1035
    %1037 = vmatmul.bf16.gmra.mxu0 %v661
    %v1038 = vpop.f32.mrf.mxu0
    %v1039 = vadd.f32 0.0, %v1038
    %v1040 = vpop.f32.mrf.mxu0
    %v1041 = vadd.f32 0.0, %v1040
    %1042 = vmatmul.bf16.gmra.mxu0 %v662
    %v1043 = vpop.f32.mrf.mxu0
    %v1044 = vadd.f32 0.0, %v1043
    %v1045 = vpop.f32.mrf.mxu0
    %v1046 = vadd.f32 0.0, %v1045
    %1047 = vmatmul.bf16.gmra.mxu0 %v663
    %v1048 = vpop.f32.mrf.mxu0
    %v1049 = vadd.f32 0.0, %v1048
    %v1050 = vpop.f32.mrf.mxu0
    %v1051 = vadd.f32 0.0, %v1050
    %1052 = vmatmul.bf16.gmra.mxu0 %v664
    %v1053 = vpop.f32.mrf.mxu0
    %v1054 = vadd.f32 0.0, %v1053
    %v1055 = vpop.f32.mrf.mxu0
    %v1056 = vadd.f32 0.0, %v1055
    %1057 = vmatmul.bf16.gmra.mxu0 %v665
    %v1058 = vpop.f32.mrf.mxu0
    %v1059 = vadd.f32 0.0, %v1058
    %v1060 = vpop.f32.mrf.mxu0
    %v1061 = vadd.f32 0.0, %v1060
    %1062 = vmatmul.bf16.gmra.mxu0 %v666
    %v1063 = vpop.f32.mrf.mxu0
    %v1064 = vadd.f32 0.0, %v1063
    %v1065 = vpop.f32.mrf.mxu0
    %v1066 = vadd.f32 0.0, %v1065
    %1067 = vmatmul.bf16.gmra.mxu0 %v667
    %v1068 = vpop.f32.mrf.mxu0
    %v1069 = vadd.f32 0.0, %v1068
    %v1070 = vpop.f32.mrf.mxu0
    %v1071 = vadd.f32 0.0, %v1070
    %1072 = vmatmul.bf16.gmra.mxu0 %v668
    %v1073 = vpop.f32.mrf.mxu0
    %v1074 = vadd.f32 0.0, %v1073
    %v1075 = vpop.f32.mrf.mxu0
    %v1076 = vadd.f32 0.0, %v1075
    %1077 = vmatmul.bf16.gmra.mxu0 %v669
    %v1078 = vpop.f32.mrf.mxu0
    %v1079 = vadd.f32 0.0, %v1078
    %v1080 = vpop.f32.mrf.mxu0
    %v1081 = vadd.f32 0.0, %v1080
    %1082 = vmatmul.bf16.gmra.mxu0 %v670
    %v1083 = vpop.f32.mrf.mxu0
    %v1084 = vadd.f32 0.0, %v1083
    %v1085 = vpop.f32.mrf.mxu0
    %v1086 = vadd.f32 0.0, %v1085
    %1087 = vmatmul.bf16.gmra.mxu0 %v671
    %v1088 = vpop.f32.mrf.mxu0
    %v1089 = vadd.f32 0.0, %v1088
    %v1090 = vpop.f32.mrf.mxu0
    %v1091 = vadd.f32 0.0, %v1090
    %1092 = vmatmul.bf16.gmra.mxu0 %v672
    %v1093 = vpop.f32.mrf.mxu0
    %v1094 = vadd.f32 0.0, %v1093
    %v1095 = vpop.f32.mrf.mxu0
    %v1096 = vadd.f32 0.0, %v1095
    %1097 = vdwg.mxu0
    %1098 = vmatpush.bf16.msra.mxu0 %v823
    %1099 = vmatpush.bf16.msra.mxu0 %v820
    %1100 = vmatpush.bf16.msra.mxu0 %v817
    %1101 = vmatpush.bf16.msra.mxu0 %v814
    %1102 = vmatpush.bf16.msra.mxu0 %v811
    %1103 = vmatpush.bf16.msra.mxu0 %v808
    %1104 = vmatpush.bf16.msra.mxu0 %v805
    %1105 = vmatpush.bf16.msra.mxu0 %v802
    %1106 = vmatmul.bf16.gmra.mxu0 %v625
    %v1107 = vpop.f32.mrf.mxu0
    %v1108 = vadd.f32 0.0, %v1107
    %v1109 = vpop.f32.mrf.mxu0
    %v1110 = vadd.f32 0.0, %v1109
    %1111 = vmatmul.bf16.gmra.mxu0 %v626
    %v1112 = vpop.f32.mrf.mxu0
    %v1113 = vpop.f32.mrf.mxu0
    %v1114 = vadd.f32 0.0, %v1113
    %1115 = vmatmul.bf16.gmra.mxu0 %v627
    %v1116 = vpop.f32.mrf.mxu0
    %v1117 = vadd.f32 0.0, %v1116
    %v1118 = vpop.f32.mrf.mxu0
    %1119 = vmatmul.bf16.gmra.mxu0 %v628
    %v1120 = vpop.f32.mrf.mxu0
    %v1121 = vadd.f32 0.0, %v1120
    %v1122 = vpop.f32.mrf.mxu0
    %v1123 = vadd.f32 0.0, %v1122
    %1124 = vmatmul.bf16.gmra.mxu0 %v629
    %v1125 = vpop.f32.mrf.mxu0
    %v1126 = vpop.f32.mrf.mxu0
    %v1127 = vadd.f32 0.0, %v1126
    %1128 = vmatmul.bf16.gmra.mxu0 %v630
    %v1129 = vpop.f32.mrf.mxu0
    %v1130 = vadd.f32 0.0, %v1129
    %v1131 = vpop.f32.mrf.mxu0
    %1132 = vmatmul.bf16.gmra.mxu0 %v631
    %v1133 = vpop.f32.mrf.mxu0
    %v1134 = vadd.f32 0.0, %v1133
    %v1135 = vpop.f32.mrf.mxu0
    %v1136 = vadd.f32 0.0, %v1135
    %1137 = vmatmul.bf16.gmra.mxu0 %v632
    %v1138 = vpop.f32.mrf.mxu0
    %v1139 = vpop.f32.mrf.mxu0
    %v1140 = vadd.f32 0.0, %v1139
    %1141 = vmatmul.bf16.gmra.mxu0 %v633
    %v1142 = vpop.f32.mrf.mxu0
    %v1143 = vadd.f32 0.0, %v1142
    %v1144 = vpop.f32.mrf.mxu0
    %1145 = vmatmul.bf16.gmra.mxu0 %v634
    %v1146 = vpop.f32.mrf.mxu0
    %v1147 = vadd.f32 0.0, %v1146
    %v1148 = vpop.f32.mrf.mxu0
    %v1149 = vadd.f32 0.0, %v1148
    %1150 = vmatmul.bf16.gmra.mxu0 %v635
    %v1151 = vpop.f32.mrf.mxu0
    %v1152 = vpop.f32.mrf.mxu0
    %v1153 = vadd.f32 0.0, %v1152
    %1154 = vmatmul.bf16.gmra.mxu0 %v636
    %v1155 = vpop.f32.mrf.mxu0
    %v1156 = vadd.f32 0.0, %v1155
    %v1157 = vpop.f32.mrf.mxu0
    %1158 = vmatmul.bf16.gmra.mxu0 %v637
    %v1159 = vpop.f32.mrf.mxu0
    %v1160 = vadd.f32 0.0, %v1159
    %v1161 = vpop.f32.mrf.mxu0
    %v1162 = vadd.f32 0.0, %v1161
    %1163 = vmatmul.bf16.gmra.mxu0 %v638
    %v1164 = vpop.f32.mrf.mxu0
    %v1165 = vpop.f32.mrf.mxu0
    %v1166 = vadd.f32 0.0, %v1165
    %1167 = vmatmul.bf16.gmra.mxu0 %v639
    %v1168 = vpop.f32.mrf.mxu0
    %v1169 = vadd.f32 0.0, %v1168
    %v1170 = vpop.f32.mrf.mxu0
    %1171 = vmatmul.bf16.gmra.mxu0 %v640
    %v1172 = vpop.f32.mrf.mxu0
    %v1173 = vadd.f32 0.0, %v1172
    %v1174 = vpop.f32.mrf.mxu0
    %v1175 = vadd.f32 0.0, %v1174
    %1176 = vmatmul.bf16.gmra.mxu0 %v641
    %v1177 = vpop.f32.mrf.mxu0
    %v1178 = vpop.f32.mrf.mxu0
    %v1179 = vadd.f32 0.0, %v1178
    %1180 = vmatmul.bf16.gmra.mxu0 %v642
    %v1181 = vpop.f32.mrf.mxu0
    %v1182 = vadd.f32 0.0, %v1181
    %v1183 = vpop.f32.mrf.mxu0
    %1184 = vmatmul.bf16.gmra.mxu0 %v643
    %v1185 = vpop.f32.mrf.mxu0
    %v1186 = vadd.f32 0.0, %v1185
    %v1187 = vpop.f32.mrf.mxu0
    %v1188 = vadd.f32 0.0, %v1187
    %1189 = vmatmul.bf16.gmra.mxu0 %v644
    %v1190 = vpop.f32.mrf.mxu0
    %v1191 = vpop.f32.mrf.mxu0
    %v1192 = vadd.f32 0.0, %v1191
    %1193 = vmatmul.bf16.gmra.mxu0 %v645
    %v1194 = vpop.f32.mrf.mxu0
    %v1195 = vadd.f32 0.0, %v1194
    %v1196 = vpop.f32.mrf.mxu0
    %1197 = vmatmul.bf16.gmra.mxu0 %v646
    %v1198 = vpop.f32.mrf.mxu0
    %v1199 = vadd.f32 0.0, %v1198
    %v1200 = vpop.f32.mrf.mxu0
    %v1201 = vadd.f32 0.0, %v1200
    %1202 = vmatmul.bf16.gmra.mxu0 %v647
    %v1203 = vpop.f32.mrf.mxu0
    %v1204 = vpop.f32.mrf.mxu0
    %v1205 = vadd.f32 0.0, %v1204
    %1206 = vmatmul.bf16.gmra.mxu0 %v648
    %v1207 = vpop.f32.mrf.mxu0
    %v1208 = vadd.f32 0.0, %v1207
    %v1209 = vpop.f32.mrf.mxu0
    %1210 = vmatmul.bf16.gmra.mxu0 %v649
    %v1211 = vpop.f32.mrf.mxu0
    %v1212 = vadd.f32 0.0, %v1211
    %v1213 = vpop.f32.mrf.mxu0
    %v1214 = vadd.f32 0.0, %v1213
    %1215 = vmatmul.bf16.gmra.mxu0 %v650
    %v1216 = vpop.f32.mrf.mxu0
    %v1217 = vpop.f32.mrf.mxu0
    %v1218 = vadd.f32 0.0, %v1217
    %1219 = vmatmul.bf16.gmra.mxu0 %v651
    %v1220 = vpop.f32.mrf.mxu0
    %v1221 = vadd.f32 0.0, %v1220
    %v1222 = vpop.f32.mrf.mxu0
    %1223 = vmatmul.bf16.gmra.mxu0 %v652
    %v1224 = vpop.f32.mrf.mxu0
    %v1225 = vadd.f32 0.0, %v1224
    %v1226 = vpop.f32.mrf.mxu0
    %v1227 = vadd.f32 0.0, %v1226
    %1228 = vmatmul.bf16.gmra.mxu0 %v653
    %v1229 = vpop.f32.mrf.mxu0
    %v1230 = vpop.f32.mrf.mxu0
    %v1231 = vadd.f32 0.0, %v1230
    %1232 = vmatmul.bf16.gmra.mxu0 %v654
    %v1233 = vpop.f32.mrf.mxu0
    %v1234 = vadd.f32 0.0, %v1233
    %v1235 = vpop.f32.mrf.mxu0
    %1236 = vmatmul.bf16.gmra.mxu0 %v655
    %v1237 = vpop.f32.mrf.mxu0
    %v1238 = vadd.f32 0.0, %v1237
    %v1239 = vpop.f32.mrf.mxu0
    %v1240 = vadd.f32 0.0, %v1239
    %1241 = vmatmul.bf16.gmra.mxu0 %v656
    %v1242 = vpop.f32.mrf.mxu0
    %v1243 = vpop.f32.mrf.mxu0
    %v1244 = vadd.f32 0.0, %v1243
    %1245 = vmatmul.bf16.gmra.mxu0 %v657
    %v1246 = vpop.f32.mrf.mxu0
    %v1247 = vadd.f32 0.0, %v1246
    %v1248 = vpop.f32.mrf.mxu0
    %1249 = vmatmul.bf16.gmra.mxu0 %v658
    %v1250 = vpop.f32.mrf.mxu0
    %v1251 = vadd.f32 0.0, %v1250
    %v1252 = vpop.f32.mrf.mxu0
    %v1253 = vadd.f32 0.0, %v1252
    %1254 = vmatmul.bf16.gmra.mxu0 %v659
    %v1255 = vpop.f32.mrf.mxu0
    %v1256 = vpop.f32.mrf.mxu0
    %v1257 = vadd.f32 0.0, %v1256
    %1258 = vmatmul.bf16.gmra.mxu0 %v660
    %v1259 = vpop.f32.mrf.mxu0
    %v1260 = vadd.f32 0.0, %v1259
    %v1261 = vpop.f32.mrf.mxu0
    %1262 = vmatmul.bf16.gmra.mxu0 %v661
    %v1263 = vpop.f32.mrf.mxu0
    %v1264 = vadd.f32 0.0, %v1263
    %v1265 = vpop.f32.mrf.mxu0
    %v1266 = vadd.f32 0.0, %v1265
    %1267 = vmatmul.bf16.gmra.mxu0 %v662
    %v1268 = vpop.f32.mrf.mxu0
    %v1269 = vpop.f32.mrf.mxu0
    %v1270 = vadd.f32 0.0, %v1269
    %1271 = vmatmul.bf16.gmra.mxu0 %v663
    %v1272 = vpop.f32.mrf.mxu0
    %v1273 = vadd.f32 0.0, %v1272
    %v1274 = vpop.f32.mrf.mxu0
    %1275 = vmatmul.bf16.gmra.mxu0 %v664
    %v1276 = vpop.f32.mrf.mxu0
    %v1277 = vadd.f32 0.0, %v1276
    %v1278 = vpop.f32.mrf.mxu0
    %v1279 = vadd.f32 0.0, %v1278
    %1280 = vmatmul.bf16.gmra.mxu0 %v665
    %v1281 = vpop.f32.mrf.mxu0
    %v1282 = vpop.f32.mrf.mxu0
    %v1283 = vadd.f32 0.0, %v1282
    %1284 = vmatmul.bf16.gmra.mxu0 %v666
    %v1285 = vpop.f32.mrf.mxu0
    %v1286 = vadd.f32 0.0, %v1285
    %v1287 = vpop.f32.mrf.mxu0
    %1288 = vmatmul.bf16.gmra.mxu0 %v667
    %v1289 = vpop.f32.mrf.mxu0
    %v1290 = vadd.f32 0.0, %v1289
    %v1291 = vpop.f32.mrf.mxu0
    %v1292 = vadd.f32 0.0, %v1291
    %1293 = vmatmul.bf16.gmra.mxu0 %v668
    %v1294 = vpop.f32.mrf.mxu0
    %v1295 = vpop.f32.mrf.mxu0
    %v1296 = vadd.f32 0.0, %v1295
    %1297 = vmatmul.bf16.gmra.mxu0 %v669
    %v1298 = vpop.f32.mrf.mxu0
    %v1299 = vadd.f32 0.0, %v1298
    %v1300 = vpop.f32.mrf.mxu0
    %1301 = vmatmul.bf16.gmra.mxu0 %v670
    %v1302 = vpop.f32.mrf.mxu0
    %v1303 = vadd.f32 0.0, %v1302
    %v1304 = vpop.f32.mrf.mxu0
    %v1305 = vadd.f32 0.0, %v1304
    %1306 = vmatmul.bf16.gmra.mxu0 %v671
    %v1307 = vpop.f32.mrf.mxu0
    %v1308 = vpop.f32.mrf.mxu0
    %v1309 = vadd.f32 0.0, %v1308
    %1310 = vmatmul.bf16.gmra.mxu0 %v672
    %v1311 = vpop.f32.mrf.mxu0
    %v1312 = vadd.f32 0.0, %v1311
    %v1313 = vpop.f32.mrf.mxu0
    %1314 = vdwg.mxu0
    %1315 = vmatpush.bf16.msra.mxu0 %v824
    %1316 = vmatpush.bf16.msra.mxu0 %v821
    %1317 = vmatpush.bf16.msra.mxu0 %v818
    %1318 = vmatpush.bf16.msra.mxu0 %v815
    %1319 = vmatpush.bf16.msra.mxu0 %v812
    %1320 = vmatpush.bf16.msra.mxu0 %v809
    %1321 = vmatpush.bf16.msra.mxu0 %v806
    %1322 = vmatpush.bf16.msra.mxu0 %v803
    %1323 = vmatmul.bf16.gmra.mxu0 %v625
    %v1324 = vpop.f32.mrf.mxu0
    %v1325 = vadd.f32 0.0, %v1324
    %v1326 = vpop.f32.mrf.mxu0
    %v1327 = vadd.f32 0.0, %v1326
    %1328 = vmatmul.bf16.gmra.mxu0 %v626
    %v1329 = vpop.f32.mrf.mxu0
    %v1330 = vadd.f32 0.0, %v1329
    %v1331 = vpop.f32.mrf.mxu0
    %v1332 = vadd.f32 0.0, %v1331
    %1333 = vmatmul.bf16.gmra.mxu0 %v627
    %v1334 = vpop.f32.mrf.mxu0
    %v1335 = vadd.f32 0.0, %v1334
    %v1336 = vpop.f32.mrf.mxu0
    %v1337 = vadd.f32 0.0, %v1336
    %1338 = vmatmul.bf16.gmra.mxu0 %v628
    %v1339 = vpop.f32.mrf.mxu0
    %v1340 = vadd.f32 0.0, %v1339
    %v1341 = vpop.f32.mrf.mxu0
    %v1342 = vadd.f32 0.0, %v1341
    %1343 = vmatmul.bf16.gmra.mxu0 %v629
    %v1344 = vpop.f32.mrf.mxu0
    %v1345 = vadd.f32 0.0, %v1344
    %v1346 = vpop.f32.mrf.mxu0
    %v1347 = vadd.f32 0.0, %v1346
    %1348 = vmatmul.bf16.gmra.mxu0 %v630
    %v1349 = vpop.f32.mrf.mxu0
    %v1350 = vadd.f32 0.0, %v1349
    %v1351 = vpop.f32.mrf.mxu0
    %v1352 = vadd.f32 0.0, %v1351
    %1353 = vmatmul.bf16.gmra.mxu0 %v631
    %v1354 = vpop.f32.mrf.mxu0
    %v1355 = vadd.f32 0.0, %v1354
    %v1356 = vpop.f32.mrf.mxu0
    %v1357 = vadd.f32 0.0, %v1356
    %1358 = vmatmul.bf16.gmra.mxu0 %v632
    %v1359 = vpop.f32.mrf.mxu0
    %v1360 = vadd.f32 0.0, %v1359
    %v1361 = vpop.f32.mrf.mxu0
    %v1362 = vadd.f32 0.0, %v1361
    %1363 = vmatmul.bf16.gmra.mxu0 %v633
    %v1364 = vpop.f32.mrf.mxu0
    %v1365 = vadd.f32 0.0, %v1364
    %v1366 = vpop.f32.mrf.mxu0
    %v1367 = vadd.f32 0.0, %v1366
    %1368 = vmatmul.bf16.gmra.mxu0 %v634
    %v1369 = vpop.f32.mrf.mxu0
    %v1370 = vadd.f32 0.0, %v1369
    %v1371 = vpop.f32.mrf.mxu0
    %v1372 = vadd.f32 0.0, %v1371
    %1373 = vmatmul.bf16.gmra.mxu0 %v635
    %v1374 = vpop.f32.mrf.mxu0
    %v1375 = vadd.f32 0.0, %v1374
    %v1376 = vpop.f32.mrf.mxu0
    %v1377 = vadd.f32 0.0, %v1376
    %1378 = vmatmul.bf16.gmra.mxu0 %v636
    %v1379 = vpop.f32.mrf.mxu0
    %v1380 = vadd.f32 0.0, %v1379
    %v1381 = vpop.f32.mrf.mxu0
    %v1382 = vadd.f32 0.0, %v1381
    %1383 = vmatmul.bf16.gmra.mxu0 %v637
    %v1384 = vpop.f32.mrf.mxu0
    %v1385 = vadd.f32 0.0, %v1384
    %v1386 = vpop.f32.mrf.mxu0
    %v1387 = vadd.f32 0.0, %v1386
    %1388 = vmatmul.bf16.gmra.mxu0 %v638
    %v1389 = vpop.f32.mrf.mxu0
    %v1390 = vadd.f32 0.0, %v1389
    %v1391 = vpop.f32.mrf.mxu0
    %v1392 = vadd.f32 0.0, %v1391
    %1393 = vmatmul.bf16.gmra.mxu0 %v639
    %v1394 = vpop.f32.mrf.mxu0
    %v1395 = vadd.f32 0.0, %v1394
    %v1396 = vpop.f32.mrf.mxu0
    %v1397 = vadd.f32 0.0, %v1396
    %1398 = vmatmul.bf16.gmra.mxu0 %v640
    %v1399 = vpop.f32.mrf.mxu0
    %v1400 = vadd.f32 0.0, %v1399
    %v1401 = vpop.f32.mrf.mxu0
    %v1402 = vadd.f32 0.0, %v1401
    %1403 = vmatmul.bf16.gmra.mxu0 %v641
    %v1404 = vpop.f32.mrf.mxu0
    %v1405 = vadd.f32 0.0, %v1404
    %v1406 = vpop.f32.mrf.mxu0
    %v1407 = vadd.f32 0.0, %v1406
    %1408 = vmatmul.bf16.gmra.mxu0 %v642
    %v1409 = vpop.f32.mrf.mxu0
    %v1410 = vadd.f32 0.0, %v1409
    %v1411 = vpop.f32.mrf.mxu0
    %v1412 = vadd.f32 0.0, %v1411
    %1413 = vmatmul.bf16.gmra.mxu0 %v643
    %v1414 = vpop.f32.mrf.mxu0
    %v1415 = vadd.f32 0.0, %v1414
    %v1416 = vpop.f32.mrf.mxu0
    %v1417 = vadd.f32 0.0, %v1416
    %1418 = vmatmul.bf16.gmra.mxu0 %v644
    %v1419 = vpop.f32.mrf.mxu0
    %v1420 = vadd.f32 0.0, %v1419
    %v1421 = vpop.f32.mrf.mxu0
    %v1422 = vadd.f32 0.0, %v1421
    %1423 = vmatmul.bf16.gmra.mxu0 %v645
    %v1424 = vpop.f32.mrf.mxu0
    %v1425 = vadd.f32 0.0, %v1424
    %v1426 = vpop.f32.mrf.mxu0
    %v1427 = vadd.f32 0.0, %v1426
    %1428 = vmatmul.bf16.gmra.mxu0 %v646
    %v1429 = vpop.f32.mrf.mxu0
    %v1430 = vadd.f32 0.0, %v1429
    %v1431 = vpop.f32.mrf.mxu0
    %v1432 = vadd.f32 0.0, %v1431
    %1433 = vmatmul.bf16.gmra.mxu0 %v647
    %v1434 = vpop.f32.mrf.mxu0
    %v1435 = vadd.f32 0.0, %v1434
    %v1436 = vpop.f32.mrf.mxu0
    %v1437 = vadd.f32 0.0, %v1436
    %1438 = vmatmul.bf16.gmra.mxu0 %v648
    %v1439 = vpop.f32.mrf.mxu0
    %v1440 = vadd.f32 0.0, %v1439
    %v1441 = vpop.f32.mrf.mxu0
    %v1442 = vadd.f32 0.0, %v1441
    %1443 = vmatmul.bf16.gmra.mxu0 %v649
    %v1444 = vpop.f32.mrf.mxu0
    %v1445 = vadd.f32 0.0, %v1444
    %v1446 = vpop.f32.mrf.mxu0
    %v1447 = vadd.f32 0.0, %v1446
    %1448 = vmatmul.bf16.gmra.mxu0 %v650
    %v1449 = vpop.f32.mrf.mxu0
    %v1450 = vadd.f32 0.0, %v1449
    %v1451 = vpop.f32.mrf.mxu0
    %v1452 = vadd.f32 0.0, %v1451
    %1453 = vmatmul.bf16.gmra.mxu0 %v651
    %v1454 = vpop.f32.mrf.mxu0
    %v1455 = vadd.f32 0.0, %v1454
    %v1456 = vpop.f32.mrf.mxu0
    %v1457 = vadd.f32 0.0, %v1456
    %1458 = vmatmul.bf16.gmra.mxu0 %v652
    %v1459 = vpop.f32.mrf.mxu0
    %v1460 = vadd.f32 0.0, %v1459
    %v1461 = vpop.f32.mrf.mxu0
    %v1462 = vadd.f32 0.0, %v1461
    %1463 = vmatmul.bf16.gmra.mxu0 %v653
    %v1464 = vpop.f32.mrf.mxu0
    %v1465 = vadd.f32 0.0, %v1464
    %v1466 = vpop.f32.mrf.mxu0
    %v1467 = vadd.f32 0.0, %v1466
    %1468 = vmatmul.bf16.gmra.mxu0 %v654
    %v1469 = vpop.f32.mrf.mxu0
    %v1470 = vadd.f32 0.0, %v1469
    %v1471 = vpop.f32.mrf.mxu0
    %v1472 = vadd.f32 0.0, %v1471
    %1473 = vmatmul.bf16.gmra.mxu0 %v655
    %v1474 = vpop.f32.mrf.mxu0
    %v1475 = vadd.f32 0.0, %v1474
    %v1476 = vpop.f32.mrf.mxu0
    %v1477 = vadd.f32 0.0, %v1476
    %1478 = vmatmul.bf16.gmra.mxu0 %v656
    %v1479 = vpop.f32.mrf.mxu0
    %v1480 = vadd.f32 0.0, %v1479
    %v1481 = vpop.f32.mrf.mxu0
    %v1482 = vadd.f32 0.0, %v1481
    %1483 = vmatmul.bf16.gmra.mxu0 %v657
    %v1484 = vpop.f32.mrf.mxu0
    %v1485 = vadd.f32 0.0, %v1484
    %v1486 = vpop.f32.mrf.mxu0
    %v1487 = vadd.f32 0.0, %v1486
    %1488 = vmatmul.bf16.gmra.mxu0 %v658
    %v1489 = vpop.f32.mrf.mxu0
    %v1490 = vadd.f32 0.0, %v1489
    %v1491 = vpop.f32.mrf.mxu0
    %v1492 = vadd.f32 0.0, %v1491
    %1493 = vmatmul.bf16.gmra.mxu0 %v659
    %v1494 = vpop.f32.mrf.mxu0
    %v1495 = vadd.f32 0.0, %v1494
    %v1496 = vpop.f32.mrf.mxu0
    %v1497 = vadd.f32 0.0, %v1496
    %1498 = vmatmul.bf16.gmra.mxu0 %v660
    %v1499 = vpop.f32.mrf.mxu0
    %v1500 = vadd.f32 0.0, %v1499
    %v1501 = vpop.f32.mrf.mxu0
    %v1502 = vadd.f32 0.0, %v1501
    %1503 = vmatmul.bf16.gmra.mxu0 %v661
    %v1504 = vpop.f32.mrf.mxu0
    %v1505 = vadd.f32 0.0, %v1504
    %v1506 = vpop.f32.mrf.mxu0
    %v1507 = vadd.f32 0.0, %v1506
    %1508 = vmatmul.bf16.gmra.mxu0 %v662
    %v1509 = vpop.f32.mrf.mxu0
    %v1510 = vadd.f32 0.0, %v1509
    %v1511 = vpop.f32.mrf.mxu0
    %v1512 = vadd.f32 0.0, %v1511
    %1513 = vmatmul.bf16.gmra.mxu0 %v663
    %v1514 = vpop.f32.mrf.mxu0
    %v1515 = vadd.f32 0.0, %v1514
    %v1516 = vpop.f32.mrf.mxu0
    %v1517 = vadd.f32 0.0, %v1516
    %1518 = vmatmul.bf16.gmra.mxu0 %v664
    %v1519 = vpop.f32.mrf.mxu0
    %v1520 = vadd.f32 0.0, %v1519
    %v1521 = vpop.f32.mrf.mxu0
    %v1522 = vadd.f32 0.0, %v1521
    %1523 = vmatmul.bf16.gmra.mxu0 %v665
    %v1524 = vpop.f32.mrf.mxu0
    %v1525 = vadd.f32 0.0, %v1524
    %v1526 = vpop.f32.mrf.mxu0
    %v1527 = vadd.f32 0.0, %v1526
    %1528 = vmatmul.bf16.gmra.mxu0 %v666
    %v1529 = vpop.f32.mrf.mxu0
    %v1530 = vadd.f32 0.0, %v1529
    %v1531 = vpop.f32.mrf.mxu0
    %v1532 = vadd.f32 0.0, %v1531
    %1533 = vmatmul.bf16.gmra.mxu0 %v667
    %v1534 = vpop.f32.mrf.mxu0
    %v1535 = vadd.f32 0.0, %v1534
    %v1536 = vpop.f32.mrf.mxu0
    %v1537 = vadd.f32 0.0, %v1536
    %1538 = vmatmul.bf16.gmra.mxu0 %v668
    %v1539 = vpop.f32.mrf.mxu0
    %v1540 = vadd.f32 0.0, %v1539
    %v1541 = vpop.f32.mrf.mxu0
    %v1542 = vadd.f32 0.0, %v1541
    %1543 = vmatmul.bf16.gmra.mxu0 %v669
    %v1544 = vpop.f32.mrf.mxu0
    %v1545 = vadd.f32 0.0, %v1544
    %v1546 = vpop.f32.mrf.mxu0
    %v1547 = vadd.f32 0.0, %v1546
    %1548 = vmatmul.bf16.gmra.mxu0 %v670
    %v1549 = vpop.f32.mrf.mxu0
    %v1550 = vadd.f32 0.0, %v1549
    %v1551 = vpop.f32.mrf.mxu0
    %v1552 = vadd.f32 0.0, %v1551
    %1553 = vmatmul.bf16.gmra.mxu0 %v671
    %v1554 = vpop.f32.mrf.mxu0
    %v1555 = vadd.f32 0.0, %v1554
    %v1556 = vpop.f32.mrf.mxu0
    %v1557 = vadd.f32 0.0, %v1556
    %1558 = vmatmul.bf16.gmra.mxu0 %v672
    %v1559 = vpop.f32.mrf.mxu0
    %v1560 = vadd.f32 0.0, %v1559
    %v1561 = vpop.f32.mrf.mxu0
    %v1562 = vadd.f32 0.0, %v1561
    %1563 = vdwg.mxu0
    %v1564 = vrot.slane %v859, 7
    %v1565 = vrot.slane %v861, 7
    %v1566 = vrot.slane %v864, 7
    %v1567 = vrot.slane %v866, 7
    %v1568 = vrot.slane %v869, 7
    %v1569 = vrot.slane %v871, 7
    %v1570 = vrot.slane %v874, 7
    %v1571 = vrot.slane %v876, 7
    %v1572 = vrot.slane %v879, 7
    %v1573 = vrot.slane %v881, 7
    %v1574 = vrot.slane %v884, 7
    %v1575 = vrot.slane %v886, 7
    %v1576 = vrot.slane %v889, 7
    %v1577 = vrot.slane %v891, 7
    %v1578 = vrot.slane %v894, 7
    %v1579 = vrot.slane %v896, 7
    %v1580 = vrot.slane %v899, 7
    %v1581 = vrot.slane %v901, 7
    %v1582 = vrot.slane %v904, 7
    %v1583 = vrot.slane %v906, 7
    %v1584 = vrot.slane %v909, 7
    %v1585 = vrot.slane %v911, 7
    %v1586 = vrot.slane %v914, 7
    %v1587 = vrot.slane %v916, 7
    %v1588 = vrot.slane %v919, 7
    %v1589 = vrot.slane %v921, 7
    %v1590 = vrot.slane %v924, 7
    %v1591 = vrot.slane %v926, 7
    %v1592 = vrot.slane %v929, 7
    %v1593 = vrot.slane %v931, 7
    %v1594 = vrot.slane %v934, 7
    %v1595 = vrot.slane %v936, 7
    %v1596 = vrot.slane %v939, 7
    %v1597 = vrot.slane %v941, 7
    %v1598 = vrot.slane %v944, 7
    %v1599 = vrot.slane %v946, 7
    %v1600 = vrot.slane %v949, 7
    %v1601 = vrot.slane %v951, 7
    %v1602 = vrot.slane %v954, 7
    %v1603 = vrot.slane %v956, 7
    %v1604 = vrot.slane %v959, 7
    %v1605 = vrot.slane %v961, 7
    %v1606 = vrot.slane %v964, 7
    %v1607 = vrot.slane %v966, 7
    %v1608 = vrot.slane %v969, 7
    %v1609 = vrot.slane %v971, 7
    %v1610 = vrot.slane %v974, 7
    %v1611 = vrot.slane %v976, 7
    %v1612 = vrot.slane %v979, 7
    %v1613 = vrot.slane %v981, 7
    %v1614 = vrot.slane %v984, 7
    %v1615 = vrot.slane %v986, 7
    %v1616 = vrot.slane %v989, 7
    %v1617 = vrot.slane %v991, 7
    %v1618 = vrot.slane %v994, 7
    %v1619 = vrot.slane %v996, 7
    %v1620 = vrot.slane %v999, 7
    %v1621 = vrot.slane %v1001, 7
    %v1622 = vrot.slane %v1004, 7
    %v1623 = vrot.slane %v1006, 7
    %v1624 = vrot.slane %v1009, 7
    %v1625 = vrot.slane %v1011, 7
    %v1626 = vrot.slane %v1014, 7
    %v1627 = vrot.slane %v1016, 7
    %v1628 = vrot.slane %v1019, 7
    %v1629 = vrot.slane %v1021, 7
    %v1630 = vrot.slane %v1024, 7
    %v1631 = vrot.slane %v1026, 7
    %v1632 = vrot.slane %v1029, 7
    %v1633 = vrot.slane %v1031, 7
    %v1634 = vrot.slane %v1034, 7
    %v1635 = vrot.slane %v1036, 7
    %v1636 = vrot.slane %v1039, 7
    %v1637 = vrot.slane %v1041, 7
    %v1638 = vrot.slane %v1044, 7
    %v1639 = vrot.slane %v1046, 7
    %v1640 = vrot.slane %v1049, 7
    %v1641 = vrot.slane %v1051, 7
    %v1642 = vrot.slane %v1054, 7
    %v1643 = vrot.slane %v1056, 7
    %v1644 = vrot.slane %v1059, 7
    %v1645 = vrot.slane %v1061, 7
    %v1646 = vrot.slane %v1064, 7
    %v1647 = vrot.slane %v1066, 7
    %v1648 = vrot.slane %v1069, 7
    %v1649 = vrot.slane %v1071, 7
    %v1650 = vrot.slane %v1074, 7
    %v1651 = vrot.slane %v1076, 7
    %v1652 = vrot.slane %v1079, 7
    %v1653 = vrot.slane %v1081, 7
    %v1654 = vrot.slane %v1084, 7
    %v1655 = vrot.slane %v1086, 7
    %v1656 = vrot.slane %v1089, 7
    %v1657 = vrot.slane %v1091, 7
    %v1658 = vrot.slane %v1094, 7
    %v1659 = vrot.slane %v1096, 7
    %v1660 = vlaneseq
    %v1661 = vshrl.u32 %v1660, 7
    %vm1662 = vcmp.lt.s32.totalorder %v1661, 1
    %v1663 = vsel %vm1662, %v1657, %v1658
    %v1664 = vsel %vm1662, %v1656, %v1657
    %v1665 = vsel %vm1662, %v1654, %v1655
    %v1666 = vsel %vm1662, %v1653, %v1654
    %v1667 = vsel %vm1662, %v1651, %v1652
    %v1668 = vsel %vm1662, %v1650, %v1651
    %v1669 = vsel %vm1662, %v1648, %v1649
    %v1670 = vsel %vm1662, %v1647, %v1648
    %v1671 = vsel %vm1662, %v1645, %v1646
    %v1672 = vsel %vm1662, %v1644, %v1645
    %v1673 = vsel %vm1662, %v1642, %v1643
    %v1674 = vsel %vm1662, %v1641, %v1642
    %v1675 = vsel %vm1662, %v1639, %v1640
    %v1676 = vsel %vm1662, %v1638, %v1639
    %v1677 = vsel %vm1662, %v1636, %v1637
    %v1678 = vsel %vm1662, %v1635, %v1636
    %v1679 = vsel %vm1662, %v1633, %v1634
    %v1680 = vsel %vm1662, %v1632, %v1633
    %v1681 = vsel %vm1662, %v1630, %v1631
    %v1682 = vsel %vm1662, %v1629, %v1630
    %v1683 = vsel %vm1662, %v1627, %v1628
    %v1684 = vsel %vm1662, %v1626, %v1627
    %v1685 = vsel %vm1662, %v1624, %v1625
    %v1686 = vsel %vm1662, %v1623, %v1624
    %v1687 = vsel %vm1662, %v1621, %v1622
    %v1688 = vsel %vm1662, %v1620, %v1621
    %v1689 = vsel %vm1662, %v1618, %v1619
    %v1690 = vsel %vm1662, %v1617, %v1618
    %v1691 = vsel %vm1662, %v1615, %v1616
    %v1692 = vsel %vm1662, %v1614, %v1615
    %v1693 = vsel %vm1662, %v1612, %v1613
    %v1694 = vsel %vm1662, %v1611, %v1612
    %v1695 = vsel %vm1662, %v1609, %v1610
    %v1696 = vsel %vm1662, %v1608, %v1609
    %v1697 = vsel %vm1662, %v1606, %v1607
    %v1698 = vsel %vm1662, %v1605, %v1606
    %v1699 = vsel %vm1662, %v1603, %v1604
    %v1700 = vsel %vm1662, %v1602, %v1603
    %v1701 = vsel %vm1662, %v1600, %v1601
    %v1702 = vsel %vm1662, %v1599, %v1600
    %v1703 = vsel %vm1662, %v1597, %v1598
    %v1704 = vsel %vm1662, %v1596, %v1597
    %v1705 = vsel %vm1662, %v1594, %v1595
    %v1706 = vsel %vm1662, %v1593, %v1594
    %v1707 = vsel %vm1662, %v1591, %v1592
    %v1708 = vsel %vm1662, %v1590, %v1591
    %v1709 = vsel %vm1662, %v1588, %v1589
    %v1710 = vsel %vm1662, %v1587, %v1588
    %v1711 = vsel %vm1662, %v1585, %v1586
    %v1712 = vsel %vm1662, %v1584, %v1585
    %v1713 = vsel %vm1662, %v1582, %v1583
    %v1714 = vsel %vm1662, %v1581, %v1582
    %v1715 = vsel %vm1662, %v1579, %v1580
    %v1716 = vsel %vm1662, %v1578, %v1579
    %v1717 = vsel %vm1662, %v1576, %v1577
    %v1718 = vsel %vm1662, %v1575, %v1576
    %v1719 = vsel %vm1662, %v1573, %v1574
    %v1720 = vsel %vm1662, %v1572, %v1573
    %v1721 = vsel %vm1662, %v1570, %v1571
    %v1722 = vsel %vm1662, %v1569, %v1570
    %v1723 = vsel %vm1662, %v1567, %v1568
    %v1724 = vsel %vm1662, %v1566, %v1567
    %v1725 = vsel %vm1662, %v1564, %v1565
    %v1726 = vsel %vm1662, %v1659, %v1564
    %v1727 = vadd.f32 %v1726, 0.0
    %v1728 = vadd.f32 %v1725, 0.0
    %v1729 = vadd.f32 %v1724, 0.0
    %v1730 = vadd.f32 %v1723, 0.0
    %v1731 = vadd.f32 %v1722, 0.0
    %v1732 = vadd.f32 %v1721, 0.0
    %v1733 = vadd.f32 %v1720, 0.0
    %v1734 = vadd.f32 %v1719, 0.0
    %v1735 = vadd.f32 %v1718, 0.0
    %v1736 = vadd.f32 %v1717, 0.0
    %v1737 = vadd.f32 %v1716, 0.0
    %v1738 = vadd.f32 %v1715, 0.0
    %v1739 = vadd.f32 %v1714, 0.0
    %v1740 = vadd.f32 %v1713, 0.0
    %v1741 = vadd.f32 %v1712, 0.0
    %v1742 = vadd.f32 %v1711, 0.0
    %v1743 = vadd.f32 %v1710, 0.0
    %v1744 = vadd.f32 %v1709, 0.0
    %v1745 = vadd.f32 %v1708, 0.0
    %v1746 = vadd.f32 %v1707, 0.0
    %v1747 = vadd.f32 %v1706, 0.0
    %v1748 = vadd.f32 %v1705, 0.0
    %v1749 = vadd.f32 %v1704, 0.0
    %v1750 = vadd.f32 %v1703, 0.0
    %v1751 = vadd.f32 %v1702, 0.0
    %v1752 = vadd.f32 %v1701, 0.0
    %v1753 = vadd.f32 %v1700, 0.0
    %v1754 = vadd.f32 %v1699, 0.0
    %v1755 = vadd.f32 %v1698, 0.0
    %v1756 = vadd.f32 %v1697, 0.0
    %v1757 = vadd.f32 %v1696, 0.0
    %v1758 = vadd.f32 %v1695, 0.0
    %v1759 = vadd.f32 %v1694, 0.0
    %v1760 = vadd.f32 %v1693, 0.0
    %v1761 = vadd.f32 %v1692, 0.0
    %v1762 = vadd.f32 %v1691, 0.0
    %v1763 = vadd.f32 %v1690, 0.0
    %v1764 = vadd.f32 %v1689, 0.0
    %v1765 = vadd.f32 %v1688, 0.0
    %v1766 = vadd.f32 %v1687, 0.0
    %v1767 = vadd.f32 %v1686, 0.0
    %v1768 = vadd.f32 %v1685, 0.0
    %v1769 = vadd.f32 %v1684, 0.0
    %v1770 = vadd.f32 %v1683, 0.0
    %v1771 = vadd.f32 %v1682, 0.0
    %v1772 = vadd.f32 %v1681, 0.0
    %v1773 = vadd.f32 %v1680, 0.0
    %v1774 = vadd.f32 %v1679, 0.0
    %v1775 = vadd.f32 %v1678, 0.0
    %v1776 = vadd.f32 %v1677, 0.0
    %v1777 = vadd.f32 %v1676, 0.0
    %v1778 = vadd.f32 %v1675, 0.0
    %v1779 = vadd.f32 %v1674, 0.0
    %v1780 = vadd.f32 %v1673, 0.0
    %v1781 = vadd.f32 %v1672, 0.0
    %v1782 = vadd.f32 %v1671, 0.0
    %v1783 = vadd.f32 %v1670, 0.0
    %v1784 = vadd.f32 %v1669, 0.0
    %v1785 = vadd.f32 %v1668, 0.0
    %v1786 = vadd.f32 %v1667, 0.0
    %v1787 = vadd.f32 %v1666, 0.0
    %v1788 = vadd.f32 %v1665, 0.0
    %v1789 = vadd.f32 %v1664, 0.0
    %v1790 = vadd.f32 %v1663, 0.0
    %v1791 = vadd.f32 %v1727, %v1108
    %v1792 = vadd.f32 %v1728, %v1110
    %v1793 = vadd.f32 %v1729, %v1114
    %v1794 = vadd.f32 %v1730, %v1117
    %v1795 = vadd.f32 %v1731, %v1121
    %v1796 = vadd.f32 %v1732, %v1123
    %v1797 = vadd.f32 %v1733, %v1127
    %v1798 = vadd.f32 %v1734, %v1130
    %v1799 = vadd.f32 %v1735, %v1134
    %v1800 = vadd.f32 %v1736, %v1136
    %v1801 = vadd.f32 %v1737, %v1140
    %v1802 = vadd.f32 %v1738, %v1143
    %v1803 = vadd.f32 %v1739, %v1147
    %v1804 = vadd.f32 %v1740, %v1149
    %v1805 = vadd.f32 %v1741, %v1153
    %v1806 = vadd.f32 %v1742, %v1156
    %v1807 = vadd.f32 %v1743, %v1160
    %v1808 = vadd.f32 %v1744, %v1162
    %v1809 = vadd.f32 %v1745, %v1166
    %v1810 = vadd.f32 %v1746, %v1169
    %v1811 = vadd.f32 %v1747, %v1173
    %v1812 = vadd.f32 %v1748, %v1175
    %v1813 = vadd.f32 %v1749, %v1179
    %v1814 = vadd.f32 %v1750, %v1182
    %v1815 = vadd.f32 %v1751, %v1186
    %v1816 = vadd.f32 %v1752, %v1188
    %v1817 = vadd.f32 %v1753, %v1192
    %v1818 = vadd.f32 %v1754, %v1195
    %v1819 = vadd.f32 %v1755, %v1199
    %v1820 = vadd.f32 %v1756, %v1201
    %v1821 = vadd.f32 %v1757, %v1205
    %v1822 = vadd.f32 %v1758, %v1208
    %v1823 = vadd.f32 %v1759, %v1212
    %v1824 = vadd.f32 %v1760, %v1214
    %v1825 = vadd.f32 %v1761, %v1218
    %v1826 = vadd.f32 %v1762, %v1221
    %v1827 = vadd.f32 %v1763, %v1225
    %v1828 = vadd.f32 %v1764, %v1227
    %v1829 = vadd.f32 %v1765, %v1231
    %v1830 = vadd.f32 %v1766, %v1234
    %v1831 = vadd.f32 %v1767, %v1238
    %v1832 = vadd.f32 %v1768, %v1240
    %v1833 = vadd.f32 %v1769, %v1244
    %v1834 = vadd.f32 %v1770, %v1247
    %v1835 = vadd.f32 %v1771, %v1251
    %v1836 = vadd.f32 %v1772, %v1253
    %v1837 = vadd.f32 %v1773, %v1257
    %v1838 = vadd.f32 %v1774, %v1260
    %v1839 = vadd.f32 %v1775, %v1264
    %v1840 = vadd.f32 %v1776, %v1266
    %v1841 = vadd.f32 %v1777, %v1270
    %v1842 = vadd.f32 %v1778, %v1273
    %v1843 = vadd.f32 %v1779, %v1277
    %v1844 = vadd.f32 %v1780, %v1279
    %v1845 = vadd.f32 %v1781, %v1283
    %v1846 = vadd.f32 %v1782, %v1286
    %v1847 = vadd.f32 %v1783, %v1290
    %v1848 = vadd.f32 %v1784, %v1292
    %v1849 = vadd.f32 %v1785, %v1296
    %v1850 = vadd.f32 %v1786, %v1299
    %v1851 = vadd.f32 %v1787, %v1303
    %v1852 = vadd.f32 %v1788, %v1305
    %v1853 = vadd.f32 %v1789, %v1309
    %v1854 = vadd.f32 %v1790, %v1312
    %v1855 = vrot.slane %v1325, 1
    %v1856 = vrot.slane %v1327, 1
    %v1857 = vrot.slane %v1330, 1
    %v1858 = vrot.slane %v1332, 1
    %v1859 = vrot.slane %v1335, 1
    %v1860 = vrot.slane %v1337, 1
    %v1861 = vrot.slane %v1340, 1
    %v1862 = vrot.slane %v1342, 1
    %v1863 = vrot.slane %v1345, 1
    %v1864 = vrot.slane %v1347, 1
    %v1865 = vrot.slane %v1350, 1
    %v1866 = vrot.slane %v1352, 1
    %v1867 = vrot.slane %v1355, 1
    %v1868 = vrot.slane %v1357, 1
    %v1869 = vrot.slane %v1360, 1
    %v1870 = vrot.slane %v1362, 1
    %v1871 = vrot.slane %v1365, 1
    %v1872 = vrot.slane %v1367, 1
    %v1873 = vrot.slane %v1370, 1
    %v1874 = vrot.slane %v1372, 1
    %v1875 = vrot.slane %v1375, 1
    %v1876 = vrot.slane %v1377, 1
    %v1877 = vrot.slane %v1380, 1
    %v1878 = vrot.slane %v1382, 1
    %v1879 = vrot.slane %v1385, 1
    %v1880 = vrot.slane %v1387, 1
    %v1881 = vrot.slane %v1390, 1
    %v1882 = vrot.slane %v1392, 1
    %v1883 = vrot.slane %v1395, 1
    %v1884 = vrot.slane %v1397, 1
    %v1885 = vrot.slane %v1400, 1
    %v1886 = vrot.slane %v1402, 1
    %v1887 = vrot.slane %v1405, 1
    %v1888 = vrot.slane %v1407, 1
    %v1889 = vrot.slane %v1410, 1
    %v1890 = vrot.slane %v1412, 1
    %v1891 = vrot.slane %v1415, 1
    %v1892 = vrot.slane %v1417, 1
    %v1893 = vrot.slane %v1420, 1
    %v1894 = vrot.slane %v1422, 1
    %v1895 = vrot.slane %v1425, 1
    %v1896 = vrot.slane %v1427, 1
    %v1897 = vrot.slane %v1430, 1
    %v1898 = vrot.slane %v1432, 1
    %v1899 = vrot.slane %v1435, 1
    %v1900 = vrot.slane %v1437, 1
    %v1901 = vrot.slane %v1440, 1
    %v1902 = vrot.slane %v1442, 1
    %v1903 = vrot.slane %v1445, 1
    %v1904 = vrot.slane %v1447, 1
    %v1905 = vrot.slane %v1450, 1
    %v1906 = vrot.slane %v1452, 1
    %v1907 = vrot.slane %v1455, 1
    %v1908 = vrot.slane %v1457, 1
    %v1909 = vrot.slane %v1460, 1
    %v1910 = vrot.slane %v1462, 1
    %v1911 = vrot.slane %v1465, 1
    %v1912 = vrot.slane %v1467, 1
    %v1913 = vrot.slane %v1470, 1
    %v1914 = vrot.slane %v1472, 1
    %v1915 = vrot.slane %v1475, 1
    %v1916 = vrot.slane %v1477, 1
    %v1917 = vrot.slane %v1480, 1
    %v1918 = vrot.slane %v1482, 1
    %v1919 = vrot.slane %v1485, 1
    %v1920 = vrot.slane %v1487, 1
    %v1921 = vrot.slane %v1490, 1
    %v1922 = vrot.slane %v1492, 1
    %v1923 = vrot.slane %v1495, 1
    %v1924 = vrot.slane %v1497, 1
    %v1925 = vrot.slane %v1500, 1
    %v1926 = vrot.slane %v1502, 1
    %v1927 = vrot.slane %v1505, 1
    %v1928 = vrot.slane %v1507, 1
    %v1929 = vrot.slane %v1510, 1
    %v1930 = vrot.slane %v1512, 1
    %v1931 = vrot.slane %v1515, 1
    %v1932 = vrot.slane %v1517, 1
    %v1933 = vrot.slane %v1520, 1
    %v1934 = vrot.slane %v1522, 1
    %v1935 = vrot.slane %v1525, 1
    %v1936 = vrot.slane %v1527, 1
    %v1937 = vrot.slane %v1530, 1
    %v1938 = vrot.slane %v1532, 1
    %v1939 = vrot.slane %v1535, 1
    %v1940 = vrot.slane %v1537, 1
    %v1941 = vrot.slane %v1540, 1
    %v1942 = vrot.slane %v1542, 1
    %v1943 = vrot.slane %v1545, 1
    %v1944 = vrot.slane %v1547, 1
    %v1945 = vrot.slane %v1550, 1
    %v1946 = vrot.slane %v1552, 1
    %v1947 = vrot.slane %v1555, 1
    %v1948 = vrot.slane %v1557, 1
    %v1949 = vrot.slane %v1560, 1
    %v1950 = vrot.slane %v1562, 1
    %vm1951 = vcmp.lt.s32.totalorder %v1661, 7
    %v1952 = vsel %vm1951, %v1949, %v1950
    %v1953 = vsel %vm1951, %v1948, %v1949
    %v1954 = vsel %vm1951, %v1946, %v1947
    %v1955 = vsel %vm1951, %v1945, %v1946
    %v1956 = vsel %vm1951, %v1943, %v1944
    %v1957 = vsel %vm1951, %v1942, %v1943
    %v1958 = vsel %vm1951, %v1940, %v1941
    %v1959 = vsel %vm1951, %v1939, %v1940
    %v1960 = vsel %vm1951, %v1937, %v1938
    %v1961 = vsel %vm1951, %v1936, %v1937
    %v1962 = vsel %vm1951, %v1934, %v1935
    %v1963 = vsel %vm1951, %v1933, %v1934
    %v1964 = vsel %vm1951, %v1931, %v1932
    %v1965 = vsel %vm1951, %v1930, %v1931
    %v1966 = vsel %vm1951, %v1928, %v1929
    %v1967 = vsel %vm1951, %v1927, %v1928
    %v1968 = vsel %vm1951, %v1925, %v1926
    %v1969 = vsel %vm1951, %v1924, %v1925
    %v1970 = vsel %vm1951, %v1922, %v1923
    %v1971 = vsel %vm1951, %v1921, %v1922
    %v1972 = vsel %vm1951, %v1919, %v1920
    %v1973 = vsel %vm1951, %v1918, %v1919
    %v1974 = vsel %vm1951, %v1916, %v1917
    %v1975 = vsel %vm1951, %v1915, %v1916
    %v1976 = vsel %vm1951, %v1913, %v1914
    %v1977 = vsel %vm1951, %v1912, %v1913
    %v1978 = vsel %vm1951, %v1910, %v1911
    %v1979 = vsel %vm1951, %v1909, %v1910
    %v1980 = vsel %vm1951, %v1907, %v1908
    %v1981 = vsel %vm1951, %v1906, %v1907
    %v1982 = vsel %vm1951, %v1904, %v1905
    %v1983 = vsel %vm1951, %v1903, %v1904
    %v1984 = vsel %vm1951, %v1901, %v1902
    %v1985 = vsel %vm1951, %v1900, %v1901
    %v1986 = vsel %vm1951, %v1898, %v1899
    %v1987 = vsel %vm1951, %v1897, %v1898
    %v1988 = vsel %vm1951, %v1895, %v1896
    %v1989 = vsel %vm1951, %v1894, %v1895
    %v1990 = vsel %vm1951, %v1892, %v1893
    %v1991 = vsel %vm1951, %v1891, %v1892
    %v1992 = vsel %vm1951, %v1889, %v1890
    %v1993 = vsel %vm1951, %v1888, %v1889
    %v1994 = vsel %vm1951, %v1886, %v1887
    %v1995 = vsel %vm1951, %v1885, %v1886
    %v1996 = vsel %vm1951, %v1883, %v1884
    %v1997 = vsel %vm1951, %v1882, %v1883
    %v1998 = vsel %vm1951, %v1880, %v1881
    %v1999 = vsel %vm1951, %v1879, %v1880
    %v2000 = vsel %vm1951, %v1877, %v1878
    %v2001 = vsel %vm1951, %v1876, %v1877
    %v2002 = vsel %vm1951, %v1874, %v1875
    %v2003 = vsel %vm1951, %v1873, %v1874
    %v2004 = vsel %vm1951, %v1871, %v1872
    %v2005 = vsel %vm1951, %v1870, %v1871
    %v2006 = vsel %vm1951, %v1868, %v1869
    %v2007 = vsel %vm1951, %v1867, %v1868
    %v2008 = vsel %vm1951, %v1865, %v1866
    %v2009 = vsel %vm1951, %v1864, %v1865
    %v2010 = vsel %vm1951, %v1862, %v1863
    %v2011 = vsel %vm1951, %v1861, %v1862
    %v2012 = vsel %vm1951, %v1859, %v1860
    %v2013 = vsel %vm1951, %v1858, %v1859
    %v2014 = vsel %vm1951, %v1856, %v1857
    %v2015 = vsel %vm1951, %v1855, %v1856
    %v2016 = vadd.f32 %v1791, %v2015
    %v2017 = vadd.f32 %v1792, %v2014
    %v2018 = vadd.f32 %v1793, %v2013
    %v2019 = vadd.f32 %v1794, %v2012
    %v2020 = vadd.f32 %v1795, %v2011
    %v2021 = vadd.f32 %v1796, %v2010
    %v2022 = vadd.f32 %v1797, %v2009
    %v2023 = vadd.f32 %v1798, %v2008
    %v2024 = vadd.f32 %v1799, %v2007
    %v2025 = vadd.f32 %v1800, %v2006
    %v2026 = vadd.f32 %v1801, %v2005
    %v2027 = vadd.f32 %v1802, %v2004
    %v2028 = vadd.f32 %v1803, %v2003
    %v2029 = vadd.f32 %v1804, %v2002
    %v2030 = vadd.f32 %v1805, %v2001
    %v2031 = vadd.f32 %v1806, %v2000
    %v2032 = vadd.f32 %v1807, %v1999
    %v2033 = vadd.f32 %v1808, %v1998
    %v2034 = vadd.f32 %v1809, %v1997
    %v2035 = vadd.f32 %v1810, %v1996
    %v2036 = vadd.f32 %v1811, %v1995
    %v2037 = vadd.f32 %v1812, %v1994
    %v2038 = vadd.f32 %v1813, %v1993
    %v2039 = vadd.f32 %v1814, %v1992
    %v2040 = vadd.f32 %v1815, %v1991
    %v2041 = vadd.f32 %v1816, %v1990
    %v2042 = vadd.f32 %v1817, %v1989
    %v2043 = vadd.f32 %v1818, %v1988
    %v2044 = vadd.f32 %v1819, %v1987
    %v2045 = vadd.f32 %v1820, %v1986
    %v2046 = vadd.f32 %v1821, %v1985
    %v2047 = vadd.f32 %v1822, %v1984
    %v2048 = vadd.f32 %v1823, %v1983
    %v2049 = vadd.f32 %v1824, %v1982
    %v2050 = vadd.f32 %v1825, %v1981
    %v2051 = vadd.f32 %v1826, %v1980
    %v2052 = vadd.f32 %v1827, %v1979
    %v2053 = vadd.f32 %v1828, %v1978
    %v2054 = vadd.f32 %v1829, %v1977
    %v2055 = vadd.f32 %v1830, %v1976
    %v2056 = vadd.f32 %v1831, %v1975
    %v2057 = vadd.f32 %v1832, %v1974
    %v2058 = vadd.f32 %v1833, %v1973
    %v2059 = vadd.f32 %v1834, %v1972
    %v2060 = vadd.f32 %v1835, %v1971
    %v2061 = vadd.f32 %v1836, %v1970
    %v2062 = vadd.f32 %v1837, %v1969
    %v2063 = vadd.f32 %v1838, %v1968
    %v2064 = vadd.f32 %v1839, %v1967
    %v2065 = vadd.f32 %v1840, %v1966
    %v2066 = vadd.f32 %v1841, %v1965
    %v2067 = vadd.f32 %v1842, %v1964
    %v2068 = vadd.f32 %v1843, %v1963
    %v2069 = vadd.f32 %v1844, %v1962
    %v2070 = vadd.f32 %v1845, %v1961
    %v2071 = vadd.f32 %v1846, %v1960
    %v2072 = vadd.f32 %v1847, %v1959
    %v2073 = vadd.f32 %v1848, %v1958
    %v2074 = vadd.f32 %v1849, %v1957
    %v2075 = vadd.f32 %v1850, %v1956
    %v2076 = vadd.f32 %v1851, %v1955
    %v2077 = vadd.f32 %v1852, %v1954
    %v2078 = vadd.f32 %v1853, %v1953
    %v2079 = vadd.f32 %v1854, %v1952
    %v2080 = vld [vmem:[%s240] sm:$0xf]
    %v2081 = vld [vmem:[%s240 + $0x4] sm:$0xf]
    %v2082 = vld [vmem:[%s240 + $0x8] sm:$0xf]
    %v2083 = vld [vmem:[%s240 + $0xc] sm:$0xf]
    %v2084 = vld [vmem:[%s240 + $0x10] sm:$0xf]
    %v2085 = vld [vmem:[%s240 + $0x14] sm:$0xf]
    %v2086 = vld [vmem:[%s240 + $0x18] sm:$0xf]
    %v2087 = vld [vmem:[%s240 + $0x1c] sm:$0xf]
    %v2088 = vld [vmem:[%s240 + $0x20] sm:$0xf]
    %v2089 = vld [vmem:[%s240 + $0x24] sm:$0xf]
    %v2090 = vld [vmem:[%s240 + $0x28] sm:$0xf]
    %v2091 = vld [vmem:[%s240 + $0x2c] sm:$0xf]
    %v2092 = vld [vmem:[%s240 + $0x30] sm:$0xf]
    %v2093 = vld [vmem:[%s240 + $0x34] sm:$0xf]
    %v2094 = vld [vmem:[%s240 + $0x38] sm:$0xf]
    %v2095 = vld [vmem:[%s240 + $0x3c] sm:$0xf]
    %v2096 = vld [vmem:[%s240 + $0x40] sm:$0xf]
    %v2097 = vld [vmem:[%s240 + $0x44] sm:$0xf]
    %v2098 = vld [vmem:[%s240 + $0x48] sm:$0xf]
    %v2099 = vld [vmem:[%s240 + $0x4c] sm:$0xf]
    %v2100 = vld [vmem:[%s240 + $0x50] sm:$0xf]
    %v2101 = vld [vmem:[%s240 + $0x54] sm:$0xf]
    %v2102 = vld [vmem:[%s240 + $0x58] sm:$0xf]
    %v2103 = vld [vmem:[%s240 + $0x5c] sm:$0xf]
    %v2104 = vld [vmem:[%s240 + $0x60] sm:$0xf]
    %v2105 = vld [vmem:[%s240 + $0x64] sm:$0xf]
    %v2106 = vld [vmem:[%s240 + $0x68] sm:$0xf]
    %v2107 = vld [vmem:[%s240 + $0x6c] sm:$0xf]
    %v2108 = vld [vmem:[%s240 + $0x70] sm:$0xf]
    %v2109 = vld [vmem:[%s240 + $0x74] sm:$0xf]
    %v2110 = vld [vmem:[%s240 + $0x78] sm:$0xf]
    %v2111 = vld [vmem:[%s240 + $0x7c] sm:$0xf]
    %v2112 = vld [vmem:[%s240 + $0x80] sm:$0xf]
    %v2113 = vld [vmem:[%s240 + $0x84] sm:$0xf]
    %v2114 = vld [vmem:[%s240 + $0x88] sm:$0xf]
    %v2115 = vld [vmem:[%s240 + $0x8c] sm:$0xf]
    %v2116 = vld [vmem:[%s240 + $0x90] sm:$0xf]
    %v2117 = vld [vmem:[%s240 + $0x94] sm:$0xf]
    %v2118 = vld [vmem:[%s240 + $0x98] sm:$0xf]
    %v2119 = vld [vmem:[%s240 + $0x9c] sm:$0xf]
    %v2120 = vld [vmem:[%s240 + $0xa0] sm:$0xf]
    %v2121 = vld [vmem:[%s240 + $0xa4] sm:$0xf]
    %v2122 = vld [vmem:[%s240 + $0xa8] sm:$0xf]
    %v2123 = vld [vmem:[%s240 + $0xac] sm:$0xf]
    %v2124 = vld [vmem:[%s240 + $0xb0] sm:$0xf]
    %v2125 = vld [vmem:[%s240 + $0xb4] sm:$0xf]
    %v2126 = vld [vmem:[%s240 + $0xb8] sm:$0xf]
    %v2127 = vld [vmem:[%s240 + $0xbc] sm:$0xf]
    %v2128 = vld [vmem:[%s240 + $0xd8] sm:$0xf]
    %v2129 = vld [vmem:[%s240 + $0xdc] sm:$0xf]
    %v2130 = vld [vmem:[%s240 + $0xe0] sm:$0xf]
    %v2131 = vld [vmem:[%s240 + $0xe4] sm:$0xf]
    %v2132 = vld [vmem:[%s240 + $0xe8] sm:$0xf]
    %v2133 = vld [vmem:[%s240 + $0xec] sm:$0xf]
    %v2134 = vld [vmem:[%s240 + $0xf0] sm:$0xf]
    %v2135 = vld [vmem:[%s240 + $0xf4] sm:$0xf]
    %v2136 = vld [vmem:[%s240 + $0xf8] sm:$0xf]
    %v2137 = vld [vmem:[%s240 + $0xfc] sm:$0xf]
    %v2138 = vld [vmem:[%s240 + $0x100] sm:$0xf]
    %v2139 = vld [vmem:[%s240 + $0x104] sm:$0xf]
    %v2140 = vld [vmem:[%s240 + $0x108] sm:$0xf]
    %v2141 = vld [vmem:[%s240 + $0x10c] sm:$0xf]
    %v2142 = vld [vmem:[%s240 + $0x110] sm:$0xf]
    %v2143 = vld [vmem:[%s240 + $0x114] sm:$0xf]
    %v2144 = vld [vmem:[%s240 + $0x118] sm:$0xf]
    %v2145 = vld [vmem:[%s240 + $0x11c] sm:$0xf]
    %v2146 = vld [vmem:[%s240 + $0x120] sm:$0xf]
    %v2147 = vld [vmem:[%s240 + $0x124] sm:$0xf]
    %v2148 = vld [vmem:[%s240 + $0x128] sm:$0xf]
    %v2149 = vld [vmem:[%s240 + $0x12c] sm:$0xf]
    %v2150 = vld [vmem:[%s240 + $0x130] sm:$0xf]
    %v2151 = vld [vmem:[%s240 + $0x134] sm:$0xf]
    %v2152 = vld [vmem:[%s240 + $0x138] sm:$0xf]
    %v2153 = vld [vmem:[%s240 + $0x13c] sm:$0xf]
    %v2154 = vld [vmem:[%s240 + $0x140] sm:$0xf]
    %v2155 = vld [vmem:[%s240 + $0x144] sm:$0xf]
    %v2156 = vld [vmem:[%s240 + $0x148] sm:$0xf]
    %v2157 = vld [vmem:[%s240 + $0x14c] sm:$0xf]
    %v2158 = vld [vmem:[%s240 + $0x150] sm:$0xf]
    %v2159 = vld [vmem:[%s240 + $0x154] sm:$0xf]
    %v2160 = vld [vmem:[%s240 + $0x158] sm:$0xf]
    %v2161 = vld [vmem:[%s240 + $0x15c] sm:$0xf]
    %v2162 = vld [vmem:[%s240 + $0x160] sm:$0xf]
    %v2163 = vld [vmem:[%s240 + $0x164] sm:$0xf]
    %v2164 = vld [vmem:[%s240 + $0x168] sm:$0xf]
    %v2165 = vld [vmem:[%s240 + $0x16c] sm:$0xf]
    %v2166 = vld [vmem:[%s240 + $0x170] sm:$0xf]
    %v2167 = vld [vmem:[%s240 + $0x174] sm:$0xf]
    %v2168 = vld [vmem:[%s240 + $0x178] sm:$0xf]
    %v2169 = vld [vmem:[%s240 + $0x17c] sm:$0xf]
    %v2170 = vld [vmem:[%s240 + $0x180] sm:$0xf]
    %v2171 = vld [vmem:[%s240 + $0x184] sm:$0xf]
    %v2172 = vld [vmem:[%s240 + $0x188] sm:$0xf]
    %v2173 = vld [vmem:[%s240 + $0x18c] sm:$0xf]
    %v2174 = vld [vmem:[%s240 + $0x190] sm:$0xf]
    %v2175 = vld [vmem:[%s240 + $0x194] sm:$0xf]
    %s2176 = scalar_lea.vmem [#allocation6], 192
    %v2177 = vld [vmem:[%s2176] sm:$0xff]
    %v2178 = vld [vmem:[%s2176 + $0x8] sm:$0xf]
    %v2179 = vld [vmem:[%s2176 + $0xc] sm:$0xff]
    %v2180 = vld [vmem:[%s2176 + $0x14] sm:$0xf]
    %v2181 = vld [vmem:[%s2176 + $0x18] sm:$0xff]
    %v2182 = vld [vmem:[%s2176 + $0x20] sm:$0xf]
    %v2183 = vld [vmem:[%s2176 + $0x24] sm:$0xff]
    %v2184 = vld [vmem:[%s2176 + $0x2c] sm:$0xf]
    %v2185 = vld [vmem:[%s2176 + $0x30] sm:$0xff]
    %v2186 = vld [vmem:[%s2176 + $0x38] sm:$0xf]
    %v2187 = vld [vmem:[%s2176 + $0x3c] sm:$0xff]
    %v2188 = vld [vmem:[%s2176 + $0x44] sm:$0xf]
    %v2189 = vld [vmem:[%s2176 + $0x48] sm:$0xff]
    %v2190 = vld [vmem:[%s2176 + $0x50] sm:$0xf]
    %v2191 = vld [vmem:[%s2176 + $0x54] sm:$0xff]
    %v2192 = vld [vmem:[%s2176 + $0x5c] sm:$0xf]
    %v2193 = vld [vmem:[%s2176 + $0x60] sm:$0xff]
    %v2194 = vld [vmem:[%s2176 + $0x68] sm:$0xf]
    %v2195 = vld [vmem:[%s2176 + $0x6c] sm:$0xff]
    %v2196 = vld [vmem:[%s2176 + $0x74] sm:$0xf]
    %v2197 = vld [vmem:[%s2176 + $0x78] sm:$0xff]
    %v2198 = vld [vmem:[%s2176 + $0x80] sm:$0xf]
    %v2199 = vld [vmem:[%s2176 + $0x84] sm:$0xff]
    %v2200 = vld [vmem:[%s2176 + $0x8c] sm:$0xf]
    %v2201 = vld [vmem:[%s2176 + $0x90] sm:$0xff]
    %v2202 = vld [vmem:[%s2176 + $0x98] sm:$0xf]
    %v2203 = vld [vmem:[%s2176 + $0x9c] sm:$0xff]
    %v2204 = vld [vmem:[%s2176 + $0xa4] sm:$0xf]
    %v2205 = vld [vmem:[%s2176 + $0xa8] sm:$0xff]
    %v2206 = vld [vmem:[%s2176 + $0xb0] sm:$0xf]
    %v2207 = vld [vmem:[%s2176 + $0xb4] sm:$0xff]
    %v2208 = vld [vmem:[%s2176 + $0xbc] sm:$0xf]
    %v2305 = vunpack.c.l.b16 %v2080
    %v2306 = vunpack.c.l.b16 %v2081
    %v2307 = vunpack.c.l.b16 %v2082
    %v2308 = vunpack.c.l.b16 %v2083
    %v2309 = vunpack.c.l.b16 %v2084
    %v2310 = vunpack.c.l.b16 %v2085
    %v2311 = vunpack.c.l.b16 %v2086
    %v2312 = vunpack.c.l.b16 %v2087
    %v2313 = vunpack.c.l.b16 %v2088
    %v2314 = vunpack.c.l.b16 %v2089
    %v2315 = vunpack.c.l.b16 %v2090
    %v2316 = vunpack.c.l.b16 %v2091
    %v2317 = vunpack.c.l.b16 %v2092
    %v2318 = vunpack.c.l.b16 %v2093
    %v2319 = vunpack.c.l.b16 %v2094
    %v2320 = vunpack.c.l.b16 %v2095
    %v2321 = vunpack.c.l.b16 %v2096
    %v2322 = vunpack.c.l.b16 %v2097
    %v2323 = vunpack.c.l.b16 %v2098
    %v2324 = vunpack.c.l.b16 %v2099
    %v2325 = vunpack.c.l.b16 %v2100
    %v2326 = vunpack.c.l.b16 %v2101
    %v2327 = vunpack.c.l.b16 %v2102
    %v2328 = vunpack.c.l.b16 %v2103
    %v2329 = vunpack.c.l.b16 %v2104
    %v2330 = vunpack.c.l.b16 %v2105
    %v2331 = vunpack.c.l.b16 %v2106
    %v2332 = vunpack.c.l.b16 %v2107
    %v2333 = vunpack.c.l.b16 %v2108
    %v2334 = vunpack.c.l.b16 %v2109
    %v2335 = vunpack.c.l.b16 %v2110
    %v2336 = vunpack.c.l.b16 %v2111
    %v2337 = vunpack.c.l.b16 %v2112
    %v2338 = vunpack.c.l.b16 %v2113
    %v2339 = vunpack.c.l.b16 %v2114
    %v2340 = vunpack.c.l.b16 %v2115
    %v2341 = vunpack.c.l.b16 %v2116
    %v2342 = vunpack.c.l.b16 %v2117
    %v2343 = vunpack.c.l.b16 %v2118
    %v2344 = vunpack.c.l.b16 %v2119
    %v2345 = vunpack.c.l.b16 %v2120
    %v2346 = vunpack.c.l.b16 %v2121
    %v2347 = vunpack.c.l.b16 %v2122
    %v2348 = vunpack.c.l.b16 %v2123
    %v2349 = vunpack.c.l.b16 %v2124
    %v2350 = vunpack.c.l.b16 %v2125
    %v2351 = vunpack.c.l.b16 %v2126
    %v2352 = vunpack.c.l.b16 %v2127
    %v2353 = vunpack.c.l.b16 %v2128
    %v2354 = vunpack.c.l.b16 %v2129
    %v2355 = vunpack.c.l.b16 %v2130
    %v2356 = vunpack.c.l.b16 %v2131
    %v2357 = vunpack.c.l.b16 %v2132
    %v2358 = vunpack.c.l.b16 %v2133
    %v2359 = vunpack.c.l.b16 %v2134
    %v2360 = vunpack.c.l.b16 %v2135
    %v2361 = vunpack.c.l.b16 %v2136
    %v2362 = vunpack.c.l.b16 %v2137
    %v2363 = vunpack.c.l.b16 %v2138
    %v2364 = vunpack.c.l.b16 %v2139
    %v2365 = vunpack.c.l.b16 %v2140
    %v2366 = vunpack.c.l.b16 %v2141
    %v2367 = vunpack.c.l.b16 %v2142
    %v2368 = vunpack.c.l.b16 %v2143
    %v2369 = vunpack.c.l.b16 %v2144
    %v2370 = vunpack.c.l.b16 %v2145
    %v2371 = vunpack.c.l.b16 %v2146
    %v2372 = vunpack.c.l.b16 %v2147
    %v2373 = vunpack.c.l.b16 %v2148
    %v2374 = vunpack.c.l.b16 %v2149
    %v2375 = vunpack.c.l.b16 %v2150
    %v2376 = vunpack.c.l.b16 %v2151
    %v2377 = vunpack.c.l.b16 %v2152
    %v2378 = vunpack.c.l.b16 %v2153
    %v2379 = vunpack.c.l.b16 %v2154
    %v2380 = vunpack.c.l.b16 %v2155
    %v2381 = vunpack.c.l.b16 %v2156
    %v2382 = vunpack.c.l.b16 %v2157
    %v2383 = vunpack.c.l.b16 %v2158
    %v2384 = vunpack.c.l.b16 %v2159
    %v2385 = vunpack.c.l.b16 %v2160
    %v2386 = vunpack.c.l.b16 %v2161
    %v2387 = vunpack.c.l.b16 %v2162
    %v2388 = vunpack.c.l.b16 %v2163
    %v2389 = vunpack.c.l.b16 %v2164
    %v2390 = vunpack.c.l.b16 %v2165
    %v2391 = vunpack.c.l.b16 %v2166
    %v2392 = vunpack.c.l.b16 %v2167
    %v2393 = vunpack.c.l.b16 %v2168
    %v2394 = vunpack.c.l.b16 %v2169
    %v2395 = vunpack.c.l.b16 %v2170
    %v2396 = vunpack.c.l.b16 %v2171
    %v2397 = vunpack.c.l.b16 %v2172
    %v2398 = vunpack.c.l.b16 %v2173
    %v2399 = vunpack.c.l.b16 %v2174
    %v2400 = vunpack.c.l.b16 %v2175
    %v2401 = vpack.c.b16 %v2306, %v2305
    %v2402 = vpack.c.b16 %v2308, %v2307
    %v2403 = vpack.c.b16 %v2310, %v2309
    %v2404 = vpack.c.b16 %v2312, %v2311
    %v2405 = vpack.c.b16 %v2314, %v2313
    %v2406 = vpack.c.b16 %v2316, %v2315
    %v2407 = vpack.c.b16 %v2318, %v2317
    %v2408 = vpack.c.b16 %v2320, %v2319
    %v2409 = vpack.c.b16 %v2322, %v2321
    %v2410 = vpack.c.b16 %v2324, %v2323
    %v2411 = vpack.c.b16 %v2326, %v2325
    %v2412 = vpack.c.b16 %v2328, %v2327
    %v2413 = vpack.c.b16 %v2330, %v2329
    %v2414 = vpack.c.b16 %v2332, %v2331
    %v2415 = vpack.c.b16 %v2334, %v2333
    %v2416 = vpack.c.b16 %v2336, %v2335
    %v2417 = vpack.c.b16 %v2338, %v2337
    %v2418 = vpack.c.b16 %v2340, %v2339
    %v2419 = vpack.c.b16 %v2342, %v2341
    %v2420 = vpack.c.b16 %v2344, %v2343
    %v2421 = vpack.c.b16 %v2346, %v2345
    %v2422 = vpack.c.b16 %v2348, %v2347
    %v2423 = vpack.c.b16 %v2350, %v2349
    %v2424 = vpack.c.b16 %v2352, %v2351
    %v2425 = vpack.c.b16 %v2354, %v2353
    %v2426 = vpack.c.b16 %v2356, %v2355
    %v2427 = vpack.c.b16 %v2358, %v2357
    %v2428 = vpack.c.b16 %v2360, %v2359
    %v2429 = vpack.c.b16 %v2362, %v2361
    %v2430 = vpack.c.b16 %v2364, %v2363
    %v2431 = vpack.c.b16 %v2366, %v2365
    %v2432 = vpack.c.b16 %v2368, %v2367
    %v2433 = vpack.c.b16 %v2370, %v2369
    %v2434 = vpack.c.b16 %v2372, %v2371
    %v2435 = vpack.c.b16 %v2374, %v2373
    %v2436 = vpack.c.b16 %v2376, %v2375
    %v2437 = vpack.c.b16 %v2378, %v2377
    %v2438 = vpack.c.b16 %v2380, %v2379
    %v2439 = vpack.c.b16 %v2382, %v2381
    %v2440 = vpack.c.b16 %v2384, %v2383
    %v2441 = vpack.c.b16 %v2386, %v2385
    %v2442 = vpack.c.b16 %v2388, %v2387
    %v2443 = vpack.c.b16 %v2390, %v2389
    %v2444 = vpack.c.b16 %v2392, %v2391
    %v2445 = vpack.c.b16 %v2394, %v2393
    %v2446 = vpack.c.b16 %v2396, %v2395
    %v2447 = vpack.c.b16 %v2398, %v2397
    %v2448 = vpack.c.b16 %v2400, %v2399
    %v2529 = vunpack.c.l.b16 %v2177
    %v2530 = vunpack.c.h.b16 %v2177
    %v2531 = vunpack.c.l.b16 %v2178
    %v2532 = vunpack.c.l.b16 %v2179
    %v2533 = vunpack.c.h.b16 %v2179
    %v2534 = vunpack.c.l.b16 %v2180
    %v2535 = vunpack.c.l.b16 %v2181
    %v2536 = vunpack.c.h.b16 %v2181
    %v2537 = vunpack.c.l.b16 %v2182
    %v2538 = vunpack.c.l.b16 %v2183
    %v2539 = vunpack.c.h.b16 %v2183
    %v2540 = vunpack.c.l.b16 %v2184
    %v2541 = vunpack.c.l.b16 %v2185
    %v2542 = vunpack.c.h.b16 %v2185
    %v2543 = vunpack.c.l.b16 %v2186
    %v2544 = vunpack.c.l.b16 %v2187
    %v2545 = vunpack.c.h.b16 %v2187
    %v2546 = vunpack.c.l.b16 %v2188
    %v2547 = vunpack.c.l.b16 %v2189
    %v2548 = vunpack.c.h.b16 %v2189
    %v2549 = vunpack.c.l.b16 %v2190
    %v2550 = vunpack.c.l.b16 %v2191
    %v2551 = vunpack.c.h.b16 %v2191
    %v2552 = vunpack.c.l.b16 %v2192
    %v2553 = vunpack.c.l.b16 %v2193
    %v2554 = vunpack.c.h.b16 %v2193
    %v2555 = vunpack.c.l.b16 %v2194
    %v2556 = vunpack.c.l.b16 %v2195
    %v2557 = vunpack.c.h.b16 %v2195
    %v2558 = vunpack.c.l.b16 %v2196
    %v2559 = vunpack.c.l.b16 %v2197
    %v2560 = vunpack.c.h.b16 %v2197
    %v2561 = vunpack.c.l.b16 %v2198
    %v2562 = vunpack.c.l.b16 %v2199
    %v2563 = vunpack.c.h.b16 %v2199
    %v2564 = vunpack.c.l.b16 %v2200
    %v2565 = vunpack.c.l.b16 %v2201
    %v2566 = vunpack.c.h.b16 %v2201
    %v2567 = vunpack.c.l.b16 %v2202
    %v2568 = vunpack.c.l.b16 %v2203
    %v2569 = vunpack.c.h.b16 %v2203
    %v2570 = vunpack.c.l.b16 %v2204
    %v2571 = vunpack.c.l.b16 %v2205
    %v2572 = vunpack.c.h.b16 %v2205
    %v2573 = vunpack.c.l.b16 %v2206
    %v2574 = vunpack.c.l.b16 %v2207
    %v2575 = vunpack.c.h.b16 %v2207
    %v2576 = vunpack.c.l.b16 %v2208
    %v2577 = vpack.c.b16 %v2532, %v2529
    %v2578 = vpack.c.b16 %v2533, %v2530
    %v2579 = vpack.c.b16 %v2534, %v2531
    %v2580 = vpack.c.b16 %v2538, %v2535
    %v2581 = vpack.c.b16 %v2539, %v2536
    %v2582 = vpack.c.b16 %v2540, %v2537
    %v2583 = vpack.c.b16 %v2544, %v2541
    %v2584 = vpack.c.b16 %v2545, %v2542
    %v2585 = vpack.c.b16 %v2546, %v2543
    %v2586 = vpack.c.b16 %v2550, %v2547
    %v2587 = vpack.c.b16 %v2551, %v2548
    %v2588 = vpack.c.b16 %v2552, %v2549
    %v2589 = vpack.c.b16 %v2556, %v2553
    %v2590 = vpack.c.b16 %v2557, %v2554
    %v2591 = vpack.c.b16 %v2558, %v2555
    %v2592 = vpack.c.b16 %v2562, %v2559
    %v2593 = vpack.c.b16 %v2563, %v2560
    %v2594 = vpack.c.b16 %v2564, %v2561
    %v2595 = vpack.c.b16 %v2568, %v2565
    %v2596 = vpack.c.b16 %v2569, %v2566
    %v2597 = vpack.c.b16 %v2570, %v2567
    %v2598 = vpack.c.b16 %v2574, %v2571
    %v2599 = vpack.c.b16 %v2575, %v2572
    %v2600 = vpack.c.b16 %v2576, %v2573
    %2625 = vmatpush.bf16.msra.mxu0 %v2598
    %2626 = vmatpush.bf16.msra.mxu0 %v2595
    %2627 = vmatpush.bf16.msra.mxu0 %v2592
    %2628 = vmatpush.bf16.msra.mxu0 %v2589
    %2629 = vmatpush.bf16.msra.mxu0 %v2586
    %2630 = vmatpush.bf16.msra.mxu0 %v2583
    %2631 = vmatpush.bf16.msra.mxu0 %v2580
    %2632 = vmatpush.bf16.msra.mxu0 %v2577
    %2633 = vmatmul.bf16.gmra.mxu0 %v2401
    %v2634 = vpop.f32.mrf.mxu0
    %v2635 = vadd.f32 0.0, %v2634
    %v2636 = vpop.f32.mrf.mxu0
    %v2637 = vadd.f32 0.0, %v2636
    %2638 = vmatmul.bf16.gmra.mxu0 %v2402
    %v2639 = vpop.f32.mrf.mxu0
    %v2640 = vadd.f32 0.0, %v2639
    %v2641 = vpop.f32.mrf.mxu0
    %v2642 = vadd.f32 0.0, %v2641
    %2643 = vmatmul.bf16.gmra.mxu0 %v2403
    %v2644 = vpop.f32.mrf.mxu0
    %v2645 = vadd.f32 0.0, %v2644
    %v2646 = vpop.f32.mrf.mxu0
    %v2647 = vadd.f32 0.0, %v2646
    %2648 = vmatmul.bf16.gmra.mxu0 %v2404
    %v2649 = vpop.f32.mrf.mxu0
    %v2650 = vadd.f32 0.0, %v2649
    %v2651 = vpop.f32.mrf.mxu0
    %v2652 = vadd.f32 0.0, %v2651
    %2653 = vmatmul.bf16.gmra.mxu0 %v2405
    %v2654 = vpop.f32.mrf.mxu0
    %v2655 = vadd.f32 0.0, %v2654
    %v2656 = vpop.f32.mrf.mxu0
    %v2657 = vadd.f32 0.0, %v2656
    %2658 = vmatmul.bf16.gmra.mxu0 %v2406
    %v2659 = vpop.f32.mrf.mxu0
    %v2660 = vadd.f32 0.0, %v2659
    %v2661 = vpop.f32.mrf.mxu0
    %v2662 = vadd.f32 0.0, %v2661
    %2663 = vmatmul.bf16.gmra.mxu0 %v2407
    %v2664 = vpop.f32.mrf.mxu0
    %v2665 = vadd.f32 0.0, %v2664
    %v2666 = vpop.f32.mrf.mxu0
    %v2667 = vadd.f32 0.0, %v2666
    %2668 = vmatmul.bf16.gmra.mxu0 %v2408
    %v2669 = vpop.f32.mrf.mxu0
    %v2670 = vadd.f32 0.0, %v2669
    %v2671 = vpop.f32.mrf.mxu0
    %v2672 = vadd.f32 0.0, %v2671
    %2673 = vmatmul.bf16.gmra.mxu0 %v2409
    %v2674 = vpop.f32.mrf.mxu0
    %v2675 = vadd.f32 0.0, %v2674
    %v2676 = vpop.f32.mrf.mxu0
    %v2677 = vadd.f32 0.0, %v2676
    %2678 = vmatmul.bf16.gmra.mxu0 %v2410
    %v2679 = vpop.f32.mrf.mxu0
    %v2680 = vadd.f32 0.0, %v2679
    %v2681 = vpop.f32.mrf.mxu0
    %v2682 = vadd.f32 0.0, %v2681
    %2683 = vmatmul.bf16.gmra.mxu0 %v2411
    %v2684 = vpop.f32.mrf.mxu0
    %v2685 = vadd.f32 0.0, %v2684
    %v2686 = vpop.f32.mrf.mxu0
    %v2687 = vadd.f32 0.0, %v2686
    %2688 = vmatmul.bf16.gmra.mxu0 %v2412
    %v2689 = vpop.f32.mrf.mxu0
    %v2690 = vadd.f32 0.0, %v2689
    %v2691 = vpop.f32.mrf.mxu0
    %v2692 = vadd.f32 0.0, %v2691
    %2693 = vmatmul.bf16.gmra.mxu0 %v2413
    %v2694 = vpop.f32.mrf.mxu0
    %v2695 = vadd.f32 0.0, %v2694
    %v2696 = vpop.f32.mrf.mxu0
    %v2697 = vadd.f32 0.0, %v2696
    %2698 = vmatmul.bf16.gmra.mxu0 %v2414
    %v2699 = vpop.f32.mrf.mxu0
    %v2700 = vadd.f32 0.0, %v2699
    %v2701 = vpop.f32.mrf.mxu0
    %v2702 = vadd.f32 0.0, %v2701
    %2703 = vmatmul.bf16.gmra.mxu0 %v2415
    %v2704 = vpop.f32.mrf.mxu0
    %v2705 = vadd.f32 0.0, %v2704
    %v2706 = vpop.f32.mrf.mxu0
    %v2707 = vadd.f32 0.0, %v2706
    %2708 = vmatmul.bf16.gmra.mxu0 %v2416
    %v2709 = vpop.f32.mrf.mxu0
    %v2710 = vadd.f32 0.0, %v2709
    %v2711 = vpop.f32.mrf.mxu0
    %v2712 = vadd.f32 0.0, %v2711
    %2713 = vmatmul.bf16.gmra.mxu0 %v2417
    %v2714 = vpop.f32.mrf.mxu0
    %v2715 = vadd.f32 0.0, %v2714
    %v2716 = vpop.f32.mrf.mxu0
    %v2717 = vadd.f32 0.0, %v2716
    %2718 = vmatmul.bf16.gmra.mxu0 %v2418
    %v2719 = vpop.f32.mrf.mxu0
    %v2720 = vadd.f32 0.0, %v2719
    %v2721 = vpop.f32.mrf.mxu0
    %v2722 = vadd.f32 0.0, %v2721
    %2723 = vmatmul.bf16.gmra.mxu0 %v2419
    %v2724 = vpop.f32.mrf.mxu0
    %v2725 = vadd.f32 0.0, %v2724
    %v2726 = vpop.f32.mrf.mxu0
    %v2727 = vadd.f32 0.0, %v2726
    %2728 = vmatmul.bf16.gmra.mxu0 %v2420
    %v2729 = vpop.f32.mrf.mxu0
    %v2730 = vadd.f32 0.0, %v2729
    %v2731 = vpop.f32.mrf.mxu0
    %v2732 = vadd.f32 0.0, %v2731
    %2733 = vmatmul.bf16.gmra.mxu0 %v2421
    %v2734 = vpop.f32.mrf.mxu0
    %v2735 = vadd.f32 0.0, %v2734
    %v2736 = vpop.f32.mrf.mxu0
    %v2737 = vadd.f32 0.0, %v2736
    %2738 = vmatmul.bf16.gmra.mxu0 %v2422
    %v2739 = vpop.f32.mrf.mxu0
    %v2740 = vadd.f32 0.0, %v2739
    %v2741 = vpop.f32.mrf.mxu0
    %v2742 = vadd.f32 0.0, %v2741
    %2743 = vmatmul.bf16.gmra.mxu0 %v2423
    %v2744 = vpop.f32.mrf.mxu0
    %v2745 = vadd.f32 0.0, %v2744
    %v2746 = vpop.f32.mrf.mxu0
    %v2747 = vadd.f32 0.0, %v2746
    %2748 = vmatmul.bf16.gmra.mxu0 %v2424
    %v2749 = vpop.f32.mrf.mxu0
    %v2750 = vadd.f32 0.0, %v2749
    %v2751 = vpop.f32.mrf.mxu0
    %v2752 = vadd.f32 0.0, %v2751
    %2753 = vmatmul.bf16.gmra.mxu0 %v2425
    %v2754 = vpop.f32.mrf.mxu0
    %v2755 = vadd.f32 0.0, %v2754
    %v2756 = vpop.f32.mrf.mxu0
    %v2757 = vadd.f32 0.0, %v2756
    %2758 = vmatmul.bf16.gmra.mxu0 %v2426
    %v2759 = vpop.f32.mrf.mxu0
    %v2760 = vadd.f32 0.0, %v2759
    %v2761 = vpop.f32.mrf.mxu0
    %v2762 = vadd.f32 0.0, %v2761
    %2763 = vmatmul.bf16.gmra.mxu0 %v2427
    %v2764 = vpop.f32.mrf.mxu0
    %v2765 = vadd.f32 0.0, %v2764
    %v2766 = vpop.f32.mrf.mxu0
    %v2767 = vadd.f32 0.0, %v2766
    %2768 = vmatmul.bf16.gmra.mxu0 %v2428
    %v2769 = vpop.f32.mrf.mxu0
    %v2770 = vadd.f32 0.0, %v2769
    %v2771 = vpop.f32.mrf.mxu0
    %v2772 = vadd.f32 0.0, %v2771
    %2773 = vmatmul.bf16.gmra.mxu0 %v2429
    %v2774 = vpop.f32.mrf.mxu0
    %v2775 = vadd.f32 0.0, %v2774
    %v2776 = vpop.f32.mrf.mxu0
    %v2777 = vadd.f32 0.0, %v2776
    %2778 = vmatmul.bf16.gmra.mxu0 %v2430
    %v2779 = vpop.f32.mrf.mxu0
    %v2780 = vadd.f32 0.0, %v2779
    %v2781 = vpop.f32.mrf.mxu0
    %v2782 = vadd.f32 0.0, %v2781
    %2783 = vmatmul.bf16.gmra.mxu0 %v2431
    %v2784 = vpop.f32.mrf.mxu0
    %v2785 = vadd.f32 0.0, %v2784
    %v2786 = vpop.f32.mrf.mxu0
    %v2787 = vadd.f32 0.0, %v2786
    %2788 = vmatmul.bf16.gmra.mxu0 %v2432
    %v2789 = vpop.f32.mrf.mxu0
    %v2790 = vadd.f32 0.0, %v2789
    %v2791 = vpop.f32.mrf.mxu0
    %v2792 = vadd.f32 0.0, %v2791
    %2793 = vmatmul.bf16.gmra.mxu0 %v2433
    %v2794 = vpop.f32.mrf.mxu0
    %v2795 = vadd.f32 0.0, %v2794
    %v2796 = vpop.f32.mrf.mxu0
    %v2797 = vadd.f32 0.0, %v2796
    %2798 = vmatmul.bf16.gmra.mxu0 %v2434
    %v2799 = vpop.f32.mrf.mxu0
    %v2800 = vadd.f32 0.0, %v2799
    %v2801 = vpop.f32.mrf.mxu0
    %v2802 = vadd.f32 0.0, %v2801
    %2803 = vmatmul.bf16.gmra.mxu0 %v2435
    %v2804 = vpop.f32.mrf.mxu0
    %v2805 = vadd.f32 0.0, %v2804
    %v2806 = vpop.f32.mrf.mxu0
    %v2807 = vadd.f32 0.0, %v2806
    %2808 = vmatmul.bf16.gmra.mxu0 %v2436
    %v2809 = vpop.f32.mrf.mxu0
    %v2810 = vadd.f32 0.0, %v2809
    %v2811 = vpop.f32.mrf.mxu0
    %v2812 = vadd.f32 0.0, %v2811
    %2813 = vmatmul.bf16.gmra.mxu0 %v2437
    %v2814 = vpop.f32.mrf.mxu0
    %v2815 = vadd.f32 0.0, %v2814
    %v2816 = vpop.f32.mrf.mxu0
    %v2817 = vadd.f32 0.0, %v2816
    %2818 = vmatmul.bf16.gmra.mxu0 %v2438
    %v2819 = vpop.f32.mrf.mxu0
    %v2820 = vadd.f32 0.0, %v2819
    %v2821 = vpop.f32.mrf.mxu0
    %v2822 = vadd.f32 0.0, %v2821
    %2823 = vmatmul.bf16.gmra.mxu0 %v2439
    %v2824 = vpop.f32.mrf.mxu0
    %v2825 = vadd.f32 0.0, %v2824
    %v2826 = vpop.f32.mrf.mxu0
    %v2827 = vadd.f32 0.0, %v2826
    %2828 = vmatmul.bf16.gmra.mxu0 %v2440
    %v2829 = vpop.f32.mrf.mxu0
    %v2830 = vadd.f32 0.0, %v2829
    %v2831 = vpop.f32.mrf.mxu0
    %v2832 = vadd.f32 0.0, %v2831
    %2833 = vmatmul.bf16.gmra.mxu0 %v2441
    %v2834 = vpop.f32.mrf.mxu0
    %v2835 = vadd.f32 0.0, %v2834
    %v2836 = vpop.f32.mrf.mxu0
    %v2837 = vadd.f32 0.0, %v2836
    %2838 = vmatmul.bf16.gmra.mxu0 %v2442
    %v2839 = vpop.f32.mrf.mxu0
    %v2840 = vadd.f32 0.0, %v2839
    %v2841 = vpop.f32.mrf.mxu0
    %v2842 = vadd.f32 0.0, %v2841
    %2843 = vmatmul.bf16.gmra.mxu0 %v2443
    %v2844 = vpop.f32.mrf.mxu0
    %v2845 = vadd.f32 0.0, %v2844
    %v2846 = vpop.f32.mrf.mxu0
    %v2847 = vadd.f32 0.0, %v2846
    %2848 = vmatmul.bf16.gmra.mxu0 %v2444
    %v2849 = vpop.f32.mrf.mxu0
    %v2850 = vadd.f32 0.0, %v2849
    %v2851 = vpop.f32.mrf.mxu0
    %v2852 = vadd.f32 0.0, %v2851
    %2853 = vmatmul.bf16.gmra.mxu0 %v2445
    %v2854 = vpop.f32.mrf.mxu0
    %v2855 = vadd.f32 0.0, %v2854
    %v2856 = vpop.f32.mrf.mxu0
    %v2857 = vadd.f32 0.0, %v2856
    %2858 = vmatmul.bf16.gmra.mxu0 %v2446
    %v2859 = vpop.f32.mrf.mxu0
    %v2860 = vadd.f32 0.0, %v2859
    %v2861 = vpop.f32.mrf.mxu0
    %v2862 = vadd.f32 0.0, %v2861
    %2863 = vmatmul.bf16.gmra.mxu0 %v2447
    %v2864 = vpop.f32.mrf.mxu0
    %v2865 = vadd.f32 0.0, %v2864
    %v2866 = vpop.f32.mrf.mxu0
    %v2867 = vadd.f32 0.0, %v2866
    %2868 = vmatmul.bf16.gmra.mxu0 %v2448
    %v2869 = vpop.f32.mrf.mxu0
    %v2870 = vadd.f32 0.0, %v2869
    %v2871 = vpop.f32.mrf.mxu0
    %v2872 = vadd.f32 0.0, %v2871
    %2873 = vdwg.mxu0
    %2874 = vmatpush.bf16.msra.mxu0 %v2599
    %2875 = vmatpush.bf16.msra.mxu0 %v2596
    %2876 = vmatpush.bf16.msra.mxu0 %v2593
    %2877 = vmatpush.bf16.msra.mxu0 %v2590
    %2878 = vmatpush.bf16.msra.mxu0 %v2587
    %2879 = vmatpush.bf16.msra.mxu0 %v2584
    %2880 = vmatpush.bf16.msra.mxu0 %v2581
    %2881 = vmatpush.bf16.msra.mxu0 %v2578
    %2882 = vmatmul.bf16.gmra.mxu0 %v2401
    %v2883 = vpop.f32.mrf.mxu0
    %v2884 = vadd.f32 0.0, %v2883
    %v2885 = vpop.f32.mrf.mxu0
    %v2886 = vadd.f32 0.0, %v2885
    %2887 = vmatmul.bf16.gmra.mxu0 %v2402
    %v2888 = vpop.f32.mrf.mxu0
    %v2889 = vpop.f32.mrf.mxu0
    %v2890 = vadd.f32 0.0, %v2889
    %2891 = vmatmul.bf16.gmra.mxu0 %v2403
    %v2892 = vpop.f32.mrf.mxu0
    %v2893 = vadd.f32 0.0, %v2892
    %v2894 = vpop.f32.mrf.mxu0
    %2895 = vmatmul.bf16.gmra.mxu0 %v2404
    %v2896 = vpop.f32.mrf.mxu0
    %v2897 = vadd.f32 0.0, %v2896
    %v2898 = vpop.f32.mrf.mxu0
    %v2899 = vadd.f32 0.0, %v2898
    %2900 = vmatmul.bf16.gmra.mxu0 %v2405
    %v2901 = vpop.f32.mrf.mxu0
    %v2902 = vpop.f32.mrf.mxu0
    %v2903 = vadd.f32 0.0, %v2902
    %2904 = vmatmul.bf16.gmra.mxu0 %v2406
    %v2905 = vpop.f32.mrf.mxu0
    %v2906 = vadd.f32 0.0, %v2905
    %v2907 = vpop.f32.mrf.mxu0
    %2908 = vmatmul.bf16.gmra.mxu0 %v2407
    %v2909 = vpop.f32.mrf.mxu0
    %v2910 = vadd.f32 0.0, %v2909
    %v2911 = vpop.f32.mrf.mxu0
    %v2912 = vadd.f32 0.0, %v2911
    %2913 = vmatmul.bf16.gmra.mxu0 %v2408
    %v2914 = vpop.f32.mrf.mxu0
    %v2915 = vpop.f32.mrf.mxu0
    %v2916 = vadd.f32 0.0, %v2915
    %2917 = vmatmul.bf16.gmra.mxu0 %v2409
    %v2918 = vpop.f32.mrf.mxu0
    %v2919 = vadd.f32 0.0, %v2918
    %v2920 = vpop.f32.mrf.mxu0
    %2921 = vmatmul.bf16.gmra.mxu0 %v2410
    %v2922 = vpop.f32.mrf.mxu0
    %v2923 = vadd.f32 0.0, %v2922
    %v2924 = vpop.f32.mrf.mxu0
    %v2925 = vadd.f32 0.0, %v2924
    %2926 = vmatmul.bf16.gmra.mxu0 %v2411
    %v2927 = vpop.f32.mrf.mxu0
    %v2928 = vpop.f32.mrf.mxu0
    %v2929 = vadd.f32 0.0, %v2928
    %2930 = vmatmul.bf16.gmra.mxu0 %v2412
    %v2931 = vpop.f32.mrf.mxu0
    %v2932 = vadd.f32 0.0, %v2931
    %v2933 = vpop.f32.mrf.mxu0
    %2934 = vmatmul.bf16.gmra.mxu0 %v2413
    %v2935 = vpop.f32.mrf.mxu0
    %v2936 = vadd.f32 0.0, %v2935
    %v2937 = vpop.f32.mrf.mxu0
    %v2938 = vadd.f32 0.0, %v2937
    %2939 = vmatmul.bf16.gmra.mxu0 %v2414
    %v2940 = vpop.f32.mrf.mxu0
    %v2941 = vpop.f32.mrf.mxu0
    %v2942 = vadd.f32 0.0, %v2941
    %2943 = vmatmul.bf16.gmra.mxu0 %v2415
    %v2944 = vpop.f32.mrf.mxu0
    %v2945 = vadd.f32 0.0, %v2944
    %v2946 = vpop.f32.mrf.mxu0
    %2947 = vmatmul.bf16.gmra.mxu0 %v2416
    %v2948 = vpop.f32.mrf.mxu0
    %v2949 = vadd.f32 0.0, %v2948
    %v2950 = vpop.f32.mrf.mxu0
    %v2951 = vadd.f32 0.0, %v2950
    %2952 = vmatmul.bf16.gmra.mxu0 %v2417
    %v2953 = vpop.f32.mrf.mxu0
    %v2954 = vpop.f32.mrf.mxu0
    %v2955 = vadd.f32 0.0, %v2954
    %2956 = vmatmul.bf16.gmra.mxu0 %v2418
    %v2957 = vpop.f32.mrf.mxu0
    %v2958 = vadd.f32 0.0, %v2957
    %v2959 = vpop.f32.mrf.mxu0
    %2960 = vmatmul.bf16.gmra.mxu0 %v2419
    %v2961 = vpop.f32.mrf.mxu0
    %v2962 = vadd.f32 0.0, %v2961
    %v2963 = vpop.f32.mrf.mxu0
    %v2964 = vadd.f32 0.0, %v2963
    %2965 = vmatmul.bf16.gmra.mxu0 %v2420
    %v2966 = vpop.f32.mrf.mxu0
    %v2967 = vpop.f32.mrf.mxu0
    %v2968 = vadd.f32 0.0, %v2967
    %2969 = vmatmul.bf16.gmra.mxu0 %v2421
    %v2970 = vpop.f32.mrf.mxu0
    %v2971 = vadd.f32 0.0, %v2970
    %v2972 = vpop.f32.mrf.mxu0
    %2973 = vmatmul.bf16.gmra.mxu0 %v2422
    %v2974 = vpop.f32.mrf.mxu0
    %v2975 = vadd.f32 0.0, %v2974
    %v2976 = vpop.f32.mrf.mxu0
    %v2977 = vadd.f32 0.0, %v2976
    %2978 = vmatmul.bf16.gmra.mxu0 %v2423
    %v2979 = vpop.f32.mrf.mxu0
    %v2980 = vpop.f32.mrf.mxu0
    %v2981 = vadd.f32 0.0, %v2980
    %2982 = vmatmul.bf16.gmra.mxu0 %v2424
    %v2983 = vpop.f32.mrf.mxu0
    %v2984 = vadd.f32 0.0, %v2983
    %v2985 = vpop.f32.mrf.mxu0
    %2986 = vmatmul.bf16.gmra.mxu0 %v2425
    %v2987 = vpop.f32.mrf.mxu0
    %v2988 = vadd.f32 0.0, %v2987
    %v2989 = vpop.f32.mrf.mxu0
    %v2990 = vadd.f32 0.0, %v2989
    %2991 = vmatmul.bf16.gmra.mxu0 %v2426
    %v2992 = vpop.f32.mrf.mxu0
    %v2993 = vpop.f32.mrf.mxu0
    %v2994 = vadd.f32 0.0, %v2993
    %2995 = vmatmul.bf16.gmra.mxu0 %v2427
    %v2996 = vpop.f32.mrf.mxu0
    %v2997 = vadd.f32 0.0, %v2996
    %v2998 = vpop.f32.mrf.mxu0
    %2999 = vmatmul.bf16.gmra.mxu0 %v2428
    %v3000 = vpop.f32.mrf.mxu0
    %v3001 = vadd.f32 0.0, %v3000
    %v3002 = vpop.f32.mrf.mxu0
    %v3003 = vadd.f32 0.0, %v3002
    %3004 = vmatmul.bf16.gmra.mxu0 %v2429
    %v3005 = vpop.f32.mrf.mxu0
    %v3006 = vpop.f32.mrf.mxu0
    %v3007 = vadd.f32 0.0, %v3006
    %3008 = vmatmul.bf16.gmra.mxu0 %v2430
    %v3009 = vpop.f32.mrf.mxu0
    %v3010 = vadd.f32 0.0, %v3009
    %v3011 = vpop.f32.mrf.mxu0
    %3012 = vmatmul.bf16.gmra.mxu0 %v2431
    %v3013 = vpop.f32.mrf.mxu0
    %v3014 = vadd.f32 0.0, %v3013
    %v3015 = vpop.f32.mrf.mxu0
    %v3016 = vadd.f32 0.0, %v3015
    %3017 = vmatmul.bf16.gmra.mxu0 %v2432
    %v3018 = vpop.f32.mrf.mxu0
    %v3019 = vpop.f32.mrf.mxu0
    %v3020 = vadd.f32 0.0, %v3019
    %3021 = vmatmul.bf16.gmra.mxu0 %v2433
    %v3022 = vpop.f32.mrf.mxu0
    %v3023 = vadd.f32 0.0, %v3022
    %v3024 = vpop.f32.mrf.mxu0
    %3025 = vmatmul.bf16.gmra.mxu0 %v2434
    %v3026 = vpop.f32.mrf.mxu0
    %v3027 = vadd.f32 0.0, %v3026
    %v3028 = vpop.f32.mrf.mxu0
    %v3029 = vadd.f32 0.0, %v3028
    %3030 = vmatmul.bf16.gmra.mxu0 %v2435
    %v3031 = vpop.f32.mrf.mxu0
    %v3032 = vpop.f32.mrf.mxu0
    %v3033 = vadd.f32 0.0, %v3032
    %3034 = vmatmul.bf16.gmra.mxu0 %v2436
    %v3035 = vpop.f32.mrf.mxu0
    %v3036 = vadd.f32 0.0, %v3035
    %v3037 = vpop.f32.mrf.mxu0
    %3038 = vmatmul.bf16.gmra.mxu0 %v2437
    %v3039 = vpop.f32.mrf.mxu0
    %v3040 = vadd.f32 0.0, %v3039
    %v3041 = vpop.f32.mrf.mxu0
    %v3042 = vadd.f32 0.0, %v3041
    %3043 = vmatmul.bf16.gmra.mxu0 %v2438
    %v3044 = vpop.f32.mrf.mxu0
    %v3045 = vpop.f32.mrf.mxu0
    %v3046 = vadd.f32 0.0, %v3045
    %3047 = vmatmul.bf16.gmra.mxu0 %v2439
    %v3048 = vpop.f32.mrf.mxu0
    %v3049 = vadd.f32 0.0, %v3048
    %v3050 = vpop.f32.mrf.mxu0
    %3051 = vmatmul.bf16.gmra.mxu0 %v2440
    %v3052 = vpop.f32.mrf.mxu0
    %v3053 = vadd.f32 0.0, %v3052
    %v3054 = vpop.f32.mrf.mxu0
    %v3055 = vadd.f32 0.0, %v3054
    %3056 = vmatmul.bf16.gmra.mxu0 %v2441
    %v3057 = vpop.f32.mrf.mxu0
    %v3058 = vpop.f32.mrf.mxu0
    %v3059 = vadd.f32 0.0, %v3058
    %3060 = vmatmul.bf16.gmra.mxu0 %v2442
    %v3061 = vpop.f32.mrf.mxu0
    %v3062 = vadd.f32 0.0, %v3061
    %v3063 = vpop.f32.mrf.mxu0
    %3064 = vmatmul.bf16.gmra.mxu0 %v2443
    %v3065 = vpop.f32.mrf.mxu0
    %v3066 = vadd.f32 0.0, %v3065
    %v3067 = vpop.f32.mrf.mxu0
    %v3068 = vadd.f32 0.0, %v3067
    %3069 = vmatmul.bf16.gmra.mxu0 %v2444
    %v3070 = vpop.f32.mrf.mxu0
    %v3071 = vpop.f32.mrf.mxu0
    %v3072 = vadd.f32 0.0, %v3071
    %3073 = vmatmul.bf16.gmra.mxu0 %v2445
    %v3074 = vpop.f32.mrf.mxu0
    %v3075 = vadd.f32 0.0, %v3074
    %v3076 = vpop.f32.mrf.mxu0
    %3077 = vmatmul.bf16.gmra.mxu0 %v2446
    %v3078 = vpop.f32.mrf.mxu0
    %v3079 = vadd.f32 0.0, %v3078
    %v3080 = vpop.f32.mrf.mxu0
    %v3081 = vadd.f32 0.0, %v3080
    %3082 = vmatmul.bf16.gmra.mxu0 %v2447
    %v3083 = vpop.f32.mrf.mxu0
    %v3084 = vpop.f32.mrf.mxu0
    %v3085 = vadd.f32 0.0, %v3084
    %3086 = vmatmul.bf16.gmra.mxu0 %v2448
    %v3087 = vpop.f32.mrf.mxu0
    %v3088 = vadd.f32 0.0, %v3087
    %v3089 = vpop.f32.mrf.mxu0
    %3090 = vdwg.mxu0
    %3091 = vmatpush.bf16.msra.mxu0 %v2600
    %3092 = vmatpush.bf16.msra.mxu0 %v2597
    %3093 = vmatpush.bf16.msra.mxu0 %v2594
    %3094 = vmatpush.bf16.msra.mxu0 %v2591
    %3095 = vmatpush.bf16.msra.mxu0 %v2588
    %3096 = vmatpush.bf16.msra.mxu0 %v2585
    %3097 = vmatpush.bf16.msra.mxu0 %v2582
    %3098 = vmatpush.bf16.msra.mxu0 %v2579
    %3099 = vmatmul.bf16.gmra.mxu0 %v2401
    %v3100 = vpop.f32.mrf.mxu0
    %v3101 = vadd.f32 0.0, %v3100
    %v3102 = vpop.f32.mrf.mxu0
    %v3103 = vadd.f32 0.0, %v3102
    %3104 = vmatmul.bf16.gmra.mxu0 %v2402
    %v3105 = vpop.f32.mrf.mxu0
    %v3106 = vadd.f32 0.0, %v3105
    %v3107 = vpop.f32.mrf.mxu0
    %v3108 = vadd.f32 0.0, %v3107
    %3109 = vmatmul.bf16.gmra.mxu0 %v2403
    %v3110 = vpop.f32.mrf.mxu0
    %v3111 = vadd.f32 0.0, %v3110
    %v3112 = vpop.f32.mrf.mxu0
    %v3113 = vadd.f32 0.0, %v3112
    %3114 = vmatmul.bf16.gmra.mxu0 %v2404
    %v3115 = vpop.f32.mrf.mxu0
    %v3116 = vadd.f32 0.0, %v3115
    %v3117 = vpop.f32.mrf.mxu0
    %v3118 = vadd.f32 0.0, %v3117
    %3119 = vmatmul.bf16.gmra.mxu0 %v2405
    %v3120 = vpop.f32.mrf.mxu0
    %v3121 = vadd.f32 0.0, %v3120
    %v3122 = vpop.f32.mrf.mxu0
    %v3123 = vadd.f32 0.0, %v3122
    %3124 = vmatmul.bf16.gmra.mxu0 %v2406
    %v3125 = vpop.f32.mrf.mxu0
    %v3126 = vadd.f32 0.0, %v3125
    %v3127 = vpop.f32.mrf.mxu0
    %v3128 = vadd.f32 0.0, %v3127
    %3129 = vmatmul.bf16.gmra.mxu0 %v2407
    %v3130 = vpop.f32.mrf.mxu0
    %v3131 = vadd.f32 0.0, %v3130
    %v3132 = vpop.f32.mrf.mxu0
    %v3133 = vadd.f32 0.0, %v3132
    %3134 = vmatmul.bf16.gmra.mxu0 %v2408
    %v3135 = vpop.f32.mrf.mxu0
    %v3136 = vadd.f32 0.0, %v3135
    %v3137 = vpop.f32.mrf.mxu0
    %v3138 = vadd.f32 0.0, %v3137
    %3139 = vmatmul.bf16.gmra.mxu0 %v2409
    %v3140 = vpop.f32.mrf.mxu0
    %v3141 = vadd.f32 0.0, %v3140
    %v3142 = vpop.f32.mrf.mxu0
    %v3143 = vadd.f32 0.0, %v3142
    %3144 = vmatmul.bf16.gmra.mxu0 %v2410
    %v3145 = vpop.f32.mrf.mxu0
    %v3146 = vadd.f32 0.0, %v3145
    %v3147 = vpop.f32.mrf.mxu0
    %v3148 = vadd.f32 0.0, %v3147
    %3149 = vmatmul.bf16.gmra.mxu0 %v2411
    %v3150 = vpop.f32.mrf.mxu0
    %v3151 = vadd.f32 0.0, %v3150
    %v3152 = vpop.f32.mrf.mxu0
    %v3153 = vadd.f32 0.0, %v3152
    %3154 = vmatmul.bf16.gmra.mxu0 %v2412
    %v3155 = vpop.f32.mrf.mxu0
    %v3156 = vadd.f32 0.0, %v3155
    %v3157 = vpop.f32.mrf.mxu0
    %v3158 = vadd.f32 0.0, %v3157
    %3159 = vmatmul.bf16.gmra.mxu0 %v2413
    %v3160 = vpop.f32.mrf.mxu0
    %v3161 = vadd.f32 0.0, %v3160
    %v3162 = vpop.f32.mrf.mxu0
    %v3163 = vadd.f32 0.0, %v3162
    %3164 = vmatmul.bf16.gmra.mxu0 %v2414
    %v3165 = vpop.f32.mrf.mxu0
    %v3166 = vadd.f32 0.0, %v3165
    %v3167 = vpop.f32.mrf.mxu0
    %v3168 = vadd.f32 0.0, %v3167
    %3169 = vmatmul.bf16.gmra.mxu0 %v2415
    %v3170 = vpop.f32.mrf.mxu0
    %v3171 = vadd.f32 0.0, %v3170
    %v3172 = vpop.f32.mrf.mxu0
    %v3173 = vadd.f32 0.0, %v3172
    %3174 = vmatmul.bf16.gmra.mxu0 %v2416
    %v3175 = vpop.f32.mrf.mxu0
    %v3176 = vadd.f32 0.0, %v3175
    %v3177 = vpop.f32.mrf.mxu0
    %v3178 = vadd.f32 0.0, %v3177
    %3179 = vmatmul.bf16.gmra.mxu0 %v2417
    %v3180 = vpop.f32.mrf.mxu0
    %v3181 = vadd.f32 0.0, %v3180
    %v3182 = vpop.f32.mrf.mxu0
    %v3183 = vadd.f32 0.0, %v3182
    %3184 = vmatmul.bf16.gmra.mxu0 %v2418
    %v3185 = vpop.f32.mrf.mxu0
    %v3186 = vadd.f32 0.0, %v3185
    %v3187 = vpop.f32.mrf.mxu0
    %v3188 = vadd.f32 0.0, %v3187
    %3189 = vmatmul.bf16.gmra.mxu0 %v2419
    %v3190 = vpop.f32.mrf.mxu0
    %v3191 = vadd.f32 0.0, %v3190
    %v3192 = vpop.f32.mrf.mxu0
    %v3193 = vadd.f32 0.0, %v3192
    %3194 = vmatmul.bf16.gmra.mxu0 %v2420
    %v3195 = vpop.f32.mrf.mxu0
    %v3196 = vadd.f32 0.0, %v3195
    %v3197 = vpop.f32.mrf.mxu0
    %v3198 = vadd.f32 0.0, %v3197
    %3199 = vmatmul.bf16.gmra.mxu0 %v2421
    %v3200 = vpop.f32.mrf.mxu0
    %v3201 = vadd.f32 0.0, %v3200
    %v3202 = vpop.f32.mrf.mxu0
    %v3203 = vadd.f32 0.0, %v3202
    %3204 = vmatmul.bf16.gmra.mxu0 %v2422
    %v3205 = vpop.f32.mrf.mxu0
    %v3206 = vadd.f32 0.0, %v3205
    %v3207 = vpop.f32.mrf.mxu0
    %v3208 = vadd.f32 0.0, %v3207
    %3209 = vmatmul.bf16.gmra.mxu0 %v2423
    %v3210 = vpop.f32.mrf.mxu0
    %v3211 = vadd.f32 0.0, %v3210
    %v3212 = vpop.f32.mrf.mxu0
    %v3213 = vadd.f32 0.0, %v3212
    %3214 = vmatmul.bf16.gmra.mxu0 %v2424
    %v3215 = vpop.f32.mrf.mxu0
    %v3216 = vadd.f32 0.0, %v3215
    %v3217 = vpop.f32.mrf.mxu0
    %v3218 = vadd.f32 0.0, %v3217
    %3219 = vmatmul.bf16.gmra.mxu0 %v2425
    %v3220 = vpop.f32.mrf.mxu0
    %v3221 = vadd.f32 0.0, %v3220
    %v3222 = vpop.f32.mrf.mxu0
    %v3223 = vadd.f32 0.0, %v3222
    %3224 = vmatmul.bf16.gmra.mxu0 %v2426
    %v3225 = vpop.f32.mrf.mxu0
    %v3226 = vadd.f32 0.0, %v3225
    %v3227 = vpop.f32.mrf.mxu0
    %v3228 = vadd.f32 0.0, %v3227
    %3229 = vmatmul.bf16.gmra.mxu0 %v2427
    %v3230 = vpop.f32.mrf.mxu0
    %v3231 = vadd.f32 0.0, %v3230
    %v3232 = vpop.f32.mrf.mxu0
    %v3233 = vadd.f32 0.0, %v3232
    %3234 = vmatmul.bf16.gmra.mxu0 %v2428
    %v3235 = vpop.f32.mrf.mxu0
    %v3236 = vadd.f32 0.0, %v3235
    %v3237 = vpop.f32.mrf.mxu0
    %v3238 = vadd.f32 0.0, %v3237
    %3239 = vmatmul.bf16.gmra.mxu0 %v2429
    %v3240 = vpop.f32.mrf.mxu0
    %v3241 = vadd.f32 0.0, %v3240
    %v3242 = vpop.f32.mrf.mxu0
    %v3243 = vadd.f32 0.0, %v3242
    %3244 = vmatmul.bf16.gmra.mxu0 %v2430
    %v3245 = vpop.f32.mrf.mxu0
    %v3246 = vadd.f32 0.0, %v3245
    %v3247 = vpop.f32.mrf.mxu0
    %v3248 = vadd.f32 0.0, %v3247
    %3249 = vmatmul.bf16.gmra.mxu0 %v2431
    %v3250 = vpop.f32.mrf.mxu0
    %v3251 = vadd.f32 0.0, %v3250
    %v3252 = vpop.f32.mrf.mxu0
    %v3253 = vadd.f32 0.0, %v3252
    %3254 = vmatmul.bf16.gmra.mxu0 %v2432
    %v3255 = vpop.f32.mrf.mxu0
    %v3256 = vadd.f32 0.0, %v3255
    %v3257 = vpop.f32.mrf.mxu0
    %v3258 = vadd.f32 0.0, %v3257
    %3259 = vmatmul.bf16.gmra.mxu0 %v2433
    %v3260 = vpop.f32.mrf.mxu0
    %v3261 = vadd.f32 0.0, %v3260
    %v3262 = vpop.f32.mrf.mxu0
    %v3263 = vadd.f32 0.0, %v3262
    %3264 = vmatmul.bf16.gmra.mxu0 %v2434
    %v3265 = vpop.f32.mrf.mxu0
    %v3266 = vadd.f32 0.0, %v3265
    %v3267 = vpop.f32.mrf.mxu0
    %v3268 = vadd.f32 0.0, %v3267
    %3269 = vmatmul.bf16.gmra.mxu0 %v2435
    %v3270 = vpop.f32.mrf.mxu0
    %v3271 = vadd.f32 0.0, %v3270
    %v3272 = vpop.f32.mrf.mxu0
    %v3273 = vadd.f32 0.0, %v3272
    %3274 = vmatmul.bf16.gmra.mxu0 %v2436
    %v3275 = vpop.f32.mrf.mxu0
    %v3276 = vadd.f32 0.0, %v3275
    %v3277 = vpop.f32.mrf.mxu0
    %v3278 = vadd.f32 0.0, %v3277
    %3279 = vmatmul.bf16.gmra.mxu0 %v2437
    %v3280 = vpop.f32.mrf.mxu0
    %v3281 = vadd.f32 0.0, %v3280
    %v3282 = vpop.f32.mrf.mxu0
    %v3283 = vadd.f32 0.0, %v3282
    %3284 = vmatmul.bf16.gmra.mxu0 %v2438
    %v3285 = vpop.f32.mrf.mxu0
    %v3286 = vadd.f32 0.0, %v3285
    %v3287 = vpop.f32.mrf.mxu0
    %v3288 = vadd.f32 0.0, %v3287
    %3289 = vmatmul.bf16.gmra.mxu0 %v2439
    %v3290 = vpop.f32.mrf.mxu0
    %v3291 = vadd.f32 0.0, %v3290
    %v3292 = vpop.f32.mrf.mxu0
    %v3293 = vadd.f32 0.0, %v3292
    %3294 = vmatmul.bf16.gmra.mxu0 %v2440
    %v3295 = vpop.f32.mrf.mxu0
    %v3296 = vadd.f32 0.0, %v3295
    %v3297 = vpop.f32.mrf.mxu0
    %v3298 = vadd.f32 0.0, %v3297
    %3299 = vmatmul.bf16.gmra.mxu0 %v2441
    %v3300 = vpop.f32.mrf.mxu0
    %v3301 = vadd.f32 0.0, %v3300
    %v3302 = vpop.f32.mrf.mxu0
    %v3303 = vadd.f32 0.0, %v3302
    %3304 = vmatmul.bf16.gmra.mxu0 %v2442
    %v3305 = vpop.f32.mrf.mxu0
    %v3306 = vadd.f32 0.0, %v3305
    %v3307 = vpop.f32.mrf.mxu0
    %v3308 = vadd.f32 0.0, %v3307
    %3309 = vmatmul.bf16.gmra.mxu0 %v2443
    %v3310 = vpop.f32.mrf.mxu0
    %v3311 = vadd.f32 0.0, %v3310
    %v3312 = vpop.f32.mrf.mxu0
    %v3313 = vadd.f32 0.0, %v3312
    %3314 = vmatmul.bf16.gmra.mxu0 %v2444
    %v3315 = vpop.f32.mrf.mxu0
    %v3316 = vadd.f32 0.0, %v3315
    %v3317 = vpop.f32.mrf.mxu0
    %v3318 = vadd.f32 0.0, %v3317
    %3319 = vmatmul.bf16.gmra.mxu0 %v2445
    %v3320 = vpop.f32.mrf.mxu0
    %v3321 = vadd.f32 0.0, %v3320
    %v3322 = vpop.f32.mrf.mxu0
    %v3323 = vadd.f32 0.0, %v3322
    %3324 = vmatmul.bf16.gmra.mxu0 %v2446
    %v3325 = vpop.f32.mrf.mxu0
    %v3326 = vadd.f32 0.0, %v3325
    %v3327 = vpop.f32.mrf.mxu0
    %v3328 = vadd.f32 0.0, %v3327
    %3329 = vmatmul.bf16.gmra.mxu0 %v2447
    %v3330 = vpop.f32.mrf.mxu0
    %v3331 = vadd.f32 0.0, %v3330
    %v3332 = vpop.f32.mrf.mxu0
    %v3333 = vadd.f32 0.0, %v3332
    %3334 = vmatmul.bf16.gmra.mxu0 %v2448
    %v3335 = vpop.f32.mrf.mxu0
    %v3336 = vadd.f32 0.0, %v3335
    %v3337 = vpop.f32.mrf.mxu0
    %v3338 = vadd.f32 0.0, %v3337
    %3339 = vdwg.mxu0
    %v3340 = vrot.slane %v2635, 7
    %v3341 = vrot.slane %v2637, 7
    %v3342 = vrot.slane %v2640, 7
    %v3343 = vrot.slane %v2642, 7
    %v3344 = vrot.slane %v2645, 7
    %v3345 = vrot.slane %v2647, 7
    %v3346 = vrot.slane %v2650, 7
    %v3347 = vrot.slane %v2652, 7
    %v3348 = vrot.slane %v2655, 7
    %v3349 = vrot.slane %v2657, 7
    %v3350 = vrot.slane %v2660, 7
    %v3351 = vrot.slane %v2662, 7
    %v3352 = vrot.slane %v2665, 7
    %v3353 = vrot.slane %v2667, 7
    %v3354 = vrot.slane %v2670, 7
    %v3355 = vrot.slane %v2672, 7
    %v3356 = vrot.slane %v2675, 7
    %v3357 = vrot.slane %v2677, 7
    %v3358 = vrot.slane %v2680, 7
    %v3359 = vrot.slane %v2682, 7
    %v3360 = vrot.slane %v2685, 7
    %v3361 = vrot.slane %v2687, 7
    %v3362 = vrot.slane %v2690, 7
    %v3363 = vrot.slane %v2692, 7
    %v3364 = vrot.slane %v2695, 7
    %v3365 = vrot.slane %v2697, 7
    %v3366 = vrot.slane %v2700, 7
    %v3367 = vrot.slane %v2702, 7
    %v3368 = vrot.slane %v2705, 7
    %v3369 = vrot.slane %v2707, 7
    %v3370 = vrot.slane %v2710, 7
    %v3371 = vrot.slane %v2712, 7
    %v3372 = vrot.slane %v2715, 7
    %v3373 = vrot.slane %v2717, 7
    %v3374 = vrot.slane %v2720, 7
    %v3375 = vrot.slane %v2722, 7
    %v3376 = vrot.slane %v2725, 7
    %v3377 = vrot.slane %v2727, 7
    %v3378 = vrot.slane %v2730, 7
    %v3379 = vrot.slane %v2732, 7
    %v3380 = vrot.slane %v2735, 7
    %v3381 = vrot.slane %v2737, 7
    %v3382 = vrot.slane %v2740, 7
    %v3383 = vrot.slane %v2742, 7
    %v3384 = vrot.slane %v2745, 7
    %v3385 = vrot.slane %v2747, 7
    %v3386 = vrot.slane %v2750, 7
    %v3387 = vrot.slane %v2752, 7
    %v3388 = vrot.slane %v2755, 7
    %v3389 = vrot.slane %v2757, 7
    %v3390 = vrot.slane %v2760, 7
    %v3391 = vrot.slane %v2762, 7
    %v3392 = vrot.slane %v2765, 7
    %v3393 = vrot.slane %v2767, 7
    %v3394 = vrot.slane %v2770, 7
    %v3395 = vrot.slane %v2772, 7
    %v3396 = vrot.slane %v2775, 7
    %v3397 = vrot.slane %v2777, 7
    %v3398 = vrot.slane %v2780, 7
    %v3399 = vrot.slane %v2782, 7
    %v3400 = vrot.slane %v2785, 7
    %v3401 = vrot.slane %v2787, 7
    %v3402 = vrot.slane %v2790, 7
    %v3403 = vrot.slane %v2792, 7
    %v3404 = vrot.slane %v2795, 7
    %v3405 = vrot.slane %v2797, 7
    %v3406 = vrot.slane %v2800, 7
    %v3407 = vrot.slane %v2802, 7
    %v3408 = vrot.slane %v2805, 7
    %v3409 = vrot.slane %v2807, 7
    %v3410 = vrot.slane %v2810, 7
    %v3411 = vrot.slane %v2812, 7
    %v3412 = vrot.slane %v2815, 7
    %v3413 = vrot.slane %v2817, 7
    %v3414 = vrot.slane %v2820, 7
    %v3415 = vrot.slane %v2822, 7
    %v3416 = vrot.slane %v2825, 7
    %v3417 = vrot.slane %v2827, 7
    %v3418 = vrot.slane %v2830, 7
    %v3419 = vrot.slane %v2832, 7
    %v3420 = vrot.slane %v2835, 7
    %v3421 = vrot.slane %v2837, 7
    %v3422 = vrot.slane %v2840, 7
    %v3423 = vrot.slane %v2842, 7
    %v3424 = vrot.slane %v2845, 7
    %v3425 = vrot.slane %v2847, 7
    %v3426 = vrot.slane %v2850, 7
    %v3427 = vrot.slane %v2852, 7
    %v3428 = vrot.slane %v2855, 7
    %v3429 = vrot.slane %v2857, 7
    %v3430 = vrot.slane %v2860, 7
    %v3431 = vrot.slane %v2862, 7
    %v3432 = vrot.slane %v2865, 7
    %v3433 = vrot.slane %v2867, 7
    %v3434 = vrot.slane %v2870, 7
    %v3435 = vrot.slane %v2872, 7
    %v3436 = vsel %vm1662, %v3433, %v3434
    %v3437 = vsel %vm1662, %v3432, %v3433
    %v3438 = vsel %vm1662, %v3430, %v3431
    %v3439 = vsel %vm1662, %v3429, %v3430
    %v3440 = vsel %vm1662, %v3427, %v3428
    %v3441 = vsel %vm1662, %v3426, %v3427
    %v3442 = vsel %vm1662, %v3424, %v3425
    %v3443 = vsel %vm1662, %v3423, %v3424
    %v3444 = vsel %vm1662, %v3421, %v3422
    %v3445 = vsel %vm1662, %v3420, %v3421
    %v3446 = vsel %vm1662, %v3418, %v3419
    %v3447 = vsel %vm1662, %v3417, %v3418
    %v3448 = vsel %vm1662, %v3415, %v3416
    %v3449 = vsel %vm1662, %v3414, %v3415
    %v3450 = vsel %vm1662, %v3412, %v3413
    %v3451 = vsel %vm1662, %v3411, %v3412
    %v3452 = vsel %vm1662, %v3409, %v3410
    %v3453 = vsel %vm1662, %v3408, %v3409
    %v3454 = vsel %vm1662, %v3406, %v3407
    %v3455 = vsel %vm1662, %v3405, %v3406
    %v3456 = vsel %vm1662, %v3403, %v3404
    %v3457 = vsel %vm1662, %v3402, %v3403
    %v3458 = vsel %vm1662, %v3400, %v3401
    %v3459 = vsel %vm1662, %v3399, %v3400
    %v3460 = vsel %vm1662, %v3397, %v3398
    %v3461 = vsel %vm1662, %v3396, %v3397
    %v3462 = vsel %vm1662, %v3394, %v3395
    %v3463 = vsel %vm1662, %v3393, %v3394
    %v3464 = vsel %vm1662, %v3391, %v3392
    %v3465 = vsel %vm1662, %v3390, %v3391
    %v3466 = vsel %vm1662, %v3388, %v3389
    %v3467 = vsel %vm1662, %v3387, %v3388
    %v3468 = vsel %vm1662, %v3385, %v3386
    %v3469 = vsel %vm1662, %v3384, %v3385
    %v3470 = vsel %vm1662, %v3382, %v3383
    %v3471 = vsel %vm1662, %v3381, %v3382
    %v3472 = vsel %vm1662, %v3379, %v3380
    %v3473 = vsel %vm1662, %v3378, %v3379
    %v3474 = vsel %vm1662, %v3376, %v3377
    %v3475 = vsel %vm1662, %v3375, %v3376
    %v3476 = vsel %vm1662, %v3373, %v3374
    %v3477 = vsel %vm1662, %v3372, %v3373
    %v3478 = vsel %vm1662, %v3370, %v3371
    %v3479 = vsel %vm1662, %v3369, %v3370
    %v3480 = vsel %vm1662, %v3367, %v3368
    %v3481 = vsel %vm1662, %v3366, %v3367
    %v3482 = vsel %vm1662, %v3364, %v3365
    %v3483 = vsel %vm1662, %v3363, %v3364
    %v3484 = vsel %vm1662, %v3361, %v3362
    %v3485 = vsel %vm1662, %v3360, %v3361
    %v3486 = vsel %vm1662, %v3358, %v3359
    %v3487 = vsel %vm1662, %v3357, %v3358
    %v3488 = vsel %vm1662, %v3355, %v3356
    %v3489 = vsel %vm1662, %v3354, %v3355
    %v3490 = vsel %vm1662, %v3352, %v3353
    %v3491 = vsel %vm1662, %v3351, %v3352
    %v3492 = vsel %vm1662, %v3349, %v3350
    %v3493 = vsel %vm1662, %v3348, %v3349
    %v3494 = vsel %vm1662, %v3346, %v3347
    %v3495 = vsel %vm1662, %v3345, %v3346
    %v3496 = vsel %vm1662, %v3343, %v3344
    %v3497 = vsel %vm1662, %v3342, %v3343
    %v3498 = vsel %vm1662, %v3340, %v3341
    %v3499 = vsel %vm1662, %v3435, %v3340
    %v3500 = vadd.f32 %v2016, %v3499
    %v3501 = vadd.f32 %v2017, %v3498
    %v3502 = vadd.f32 %v2018, %v3497
    %v3503 = vadd.f32 %v2019, %v3496
    %v3504 = vadd.f32 %v2020, %v3495
    %v3505 = vadd.f32 %v2021, %v3494
    %v3506 = vadd.f32 %v2022, %v3493
    %v3507 = vadd.f32 %v2023, %v3492
    %v3508 = vadd.f32 %v2024, %v3491
    %v3509 = vadd.f32 %v2025, %v3490
    %v3510 = vadd.f32 %v2026, %v3489
    %v3511 = vadd.f32 %v2027, %v3488
    %v3512 = vadd.f32 %v2028, %v3487
    %v3513 = vadd.f32 %v2029, %v3486
    %v3514 = vadd.f32 %v2030, %v3485
    %v3515 = vadd.f32 %v2031, %v3484
    %v3516 = vadd.f32 %v2032, %v3483
    %v3517 = vadd.f32 %v2033, %v3482
    %v3518 = vadd.f32 %v2034, %v3481
    %v3519 = vadd.f32 %v2035, %v3480
    %v3520 = vadd.f32 %v2036, %v3479
    %v3521 = vadd.f32 %v2037, %v3478
    %v3522 = vadd.f32 %v2038, %v3477
    %v3523 = vadd.f32 %v2039, %v3476
    %v3524 = vadd.f32 %v2040, %v3475
    %v3525 = vadd.f32 %v2041, %v3474
    %v3526 = vadd.f32 %v2042, %v3473
    %v3527 = vadd.f32 %v2043, %v3472
    %v3528 = vadd.f32 %v2044, %v3471
    %v3529 = vadd.f32 %v2045, %v3470
    %v3530 = vadd.f32 %v2046, %v3469
    %v3531 = vadd.f32 %v2047, %v3468
    %v3532 = vadd.f32 %v2048, %v3467
    %v3533 = vadd.f32 %v2049, %v3466
    %v3534 = vadd.f32 %v2050, %v3465
    %v3535 = vadd.f32 %v2051, %v3464
    %v3536 = vadd.f32 %v2052, %v3463
    %v3537 = vadd.f32 %v2053, %v3462
    %v3538 = vadd.f32 %v2054, %v3461
    %v3539 = vadd.f32 %v2055, %v3460
    %v3540 = vadd.f32 %v2056, %v3459
    %v3541 = vadd.f32 %v2057, %v3458
    %v3542 = vadd.f32 %v2058, %v3457
    %v3543 = vadd.f32 %v2059, %v3456
    %v3544 = vadd.f32 %v2060, %v3455
    %v3545 = vadd.f32 %v2061, %v3454
    %v3546 = vadd.f32 %v2062, %v3453
    %v3547 = vadd.f32 %v2063, %v3452
    %v3548 = vadd.f32 %v2064, %v3451
    %v3549 = vadd.f32 %v2065, %v3450
    %v3550 = vadd.f32 %v2066, %v3449
    %v3551 = vadd.f32 %v2067, %v3448
    %v3552 = vadd.f32 %v2068, %v3447
    %v3553 = vadd.f32 %v2069, %v3446
    %v3554 = vadd.f32 %v2070, %v3445
    %v3555 = vadd.f32 %v2071, %v3444
    %v3556 = vadd.f32 %v2072, %v3443
    %v3557 = vadd.f32 %v2073, %v3442
    %v3558 = vadd.f32 %v2074, %v3441
    %v3559 = vadd.f32 %v2075, %v3440
    %v3560 = vadd.f32 %v2076, %v3439
    %v3561 = vadd.f32 %v2077, %v3438
    %v3562 = vadd.f32 %v2078, %v3437
    %v3563 = vadd.f32 %v2079, %v3436
    %v3564 = vadd.f32 %v3500, %v2884
    %v3565 = vadd.f32 %v3501, %v2886
    %v3566 = vadd.f32 %v3502, %v2890
    %v3567 = vadd.f32 %v3503, %v2893
    %v3568 = vadd.f32 %v3504, %v2897
    %v3569 = vadd.f32 %v3505, %v2899
    %v3570 = vadd.f32 %v3506, %v2903
    %v3571 = vadd.f32 %v3507, %v2906
    %v3572 = vadd.f32 %v3508, %v2910
    %v3573 = vadd.f32 %v3509, %v2912
    %v3574 = vadd.f32 %v3510, %v2916
    %v3575 = vadd.f32 %v3511, %v2919
    %v3576 = vadd.f32 %v3512, %v2923
    %v3577 = vadd.f32 %v3513, %v2925
    %v3578 = vadd.f32 %v3514, %v2929
    %v3579 = vadd.f32 %v3515, %v2932
    %v3580 = vadd.f32 %v3516, %v2936
    %v3581 = vadd.f32 %v3517, %v2938
    %v3582 = vadd.f32 %v3518, %v2942
    %v3583 = vadd.f32 %v3519, %v2945
    %v3584 = vadd.f32 %v3520, %v2949
    %v3585 = vadd.f32 %v3521, %v2951
    %v3586 = vadd.f32 %v3522, %v2955
    %v3587 = vadd.f32 %v3523, %v2958
    %v3588 = vadd.f32 %v3524, %v2962
    %v3589 = vadd.f32 %v3525, %v2964
    %v3590 = vadd.f32 %v3526, %v2968
    %v3591 = vadd.f32 %v3527, %v2971
    %v3592 = vadd.f32 %v3528, %v2975
    %v3593 = vadd.f32 %v3529, %v2977
    %v3594 = vadd.f32 %v3530, %v2981
    %v3595 = vadd.f32 %v3531, %v2984
    %v3596 = vadd.f32 %v3532, %v2988
    %v3597 = vadd.f32 %v3533, %v2990
    %v3598 = vadd.f32 %v3534, %v2994
    %v3599 = vadd.f32 %v3535, %v2997
    %v3600 = vadd.f32 %v3536, %v3001
    %v3601 = vadd.f32 %v3537, %v3003
    %v3602 = vadd.f32 %v3538, %v3007
    %v3603 = vadd.f32 %v3539, %v3010
    %v3604 = vadd.f32 %v3540, %v3014
    %v3605 = vadd.f32 %v3541, %v3016
    %v3606 = vadd.f32 %v3542, %v3020
    %v3607 = vadd.f32 %v3543, %v3023
    %v3608 = vadd.f32 %v3544, %v3027
    %v3609 = vadd.f32 %v3545, %v3029
    %v3610 = vadd.f32 %v3546, %v3033
    %v3611 = vadd.f32 %v3547, %v3036
    %v3612 = vadd.f32 %v3548, %v3040
    %v3613 = vadd.f32 %v3549, %v3042
    %v3614 = vadd.f32 %v3550, %v3046
    %v3615 = vadd.f32 %v3551, %v3049
    %v3616 = vadd.f32 %v3552, %v3053
    %v3617 = vadd.f32 %v3553, %v3055
    %v3618 = vadd.f32 %v3554, %v3059
    %v3619 = vadd.f32 %v3555, %v3062
    %v3620 = vadd.f32 %v3556, %v3066
    %v3621 = vadd.f32 %v3557, %v3068
    %v3622 = vadd.f32 %v3558, %v3072
    %v3623 = vadd.f32 %v3559, %v3075
    %v3624 = vadd.f32 %v3560, %v3079
    %v3625 = vadd.f32 %v3561, %v3081
    %v3626 = vadd.f32 %v3562, %v3085
    %v3627 = vadd.f32 %v3563, %v3088
    %v3628 = vrot.slane %v3101, 1
    %v3629 = vrot.slane %v3103, 1
    %v3630 = vrot.slane %v3106, 1
    %v3631 = vrot.slane %v3108, 1
    %v3632 = vrot.slane %v3111, 1
    %v3633 = vrot.slane %v3113, 1
    %v3634 = vrot.slane %v3116, 1
    %v3635 = vrot.slane %v3118, 1
    %v3636 = vrot.slane %v3121, 1
    %v3637 = vrot.slane %v3123, 1
    %v3638 = vrot.slane %v3126, 1
    %v3639 = vrot.slane %v3128, 1
    %v3640 = vrot.slane %v3131, 1
    %v3641 = vrot.slane %v3133, 1
    %v3642 = vrot.slane %v3136, 1
    %v3643 = vrot.slane %v3138, 1
    %v3644 = vrot.slane %v3141, 1
    %v3645 = vrot.slane %v3143, 1
    %v3646 = vrot.slane %v3146, 1
    %v3647 = vrot.slane %v3148, 1
    %v3648 = vrot.slane %v3151, 1
    %v3649 = vrot.slane %v3153, 1
    %v3650 = vrot.slane %v3156, 1
    %v3651 = vrot.slane %v3158, 1
    %v3652 = vrot.slane %v3161, 1
    %v3653 = vrot.slane %v3163, 1
    %v3654 = vrot.slane %v3166, 1
    %v3655 = vrot.slane %v3168, 1
    %v3656 = vrot.slane %v3171, 1
    %v3657 = vrot.slane %v3173, 1
    %v3658 = vrot.slane %v3176, 1
    %v3659 = vrot.slane %v3178, 1
    %v3660 = vrot.slane %v3181, 1
    %v3661 = vrot.slane %v3183, 1
    %v3662 = vrot.slane %v3186, 1
    %v3663 = vrot.slane %v3188, 1
    %v3664 = vrot.slane %v3191, 1
    %v3665 = vrot.slane %v3193, 1
    %v3666 = vrot.slane %v3196, 1
    %v3667 = vrot.slane %v3198, 1
    %v3668 = vrot.slane %v3201, 1
    %v3669 = vrot.slane %v3203, 1
    %v3670 = vrot.slane %v3206, 1
    %v3671 = vrot.slane %v3208, 1
    %v3672 = vrot.slane %v3211, 1
    %v3673 = vrot.slane %v3213, 1
    %v3674 = vrot.slane %v3216, 1
    %v3675 = vrot.slane %v3218, 1
    %v3676 = vrot.slane %v3221, 1
    %v3677 = vrot.slane %v3223, 1
    %v3678 = vrot.slane %v3226, 1
    %v3679 = vrot.slane %v3228, 1
    %v3680 = vrot.slane %v3231, 1
    %v3681 = vrot.slane %v3233, 1
    %v3682 = vrot.slane %v3236, 1
    %v3683 = vrot.slane %v3238, 1
    %v3684 = vrot.slane %v3241, 1
    %v3685 = vrot.slane %v3243, 1
    %v3686 = vrot.slane %v3246, 1
    %v3687 = vrot.slane %v3248, 1
    %v3688 = vrot.slane %v3251, 1
    %v3689 = vrot.slane %v3253, 1
    %v3690 = vrot.slane %v3256, 1
    %v3691 = vrot.slane %v3258, 1
    %v3692 = vrot.slane %v3261, 1
    %v3693 = vrot.slane %v3263, 1
    %v3694 = vrot.slane %v3266, 1
    %v3695 = vrot.slane %v3268, 1
    %v3696 = vrot.slane %v3271, 1
    %v3697 = vrot.slane %v3273, 1
    %v3698 = vrot.slane %v3276, 1
    %v3699 = vrot.slane %v3278, 1
    %v3700 = vrot.slane %v3281, 1
    %v3701 = vrot.slane %v3283, 1
    %v3702 = vrot.slane %v3286, 1
    %v3703 = vrot.slane %v3288, 1
    %v3704 = vrot.slane %v3291, 1
    %v3705 = vrot.slane %v3293, 1
    %v3706 = vrot.slane %v3296, 1
    %v3707 = vrot.slane %v3298, 1
    %v3708 = vrot.slane %v3301, 1
    %v3709 = vrot.slane %v3303, 1
    %v3710 = vrot.slane %v3306, 1
    %v3711 = vrot.slane %v3308, 1
    %v3712 = vrot.slane %v3311, 1
    %v3713 = vrot.slane %v3313, 1
    %v3714 = vrot.slane %v3316, 1
    %v3715 = vrot.slane %v3318, 1
    %v3716 = vrot.slane %v3321, 1
    %v3717 = vrot.slane %v3323, 1
    %v3718 = vrot.slane %v3326, 1
    %v3719 = vrot.slane %v3328, 1
    %v3720 = vrot.slane %v3331, 1
    %v3721 = vrot.slane %v3333, 1
    %v3722 = vrot.slane %v3336, 1
    %v3723 = vrot.slane %v3338, 1
    %v3724 = vsel %vm1951, %v3722, %v3723
    %v3725 = vsel %vm1951, %v3721, %v3722
    %v3726 = vsel %vm1951, %v3719, %v3720
    %v3727 = vsel %vm1951, %v3718, %v3719
    %v3728 = vsel %vm1951, %v3716, %v3717
    %v3729 = vsel %vm1951, %v3715, %v3716
    %v3730 = vsel %vm1951, %v3713, %v3714
    %v3731 = vsel %vm1951, %v3712, %v3713
    %v3732 = vsel %vm1951, %v3710, %v3711
    %v3733 = vsel %vm1951, %v3709, %v3710
    %v3734 = vsel %vm1951, %v3707, %v3708
    %v3735 = vsel %vm1951, %v3706, %v3707
    %v3736 = vsel %vm1951, %v3704, %v3705
    %v3737 = vsel %vm1951, %v3703, %v3704
    %v3738 = vsel %vm1951, %v3701, %v3702
    %v3739 = vsel %vm1951, %v3700, %v3701
    %v3740 = vsel %vm1951, %v3698, %v3699
    %v3741 = vsel %vm1951, %v3697, %v3698
    %v3742 = vsel %vm1951, %v3695, %v3696
    %v3743 = vsel %vm1951, %v3694, %v3695
    %v3744 = vsel %vm1951, %v3692, %v3693
    %v3745 = vsel %vm1951, %v3691, %v3692
    %v3746 = vsel %vm1951, %v3689, %v3690
    %v3747 = vsel %vm1951, %v3688, %v3689
    %v3748 = vsel %vm1951, %v3686, %v3687
    %v3749 = vsel %vm1951, %v3685, %v3686
    %v3750 = vsel %vm1951, %v3683, %v3684
    %v3751 = vsel %vm1951, %v3682, %v3683
    %v3752 = vsel %vm1951, %v3680, %v3681
    %v3753 = vsel %vm1951, %v3679, %v3680
    %v3754 = vsel %vm1951, %v3677, %v3678
    %v3755 = vsel %vm1951, %v3676, %v3677
    %v3756 = vsel %vm1951, %v3674, %v3675
    %v3757 = vsel %vm1951, %v3673, %v3674
    %v3758 = vsel %vm1951, %v3671, %v3672
    %v3759 = vsel %vm1951, %v3670, %v3671
    %v3760 = vsel %vm1951, %v3668, %v3669
    %v3761 = vsel %vm1951, %v3667, %v3668
    %v3762 = vsel %vm1951, %v3665, %v3666
    %v3763 = vsel %vm1951, %v3664, %v3665
    %v3764 = vsel %vm1951, %v3662, %v3663
    %v3765 = vsel %vm1951, %v3661, %v3662
    %v3766 = vsel %vm1951, %v3659, %v3660
    %v3767 = vsel %vm1951, %v3658, %v3659
    %v3768 = vsel %vm1951, %v3656, %v3657
    %v3769 = vsel %vm1951, %v3655, %v3656
    %v3770 = vsel %vm1951, %v3653, %v3654
    %v3771 = vsel %vm1951, %v3652, %v3653
    %v3772 = vsel %vm1951, %v3650, %v3651
    %v3773 = vsel %vm1951, %v3649, %v3650
    %v3774 = vsel %vm1951, %v3647, %v3648
    %v3775 = vsel %vm1951, %v3646, %v3647
    %v3776 = vsel %vm1951, %v3644, %v3645
    %v3777 = vsel %vm1951, %v3643, %v3644
    %v3778 = vsel %vm1951, %v3641, %v3642
    %v3779 = vsel %vm1951, %v3640, %v3641
    %v3780 = vsel %vm1951, %v3638, %v3639
    %v3781 = vsel %vm1951, %v3637, %v3638
    %v3782 = vsel %vm1951, %v3635, %v3636
    %v3783 = vsel %vm1951, %v3634, %v3635
    %v3784 = vsel %vm1951, %v3632, %v3633
    %v3785 = vsel %vm1951, %v3631, %v3632
    %v3786 = vsel %vm1951, %v3629, %v3630
    %v3787 = vsel %vm1951, %v3628, %v3629
    %v3788 = vadd.f32 %v3564, %v3787
    %v3789 = vadd.f32 %v3565, %v3786
    %v3790 = vadd.f32 %v3566, %v3785
    %v3791 = vadd.f32 %v3567, %v3784
    %v3792 = vadd.f32 %v3568, %v3783
    %v3793 = vadd.f32 %v3569, %v3782
    %v3794 = vadd.f32 %v3570, %v3781
    %v3795 = vadd.f32 %v3571, %v3780
    %v3796 = vadd.f32 %v3572, %v3779
    %v3797 = vadd.f32 %v3573, %v3778
    %v3798 = vadd.f32 %v3574, %v3777
    %v3799 = vadd.f32 %v3575, %v3776
    %v3800 = vadd.f32 %v3576, %v3775
    %v3801 = vadd.f32 %v3577, %v3774
    %v3802 = vadd.f32 %v3578, %v3773
    %v3803 = vadd.f32 %v3579, %v3772
    %v3804 = vadd.f32 %v3580, %v3771
    %v3805 = vadd.f32 %v3581, %v3770
    %v3806 = vadd.f32 %v3582, %v3769
    %v3807 = vadd.f32 %v3583, %v3768
    %v3808 = vadd.f32 %v3584, %v3767
    %v3809 = vadd.f32 %v3585, %v3766
    %v3810 = vadd.f32 %v3586, %v3765
    %v3811 = vadd.f32 %v3587, %v3764
    %v3812 = vadd.f32 %v3588, %v3763
    %v3813 = vadd.f32 %v3589, %v3762
    %v3814 = vadd.f32 %v3590, %v3761
    %v3815 = vadd.f32 %v3591, %v3760
    %v3816 = vadd.f32 %v3592, %v3759
    %v3817 = vadd.f32 %v3593, %v3758
    %v3818 = vadd.f32 %v3594, %v3757
    %v3819 = vadd.f32 %v3595, %v3756
    %v3820 = vadd.f32 %v3596, %v3755
    %v3821 = vadd.f32 %v3597, %v3754
    %v3822 = vadd.f32 %v3598, %v3753
    %v3823 = vadd.f32 %v3599, %v3752
    %v3824 = vadd.f32 %v3600, %v3751
    %v3825 = vadd.f32 %v3601, %v3750
    %v3826 = vadd.f32 %v3602, %v3749
    %v3827 = vadd.f32 %v3603, %v3748
    %v3828 = vadd.f32 %v3604, %v3747
    %v3829 = vadd.f32 %v3605, %v3746
    %v3830 = vadd.f32 %v3606, %v3745
    %v3831 = vadd.f32 %v3607, %v3744
    %v3832 = vadd.f32 %v3608, %v3743
    %v3833 = vadd.f32 %v3609, %v3742
    %v3834 = vadd.f32 %v3610, %v3741
    %v3835 = vadd.f32 %v3611, %v3740
    %v3836 = vadd.f32 %v3612, %v3739
    %v3837 = vadd.f32 %v3613, %v3738
    %v3838 = vadd.f32 %v3614, %v3737
    %v3839 = vadd.f32 %v3615, %v3736
    %v3840 = vadd.f32 %v3616, %v3735
    %v3841 = vadd.f32 %v3617, %v3734
    %v3842 = vadd.f32 %v3618, %v3733
    %v3843 = vadd.f32 %v3619, %v3732
    %v3844 = vadd.f32 %v3620, %v3731
    %v3845 = vadd.f32 %v3621, %v3730
    %v3846 = vadd.f32 %v3622, %v3729
    %v3847 = vadd.f32 %v3623, %v3728
    %v3848 = vadd.f32 %v3624, %v3727
    %v3849 = vadd.f32 %v3625, %v3726
    %v3850 = vadd.f32 %v3626, %v3725
    %v3851 = vadd.f32 %v3627, %v3724
    %s3852 = scalar_lea.vmem [#allocation2], 24
    %v3853 = vld [vmem:[%s3852] sm:$0xf]
    %v3854 = vld [vmem:[%s3852 + $0x4] sm:$0xf]
    %v3855 = vld [vmem:[%s3852 + $0x8] sm:$0xf]
    %v3856 = vld [vmem:[%s3852 + $0xc] sm:$0xf]
    %v3857 = vld [vmem:[%s3852 + $0x10] sm:$0xf]
    %v3858 = vld [vmem:[%s3852 + $0x14] sm:$0xf]
    %v3859 = vld [vmem:[%s3852 + $0x18] sm:$0xf]
    %v3860 = vld [vmem:[%s3852 + $0x1c] sm:$0xf]
    %v3861 = vld [vmem:[%s3852 + $0x20] sm:$0xf]
    %v3862 = vld [vmem:[%s3852 + $0x24] sm:$0xf]
    %v3863 = vld [vmem:[%s3852 + $0x28] sm:$0xf]
    %v3864 = vld [vmem:[%s3852 + $0x2c] sm:$0xf]
    %v3865 = vld [vmem:[%s3852 + $0x30] sm:$0xf]
    %v3866 = vld [vmem:[%s3852 + $0x34] sm:$0xf]
    %v3867 = vld [vmem:[%s3852 + $0x38] sm:$0xf]
    %v3868 = vld [vmem:[%s3852 + $0x3c] sm:$0xf]
    %v3869 = vld [vmem:[%s3852 + $0x40] sm:$0xf]
    %v3870 = vld [vmem:[%s3852 + $0x44] sm:$0xf]
    %v3871 = vld [vmem:[%s3852 + $0x48] sm:$0xf]
    %v3872 = vld [vmem:[%s3852 + $0x4c] sm:$0xf]
    %v3873 = vld [vmem:[%s3852 + $0x50] sm:$0xf]
    %v3874 = vld [vmem:[%s3852 + $0x54] sm:$0xf]
    %v3875 = vld [vmem:[%s3852 + $0x58] sm:$0xf]
    %v3876 = vld [vmem:[%s3852 + $0x5c] sm:$0xf]
    %v3877 = vld [vmem:[%s3852 + $0x60] sm:$0xf]
    %v3878 = vld [vmem:[%s3852 + $0x64] sm:$0xf]
    %v3879 = vld [vmem:[%s3852 + $0x68] sm:$0xf]
    %v3880 = vld [vmem:[%s3852 + $0x6c] sm:$0xf]
    %v3881 = vld [vmem:[%s3852 + $0x70] sm:$0xf]
    %v3882 = vld [vmem:[%s3852 + $0x74] sm:$0xf]
    %v3883 = vld [vmem:[%s3852 + $0x78] sm:$0xf]
    %v3884 = vld [vmem:[%s3852 + $0x7c] sm:$0xf]
    %v3885 = vld [vmem:[%s3852 + $0x80] sm:$0xf]
    %v3886 = vld [vmem:[%s3852 + $0x84] sm:$0xf]
    %v3887 = vld [vmem:[%s3852 + $0x88] sm:$0xf]
    %v3888 = vld [vmem:[%s3852 + $0x8c] sm:$0xf]
    %v3889 = vld [vmem:[%s3852 + $0x90] sm:$0xf]
    %v3890 = vld [vmem:[%s3852 + $0x94] sm:$0xf]
    %v3891 = vld [vmem:[%s3852 + $0x98] sm:$0xf]
    %v3892 = vld [vmem:[%s3852 + $0x9c] sm:$0xf]
    %v3893 = vld [vmem:[%s3852 + $0xa0] sm:$0xf]
    %v3894 = vld [vmem:[%s3852 + $0xa4] sm:$0xf]
    %v3895 = vld [vmem:[%s3852 + $0xa8] sm:$0xf]
    %v3896 = vld [vmem:[%s3852 + $0xac] sm:$0xf]
    %v3897 = vld [vmem:[%s3852 + $0xb0] sm:$0xf]
    %v3898 = vld [vmem:[%s3852 + $0xb4] sm:$0xf]
    %v3899 = vld [vmem:[%s3852 + $0xb8] sm:$0xf]
    %v3900 = vld [vmem:[%s3852 + $0xbc] sm:$0xf]
    %v3901 = vld [vmem:[%s3852 + $0xd8] sm:$0xf]
    %v3902 = vld [vmem:[%s3852 + $0xdc] sm:$0xf]
    %v3903 = vld [vmem:[%s3852 + $0xe0] sm:$0xf]
    %v3904 = vld [vmem:[%s3852 + $0xe4] sm:$0xf]
    %v3905 = vld [vmem:[%s3852 + $0xe8] sm:$0xf]
    %v3906 = vld [vmem:[%s3852 + $0xec] sm:$0xf]
    %v3907 = vld [vmem:[%s3852 + $0xf0] sm:$0xf]
    %v3908 = vld [vmem:[%s3852 + $0xf4] sm:$0xf]
    %v3909 = vld [vmem:[%s3852 + $0xf8] sm:$0xf]
    %v3910 = vld [vmem:[%s3852 + $0xfc] sm:$0xf]
    %v3911 = vld [vmem:[%s3852 + $0x100] sm:$0xf]
    %v3912 = vld [vmem:[%s3852 + $0x104] sm:$0xf]
    %v3913 = vld [vmem:[%s3852 + $0x108] sm:$0xf]
    %v3914 = vld [vmem:[%s3852 + $0x10c] sm:$0xf]
    %v3915 = vld [vmem:[%s3852 + $0x110] sm:$0xf]
    %v3916 = vld [vmem:[%s3852 + $0x114] sm:$0xf]
    %v3917 = vld [vmem:[%s3852 + $0x118] sm:$0xf]
    %v3918 = vld [vmem:[%s3852 + $0x11c] sm:$0xf]
    %v3919 = vld [vmem:[%s3852 + $0x120] sm:$0xf]
    %v3920 = vld [vmem:[%s3852 + $0x124] sm:$0xf]
    %v3921 = vld [vmem:[%s3852 + $0x128] sm:$0xf]
    %v3922 = vld [vmem:[%s3852 + $0x12c] sm:$0xf]
    %v3923 = vld [vmem:[%s3852 + $0x130] sm:$0xf]
    %v3924 = vld [vmem:[%s3852 + $0x134] sm:$0xf]
    %v3925 = vld [vmem:[%s3852 + $0x138] sm:$0xf]
    %v3926 = vld [vmem:[%s3852 + $0x13c] sm:$0xf]
    %v3927 = vld [vmem:[%s3852 + $0x140] sm:$0xf]
    %v3928 = vld [vmem:[%s3852 + $0x144] sm:$0xf]
    %v3929 = vld [vmem:[%s3852 + $0x148] sm:$0xf]
    %v3930 = vld [vmem:[%s3852 + $0x14c] sm:$0xf]
    %v3931 = vld [vmem:[%s3852 + $0x150] sm:$0xf]
    %v3932 = vld [vmem:[%s3852 + $0x154] sm:$0xf]
    %v3933 = vld [vmem:[%s3852 + $0x158] sm:$0xf]
    %v3934 = vld [vmem:[%s3852 + $0x15c] sm:$0xf]
    %v3935 = vld [vmem:[%s3852 + $0x160] sm:$0xf]
    %v3936 = vld [vmem:[%s3852 + $0x164] sm:$0xf]
    %v3937 = vld [vmem:[%s3852 + $0x168] sm:$0xf]
    %v3938 = vld [vmem:[%s3852 + $0x16c] sm:$0xf]
    %v3939 = vld [vmem:[%s3852 + $0x170] sm:$0xf]
    %v3940 = vld [vmem:[%s3852 + $0x174] sm:$0xf]
    %v3941 = vld [vmem:[%s3852 + $0x178] sm:$0xf]
    %v3942 = vld [vmem:[%s3852 + $0x17c] sm:$0xf]
    %v3943 = vld [vmem:[%s3852 + $0x180] sm:$0xf]
    %v3944 = vld [vmem:[%s3852 + $0x184] sm:$0xf]
    %v3945 = vld [vmem:[%s3852 + $0x188] sm:$0xf]
    %v3946 = vld [vmem:[%s3852 + $0x18c] sm:$0xf]
    %v3947 = vld [vmem:[%s3852 + $0x190] sm:$0xf]
    %v3948 = vld [vmem:[%s3852 + $0x194] sm:$0xf]
    %s3949 = scalar_lea.vmem [#allocation6], 384
    %v3950 = vld [vmem:[%s3949] sm:$0xff]
    %v3951 = vld [vmem:[%s3949 + $0x8] sm:$0xf]
    %v3952 = vld [vmem:[%s3949 + $0xc] sm:$0xff]
    %v3953 = vld [vmem:[%s3949 + $0x14] sm:$0xf]
    %v3954 = vld [vmem:[%s3949 + $0x18] sm:$0xff]
    %v3955 = vld [vmem:[%s3949 + $0x20] sm:$0xf]
    %v3956 = vld [vmem:[%s3949 + $0x24] sm:$0xff]
    %v3957 = vld [vmem:[%s3949 + $0x2c] sm:$0xf]
    %v3958 = vld [vmem:[%s3949 + $0x30] sm:$0xff]
    %v3959 = vld [vmem:[%s3949 + $0x38] sm:$0xf]
    %v3960 = vld [vmem:[%s3949 + $0x3c] sm:$0xff]
    %v3961 = vld [vmem:[%s3949 + $0x44] sm:$0xf]
    %v3962 = vld [vmem:[%s3949 + $0x48] sm:$0xff]
    %v3963 = vld [vmem:[%s3949 + $0x50] sm:$0xf]
    %v3964 = vld [vmem:[%s3949 + $0x54] sm:$0xff]
    %v3965 = vld [vmem:[%s3949 + $0x5c] sm:$0xf]
    %v3966 = vld [vmem:[%s3949 + $0x60] sm:$0xff]
    %v3967 = vld [vmem:[%s3949 + $0x68] sm:$0xf]
    %v3968 = vld [vmem:[%s3949 + $0x6c] sm:$0xff]
    %v3969 = vld [vmem:[%s3949 + $0x74] sm:$0xf]
    %v3970 = vld [vmem:[%s3949 + $0x78] sm:$0xff]
    %v3971 = vld [vmem:[%s3949 + $0x80] sm:$0xf]
    %v3972 = vld [vmem:[%s3949 + $0x84] sm:$0xff]
    %v3973 = vld [vmem:[%s3949 + $0x8c] sm:$0xf]
    %v3974 = vld [vmem:[%s3949 + $0x90] sm:$0xff]
    %v3975 = vld [vmem:[%s3949 + $0x98] sm:$0xf]
    %v3976 = vld [vmem:[%s3949 + $0x9c] sm:$0xff]
    %v3977 = vld [vmem:[%s3949 + $0xa4] sm:$0xf]
    %v3978 = vld [vmem:[%s3949 + $0xa8] sm:$0xff]
    %v3979 = vld [vmem:[%s3949 + $0xb0] sm:$0xf]
    %v3980 = vld [vmem:[%s3949 + $0xb4] sm:$0xff]
    %v3981 = vld [vmem:[%s3949 + $0xbc] sm:$0xf]
    %v4078 = vunpack.c.l.b16 %v3853
    %v4079 = vunpack.c.l.b16 %v3854
    %v4080 = vunpack.c.l.b16 %v3855
    %v4081 = vunpack.c.l.b16 %v3856
    %v4082 = vunpack.c.l.b16 %v3857
    %v4083 = vunpack.c.l.b16 %v3858
    %v4084 = vunpack.c.l.b16 %v3859
    %v4085 = vunpack.c.l.b16 %v3860
    %v4086 = vunpack.c.l.b16 %v3861
    %v4087 = vunpack.c.l.b16 %v3862
    %v4088 = vunpack.c.l.b16 %v3863
    %v4089 = vunpack.c.l.b16 %v3864
    %v4090 = vunpack.c.l.b16 %v3865
    %v4091 = vunpack.c.l.b16 %v3866
    %v4092 = vunpack.c.l.b16 %v3867
    %v4093 = vunpack.c.l.b16 %v3868
    %v4094 = vunpack.c.l.b16 %v3869
    %v4095 = vunpack.c.l.b16 %v3870
    %v4096 = vunpack.c.l.b16 %v3871
    %v4097 = vunpack.c.l.b16 %v3872
    %v4098 = vunpack.c.l.b16 %v3873
    %v4099 = vunpack.c.l.b16 %v3874
    %v4100 = vunpack.c.l.b16 %v3875
    %v4101 = vunpack.c.l.b16 %v3876
    %v4102 = vunpack.c.l.b16 %v3877
    %v4103 = vunpack.c.l.b16 %v3878
    %v4104 = vunpack.c.l.b16 %v3879
    %v4105 = vunpack.c.l.b16 %v3880
    %v4106 = vunpack.c.l.b16 %v3881
    %v4107 = vunpack.c.l.b16 %v3882
    %v4108 = vunpack.c.l.b16 %v3883
    %v4109 = vunpack.c.l.b16 %v3884
    %v4110 = vunpack.c.l.b16 %v3885
    %v4111 = vunpack.c.l.b16 %v3886
    %v4112 = vunpack.c.l.b16 %v3887
    %v4113 = vunpack.c.l.b16 %v3888
    %v4114 = vunpack.c.l.b16 %v3889
    %v4115 = vunpack.c.l.b16 %v3890
    %v4116 = vunpack.c.l.b16 %v3891
    %v4117 = vunpack.c.l.b16 %v3892
    %v4118 = vunpack.c.l.b16 %v3893
    %v4119 = vunpack.c.l.b16 %v3894
    %v4120 = vunpack.c.l.b16 %v3895
    %v4121 = vunpack.c.l.b16 %v3896
    %v4122 = vunpack.c.l.b16 %v3897
    %v4123 = vunpack.c.l.b16 %v3898
    %v4124 = vunpack.c.l.b16 %v3899
    %v4125 = vunpack.c.l.b16 %v3900
    %v4126 = vunpack.c.l.b16 %v3901
    %v4127 = vunpack.c.l.b16 %v3902
    %v4128 = vunpack.c.l.b16 %v3903
    %v4129 = vunpack.c.l.b16 %v3904
    %v4130 = vunpack.c.l.b16 %v3905
    %v4131 = vunpack.c.l.b16 %v3906
    %v4132 = vunpack.c.l.b16 %v3907
    %v4133 = vunpack.c.l.b16 %v3908
    %v4134 = vunpack.c.l.b16 %v3909
    %v4135 = vunpack.c.l.b16 %v3910
    %v4136 = vunpack.c.l.b16 %v3911
    %v4137 = vunpack.c.l.b16 %v3912
    %v4138 = vunpack.c.l.b16 %v3913
    %v4139 = vunpack.c.l.b16 %v3914
    %v4140 = vunpack.c.l.b16 %v3915
    %v4141 = vunpack.c.l.b16 %v3916
    %v4142 = vunpack.c.l.b16 %v3917
    %v4143 = vunpack.c.l.b16 %v3918
    %v4144 = vunpack.c.l.b16 %v3919
    %v4145 = vunpack.c.l.b16 %v3920
    %v4146 = vunpack.c.l.b16 %v3921
    %v4147 = vunpack.c.l.b16 %v3922
    %v4148 = vunpack.c.l.b16 %v3923
    %v4149 = vunpack.c.l.b16 %v3924
    %v4150 = vunpack.c.l.b16 %v3925
    %v4151 = vunpack.c.l.b16 %v3926
    %v4152 = vunpack.c.l.b16 %v3927
    %v4153 = vunpack.c.l.b16 %v3928
    %v4154 = vunpack.c.l.b16 %v3929
    %v4155 = vunpack.c.l.b16 %v3930
    %v4156 = vunpack.c.l.b16 %v3931
    %v4157 = vunpack.c.l.b16 %v3932
    %v4158 = vunpack.c.l.b16 %v3933
    %v4159 = vunpack.c.l.b16 %v3934
    %v4160 = vunpack.c.l.b16 %v3935
    %v4161 = vunpack.c.l.b16 %v3936
    %v4162 = vunpack.c.l.b16 %v3937
    %v4163 = vunpack.c.l.b16 %v3938
    %v4164 = vunpack.c.l.b16 %v3939
    %v4165 = vunpack.c.l.b16 %v3940
    %v4166 = vunpack.c.l.b16 %v3941
    %v4167 = vunpack.c.l.b16 %v3942
    %v4168 = vunpack.c.l.b16 %v3943
    %v4169 = vunpack.c.l.b16 %v3944
    %v4170 = vunpack.c.l.b16 %v3945
    %v4171 = vunpack.c.l.b16 %v3946
    %v4172 = vunpack.c.l.b16 %v3947
    %v4173 = vunpack.c.l.b16 %v3948
    %v4174 = vpack.c.b16 %v4079, %v4078
    %v4175 = vpack.c.b16 %v4081, %v4080
    %v4176 = vpack.c.b16 %v4083, %v4082
    %v4177 = vpack.c.b16 %v4085, %v4084
    %v4178 = vpack.c.b16 %v4087, %v4086
    %v4179 = vpack.c.b16 %v4089, %v4088
    %v4180 = vpack.c.b16 %v4091, %v4090
    %v4181 = vpack.c.b16 %v4093, %v4092
    %v4182 = vpack.c.b16 %v4095, %v4094
    %v4183 = vpack.c.b16 %v4097, %v4096
    %v4184 = vpack.c.b16 %v4099, %v4098
    %v4185 = vpack.c.b16 %v4101, %v4100
    %v4186 = vpack.c.b16 %v4103, %v4102
    %v4187 = vpack.c.b16 %v4105, %v4104
    %v4188 = vpack.c.b16 %v4107, %v4106
    %v4189 = vpack.c.b16 %v4109, %v4108
    %v4190 = vpack.c.b16 %v4111, %v4110
    %v4191 = vpack.c.b16 %v4113, %v4112
    %v4192 = vpack.c.b16 %v4115, %v4114
    %v4193 = vpack.c.b16 %v4117, %v4116
    %v4194 = vpack.c.b16 %v4119, %v4118
    %v4195 = vpack.c.b16 %v4121, %v4120
    %v4196 = vpack.c.b16 %v4123, %v4122
    %v4197 = vpack.c.b16 %v4125, %v4124
    %v4198 = vpack.c.b16 %v4127, %v4126
    %v4199 = vpack.c.b16 %v4129, %v4128
    %v4200 = vpack.c.b16 %v4131, %v4130
    %v4201 = vpack.c.b16 %v4133, %v4132
    %v4202 = vpack.c.b16 %v4135, %v4134
    %v4203 = vpack.c.b16 %v4137, %v4136
    %v4204 = vpack.c.b16 %v4139, %v4138
    %v4205 = vpack.c.b16 %v4141, %v4140
    %v4206 = vpack.c.b16 %v4143, %v4142
    %v4207 = vpack.c.b16 %v4145, %v4144
    %v4208 = vpack.c.b16 %v4147, %v4146
    %v4209 = vpack.c.b16 %v4149, %v4148
    %v4210 = vpack.c.b16 %v4151, %v4150
    %v4211 = vpack.c.b16 %v4153, %v4152
    %v4212 = vpack.c.b16 %v4155, %v4154
    %v4213 = vpack.c.b16 %v4157, %v4156
    %v4214 = vpack.c.b16 %v4159, %v4158
    %v4215 = vpack.c.b16 %v4161, %v4160
    %v4216 = vpack.c.b16 %v4163, %v4162
    %v4217 = vpack.c.b16 %v4165, %v4164
    %v4218 = vpack.c.b16 %v4167, %v4166
    %v4219 = vpack.c.b16 %v4169, %v4168
    %v4220 = vpack.c.b16 %v4171, %v4170
    %v4221 = vpack.c.b16 %v4173, %v4172
    %v4302 = vunpack.c.l.b16 %v3950
    %v4303 = vunpack.c.h.b16 %v3950
    %v4304 = vunpack.c.l.b16 %v3951
    %v4305 = vunpack.c.l.b16 %v3952
    %v4306 = vunpack.c.h.b16 %v3952
    %v4307 = vunpack.c.l.b16 %v3953
    %v4308 = vunpack.c.l.b16 %v3954
    %v4309 = vunpack.c.h.b16 %v3954
    %v4310 = vunpack.c.l.b16 %v3955
    %v4311 = vunpack.c.l.b16 %v3956
    %v4312 = vunpack.c.h.b16 %v3956
    %v4313 = vunpack.c.l.b16 %v3957
    %v4314 = vunpack.c.l.b16 %v3958
    %v4315 = vunpack.c.h.b16 %v3958
    %v4316 = vunpack.c.l.b16 %v3959
    %v4317 = vunpack.c.l.b16 %v3960
    %v4318 = vunpack.c.h.b16 %v3960
    %v4319 = vunpack.c.l.b16 %v3961
    %v4320 = vunpack.c.l.b16 %v3962
    %v4321 = vunpack.c.h.b16 %v3962
    %v4322 = vunpack.c.l.b16 %v3963
    %v4323 = vunpack.c.l.b16 %v3964
    %v4324 = vunpack.c.h.b16 %v3964
    %v4325 = vunpack.c.l.b16 %v3965
    %v4326 = vunpack.c.l.b16 %v3966
    %v4327 = vunpack.c.h.b16 %v3966
    %v4328 = vunpack.c.l.b16 %v3967
    %v4329 = vunpack.c.l.b16 %v3968
    %v4330 = vunpack.c.h.b16 %v3968
    %v4331 = vunpack.c.l.b16 %v3969
    %v4332 = vunpack.c.l.b16 %v3970
    %v4333 = vunpack.c.h.b16 %v3970
    %v4334 = vunpack.c.l.b16 %v3971
    %v4335 = vunpack.c.l.b16 %v3972
    %v4336 = vunpack.c.h.b16 %v3972
    %v4337 = vunpack.c.l.b16 %v3973
    %v4338 = vunpack.c.l.b16 %v3974
    %v4339 = vunpack.c.h.b16 %v3974
    %v4340 = vunpack.c.l.b16 %v3975
    %v4341 = vunpack.c.l.b16 %v3976
    %v4342 = vunpack.c.h.b16 %v3976
    %v4343 = vunpack.c.l.b16 %v3977
    %v4344 = vunpack.c.l.b16 %v3978
    %v4345 = vunpack.c.h.b16 %v3978
    %v4346 = vunpack.c.l.b16 %v3979
    %v4347 = vunpack.c.l.b16 %v3980
    %v4348 = vunpack.c.h.b16 %v3980
    %v4349 = vunpack.c.l.b16 %v3981
    %v4350 = vpack.c.b16 %v4305, %v4302
    %v4351 = vpack.c.b16 %v4306, %v4303
    %v4352 = vpack.c.b16 %v4307, %v4304
    %v4353 = vpack.c.b16 %v4311, %v4308
    %v4354 = vpack.c.b16 %v4312, %v4309
    %v4355 = vpack.c.b16 %v4313, %v4310
    %v4356 = vpack.c.b16 %v4317, %v4314
    %v4357 = vpack.c.b16 %v4318, %v4315
    %v4358 = vpack.c.b16 %v4319, %v4316
    %v4359 = vpack.c.b16 %v4323, %v4320
    %v4360 = vpack.c.b16 %v4324, %v4321
    %v4361 = vpack.c.b16 %v4325, %v4322
    %v4362 = vpack.c.b16 %v4329, %v4326
    %v4363 = vpack.c.b16 %v4330, %v4327
    %v4364 = vpack.c.b16 %v4331, %v4328
    %v4365 = vpack.c.b16 %v4335, %v4332
    %v4366 = vpack.c.b16 %v4336, %v4333
    %v4367 = vpack.c.b16 %v4337, %v4334
    %v4368 = vpack.c.b16 %v4341, %v4338
    %v4369 = vpack.c.b16 %v4342, %v4339
    %v4370 = vpack.c.b16 %v4343, %v4340
    %v4371 = vpack.c.b16 %v4347, %v4344
    %v4372 = vpack.c.b16 %v4348, %v4345
    %v4373 = vpack.c.b16 %v4349, %v4346
    %4398 = vmatpush.bf16.msra.mxu0 %v4371
    %4399 = vmatpush.bf16.msra.mxu0 %v4368
    %4400 = vmatpush.bf16.msra.mxu0 %v4365
    %4401 = vmatpush.bf16.msra.mxu0 %v4362
    %4402 = vmatpush.bf16.msra.mxu0 %v4359
    %4403 = vmatpush.bf16.msra.mxu0 %v4356
    %4404 = vmatpush.bf16.msra.mxu0 %v4353
    %4405 = vmatpush.bf16.msra.mxu0 %v4350
    %4406 = vmatmul.bf16.gmra.mxu0 %v4174
    %v4407 = vpop.f32.mrf.mxu0
    %v4408 = vadd.f32 0.0, %v4407
    %v4409 = vpop.f32.mrf.mxu0
    %v4410 = vadd.f32 0.0, %v4409
    %4411 = vmatmul.bf16.gmra.mxu0 %v4175
    %v4412 = vpop.f32.mrf.mxu0
    %v4413 = vadd.f32 0.0, %v4412
    %v4414 = vpop.f32.mrf.mxu0
    %v4415 = vadd.f32 0.0, %v4414
    %4416 = vmatmul.bf16.gmra.mxu0 %v4176
    %v4417 = vpop.f32.mrf.mxu0
    %v4418 = vadd.f32 0.0, %v4417
    %v4419 = vpop.f32.mrf.mxu0
    %v4420 = vadd.f32 0.0, %v4419
    %4421 = vmatmul.bf16.gmra.mxu0 %v4177
    %v4422 = vpop.f32.mrf.mxu0
    %v4423 = vadd.f32 0.0, %v4422
    %v4424 = vpop.f32.mrf.mxu0
    %v4425 = vadd.f32 0.0, %v4424
    %4426 = vmatmul.bf16.gmra.mxu0 %v4178
    %v4427 = vpop.f32.mrf.mxu0
    %v4428 = vadd.f32 0.0, %v4427
    %v4429 = vpop.f32.mrf.mxu0
    %v4430 = vadd.f32 0.0, %v4429
    %4431 = vmatmul.bf16.gmra.mxu0 %v4179
    %v4432 = vpop.f32.mrf.mxu0
    %v4433 = vadd.f32 0.0, %v4432
    %v4434 = vpop.f32.mrf.mxu0
    %v4435 = vadd.f32 0.0, %v4434
    %4436 = vmatmul.bf16.gmra.mxu0 %v4180
    %v4437 = vpop.f32.mrf.mxu0
    %v4438 = vadd.f32 0.0, %v4437
    %v4439 = vpop.f32.mrf.mxu0
    %v4440 = vadd.f32 0.0, %v4439
    %4441 = vmatmul.bf16.gmra.mxu0 %v4181
    %v4442 = vpop.f32.mrf.mxu0
    %v4443 = vadd.f32 0.0, %v4442
    %v4444 = vpop.f32.mrf.mxu0
    %v4445 = vadd.f32 0.0, %v4444
    %4446 = vmatmul.bf16.gmra.mxu0 %v4182
    %v4447 = vpop.f32.mrf.mxu0
    %v4448 = vadd.f32 0.0, %v4447
    %v4449 = vpop.f32.mrf.mxu0
    %v4450 = vadd.f32 0.0, %v4449
    %4451 = vmatmul.bf16.gmra.mxu0 %v4183
    %v4452 = vpop.f32.mrf.mxu0
    %v4453 = vadd.f32 0.0, %v4452
    %v4454 = vpop.f32.mrf.mxu0
    %v4455 = vadd.f32 0.0, %v4454
    %4456 = vmatmul.bf16.gmra.mxu0 %v4184
    %v4457 = vpop.f32.mrf.mxu0
    %v4458 = vadd.f32 0.0, %v4457
    %v4459 = vpop.f32.mrf.mxu0
    %v4460 = vadd.f32 0.0, %v4459
    %4461 = vmatmul.bf16.gmra.mxu0 %v4185
    %v4462 = vpop.f32.mrf.mxu0
    %v4463 = vadd.f32 0.0, %v4462
    %v4464 = vpop.f32.mrf.mxu0
    %v4465 = vadd.f32 0.0, %v4464
    %4466 = vmatmul.bf16.gmra.mxu0 %v4186
    %v4467 = vpop.f32.mrf.mxu0
    %v4468 = vadd.f32 0.0, %v4467
    %v4469 = vpop.f32.mrf.mxu0
    %v4470 = vadd.f32 0.0, %v4469
    %4471 = vmatmul.bf16.gmra.mxu0 %v4187
    %v4472 = vpop.f32.mrf.mxu0
    %v4473 = vadd.f32 0.0, %v4472
    %v4474 = vpop.f32.mrf.mxu0
    %v4475 = vadd.f32 0.0, %v4474
    %4476 = vmatmul.bf16.gmra.mxu0 %v4188
    %v4477 = vpop.f32.mrf.mxu0
    %v4478 = vadd.f32 0.0, %v4477
    %v4479 = vpop.f32.mrf.mxu0
    %v4480 = vadd.f32 0.0, %v4479
    %4481 = vmatmul.bf16.gmra.mxu0 %v4189
    %v4482 = vpop.f32.mrf.mxu0
    %v4483 = vadd.f32 0.0, %v4482
    %v4484 = vpop.f32.mrf.mxu0
    %v4485 = vadd.f32 0.0, %v4484
    %4486 = vmatmul.bf16.gmra.mxu0 %v4190
    %v4487 = vpop.f32.mrf.mxu0
    %v4488 = vadd.f32 0.0, %v4487
    %v4489 = vpop.f32.mrf.mxu0
    %v4490 = vadd.f32 0.0, %v4489
    %4491 = vmatmul.bf16.gmra.mxu0 %v4191
    %v4492 = vpop.f32.mrf.mxu0
    %v4493 = vadd.f32 0.0, %v4492
    %v4494 = vpop.f32.mrf.mxu0
    %v4495 = vadd.f32 0.0, %v4494
    %4496 = vmatmul.bf16.gmra.mxu0 %v4192
    %v4497 = vpop.f32.mrf.mxu0
    %v4498 = vadd.f32 0.0, %v4497
    %v4499 = vpop.f32.mrf.mxu0
    %v4500 = vadd.f32 0.0, %v4499
    %4501 = vmatmul.bf16.gmra.mxu0 %v4193
    %v4502 = vpop.f32.mrf.mxu0
    %v4503 = vadd.f32 0.0, %v4502
    %v4504 = vpop.f32.mrf.mxu0
    %v4505 = vadd.f32 0.0, %v4504
    %4506 = vmatmul.bf16.gmra.mxu0 %v4194
    %v4507 = vpop.f32.mrf.mxu0
    %v4508 = vadd.f32 0.0, %v4507
    %v4509 = vpop.f32.mrf.mxu0
    %v4510 = vadd.f32 0.0, %v4509
    %4511 = vmatmul.bf16.gmra.mxu0 %v4195
    %v4512 = vpop.f32.mrf.mxu0
    %v4513 = vadd.f32 0.0, %v4512
    %v4514 = vpop.f32.mrf.mxu0
    %v4515 = vadd.f32 0.0, %v4514
    %4516 = vmatmul.bf16.gmra.mxu0 %v4196
    %v4517 = vpop.f32.mrf.mxu0
    %v4518 = vadd.f32 0.0, %v4517
    %v4519 = vpop.f32.mrf.mxu0
    %v4520 = vadd.f32 0.0, %v4519
    %4521 = vmatmul.bf16.gmra.mxu0 %v4197
    %v4522 = vpop.f32.mrf.mxu0
    %v4523 = vadd.f32 0.0, %v4522
    %v4524 = vpop.f32.mrf.mxu0
    %v4525 = vadd.f32 0.0, %v4524
    %4526 = vmatmul.bf16.gmra.mxu0 %v4198
    %v4527 = vpop.f32.mrf.mxu0
    %v4528 = vadd.f32 0.0, %v4527
    %v4529 = vpop.f32.mrf.mxu0
    %v4530 = vadd.f32 0.0, %v4529
    %4531 = vmatmul.bf16.gmra.mxu0 %v4199
    %v4532 = vpop.f32.mrf.mxu0
    %v4533 = vadd.f32 0.0, %v4532
    %v4534 = vpop.f32.mrf.mxu0
    %v4535 = vadd.f32 0.0, %v4534
    %4536 = vmatmul.bf16.gmra.mxu0 %v4200
    %v4537 = vpop.f32.mrf.mxu0
    %v4538 = vadd.f32 0.0, %v4537
    %v4539 = vpop.f32.mrf.mxu0
    %v4540 = vadd.f32 0.0, %v4539
    %4541 = vmatmul.bf16.gmra.mxu0 %v4201
    %v4542 = vpop.f32.mrf.mxu0
    %v4543 = vadd.f32 0.0, %v4542
    %v4544 = vpop.f32.mrf.mxu0
    %v4545 = vadd.f32 0.0, %v4544
    %4546 = vmatmul.bf16.gmra.mxu0 %v4202
    %v4547 = vpop.f32.mrf.mxu0
    %v4548 = vadd.f32 0.0, %v4547
    %v4549 = vpop.f32.mrf.mxu0
    %v4550 = vadd.f32 0.0, %v4549
    %4551 = vmatmul.bf16.gmra.mxu0 %v4203
    %v4552 = vpop.f32.mrf.mxu0
    %v4553 = vadd.f32 0.0, %v4552
    %v4554 = vpop.f32.mrf.mxu0
    %v4555 = vadd.f32 0.0, %v4554
    %4556 = vmatmul.bf16.gmra.mxu0 %v4204
    %v4557 = vpop.f32.mrf.mxu0
    %v4558 = vadd.f32 0.0, %v4557
    %v4559 = vpop.f32.mrf.mxu0
    %v4560 = vadd.f32 0.0, %v4559
    %4561 = vmatmul.bf16.gmra.mxu0 %v4205
    %v4562 = vpop.f32.mrf.mxu0
    %v4563 = vadd.f32 0.0, %v4562
    %v4564 = vpop.f32.mrf.mxu0
    %v4565 = vadd.f32 0.0, %v4564
    %4566 = vmatmul.bf16.gmra.mxu0 %v4206
    %v4567 = vpop.f32.mrf.mxu0
    %v4568 = vadd.f32 0.0, %v4567
    %v4569 = vpop.f32.mrf.mxu0
    %v4570 = vadd.f32 0.0, %v4569
    %4571 = vmatmul.bf16.gmra.mxu0 %v4207
    %v4572 = vpop.f32.mrf.mxu0
    %v4573 = vadd.f32 0.0, %v4572
    %v4574 = vpop.f32.mrf.mxu0
    %v4575 = vadd.f32 0.0, %v4574
    %4576 = vmatmul.bf16.gmra.mxu0 %v4208
    %v4577 = vpop.f32.mrf.mxu0
    %v4578 = vadd.f32 0.0, %v4577
    %v4579 = vpop.f32.mrf.mxu0
    %v4580 = vadd.f32 0.0, %v4579
    %4581 = vmatmul.bf16.gmra.mxu0 %v4209
    %v4582 = vpop.f32.mrf.mxu0
    %v4583 = vadd.f32 0.0, %v4582
    %v4584 = vpop.f32.mrf.mxu0
    %v4585 = vadd.f32 0.0, %v4584
    %4586 = vmatmul.bf16.gmra.mxu0 %v4210
    %v4587 = vpop.f32.mrf.mxu0
    %v4588 = vadd.f32 0.0, %v4587
    %v4589 = vpop.f32.mrf.mxu0
    %v4590 = vadd.f32 0.0, %v4589
    %4591 = vmatmul.bf16.gmra.mxu0 %v4211
    %v4592 = vpop.f32.mrf.mxu0
    %v4593 = vadd.f32 0.0, %v4592
    %v4594 = vpop.f32.mrf.mxu0
    %v4595 = vadd.f32 0.0, %v4594
    %4596 = vmatmul.bf16.gmra.mxu0 %v4212
    %v4597 = vpop.f32.mrf.mxu0
    %v4598 = vadd.f32 0.0, %v4597
    %v4599 = vpop.f32.mrf.mxu0
    %v4600 = vadd.f32 0.0, %v4599
    %4601 = vmatmul.bf16.gmra.mxu0 %v4213
    %v4602 = vpop.f32.mrf.mxu0
    %v4603 = vadd.f32 0.0, %v4602
    %v4604 = vpop.f32.mrf.mxu0
    %v4605 = vadd.f32 0.0, %v4604
    %4606 = vmatmul.bf16.gmra.mxu0 %v4214
    %v4607 = vpop.f32.mrf.mxu0
    %v4608 = vadd.f32 0.0, %v4607
    %v4609 = vpop.f32.mrf.mxu0
    %v4610 = vadd.f32 0.0, %v4609
    %4611 = vmatmul.bf16.gmra.mxu0 %v4215
    %v4612 = vpop.f32.mrf.mxu0
    %v4613 = vadd.f32 0.0, %v4612
    %v4614 = vpop.f32.mrf.mxu0
    %v4615 = vadd.f32 0.0, %v4614
    %4616 = vmatmul.bf16.gmra.mxu0 %v4216
    %v4617 = vpop.f32.mrf.mxu0
    %v4618 = vadd.f32 0.0, %v4617
    %v4619 = vpop.f32.mrf.mxu0
    %v4620 = vadd.f32 0.0, %v4619
    %4621 = vmatmul.bf16.gmra.mxu0 %v4217
    %v4622 = vpop.f32.mrf.mxu0
    %v4623 = vadd.f32 0.0, %v4622
    %v4624 = vpop.f32.mrf.mxu0
    %v4625 = vadd.f32 0.0, %v4624
    %4626 = vmatmul.bf16.gmra.mxu0 %v4218
    %v4627 = vpop.f32.mrf.mxu0
    %v4628 = vadd.f32 0.0, %v4627
    %v4629 = vpop.f32.mrf.mxu0
    %v4630 = vadd.f32 0.0, %v4629
    %4631 = vmatmul.bf16.gmra.mxu0 %v4219
    %v4632 = vpop.f32.mrf.mxu0
    %v4633 = vadd.f32 0.0, %v4632
    %v4634 = vpop.f32.mrf.mxu0
    %v4635 = vadd.f32 0.0, %v4634
    %4636 = vmatmul.bf16.gmra.mxu0 %v4220
    %v4637 = vpop.f32.mrf.mxu0
    %v4638 = vadd.f32 0.0, %v4637
    %v4639 = vpop.f32.mrf.mxu0
    %v4640 = vadd.f32 0.0, %v4639
    %4641 = vmatmul.bf16.gmra.mxu0 %v4221
    %v4642 = vpop.f32.mrf.mxu0
    %v4643 = vadd.f32 0.0, %v4642
    %v4644 = vpop.f32.mrf.mxu0
    %v4645 = vadd.f32 0.0, %v4644
    %4646 = vdwg.mxu0
    %4647 = vmatpush.bf16.msra.mxu0 %v4372
    %4648 = vmatpush.bf16.msra.mxu0 %v4369
    %4649 = vmatpush.bf16.msra.mxu0 %v4366
    %4650 = vmatpush.bf16.msra.mxu0 %v4363
    %4651 = vmatpush.bf16.msra.mxu0 %v4360
    %4652 = vmatpush.bf16.msra.mxu0 %v4357
    %4653 = vmatpush.bf16.msra.mxu0 %v4354
    %4654 = vmatpush.bf16.msra.mxu0 %v4351
    %4655 = vmatmul.bf16.gmra.mxu0 %v4174
    %v4656 = vpop.f32.mrf.mxu0
    %v4657 = vadd.f32 0.0, %v4656
    %v4658 = vpop.f32.mrf.mxu0
    %v4659 = vadd.f32 0.0, %v4658
    %4660 = vmatmul.bf16.gmra.mxu0 %v4175
    %v4661 = vpop.f32.mrf.mxu0
    %v4662 = vpop.f32.mrf.mxu0
    %v4663 = vadd.f32 0.0, %v4662
    %4664 = vmatmul.bf16.gmra.mxu0 %v4176
    %v4665 = vpop.f32.mrf.mxu0
    %v4666 = vadd.f32 0.0, %v4665
    %v4667 = vpop.f32.mrf.mxu0
    %4668 = vmatmul.bf16.gmra.mxu0 %v4177
    %v4669 = vpop.f32.mrf.mxu0
    %v4670 = vadd.f32 0.0, %v4669
    %v4671 = vpop.f32.mrf.mxu0
    %v4672 = vadd.f32 0.0, %v4671
    %4673 = vmatmul.bf16.gmra.mxu0 %v4178
    %v4674 = vpop.f32.mrf.mxu0
    %v4675 = vpop.f32.mrf.mxu0
    %v4676 = vadd.f32 0.0, %v4675
    %4677 = vmatmul.bf16.gmra.mxu0 %v4179
    %v4678 = vpop.f32.mrf.mxu0
    %v4679 = vadd.f32 0.0, %v4678
    %v4680 = vpop.f32.mrf.mxu0
    %4681 = vmatmul.bf16.gmra.mxu0 %v4180
    %v4682 = vpop.f32.mrf.mxu0
    %v4683 = vadd.f32 0.0, %v4682
    %v4684 = vpop.f32.mrf.mxu0
    %v4685 = vadd.f32 0.0, %v4684
    %4686 = vmatmul.bf16.gmra.mxu0 %v4181
    %v4687 = vpop.f32.mrf.mxu0
    %v4688 = vpop.f32.mrf.mxu0
    %v4689 = vadd.f32 0.0, %v4688
    %4690 = vmatmul.bf16.gmra.mxu0 %v4182
    %v4691 = vpop.f32.mrf.mxu0
    %v4692 = vadd.f32 0.0, %v4691
    %v4693 = vpop.f32.mrf.mxu0
    %4694 = vmatmul.bf16.gmra.mxu0 %v4183
    %v4695 = vpop.f32.mrf.mxu0
    %v4696 = vadd.f32 0.0, %v4695
    %v4697 = vpop.f32.mrf.mxu0
    %v4698 = vadd.f32 0.0, %v4697
    %4699 = vmatmul.bf16.gmra.mxu0 %v4184
    %v4700 = vpop.f32.mrf.mxu0
    %v4701 = vpop.f32.mrf.mxu0
    %v4702 = vadd.f32 0.0, %v4701
    %4703 = vmatmul.bf16.gmra.mxu0 %v4185
    %v4704 = vpop.f32.mrf.mxu0
    %v4705 = vadd.f32 0.0, %v4704
    %v4706 = vpop.f32.mrf.mxu0
    %4707 = vmatmul.bf16.gmra.mxu0 %v4186
    %v4708 = vpop.f32.mrf.mxu0
    %v4709 = vadd.f32 0.0, %v4708
    %v4710 = vpop.f32.mrf.mxu0
    %v4711 = vadd.f32 0.0, %v4710
    %4712 = vmatmul.bf16.gmra.mxu0 %v4187
    %v4713 = vpop.f32.mrf.mxu0
    %v4714 = vpop.f32.mrf.mxu0
    %v4715 = vadd.f32 0.0, %v4714
    %4716 = vmatmul.bf16.gmra.mxu0 %v4188
    %v4717 = vpop.f32.mrf.mxu0
    %v4718 = vadd.f32 0.0, %v4717
    %v4719 = vpop.f32.mrf.mxu0
    %4720 = vmatmul.bf16.gmra.mxu0 %v4189
    %v4721 = vpop.f32.mrf.mxu0
    %v4722 = vadd.f32 0.0, %v4721
    %v4723 = vpop.f32.mrf.mxu0
    %v4724 = vadd.f32 0.0, %v4723
    %4725 = vmatmul.bf16.gmra.mxu0 %v4190
    %v4726 = vpop.f32.mrf.mxu0
    %v4727 = vpop.f32.mrf.mxu0
    %v4728 = vadd.f32 0.0, %v4727
    %4729 = vmatmul.bf16.gmra.mxu0 %v4191
    %v4730 = vpop.f32.mrf.mxu0
    %v4731 = vadd.f32 0.0, %v4730
    %v4732 = vpop.f32.mrf.mxu0
    %4733 = vmatmul.bf16.gmra.mxu0 %v4192
    %v4734 = vpop.f32.mrf.mxu0
    %v4735 = vadd.f32 0.0, %v4734
    %v4736 = vpop.f32.mrf.mxu0
    %v4737 = vadd.f32 0.0, %v4736
    %4738 = vmatmul.bf16.gmra.mxu0 %v4193
    %v4739 = vpop.f32.mrf.mxu0
    %v4740 = vpop.f32.mrf.mxu0
    %v4741 = vadd.f32 0.0, %v4740
    %4742 = vmatmul.bf16.gmra.mxu0 %v4194
    %v4743 = vpop.f32.mrf.mxu0
    %v4744 = vadd.f32 0.0, %v4743
    %v4745 = vpop.f32.mrf.mxu0
    %4746 = vmatmul.bf16.gmra.mxu0 %v4195
    %v4747 = vpop.f32.mrf.mxu0
    %v4748 = vadd.f32 0.0, %v4747
    %v4749 = vpop.f32.mrf.mxu0
    %v4750 = vadd.f32 0.0, %v4749
    %4751 = vmatmul.bf16.gmra.mxu0 %v4196
    %v4752 = vpop.f32.mrf.mxu0
    %v4753 = vpop.f32.mrf.mxu0
    %v4754 = vadd.f32 0.0, %v4753
    %4755 = vmatmul.bf16.gmra.mxu0 %v4197
    %v4756 = vpop.f32.mrf.mxu0
    %v4757 = vadd.f32 0.0, %v4756
    %v4758 = vpop.f32.mrf.mxu0
    %4759 = vmatmul.bf16.gmra.mxu0 %v4198
    %v4760 = vpop.f32.mrf.mxu0
    %v4761 = vadd.f32 0.0, %v4760
    %v4762 = vpop.f32.mrf.mxu0
    %v4763 = vadd.f32 0.0, %v4762
    %4764 = vmatmul.bf16.gmra.mxu0 %v4199
    %v4765 = vpop.f32.mrf.mxu0
    %v4766 = vpop.f32.mrf.mxu0
    %v4767 = vadd.f32 0.0, %v4766
    %4768 = vmatmul.bf16.gmra.mxu0 %v4200
    %v4769 = vpop.f32.mrf.mxu0
    %v4770 = vadd.f32 0.0, %v4769
    %v4771 = vpop.f32.mrf.mxu0
    %4772 = vmatmul.bf16.gmra.mxu0 %v4201
    %v4773 = vpop.f32.mrf.mxu0
    %v4774 = vadd.f32 0.0, %v4773
    %v4775 = vpop.f32.mrf.mxu0
    %v4776 = vadd.f32 0.0, %v4775
    %4777 = vmatmul.bf16.gmra.mxu0 %v4202
    %v4778 = vpop.f32.mrf.mxu0
    %v4779 = vpop.f32.mrf.mxu0
    %v4780 = vadd.f32 0.0, %v4779
    %4781 = vmatmul.bf16.gmra.mxu0 %v4203
    %v4782 = vpop.f32.mrf.mxu0
    %v4783 = vadd.f32 0.0, %v4782
    %v4784 = vpop.f32.mrf.mxu0
    %4785 = vmatmul.bf16.gmra.mxu0 %v4204
    %v4786 = vpop.f32.mrf.mxu0
    %v4787 = vadd.f32 0.0, %v4786
    %v4788 = vpop.f32.mrf.mxu0
    %v4789 = vadd.f32 0.0, %v4788
    %4790 = vmatmul.bf16.gmra.mxu0 %v4205
    %v4791 = vpop.f32.mrf.mxu0
    %v4792 = vpop.f32.mrf.mxu0
    %v4793 = vadd.f32 0.0, %v4792
    %4794 = vmatmul.bf16.gmra.mxu0 %v4206
    %v4795 = vpop.f32.mrf.mxu0
    %v4796 = vadd.f32 0.0, %v4795
    %v4797 = vpop.f32.mrf.mxu0
    %4798 = vmatmul.bf16.gmra.mxu0 %v4207
    %v4799 = vpop.f32.mrf.mxu0
    %v4800 = vadd.f32 0.0, %v4799
    %v4801 = vpop.f32.mrf.mxu0
    %v4802 = vadd.f32 0.0, %v4801
    %4803 = vmatmul.bf16.gmra.mxu0 %v4208
    %v4804 = vpop.f32.mrf.mxu0
    %v4805 = vpop.f32.mrf.mxu0
    %v4806 = vadd.f32 0.0, %v4805
    %4807 = vmatmul.bf16.gmra.mxu0 %v4209
    %v4808 = vpop.f32.mrf.mxu0
    %v4809 = vadd.f32 0.0, %v4808
    %v4810 = vpop.f32.mrf.mxu0
    %4811 = vmatmul.bf16.gmra.mxu0 %v4210
    %v4812 = vpop.f32.mrf.mxu0
    %v4813 = vadd.f32 0.0, %v4812
    %v4814 = vpop.f32.mrf.mxu0
    %v4815 = vadd.f32 0.0, %v4814
    %4816 = vmatmul.bf16.gmra.mxu0 %v4211
    %v4817 = vpop.f32.mrf.mxu0
    %v4818 = vpop.f32.mrf.mxu0
    %v4819 = vadd.f32 0.0, %v4818
    %4820 = vmatmul.bf16.gmra.mxu0 %v4212
    %v4821 = vpop.f32.mrf.mxu0
    %v4822 = vadd.f32 0.0, %v4821
    %v4823 = vpop.f32.mrf.mxu0
    %4824 = vmatmul.bf16.gmra.mxu0 %v4213
    %v4825 = vpop.f32.mrf.mxu0
    %v4826 = vadd.f32 0.0, %v4825
    %v4827 = vpop.f32.mrf.mxu0
    %v4828 = vadd.f32 0.0, %v4827
    %4829 = vmatmul.bf16.gmra.mxu0 %v4214
    %v4830 = vpop.f32.mrf.mxu0
    %v4831 = vpop.f32.mrf.mxu0
    %v4832 = vadd.f32 0.0, %v4831
    %4833 = vmatmul.bf16.gmra.mxu0 %v4215
    %v4834 = vpop.f32.mrf.mxu0
    %v4835 = vadd.f32 0.0, %v4834
    %v4836 = vpop.f32.mrf.mxu0
    %4837 = vmatmul.bf16.gmra.mxu0 %v4216
    %v4838 = vpop.f32.mrf.mxu0
    %v4839 = vadd.f32 0.0, %v4838
    %v4840 = vpop.f32.mrf.mxu0
    %v4841 = vadd.f32 0.0, %v4840
    %4842 = vmatmul.bf16.gmra.mxu0 %v4217
    %v4843 = vpop.f32.mrf.mxu0
    %v4844 = vpop.f32.mrf.mxu0
    %v4845 = vadd.f32 0.0, %v4844
    %4846 = vmatmul.bf16.gmra.mxu0 %v4218
    %v4847 = vpop.f32.mrf.mxu0
    %v4848 = vadd.f32 0.0, %v4847
    %v4849 = vpop.f32.mrf.mxu0
    %4850 = vmatmul.bf16.gmra.mxu0 %v4219
    %v4851 = vpop.f32.mrf.mxu0
    %v4852 = vadd.f32 0.0, %v4851
    %v4853 = vpop.f32.mrf.mxu0
    %v4854 = vadd.f32 0.0, %v4853
    %4855 = vmatmul.bf16.gmra.mxu0 %v4220
    %v4856 = vpop.f32.mrf.mxu0
    %v4857 = vpop.f32.mrf.mxu0
    %v4858 = vadd.f32 0.0, %v4857
    %4859 = vmatmul.bf16.gmra.mxu0 %v4221
    %v4860 = vpop.f32.mrf.mxu0
    %v4861 = vadd.f32 0.0, %v4860
    %v4862 = vpop.f32.mrf.mxu0
    %4863 = vdwg.mxu0
    %4864 = vmatpush.bf16.msra.mxu0 %v4373
    %4865 = vmatpush.bf16.msra.mxu0 %v4370
    %4866 = vmatpush.bf16.msra.mxu0 %v4367
    %4867 = vmatpush.bf16.msra.mxu0 %v4364
    %4868 = vmatpush.bf16.msra.mxu0 %v4361
    %4869 = vmatpush.bf16.msra.mxu0 %v4358
    %4870 = vmatpush.bf16.msra.mxu0 %v4355
    %4871 = vmatpush.bf16.msra.mxu0 %v4352
    %4872 = vmatmul.bf16.gmra.mxu0 %v4174
    %v4873 = vpop.f32.mrf.mxu0
    %v4874 = vadd.f32 0.0, %v4873
    %v4875 = vpop.f32.mrf.mxu0
    %v4876 = vadd.f32 0.0, %v4875
    %4877 = vmatmul.bf16.gmra.mxu0 %v4175
    %v4878 = vpop.f32.mrf.mxu0
    %v4879 = vadd.f32 0.0, %v4878
    %v4880 = vpop.f32.mrf.mxu0
    %v4881 = vadd.f32 0.0, %v4880
    %4882 = vmatmul.bf16.gmra.mxu0 %v4176
    %v4883 = vpop.f32.mrf.mxu0
    %v4884 = vadd.f32 0.0, %v4883
    %v4885 = vpop.f32.mrf.mxu0
    %v4886 = vadd.f32 0.0, %v4885
    %4887 = vmatmul.bf16.gmra.mxu0 %v4177
    %v4888 = vpop.f32.mrf.mxu0
    %v4889 = vadd.f32 0.0, %v4888
    %v4890 = vpop.f32.mrf.mxu0
    %v4891 = vadd.f32 0.0, %v4890
    %4892 = vmatmul.bf16.gmra.mxu0 %v4178
    %v4893 = vpop.f32.mrf.mxu0
    %v4894 = vadd.f32 0.0, %v4893
    %v4895 = vpop.f32.mrf.mxu0
    %v4896 = vadd.f32 0.0, %v4895
    %4897 = vmatmul.bf16.gmra.mxu0 %v4179
    %v4898 = vpop.f32.mrf.mxu0
    %v4899 = vadd.f32 0.0, %v4898
    %v4900 = vpop.f32.mrf.mxu0
    %v4901 = vadd.f32 0.0, %v4900
    %4902 = vmatmul.bf16.gmra.mxu0 %v4180
    %v4903 = vpop.f32.mrf.mxu0
    %v4904 = vadd.f32 0.0, %v4903
    %v4905 = vpop.f32.mrf.mxu0
    %v4906 = vadd.f32 0.0, %v4905
    %4907 = vmatmul.bf16.gmra.mxu0 %v4181
    %v4908 = vpop.f32.mrf.mxu0
    %v4909 = vadd.f32 0.0, %v4908
    %v4910 = vpop.f32.mrf.mxu0
    %v4911 = vadd.f32 0.0, %v4910
    %4912 = vmatmul.bf16.gmra.mxu0 %v4182
    %v4913 = vpop.f32.mrf.mxu0
    %v4914 = vadd.f32 0.0, %v4913
    %v4915 = vpop.f32.mrf.mxu0
    %v4916 = vadd.f32 0.0, %v4915
    %4917 = vmatmul.bf16.gmra.mxu0 %v4183
    %v4918 = vpop.f32.mrf.mxu0
    %v4919 = vadd.f32 0.0, %v4918
    %v4920 = vpop.f32.mrf.mxu0
    %v4921 = vadd.f32 0.0, %v4920
    %4922 = vmatmul.bf16.gmra.mxu0 %v4184
    %v4923 = vpop.f32.mrf.mxu0
    %v4924 = vadd.f32 0.0, %v4923
    %v4925 = vpop.f32.mrf.mxu0
    %v4926 = vadd.f32 0.0, %v4925
    %4927 = vmatmul.bf16.gmra.mxu0 %v4185
    %v4928 = vpop.f32.mrf.mxu0
    %v4929 = vadd.f32 0.0, %v4928
    %v4930 = vpop.f32.mrf.mxu0
    %v4931 = vadd.f32 0.0, %v4930
    %4932 = vmatmul.bf16.gmra.mxu0 %v4186
    %v4933 = vpop.f32.mrf.mxu0
    %v4934 = vadd.f32 0.0, %v4933
    %v4935 = vpop.f32.mrf.mxu0
    %v4936 = vadd.f32 0.0, %v4935
    %4937 = vmatmul.bf16.gmra.mxu0 %v4187
    %v4938 = vpop.f32.mrf.mxu0
    %v4939 = vadd.f32 0.0, %v4938
    %v4940 = vpop.f32.mrf.mxu0
    %v4941 = vadd.f32 0.0, %v4940
    %4942 = vmatmul.bf16.gmra.mxu0 %v4188
    %v4943 = vpop.f32.mrf.mxu0
    %v4944 = vadd.f32 0.0, %v4943
    %v4945 = vpop.f32.mrf.mxu0
    %v4946 = vadd.f32 0.0, %v4945
    %4947 = vmatmul.bf16.gmra.mxu0 %v4189
    %v4948 = vpop.f32.mrf.mxu0
    %v4949 = vadd.f32 0.0, %v4948
    %v4950 = vpop.f32.mrf.mxu0
    %v4951 = vadd.f32 0.0, %v4950
    %4952 = vmatmul.bf16.gmra.mxu0 %v4190
    %v4953 = vpop.f32.mrf.mxu0
    %v4954 = vadd.f32 0.0, %v4953
    %v4955 = vpop.f32.mrf.mxu0
    %v4956 = vadd.f32 0.0, %v4955
    %4957 = vmatmul.bf16.gmra.mxu0 %v4191
    %v4958 = vpop.f32.mrf.mxu0
    %v4959 = vadd.f32 0.0, %v4958
    %v4960 = vpop.f32.mrf.mxu0
    %v4961 = vadd.f32 0.0, %v4960
    %4962 = vmatmul.bf16.gmra.mxu0 %v4192
    %v4963 = vpop.f32.mrf.mxu0
    %v4964 = vadd.f32 0.0, %v4963
    %v4965 = vpop.f32.mrf.mxu0
    %v4966 = vadd.f32 0.0, %v4965
    %4967 = vmatmul.bf16.gmra.mxu0 %v4193
    %v4968 = vpop.f32.mrf.mxu0
    %v4969 = vadd.f32 0.0, %v4968
    %v4970 = vpop.f32.mrf.mxu0
    %v4971 = vadd.f32 0.0, %v4970
    %4972 = vmatmul.bf16.gmra.mxu0 %v4194
    %v4973 = vpop.f32.mrf.mxu0
    %v4974 = vadd.f32 0.0, %v4973
    %v4975 = vpop.f32.mrf.mxu0
    %v4976 = vadd.f32 0.0, %v4975
    %4977 = vmatmul.bf16.gmra.mxu0 %v4195
    %v4978 = vpop.f32.mrf.mxu0
    %v4979 = vadd.f32 0.0, %v4978
    %v4980 = vpop.f32.mrf.mxu0
    %v4981 = vadd.f32 0.0, %v4980
    %4982 = vmatmul.bf16.gmra.mxu0 %v4196
    %v4983 = vpop.f32.mrf.mxu0
    %v4984 = vadd.f32 0.0, %v4983
    %v4985 = vpop.f32.mrf.mxu0
    %v4986 = vadd.f32 0.0, %v4985
    %4987 = vmatmul.bf16.gmra.mxu0 %v4197
    %v4988 = vpop.f32.mrf.mxu0
    %v4989 = vadd.f32 0.0, %v4988
    %v4990 = vpop.f32.mrf.mxu0
    %v4991 = vadd.f32 0.0, %v4990
    %4992 = vmatmul.bf16.gmra.mxu0 %v4198
    %v4993 = vpop.f32.mrf.mxu0
    %v4994 = vadd.f32 0.0, %v4993
    %v4995 = vpop.f32.mrf.mxu0
    %v4996 = vadd.f32 0.0, %v4995
    %4997 = vmatmul.bf16.gmra.mxu0 %v4199
    %v4998 = vpop.f32.mrf.mxu0
    %v4999 = vadd.f32 0.0, %v4998
    %v5000 = vpop.f32.mrf.mxu0
    %v5001 = vadd.f32 0.0, %v5000
    %5002 = vmatmul.bf16.gmra.mxu0 %v4200
    %v5003 = vpop.f32.mrf.mxu0
    %v5004 = vadd.f32 0.0, %v5003
    %v5005 = vpop.f32.mrf.mxu0
    %v5006 = vadd.f32 0.0, %v5005
    %5007 = vmatmul.bf16.gmra.mxu0 %v4201
    %v5008 = vpop.f32.mrf.mxu0
    %v5009 = vadd.f32 0.0, %v5008
    %v5010 = vpop.f32.mrf.mxu0
    %v5011 = vadd.f32 0.0, %v5010
    %5012 = vmatmul.bf16.gmra.mxu0 %v4202
    %v5013 = vpop.f32.mrf.mxu0
    %v5014 = vadd.f32 0.0, %v5013
    %v5015 = vpop.f32.mrf.mxu0
    %v5016 = vadd.f32 0.0, %v5015
    %5017 = vmatmul.bf16.gmra.mxu0 %v4203
    %v5018 = vpop.f32.mrf.mxu0
    %v5019 = vadd.f32 0.0, %v5018
    %v5020 = vpop.f32.mrf.mxu0
    %v5021 = vadd.f32 0.0, %v5020
    %5022 = vmatmul.bf16.gmra.mxu0 %v4204
    %v5023 = vpop.f32.mrf.mxu0
    %v5024 = vadd.f32 0.0, %v5023
    %v5025 = vpop.f32.mrf.mxu0
    %v5026 = vadd.f32 0.0, %v5025
    %5027 = vmatmul.bf16.gmra.mxu0 %v4205
    %v5028 = vpop.f32.mrf.mxu0
    %v5029 = vadd.f32 0.0, %v5028
    %v5030 = vpop.f32.mrf.mxu0
    %v5031 = vadd.f32 0.0, %v5030
    %5032 = vmatmul.bf16.gmra.mxu0 %v4206
    %v5033 = vpop.f32.mrf.mxu0
    %v5034 = vadd.f32 0.0, %v5033
    %v5035 = vpop.f32.mrf.mxu0
    %v5036 = vadd.f32 0.0, %v5035
    %5037 = vmatmul.bf16.gmra.mxu0 %v4207
    %v5038 = vpop.f32.mrf.mxu0
    %v5039 = vadd.f32 0.0, %v5038
    %v5040 = vpop.f32.mrf.mxu0
    %v5041 = vadd.f32 0.0, %v5040
    %5042 = vmatmul.bf16.gmra.mxu0 %v4208
    %v5043 = vpop.f32.mrf.mxu0
    %v5044 = vadd.f32 0.0, %v5043
    %v5045 = vpop.f32.mrf.mxu0
    %v5046 = vadd.f32 0.0, %v5045
    %5047 = vmatmul.bf16.gmra.mxu0 %v4209
    %v5048 = vpop.f32.mrf.mxu0
    %v5049 = vadd.f32 0.0, %v5048
    %v5050 = vpop.f32.mrf.mxu0
    %v5051 = vadd.f32 0.0, %v5050
    %5052 = vmatmul.bf16.gmra.mxu0 %v4210
    %v5053 = vpop.f32.mrf.mxu0
    %v5054 = vadd.f32 0.0, %v5053
    %v5055 = vpop.f32.mrf.mxu0
    %v5056 = vadd.f32 0.0, %v5055
    %5057 = vmatmul.bf16.gmra.mxu0 %v4211
    %v5058 = vpop.f32.mrf.mxu0
    %v5059 = vadd.f32 0.0, %v5058
    %v5060 = vpop.f32.mrf.mxu0
    %v5061 = vadd.f32 0.0, %v5060
    %5062 = vmatmul.bf16.gmra.mxu0 %v4212
    %v5063 = vpop.f32.mrf.mxu0
    %v5064 = vadd.f32 0.0, %v5063
    %v5065 = vpop.f32.mrf.mxu0
    %v5066 = vadd.f32 0.0, %v5065
    %5067 = vmatmul.bf16.gmra.mxu0 %v4213
    %v5068 = vpop.f32.mrf.mxu0
    %v5069 = vadd.f32 0.0, %v5068
    %v5070 = vpop.f32.mrf.mxu0
    %v5071 = vadd.f32 0.0, %v5070
    %5072 = vmatmul.bf16.gmra.mxu0 %v4214
    %v5073 = vpop.f32.mrf.mxu0
    %v5074 = vadd.f32 0.0, %v5073
    %v5075 = vpop.f32.mrf.mxu0
    %v5076 = vadd.f32 0.0, %v5075
    %5077 = vmatmul.bf16.gmra.mxu0 %v4215
    %v5078 = vpop.f32.mrf.mxu0
    %v5079 = vadd.f32 0.0, %v5078
    %v5080 = vpop.f32.mrf.mxu0
    %v5081 = vadd.f32 0.0, %v5080
    %5082 = vmatmul.bf16.gmra.mxu0 %v4216
    %v5083 = vpop.f32.mrf.mxu0
    %v5084 = vadd.f32 0.0, %v5083
    %v5085 = vpop.f32.mrf.mxu0
    %v5086 = vadd.f32 0.0, %v5085
    %5087 = vmatmul.bf16.gmra.mxu0 %v4217
    %v5088 = vpop.f32.mrf.mxu0
    %v5089 = vadd.f32 0.0, %v5088
    %v5090 = vpop.f32.mrf.mxu0
    %v5091 = vadd.f32 0.0, %v5090
    %5092 = vmatmul.bf16.gmra.mxu0 %v4218
    %v5093 = vpop.f32.mrf.mxu0
    %v5094 = vadd.f32 0.0, %v5093
    %v5095 = vpop.f32.mrf.mxu0
    %v5096 = vadd.f32 0.0, %v5095
    %5097 = vmatmul.bf16.gmra.mxu0 %v4219
    %v5098 = vpop.f32.mrf.mxu0
    %v5099 = vadd.f32 0.0, %v5098
    %v5100 = vpop.f32.mrf.mxu0
    %v5101 = vadd.f32 0.0, %v5100
    %5102 = vmatmul.bf16.gmra.mxu0 %v4220
    %v5103 = vpop.f32.mrf.mxu0
    %v5104 = vadd.f32 0.0, %v5103
    %v5105 = vpop.f32.mrf.mxu0
    %v5106 = vadd.f32 0.0, %v5105
    %5107 = vmatmul.bf16.gmra.mxu0 %v4221
    %v5108 = vpop.f32.mrf.mxu0
    %v5109 = vadd.f32 0.0, %v5108
    %v5110 = vpop.f32.mrf.mxu0
    %v5111 = vadd.f32 0.0, %v5110
    %5112 = vdwg.mxu0
    %v5113 = vrot.slane %v4408, 7
    %v5114 = vrot.slane %v4410, 7
    %v5115 = vrot.slane %v4413, 7
    %v5116 = vrot.slane %v4415, 7
    %v5117 = vrot.slane %v4418, 7
    %v5118 = vrot.slane %v4420, 7
    %v5119 = vrot.slane %v4423, 7
    %v5120 = vrot.slane %v4425, 7
    %v5121 = vrot.slane %v4428, 7
    %v5122 = vrot.slane %v4430, 7
    %v5123 = vrot.slane %v4433, 7
    %v5124 = vrot.slane %v4435, 7
    %v5125 = vrot.slane %v4438, 7
    %v5126 = vrot.slane %v4440, 7
    %v5127 = vrot.slane %v4443, 7
    %v5128 = vrot.slane %v4445, 7
    %v5129 = vrot.slane %v4448, 7
    %v5130 = vrot.slane %v4450, 7
    %v5131 = vrot.slane %v4453, 7
    %v5132 = vrot.slane %v4455, 7
    %v5133 = vrot.slane %v4458, 7
    %v5134 = vrot.slane %v4460, 7
    %v5135 = vrot.slane %v4463, 7
    %v5136 = vrot.slane %v4465, 7
    %v5137 = vrot.slane %v4468, 7
    %v5138 = vrot.slane %v4470, 7
    %v5139 = vrot.slane %v4473, 7
    %v5140 = vrot.slane %v4475, 7
    %v5141 = vrot.slane %v4478, 7
    %v5142 = vrot.slane %v4480, 7
    %v5143 = vrot.slane %v4483, 7
    %v5144 = vrot.slane %v4485, 7
    %v5145 = vrot.slane %v4488, 7
    %v5146 = vrot.slane %v4490, 7
    %v5147 = vrot.slane %v4493, 7
    %v5148 = vrot.slane %v4495, 7
    %v5149 = vrot.slane %v4498, 7
    %v5150 = vrot.slane %v4500, 7
    %v5151 = vrot.slane %v4503, 7
    %v5152 = vrot.slane %v4505, 7
    %v5153 = vrot.slane %v4508, 7
    %v5154 = vrot.slane %v4510, 7
    %v5155 = vrot.slane %v4513, 7
    %v5156 = vrot.slane %v4515, 7
    %v5157 = vrot.slane %v4518, 7
    %v5158 = vrot.slane %v4520, 7
    %v5159 = vrot.slane %v4523, 7
    %v5160 = vrot.slane %v4525, 7
    %v5161 = vrot.slane %v4528, 7
    %v5162 = vrot.slane %v4530, 7
    %v5163 = vrot.slane %v4533, 7
    %v5164 = vrot.slane %v4535, 7
    %v5165 = vrot.slane %v4538, 7
    %v5166 = vrot.slane %v4540, 7
    %v5167 = vrot.slane %v4543, 7
    %v5168 = vrot.slane %v4545, 7
    %v5169 = vrot.slane %v4548, 7
    %v5170 = vrot.slane %v4550, 7
    %v5171 = vrot.slane %v4553, 7
    %v5172 = vrot.slane %v4555, 7
    %v5173 = vrot.slane %v4558, 7
    %v5174 = vrot.slane %v4560, 7
    %v5175 = vrot.slane %v4563, 7
    %v5176 = vrot.slane %v4565, 7
    %v5177 = vrot.slane %v4568, 7
    %v5178 = vrot.slane %v4570, 7
    %v5179 = vrot.slane %v4573, 7
    %v5180 = vrot.slane %v4575, 7
    %v5181 = vrot.slane %v4578, 7
    %v5182 = vrot.slane %v4580, 7
    %v5183 = vrot.slane %v4583, 7
    %v5184 = vrot.slane %v4585, 7
    %v5185 = vrot.slane %v4588, 7
    %v5186 = vrot.slane %v4590, 7
    %v5187 = vrot.slane %v4593, 7
    %v5188 = vrot.slane %v4595, 7
    %v5189 = vrot.slane %v4598, 7
    %v5190 = vrot.slane %v4600, 7
    %v5191 = vrot.slane %v4603, 7
    %v5192 = vrot.slane %v4605, 7
    %v5193 = vrot.slane %v4608, 7
    %v5194 = vrot.slane %v4610, 7
    %v5195 = vrot.slane %v4613, 7
    %v5196 = vrot.slane %v4615, 7
    %v5197 = vrot.slane %v4618, 7
    %v5198 = vrot.slane %v4620, 7
    %v5199 = vrot.slane %v4623, 7
    %v5200 = vrot.slane %v4625, 7
    %v5201 = vrot.slane %v4628, 7
    %v5202 = vrot.slane %v4630, 7
    %v5203 = vrot.slane %v4633, 7
    %v5204 = vrot.slane %v4635, 7
    %v5205 = vrot.slane %v4638, 7
    %v5206 = vrot.slane %v4640, 7
    %v5207 = vrot.slane %v4643, 7
    %v5208 = vrot.slane %v4645, 7
    %v5209 = vsel %vm1662, %v5206, %v5207
    %v5210 = vsel %vm1662, %v5205, %v5206
    %v5211 = vsel %vm1662, %v5203, %v5204
    %v5212 = vsel %vm1662, %v5202, %v5203
    %v5213 = vsel %vm1662, %v5200, %v5201
    %v5214 = vsel %vm1662, %v5199, %v5200
    %v5215 = vsel %vm1662, %v5197, %v5198
    %v5216 = vsel %vm1662, %v5196, %v5197
    %v5217 = vsel %vm1662, %v5194, %v5195
    %v5218 = vsel %vm1662, %v5193, %v5194
    %v5219 = vsel %vm1662, %v5191, %v5192
    %v5220 = vsel %vm1662, %v5190, %v5191
    %v5221 = vsel %vm1662, %v5188, %v5189
    %v5222 = vsel %vm1662, %v5187, %v5188
    %v5223 = vsel %vm1662, %v5185, %v5186
    %v5224 = vsel %vm1662, %v5184, %v5185
    %v5225 = vsel %vm1662, %v5182, %v5183
    %v5226 = vsel %vm1662, %v5181, %v5182
    %v5227 = vsel %vm1662, %v5179, %v5180
    %v5228 = vsel %vm1662, %v5178, %v5179
    %v5229 = vsel %vm1662, %v5176, %v5177
    %v5230 = vsel %vm1662, %v5175, %v5176
    %v5231 = vsel %vm1662, %v5173, %v5174
    %v5232 = vsel %vm1662, %v5172, %v5173
    %v5233 = vsel %vm1662, %v5170, %v5171
    %v5234 = vsel %vm1662, %v5169, %v5170
    %v5235 = vsel %vm1662, %v5167, %v5168
    %v5236 = vsel %vm1662, %v5166, %v5167
    %v5237 = vsel %vm1662, %v5164, %v5165
    %v5238 = vsel %vm1662, %v5163, %v5164
    %v5239 = vsel %vm1662, %v5161, %v5162
    %v5240 = vsel %vm1662, %v5160, %v5161
    %v5241 = vsel %vm1662, %v5158, %v5159
    %v5242 = vsel %vm1662, %v5157, %v5158
    %v5243 = vsel %vm1662, %v5155, %v5156
    %v5244 = vsel %vm1662, %v5154, %v5155
    %v5245 = vsel %vm1662, %v5152, %v5153
    %v5246 = vsel %vm1662, %v5151, %v5152
    %v5247 = vsel %vm1662, %v5149, %v5150
    %v5248 = vsel %vm1662, %v5148, %v5149
    %v5249 = vsel %vm1662, %v5146, %v5147
    %v5250 = vsel %vm1662, %v5145, %v5146
    %v5251 = vsel %vm1662, %v5143, %v5144
    %v5252 = vsel %vm1662, %v5142, %v5143
    %v5253 = vsel %vm1662, %v5140, %v5141
    %v5254 = vsel %vm1662, %v5139, %v5140
    %v5255 = vsel %vm1662, %v5137, %v5138
    %v5256 = vsel %vm1662, %v5136, %v5137
    %v5257 = vsel %vm1662, %v5134, %v5135
    %v5258 = vsel %vm1662, %v5133, %v5134
    %v5259 = vsel %vm1662, %v5131, %v5132
    %v5260 = vsel %vm1662, %v5130, %v5131
    %v5261 = vsel %vm1662, %v5128, %v5129
    %v5262 = vsel %vm1662, %v5127, %v5128
    %v5263 = vsel %vm1662, %v5125, %v5126
    %v5264 = vsel %vm1662, %v5124, %v5125
    %v5265 = vsel %vm1662, %v5122, %v5123
    %v5266 = vsel %vm1662, %v5121, %v5122
    %v5267 = vsel %vm1662, %v5119, %v5120
    %v5268 = vsel %vm1662, %v5118, %v5119
    %v5269 = vsel %vm1662, %v5116, %v5117
    %v5270 = vsel %vm1662, %v5115, %v5116
    %v5271 = vsel %vm1662, %v5113, %v5114
    %v5272 = vsel %vm1662, %v5208, %v5113
    %v5273 = vadd.f32 %v3788, %v5272
    %v5274 = vadd.f32 %v3789, %v5271
    %v5275 = vadd.f32 %v3790, %v5270
    %v5276 = vadd.f32 %v3791, %v5269
    %v5277 = vadd.f32 %v3792, %v5268
    %v5278 = vadd.f32 %v3793, %v5267
    %v5279 = vadd.f32 %v3794, %v5266
    %v5280 = vadd.f32 %v3795, %v5265
    %v5281 = vadd.f32 %v3796, %v5264
    %v5282 = vadd.f32 %v3797, %v5263
    %v5283 = vadd.f32 %v3798, %v5262
    %v5284 = vadd.f32 %v3799, %v5261
    %v5285 = vadd.f32 %v3800, %v5260
    %v5286 = vadd.f32 %v3801, %v5259
    %v5287 = vadd.f32 %v3802, %v5258
    %v5288 = vadd.f32 %v3803, %v5257
    %v5289 = vadd.f32 %v3804, %v5256
    %v5290 = vadd.f32 %v3805, %v5255
    %v5291 = vadd.f32 %v3806, %v5254
    %v5292 = vadd.f32 %v3807, %v5253
    %v5293 = vadd.f32 %v3808, %v5252
    %v5294 = vadd.f32 %v3809, %v5251
    %v5295 = vadd.f32 %v3810, %v5250
    %v5296 = vadd.f32 %v3811, %v5249
    %v5297 = vadd.f32 %v3812, %v5248
    %v5298 = vadd.f32 %v3813, %v5247
    %v5299 = vadd.f32 %v3814, %v5246
    %v5300 = vadd.f32 %v3815, %v5245
    %v5301 = vadd.f32 %v3816, %v5244
    %v5302 = vadd.f32 %v3817, %v5243
    %v5303 = vadd.f32 %v3818, %v5242
    %v5304 = vadd.f32 %v3819, %v5241
    %v5305 = vadd.f32 %v3820, %v5240
    %v5306 = vadd.f32 %v3821, %v5239
    %v5307 = vadd.f32 %v3822, %v5238
    %v5308 = vadd.f32 %v3823, %v5237
    %v5309 = vadd.f32 %v3824, %v5236
    %v5310 = vadd.f32 %v3825, %v5235
    %v5311 = vadd.f32 %v3826, %v5234
    %v5312 = vadd.f32 %v3827, %v5233
    %v5313 = vadd.f32 %v3828, %v5232
    %v5314 = vadd.f32 %v3829, %v5231
    %v5315 = vadd.f32 %v3830, %v5230
    %v5316 = vadd.f32 %v3831, %v5229
    %v5317 = vadd.f32 %v3832, %v5228
    %v5318 = vadd.f32 %v3833, %v5227
    %v5319 = vadd.f32 %v3834, %v5226
    %v5320 = vadd.f32 %v3835, %v5225
    %v5321 = vadd.f32 %v3836, %v5224
    %v5322 = vadd.f32 %v3837, %v5223
    %v5323 = vadd.f32 %v3838, %v5222
    %v5324 = vadd.f32 %v3839, %v5221
    %v5325 = vadd.f32 %v3840, %v5220
    %v5326 = vadd.f32 %v3841, %v5219
    %v5327 = vadd.f32 %v3842, %v5218
    %v5328 = vadd.f32 %v3843, %v5217
    %v5329 = vadd.f32 %v3844, %v5216
    %v5330 = vadd.f32 %v3845, %v5215
    %v5331 = vadd.f32 %v3846, %v5214
    %v5332 = vadd.f32 %v3847, %v5213
    %v5333 = vadd.f32 %v3848, %v5212
    %v5334 = vadd.f32 %v3849, %v5211
    %v5335 = vadd.f32 %v3850, %v5210
    %v5336 = vadd.f32 %v3851, %v5209
    %v5337 = vadd.f32 %v5273, %v4657
    %v5338 = vadd.f32 %v5274, %v4659
    %v5339 = vadd.f32 %v5275, %v4663
    %v5340 = vadd.f32 %v5276, %v4666
    %v5341 = vadd.f32 %v5277, %v4670
    %v5342 = vadd.f32 %v5278, %v4672
    %v5343 = vadd.f32 %v5279, %v4676
    %v5344 = vadd.f32 %v5280, %v4679
    %v5345 = vadd.f32 %v5281, %v4683
    %v5346 = vadd.f32 %v5282, %v4685
    %v5347 = vadd.f32 %v5283, %v4689
    %v5348 = vadd.f32 %v5284, %v4692
    %v5349 = vadd.f32 %v5285, %v4696
    %v5350 = vadd.f32 %v5286, %v4698
    %v5351 = vadd.f32 %v5287, %v4702
    %v5352 = vadd.f32 %v5288, %v4705
    %v5353 = vadd.f32 %v5289, %v4709
    %v5354 = vadd.f32 %v5290, %v4711
    %v5355 = vadd.f32 %v5291, %v4715
    %v5356 = vadd.f32 %v5292, %v4718
    %v5357 = vadd.f32 %v5293, %v4722
    %v5358 = vadd.f32 %v5294, %v4724
    %v5359 = vadd.f32 %v5295, %v4728
    %v5360 = vadd.f32 %v5296, %v4731
    %v5361 = vadd.f32 %v5297, %v4735
    %v5362 = vadd.f32 %v5298, %v4737
    %v5363 = vadd.f32 %v5299, %v4741
    %v5364 = vadd.f32 %v5300, %v4744
    %v5365 = vadd.f32 %v5301, %v4748
    %v5366 = vadd.f32 %v5302, %v4750
    %v5367 = vadd.f32 %v5303, %v4754
    %v5368 = vadd.f32 %v5304, %v4757
    %v5369 = vadd.f32 %v5305, %v4761
    %v5370 = vadd.f32 %v5306, %v4763
    %v5371 = vadd.f32 %v5307, %v4767
    %v5372 = vadd.f32 %v5308, %v4770
    %v5373 = vadd.f32 %v5309, %v4774
    %v5374 = vadd.f32 %v5310, %v4776
    %v5375 = vadd.f32 %v5311, %v4780
    %v5376 = vadd.f32 %v5312, %v4783
    %v5377 = vadd.f32 %v5313, %v4787
    %v5378 = vadd.f32 %v5314, %v4789
    %v5379 = vadd.f32 %v5315, %v4793
    %v5380 = vadd.f32 %v5316, %v4796
    %v5381 = vadd.f32 %v5317, %v4800
    %v5382 = vadd.f32 %v5318, %v4802
    %v5383 = vadd.f32 %v5319, %v4806
    %v5384 = vadd.f32 %v5320, %v4809
    %v5385 = vadd.f32 %v5321, %v4813
    %v5386 = vadd.f32 %v5322, %v4815
    %v5387 = vadd.f32 %v5323, %v4819
    %v5388 = vadd.f32 %v5324, %v4822
    %v5389 = vadd.f32 %v5325, %v4826
    %v5390 = vadd.f32 %v5326, %v4828
    %v5391 = vadd.f32 %v5327, %v4832
    %v5392 = vadd.f32 %v5328, %v4835
    %v5393 = vadd.f32 %v5329, %v4839
    %v5394 = vadd.f32 %v5330, %v4841
    %v5395 = vadd.f32 %v5331, %v4845
    %v5396 = vadd.f32 %v5332, %v4848
    %v5397 = vadd.f32 %v5333, %v4852
    %v5398 = vadd.f32 %v5334, %v4854
    %v5399 = vadd.f32 %v5335, %v4858
    %v5400 = vadd.f32 %v5336, %v4861
    %v5401 = vrot.slane %v4874, 1
    %v5402 = vrot.slane %v4876, 1
    %v5403 = vrot.slane %v4879, 1
    %v5404 = vrot.slane %v4881, 1
    %v5405 = vrot.slane %v4884, 1
    %v5406 = vrot.slane %v4886, 1
    %v5407 = vrot.slane %v4889, 1
    %v5408 = vrot.slane %v4891, 1
    %v5409 = vrot.slane %v4894, 1
    %v5410 = vrot.slane %v4896, 1
    %v5411 = vrot.slane %v4899, 1
    %v5412 = vrot.slane %v4901, 1
    %v5413 = vrot.slane %v4904, 1
    %v5414 = vrot.slane %v4906, 1
    %v5415 = vrot.slane %v4909, 1
    %v5416 = vrot.slane %v4911, 1
    %v5417 = vrot.slane %v4914, 1
    %v5418 = vrot.slane %v4916, 1
    %v5419 = vrot.slane %v4919, 1
    %v5420 = vrot.slane %v4921, 1
    %v5421 = vrot.slane %v4924, 1
    %v5422 = vrot.slane %v4926, 1
    %v5423 = vrot.slane %v4929, 1
    %v5424 = vrot.slane %v4931, 1
    %v5425 = vrot.slane %v4934, 1
    %v5426 = vrot.slane %v4936, 1
    %v5427 = vrot.slane %v4939, 1
    %v5428 = vrot.slane %v4941, 1
    %v5429 = vrot.slane %v4944, 1
    %v5430 = vrot.slane %v4946, 1
    %v5431 = vrot.slane %v4949, 1
    %v5432 = vrot.slane %v4951, 1
    %v5433 = vrot.slane %v4954, 1
    %v5434 = vrot.slane %v4956, 1
    %v5435 = vrot.slane %v4959, 1
    %v5436 = vrot.slane %v4961, 1
    %v5437 = vrot.slane %v4964, 1
    %v5438 = vrot.slane %v4966, 1
    %v5439 = vrot.slane %v4969, 1
    %v5440 = vrot.slane %v4971, 1
    %v5441 = vrot.slane %v4974, 1
    %v5442 = vrot.slane %v4976, 1
    %v5443 = vrot.slane %v4979, 1
    %v5444 = vrot.slane %v4981, 1
    %v5445 = vrot.slane %v4984, 1
    %v5446 = vrot.slane %v4986, 1
    %v5447 = vrot.slane %v4989, 1
    %v5448 = vrot.slane %v4991, 1
    %v5449 = vrot.slane %v4994, 1
    %v5450 = vrot.slane %v4996, 1
    %v5451 = vrot.slane %v4999, 1
    %v5452 = vrot.slane %v5001, 1
    %v5453 = vrot.slane %v5004, 1
    %v5454 = vrot.slane %v5006, 1
    %v5455 = vrot.slane %v5009, 1
    %v5456 = vrot.slane %v5011, 1
    %v5457 = vrot.slane %v5014, 1
    %v5458 = vrot.slane %v5016, 1
    %v5459 = vrot.slane %v5019, 1
    %v5460 = vrot.slane %v5021, 1
    %v5461 = vrot.slane %v5024, 1
    %v5462 = vrot.slane %v5026, 1
    %v5463 = vrot.slane %v5029, 1
    %v5464 = vrot.slane %v5031, 1
    %v5465 = vrot.slane %v5034, 1
    %v5466 = vrot.slane %v5036, 1
    %v5467 = vrot.slane %v5039, 1
    %v5468 = vrot.slane %v5041, 1
    %v5469 = vrot.slane %v5044, 1
    %v5470 = vrot.slane %v5046, 1
    %v5471 = vrot.slane %v5049, 1
    %v5472 = vrot.slane %v5051, 1
    %v5473 = vrot.slane %v5054, 1
    %v5474 = vrot.slane %v5056, 1
    %v5475 = vrot.slane %v5059, 1
    %v5476 = vrot.slane %v5061, 1
    %v5477 = vrot.slane %v5064, 1
    %v5478 = vrot.slane %v5066, 1
    %v5479 = vrot.slane %v5069, 1
    %v5480 = vrot.slane %v5071, 1
    %v5481 = vrot.slane %v5074, 1
    %v5482 = vrot.slane %v5076, 1
    %v5483 = vrot.slane %v5079, 1
    %v5484 = vrot.slane %v5081, 1
    %v5485 = vrot.slane %v5084, 1
    %v5486 = vrot.slane %v5086, 1
    %v5487 = vrot.slane %v5089, 1
    %v5488 = vrot.slane %v5091, 1
    %v5489 = vrot.slane %v5094, 1
    %v5490 = vrot.slane %v5096, 1
    %v5491 = vrot.slane %v5099, 1
    %v5492 = vrot.slane %v5101, 1
    %v5493 = vrot.slane %v5104, 1
    %v5494 = vrot.slane %v5106, 1
    %v5495 = vrot.slane %v5109, 1
    %v5496 = vrot.slane %v5111, 1
    %v5497 = vsel %vm1951, %v5495, %v5496
    %v5498 = vsel %vm1951, %v5494, %v5495
    %v5499 = vsel %vm1951, %v5492, %v5493
    %v5500 = vsel %vm1951, %v5491, %v5492
    %v5501 = vsel %vm1951, %v5489, %v5490
    %v5502 = vsel %vm1951, %v5488, %v5489
    %v5503 = vsel %vm1951, %v5486, %v5487
    %v5504 = vsel %vm1951, %v5485, %v5486
    %v5505 = vsel %vm1951, %v5483, %v5484
    %v5506 = vsel %vm1951, %v5482, %v5483
    %v5507 = vsel %vm1951, %v5480, %v5481
    %v5508 = vsel %vm1951, %v5479, %v5480
    %v5509 = vsel %vm1951, %v5477, %v5478
    %v5510 = vsel %vm1951, %v5476, %v5477
    %v5511 = vsel %vm1951, %v5474, %v5475
    %v5512 = vsel %vm1951, %v5473, %v5474
    %v5513 = vsel %vm1951, %v5471, %v5472
    %v5514 = vsel %vm1951, %v5470, %v5471
    %v5515 = vsel %vm1951, %v5468, %v5469
    %v5516 = vsel %vm1951, %v5467, %v5468
    %v5517 = vsel %vm1951, %v5465, %v5466
    %v5518 = vsel %vm1951, %v5464, %v5465
    %v5519 = vsel %vm1951, %v5462, %v5463
    %v5520 = vsel %vm1951, %v5461, %v5462
    %v5521 = vsel %vm1951, %v5459, %v5460
    %v5522 = vsel %vm1951, %v5458, %v5459
    %v5523 = vsel %vm1951, %v5456, %v5457
    %v5524 = vsel %vm1951, %v5455, %v5456
    %v5525 = vsel %vm1951, %v5453, %v5454
    %v5526 = vsel %vm1951, %v5452, %v5453
    %v5527 = vsel %vm1951, %v5450, %v5451
    %v5528 = vsel %vm1951, %v5449, %v5450
    %v5529 = vsel %vm1951, %v5447, %v5448
    %v5530 = vsel %vm1951, %v5446, %v5447
    %v5531 = vsel %vm1951, %v5444, %v5445
    %v5532 = vsel %vm1951, %v5443, %v5444
    %v5533 = vsel %vm1951, %v5441, %v5442
    %v5534 = vsel %vm1951, %v5440, %v5441
    %v5535 = vsel %vm1951, %v5438, %v5439
    %v5536 = vsel %vm1951, %v5437, %v5438
    %v5537 = vsel %vm1951, %v5435, %v5436
    %v5538 = vsel %vm1951, %v5434, %v5435
    %v5539 = vsel %vm1951, %v5432, %v5433
    %v5540 = vsel %vm1951, %v5431, %v5432
    %v5541 = vsel %vm1951, %v5429, %v5430
    %v5542 = vsel %vm1951, %v5428, %v5429
    %v5543 = vsel %vm1951, %v5426, %v5427
    %v5544 = vsel %vm1951, %v5425, %v5426
    %v5545 = vsel %vm1951, %v5423, %v5424
    %v5546 = vsel %vm1951, %v5422, %v5423
    %v5547 = vsel %vm1951, %v5420, %v5421
    %v5548 = vsel %vm1951, %v5419, %v5420
    %v5549 = vsel %vm1951, %v5417, %v5418
    %v5550 = vsel %vm1951, %v5416, %v5417
    %v5551 = vsel %vm1951, %v5414, %v5415
    %v5552 = vsel %vm1951, %v5413, %v5414
    %v5553 = vsel %vm1951, %v5411, %v5412
    %v5554 = vsel %vm1951, %v5410, %v5411
    %v5555 = vsel %vm1951, %v5408, %v5409
    %v5556 = vsel %vm1951, %v5407, %v5408
    %v5557 = vsel %vm1951, %v5405, %v5406
    %v5558 = vsel %vm1951, %v5404, %v5405
    %v5559 = vsel %vm1951, %v5402, %v5403
    %v5560 = vsel %vm1951, %v5401, %v5402
    %v5561 = vadd.f32 %v5337, %v5560
    %v5562 = vadd.f32 %v5338, %v5559
    %v5563 = vadd.f32 %v5339, %v5558
    %v5564 = vadd.f32 %v5340, %v5557
    %v5565 = vadd.f32 %v5341, %v5556
    %v5566 = vadd.f32 %v5342, %v5555
    %v5567 = vadd.f32 %v5343, %v5554
    %v5568 = vadd.f32 %v5344, %v5553
    %v5569 = vadd.f32 %v5345, %v5552
    %v5570 = vadd.f32 %v5346, %v5551
    %v5571 = vadd.f32 %v5347, %v5550
    %v5572 = vadd.f32 %v5348, %v5549
    %v5573 = vadd.f32 %v5349, %v5548
    %v5574 = vadd.f32 %v5350, %v5547
    %v5575 = vadd.f32 %v5351, %v5546
    %v5576 = vadd.f32 %v5352, %v5545
    %v5577 = vadd.f32 %v5353, %v5544
    %v5578 = vadd.f32 %v5354, %v5543
    %v5579 = vadd.f32 %v5355, %v5542
    %v5580 = vadd.f32 %v5356, %v5541
    %v5581 = vadd.f32 %v5357, %v5540
    %v5582 = vadd.f32 %v5358, %v5539
    %v5583 = vadd.f32 %v5359, %v5538
    %v5584 = vadd.f32 %v5360, %v5537
    %v5585 = vadd.f32 %v5361, %v5536
    %v5586 = vadd.f32 %v5362, %v5535
    %v5587 = vadd.f32 %v5363, %v5534
    %v5588 = vadd.f32 %v5364, %v5533
    %v5589 = vadd.f32 %v5365, %v5532
    %v5590 = vadd.f32 %v5366, %v5531
    %v5591 = vadd.f32 %v5367, %v5530
    %v5592 = vadd.f32 %v5368, %v5529
    %v5593 = vadd.f32 %v5369, %v5528
    %v5594 = vadd.f32 %v5370, %v5527
    %v5595 = vadd.f32 %v5371, %v5526
    %v5596 = vadd.f32 %v5372, %v5525
    %v5597 = vadd.f32 %v5373, %v5524
    %v5598 = vadd.f32 %v5374, %v5523
    %v5599 = vadd.f32 %v5375, %v5522
    %v5600 = vadd.f32 %v5376, %v5521
    %v5601 = vadd.f32 %v5377, %v5520
    %v5602 = vadd.f32 %v5378, %v5519
    %v5603 = vadd.f32 %v5379, %v5518
    %v5604 = vadd.f32 %v5380, %v5517
    %v5605 = vadd.f32 %v5381, %v5516
    %v5606 = vadd.f32 %v5382, %v5515
    %v5607 = vadd.f32 %v5383, %v5514
    %v5608 = vadd.f32 %v5384, %v5513
    %v5609 = vadd.f32 %v5385, %v5512
    %v5610 = vadd.f32 %v5386, %v5511
    %v5611 = vadd.f32 %v5387, %v5510
    %v5612 = vadd.f32 %v5388, %v5509
    %v5613 = vadd.f32 %v5389, %v5508
    %v5614 = vadd.f32 %v5390, %v5507
    %v5615 = vadd.f32 %v5391, %v5506
    %v5616 = vadd.f32 %v5392, %v5505
    %v5617 = vadd.f32 %v5393, %v5504
    %v5618 = vadd.f32 %v5394, %v5503
    %v5619 = vadd.f32 %v5395, %v5502
    %v5620 = vadd.f32 %v5396, %v5501
    %v5621 = vadd.f32 %v5397, %v5500
    %v5622 = vadd.f32 %v5398, %v5499
    %v5623 = vadd.f32 %v5399, %v5498
    %v5624 = vadd.f32 %v5400, %v5497
    %v5625 = vadd.f32 %v5561, %v5562
    %v5626 = vadd.f32 %v5625, %v5563
    %v5627 = vadd.f32 %v5626, %v5564
    %v5628 = vadd.f32 %v5627, %v5565
    %v5629 = vadd.f32 %v5628, %v5566
    %v5630 = vadd.f32 %v5629, %v5567
    %v5631 = vadd.f32 %v5630, %v5568
    %v5632 = vadd.f32 %v5631, %v5569
    %v5633 = vadd.f32 %v5632, %v5570
    %v5634 = vadd.f32 %v5633, %v5571
    %v5635 = vadd.f32 %v5634, %v5572
    %v5636 = vadd.f32 %v5635, %v5573
    %v5637 = vadd.f32 %v5636, %v5574
    %v5638 = vadd.f32 %v5637, %v5575
    %v5639 = vadd.f32 %v5638, %v5576
    %v5640 = vadd.f32 %v5639, %v5577
    %v5641 = vadd.f32 %v5640, %v5578
    %v5642 = vadd.f32 %v5641, %v5579
    %v5643 = vadd.f32 %v5642, %v5580
    %v5644 = vadd.f32 %v5643, %v5581
    %v5645 = vadd.f32 %v5644, %v5582
    %v5646 = vadd.f32 %v5645, %v5583
    %v5647 = vadd.f32 %v5646, %v5584
    %v5648 = vadd.f32 %v5647, %v5585
    %v5649 = vadd.f32 %v5648, %v5586
    %v5650 = vadd.f32 %v5649, %v5587
    %v5651 = vadd.f32 %v5650, %v5588
    %v5652 = vadd.f32 %v5651, %v5589
    %v5653 = vadd.f32 %v5652, %v5590
    %v5654 = vadd.f32 %v5653, %v5591
    %v5655 = vadd.f32 %v5654, %v5592
    %v5656 = vadd.f32 %v5655, %v5593
    %v5657 = vadd.f32 %v5656, %v5594
    %v5658 = vadd.f32 %v5657, %v5595
    %v5659 = vadd.f32 %v5658, %v5596
    %v5660 = vadd.f32 %v5659, %v5597
    %v5661 = vadd.f32 %v5660, %v5598
    %v5662 = vadd.f32 %v5661, %v5599
    %v5663 = vadd.f32 %v5662, %v5600
    %v5664 = vadd.f32 %v5663, %v5601
    %v5665 = vadd.f32 %v5664, %v5602
    %v5666 = vadd.f32 %v5665, %v5603
    %v5667 = vadd.f32 %v5666, %v5604
    %v5668 = vadd.f32 %v5667, %v5605
    %v5669 = vadd.f32 %v5668, %v5606
    %v5670 = vadd.f32 %v5669, %v5607
    %v5671 = vadd.f32 %v5670, %v5608
    %v5672 = vadd.f32 %v5671, %v5609
    %v5673 = vadd.f32 %v5672, %v5610
    %v5674 = vadd.f32 %v5673, %v5611
    %v5675 = vadd.f32 %v5674, %v5612
    %v5676 = vadd.f32 %v5675, %v5613
    %v5677 = vadd.f32 %v5676, %v5614
    %v5678 = vadd.f32 %v5677, %v5615
    %v5679 = vadd.f32 %v5678, %v5616
    %v5680 = vadd.f32 %v5679, %v5617
    %v5681 = vadd.f32 %v5680, %v5618
    %v5682 = vadd.f32 %v5681, %v5619
    %v5683 = vadd.f32 %v5682, %v5620
    %v5684 = vadd.f32 %v5683, %v5621
    %v5685 = vadd.f32 %v5684, %v5622
    %v5686 = vadd.f32 %v5685, %v5623
    %v5687 = vadd.f32 %v5686, %v5624
    %v5688 = vrot.slane %v5687, 4
    %v5689 = vadd.f32 %v5687, %v5688
    %v5690 = vrot.slane %v5689, 2
    %v5691 = vadd.f32 %v5689, %v5690
    %v5692 = vrot.slane %v5691, 1
    %v5693 = vadd.f32 %v5691, %v5692
    %v5694 = vmul.f32 %v5693, 0.001953125
    %v5695 = vsub.f32 %v5561, %v5694
    %v5696 = vsub.f32 %v5562, %v5694
    %v5697 = vsub.f32 %v5563, %v5694
    %v5698 = vsub.f32 %v5564, %v5694
    %v5699 = vsub.f32 %v5565, %v5694
    %v5700 = vsub.f32 %v5566, %v5694
    %v5701 = vsub.f32 %v5567, %v5694
    %v5702 = vsub.f32 %v5568, %v5694
    %v5703 = vsub.f32 %v5569, %v5694
    %v5704 = vsub.f32 %v5570, %v5694
    %v5705 = vsub.f32 %v5571, %v5694
    %v5706 = vsub.f32 %v5572, %v5694
    %v5707 = vsub.f32 %v5573, %v5694
    %v5708 = vsub.f32 %v5574, %v5694
    %v5709 = vsub.f32 %v5575, %v5694
    %v5710 = vsub.f32 %v5576, %v5694
    %v5711 = vsub.f32 %v5577, %v5694
    %v5712 = vsub.f32 %v5578, %v5694
    %v5713 = vsub.f32 %v5579, %v5694
    %v5714 = vsub.f32 %v5580, %v5694
    %v5715 = vsub.f32 %v5581, %v5694
    %v5716 = vsub.f32 %v5582, %v5694
    %v5717 = vsub.f32 %v5583, %v5694
    %v5718 = vsub.f32 %v5584, %v5694
    %v5719 = vsub.f32 %v5585, %v5694
    %v5720 = vsub.f32 %v5586, %v5694
    %v5721 = vsub.f32 %v5587, %v5694
    %v5722 = vsub.f32 %v5588, %v5694
    %v5723 = vsub.f32 %v5589, %v5694
    %v5724 = vsub.f32 %v5590, %v5694
    %v5725 = vsub.f32 %v5591, %v5694
    %v5726 = vsub.f32 %v5592, %v5694
    %v5727 = vsub.f32 %v5593, %v5694
    %v5728 = vsub.f32 %v5594, %v5694
    %v5729 = vsub.f32 %v5595, %v5694
    %v5730 = vsub.f32 %v5596, %v5694
    %v5731 = vsub.f32 %v5597, %v5694
    %v5732 = vsub.f32 %v5598, %v5694
    %v5733 = vsub.f32 %v5599, %v5694
    %v5734 = vsub.f32 %v5600, %v5694
    %v5735 = vsub.f32 %v5601, %v5694
    %v5736 = vsub.f32 %v5602, %v5694
    %v5737 = vsub.f32 %v5603, %v5694
    %v5738 = vsub.f32 %v5604, %v5694
    %v5739 = vsub.f32 %v5605, %v5694
    %v5740 = vsub.f32 %v5606, %v5694
    %v5741 = vsub.f32 %v5607, %v5694
    %v5742 = vsub.f32 %v5608, %v5694
    %v5743 = vsub.f32 %v5609, %v5694
    %v5744 = vsub.f32 %v5610, %v5694
    %v5745 = vsub.f32 %v5611, %v5694
    %v5746 = vsub.f32 %v5612, %v5694
    %v5747 = vsub.f32 %v5613, %v5694
    %v5748 = vsub.f32 %v5614, %v5694
    %v5749 = vsub.f32 %v5615, %v5694
    %v5750 = vsub.f32 %v5616, %v5694
    %v5751 = vsub.f32 %v5617, %v5694
    %v5752 = vsub.f32 %v5618, %v5694
    %v5753 = vsub.f32 %v5619, %v5694
    %v5754 = vsub.f32 %v5620, %v5694
    %v5755 = vsub.f32 %v5621, %v5694
    %v5756 = vsub.f32 %v5622, %v5694
    %v5757 = vsub.f32 %v5623, %v5694
    %v5758 = vsub.f32 %v5624, %v5694
    %v5759 = vmul.f32 %v5695, %v5695
    %v5760 = vmul.f32 %v5696, %v5696
    %v5761 = vmul.f32 %v5697, %v5697
    %v5762 = vmul.f32 %v5698, %v5698
    %v5763 = vmul.f32 %v5699, %v5699
    %v5764 = vmul.f32 %v5700, %v5700
    %v5765 = vmul.f32 %v5701, %v5701
    %v5766 = vmul.f32 %v5702, %v5702
    %v5767 = vmul.f32 %v5703, %v5703
    %v5768 = vmul.f32 %v5704, %v5704
    %v5769 = vmul.f32 %v5705, %v5705
    %v5770 = vmul.f32 %v5706, %v5706
    %v5771 = vmul.f32 %v5707, %v5707
    %v5772 = vmul.f32 %v5708, %v5708
    %v5773 = vmul.f32 %v5709, %v5709
    %v5774 = vmul.f32 %v5710, %v5710
    %v5775 = vmul.f32 %v5711, %v5711
    %v5776 = vmul.f32 %v5712, %v5712
    %v5777 = vmul.f32 %v5713, %v5713
    %v5778 = vmul.f32 %v5714, %v5714
    %v5779 = vmul.f32 %v5715, %v5715
    %v5780 = vmul.f32 %v5716, %v5716
    %v5781 = vmul.f32 %v5717, %v5717
    %v5782 = vmul.f32 %v5718, %v5718
    %v5783 = vmul.f32 %v5719, %v5719
    %v5784 = vmul.f32 %v5720, %v5720
    %v5785 = vmul.f32 %v5721, %v5721
    %v5786 = vmul.f32 %v5722, %v5722
    %v5787 = vmul.f32 %v5723, %v5723
    %v5788 = vmul.f32 %v5724, %v5724
    %v5789 = vmul.f32 %v5725, %v5725
    %v5790 = vmul.f32 %v5726, %v5726
    %v5791 = vmul.f32 %v5727, %v5727
    %v5792 = vmul.f32 %v5728, %v5728
    %v5793 = vmul.f32 %v5729, %v5729
    %v5794 = vmul.f32 %v5730, %v5730
    %v5795 = vmul.f32 %v5731, %v5731
    %v5796 = vmul.f32 %v5732, %v5732
    %v5797 = vmul.f32 %v5733, %v5733
    %v5798 = vmul.f32 %v5734, %v5734
    %v5799 = vmul.f32 %v5735, %v5735
    %v5800 = vmul.f32 %v5736, %v5736
    %v5801 = vmul.f32 %v5737, %v5737
    %v5802 = vmul.f32 %v5738, %v5738
    %v5803 = vmul.f32 %v5739, %v5739
    %v5804 = vmul.f32 %v5740, %v5740
    %v5805 = vmul.f32 %v5741, %v5741
    %v5806 = vmul.f32 %v5742, %v5742
    %v5807 = vmul.f32 %v5743, %v5743
    %v5808 = vmul.f32 %v5744, %v5744
    %v5809 = vmul.f32 %v5745, %v5745
    %v5810 = vmul.f32 %v5746, %v5746
    %v5811 = vmul.f32 %v5747, %v5747
    %v5812 = vmul.f32 %v5748, %v5748
    %v5813 = vmul.f32 %v5749, %v5749
    %v5814 = vmul.f32 %v5750, %v5750
    %v5815 = vmul.f32 %v5751, %v5751
    %v5816 = vmul.f32 %v5752, %v5752
    %v5817 = vmul.f32 %v5753, %v5753
    %v5818 = vmul.f32 %v5754, %v5754
    %v5819 = vmul.f32 %v5755, %v5755
    %v5820 = vmul.f32 %v5756, %v5756
    %v5821 = vmul.f32 %v5757, %v5757
    %v5822 = vmul.f32 %v5758, %v5758
    %v5823 = vadd.f32 %v5759, %v5760
    %v5824 = vadd.f32 %v5823, %v5761
    %v5825 = vadd.f32 %v5824, %v5762
    %v5826 = vadd.f32 %v5825, %v5763
    %v5827 = vadd.f32 %v5826, %v5764
    %v5828 = vadd.f32 %v5827, %v5765
    %v5829 = vadd.f32 %v5828, %v5766
    %v5830 = vadd.f32 %v5829, %v5767
    %v5831 = vadd.f32 %v5830, %v5768
    %v5832 = vadd.f32 %v5831, %v5769
    %v5833 = vadd.f32 %v5832, %v5770
    %v5834 = vadd.f32 %v5833, %v5771
    %v5835 = vadd.f32 %v5834, %v5772
    %v5836 = vadd.f32 %v5835, %v5773
    %v5837 = vadd.f32 %v5836, %v5774
    %v5838 = vadd.f32 %v5837, %v5775
    %v5839 = vadd.f32 %v5838, %v5776
    %v5840 = vadd.f32 %v5839, %v5777
    %v5841 = vadd.f32 %v5840, %v5778
    %v5842 = vadd.f32 %v5841, %v5779
    %v5843 = vadd.f32 %v5842, %v5780
    %v5844 = vadd.f32 %v5843, %v5781
    %v5845 = vadd.f32 %v5844, %v5782
    %v5846 = vadd.f32 %v5845, %v5783
    %v5847 = vadd.f32 %v5846, %v5784
    %v5848 = vadd.f32 %v5847, %v5785
    %v5849 = vadd.f32 %v5848, %v5786
    %v5850 = vadd.f32 %v5849, %v5787
    %v5851 = vadd.f32 %v5850, %v5788
    %v5852 = vadd.f32 %v5851, %v5789
    %v5853 = vadd.f32 %v5852, %v5790
    %v5854 = vadd.f32 %v5853, %v5791
    %v5855 = vadd.f32 %v5854, %v5792
    %v5856 = vadd.f32 %v5855, %v5793
    %v5857 = vadd.f32 %v5856, %v5794
    %v5858 = vadd.f32 %v5857, %v5795
    %v5859 = vadd.f32 %v5858, %v5796
    %v5860 = vadd.f32 %v5859, %v5797
    %v5861 = vadd.f32 %v5860, %v5798
    %v5862 = vadd.f32 %v5861, %v5799
    %v5863 = vadd.f32 %v5862, %v5800
    %v5864 = vadd.f32 %v5863, %v5801
    %v5865 = vadd.f32 %v5864, %v5802
    %v5866 = vadd.f32 %v5865, %v5803
    %v5867 = vadd.f32 %v5866, %v5804
    %v5868 = vadd.f32 %v5867, %v5805
    %v5869 = vadd.f32 %v5868, %v5806
    %v5870 = vadd.f32 %v5869, %v5807
    %v5871 = vadd.f32 %v5870, %v5808
    %v5872 = vadd.f32 %v5871, %v5809
    %v5873 = vadd.f32 %v5872, %v5810
    %v5874 = vadd.f32 %v5873, %v5811
    %v5875 = vadd.f32 %v5874, %v5812
    %v5876 = vadd.f32 %v5875, %v5813
    %v5877 = vadd.f32 %v5876, %v5814
    %v5878 = vadd.f32 %v5877, %v5815
    %v5879 = vadd.f32 %v5878, %v5816
    %v5880 = vadd.f32 %v5879, %v5817
    %v5881 = vadd.f32 %v5880, %v5818
    %v5882 = vadd.f32 %v5881, %v5819
    %v5883 = vadd.f32 %v5882, %v5820
    %v5884 = vadd.f32 %v5883, %v5821
    %v5885 = vadd.f32 %v5884, %v5822
    %v5886 = vrot.slane %v5885, 4
    %v5887 = vadd.f32 %v5885, %v5886
    %v5888 = vrot.slane %v5887, 2
    %v5889 = vadd.f32 %v5887, %v5888
    %v5890 = vrot.slane %v5889, 1
    %v5891 = vadd.f32 %v5889, %v5890
    %v5892 = vmul.f32 %v5891, 0.001953125
    %v5893 = vadd.f32 %v5892, 1e-05
    %v5894 = vrsqrt.pop %v5893
    %v5895 = vmul.f32 %v5894, %v5893
    %v5896 = vmul.f32 %v5895, %v5894
    %v5897 = vmul.f32 0.5, %v5896
    %v5898 = vsub.f32 1.5, %v5897
    %v5899 = vmul.f32 %v5894, %v5898
    %vm5900 = vweird.f32 %v5893
    %vm5901 = vweird.f32 %v5894
    %vm5902 = vmor %vm5900, %vm5901
    %v5903 = vsel %vm5902, %v5894, %v5899
    %v5904 = vmul.f32 %v5695, %v5903
    %v5905 = vmul.f32 %v5696, %v5903
    %v5906 = vmul.f32 %v5697, %v5903
    %v5907 = vmul.f32 %v5698, %v5903
    %v5908 = vmul.f32 %v5699, %v5903
    %v5909 = vmul.f32 %v5700, %v5903
    %v5910 = vmul.f32 %v5701, %v5903
    %v5911 = vmul.f32 %v5702, %v5903
    %v5912 = vmul.f32 %v5703, %v5903
    %v5913 = vmul.f32 %v5704, %v5903
    %v5914 = vmul.f32 %v5705, %v5903
    %v5915 = vmul.f32 %v5706, %v5903
    %v5916 = vmul.f32 %v5707, %v5903
    %v5917 = vmul.f32 %v5708, %v5903
    %v5918 = vmul.f32 %v5709, %v5903
    %v5919 = vmul.f32 %v5710, %v5903
    %v5920 = vmul.f32 %v5711, %v5903
    %v5921 = vmul.f32 %v5712, %v5903
    %v5922 = vmul.f32 %v5713, %v5903
    %v5923 = vmul.f32 %v5714, %v5903
    %v5924 = vmul.f32 %v5715, %v5903
    %v5925 = vmul.f32 %v5716, %v5903
    %v5926 = vmul.f32 %v5717, %v5903
    %v5927 = vmul.f32 %v5718, %v5903
    %v5928 = vmul.f32 %v5719, %v5903
    %v5929 = vmul.f32 %v5720, %v5903
    %v5930 = vmul.f32 %v5721, %v5903
    %v5931 = vmul.f32 %v5722, %v5903
    %v5932 = vmul.f32 %v5723, %v5903
    %v5933 = vmul.f32 %v5724, %v5903
    %v5934 = vmul.f32 %v5725, %v5903
    %v5935 = vmul.f32 %v5726, %v5903
    %v5936 = vmul.f32 %v5727, %v5903
    %v5937 = vmul.f32 %v5728, %v5903
    %v5938 = vmul.f32 %v5729, %v5903
    %v5939 = vmul.f32 %v5730, %v5903
    %v5940 = vmul.f32 %v5731, %v5903
    %v5941 = vmul.f32 %v5732, %v5903
    %v5942 = vmul.f32 %v5733, %v5903
    %v5943 = vmul.f32 %v5734, %v5903
    %v5944 = vmul.f32 %v5735, %v5903
    %v5945 = vmul.f32 %v5736, %v5903
    %v5946 = vmul.f32 %v5737, %v5903
    %v5947 = vmul.f32 %v5738, %v5903
    %v5948 = vmul.f32 %v5739, %v5903
    %v5949 = vmul.f32 %v5740, %v5903
    %v5950 = vmul.f32 %v5741, %v5903
    %v5951 = vmul.f32 %v5742, %v5903
    %v5952 = vmul.f32 %v5743, %v5903
    %v5953 = vmul.f32 %v5744, %v5903
    %v5954 = vmul.f32 %v5745, %v5903
    %v5955 = vmul.f32 %v5746, %v5903
    %v5956 = vmul.f32 %v5747, %v5903
    %v5957 = vmul.f32 %v5748, %v5903
    %v5958 = vmul.f32 %v5749, %v5903
    %v5959 = vmul.f32 %v5750, %v5903
    %v5960 = vmul.f32 %v5751, %v5903
    %v5961 = vmul.f32 %v5752, %v5903
    %v5962 = vmul.f32 %v5753, %v5903
    %v5963 = vmul.f32 %v5754, %v5903
    %v5964 = vmul.f32 %v5755, %v5903
    %v5965 = vmul.f32 %v5756, %v5903
    %v5966 = vmul.f32 %v5757, %v5903
    %v5967 = vmul.f32 %v5758, %v5903
    %v5968 = vmax.f32 %v5904, 0.0
    %v5969 = vmax.f32 %v5905, 0.0
    %v5970 = vmax.f32 %v5906, 0.0
    %v5971 = vmax.f32 %v5907, 0.0
    %v5972 = vmax.f32 %v5908, 0.0
    %v5973 = vmax.f32 %v5909, 0.0
    %v5974 = vmax.f32 %v5910, 0.0
    %v5975 = vmax.f32 %v5911, 0.0
    %v5976 = vmax.f32 %v5912, 0.0
    %v5977 = vmax.f32 %v5913, 0.0
    %v5978 = vmax.f32 %v5914, 0.0
    %v5979 = vmax.f32 %v5915, 0.0
    %v5980 = vmax.f32 %v5916, 0.0
    %v5981 = vmax.f32 %v5917, 0.0
    %v5982 = vmax.f32 %v5918, 0.0
    %v5983 = vmax.f32 %v5919, 0.0
    %v5984 = vmax.f32 %v5920, 0.0
    %v5985 = vmax.f32 %v5921, 0.0
    %v5986 = vmax.f32 %v5922, 0.0
    %v5987 = vmax.f32 %v5923, 0.0
    %v5988 = vmax.f32 %v5924, 0.0
    %v5989 = vmax.f32 %v5925, 0.0
    %v5990 = vmax.f32 %v5926, 0.0
    %v5991 = vmax.f32 %v5927, 0.0
    %v5992 = vmax.f32 %v5928, 0.0
    %v5993 = vmax.f32 %v5929, 0.0
    %v5994 = vmax.f32 %v5930, 0.0
    %v5995 = vmax.f32 %v5931, 0.0
    %v5996 = vmax.f32 %v5932, 0.0
    %v5997 = vmax.f32 %v5933, 0.0
    %v5998 = vmax.f32 %v5934, 0.0
    %v5999 = vmax.f32 %v5935, 0.0
    %v6000 = vmax.f32 %v5936, 0.0
    %v6001 = vmax.f32 %v5937, 0.0
    %v6002 = vmax.f32 %v5938, 0.0
    %v6003 = vmax.f32 %v5939, 0.0
    %v6004 = vmax.f32 %v5940, 0.0
    %v6005 = vmax.f32 %v5941, 0.0
    %v6006 = vmax.f32 %v5942, 0.0
    %v6007 = vmax.f32 %v5943, 0.0
    %v6008 = vmax.f32 %v5944, 0.0
    %v6009 = vmax.f32 %v5945, 0.0
    %v6010 = vmax.f32 %v5946, 0.0
    %v6011 = vmax.f32 %v5947, 0.0
    %v6012 = vmax.f32 %v5948, 0.0
    %v6013 = vmax.f32 %v5949, 0.0
    %v6014 = vmax.f32 %v5950, 0.0
    %v6015 = vmax.f32 %v5951, 0.0
    %v6016 = vmax.f32 %v5952, 0.0
    %v6017 = vmax.f32 %v5953, 0.0
    %v6018 = vmax.f32 %v5954, 0.0
    %v6019 = vmax.f32 %v5955, 0.0
    %v6020 = vmax.f32 %v5956, 0.0
    %v6021 = vmax.f32 %v5957, 0.0
    %v6022 = vmax.f32 %v5958, 0.0
    %v6023 = vmax.f32 %v5959, 0.0
    %v6024 = vmax.f32 %v5960, 0.0
    %v6025 = vmax.f32 %v5961, 0.0
    %v6026 = vmax.f32 %v5962, 0.0
    %v6027 = vmax.f32 %v5963, 0.0
    %v6028 = vmax.f32 %v5964, 0.0
    %v6029 = vmax.f32 %v5965, 0.0
    %v6030 = vmax.f32 %v5966, 0.0
    %v6031 = vmax.f32 %v5967, 0.0
    %v6032 = vpack.c.bf16 %v5968, %v5968
    %v6033 = vpack.c.bf16 %v5969, %v5969
    %v6034 = vpack.c.bf16 %v5970, %v5970
    %v6035 = vpack.c.bf16 %v5971, %v5971
    %v6036 = vpack.c.bf16 %v5972, %v5972
    %v6037 = vpack.c.bf16 %v5973, %v5973
    %v6038 = vpack.c.bf16 %v5974, %v5974
    %v6039 = vpack.c.bf16 %v5975, %v5975
    %v6040 = vpack.c.bf16 %v5976, %v5976
    %v6041 = vpack.c.bf16 %v5977, %v5977
    %v6042 = vpack.c.bf16 %v5978, %v5978
    %v6043 = vpack.c.bf16 %v5979, %v5979
    %v6044 = vpack.c.bf16 %v5980, %v5980
    %v6045 = vpack.c.bf16 %v5981, %v5981
    %v6046 = vpack.c.bf16 %v5982, %v5982
    %v6047 = vpack.c.bf16 %v5983, %v5983
    %v6048 = vpack.c.bf16 %v5984, %v5984
    %v6049 = vpack.c.bf16 %v5985, %v5985
    %v6050 = vpack.c.bf16 %v5986, %v5986
    %v6051 = vpack.c.bf16 %v5987, %v5987
    %v6052 = vpack.c.bf16 %v5988, %v5988
    %v6053 = vpack.c.bf16 %v5989, %v5989
    %v6054 = vpack.c.bf16 %v5990, %v5990
    %v6055 = vpack.c.bf16 %v5991, %v5991
    %v6056 = vpack.c.bf16 %v5992, %v5992
    %v6057 = vpack.c.bf16 %v5993, %v5993
    %v6058 = vpack.c.bf16 %v5994, %v5994
    %v6059 = vpack.c.bf16 %v5995, %v5995
    %v6060 = vpack.c.bf16 %v5996, %v5996
    %v6061 = vpack.c.bf16 %v5997, %v5997
    %v6062 = vpack.c.bf16 %v5998, %v5998
    %v6063 = vpack.c.bf16 %v5999, %v5999
    %v6064 = vpack.c.bf16 %v6000, %v6000
    %v6065 = vpack.c.bf16 %v6001, %v6001
    %v6066 = vpack.c.bf16 %v6002, %v6002
    %v6067 = vpack.c.bf16 %v6003, %v6003
    %v6068 = vpack.c.bf16 %v6004, %v6004
    %v6069 = vpack.c.bf16 %v6005, %v6005
    %v6070 = vpack.c.bf16 %v6006, %v6006
    %v6071 = vpack.c.bf16 %v6007, %v6007
    %v6072 = vpack.c.bf16 %v6008, %v6008
    %v6073 = vpack.c.bf16 %v6009, %v6009
    %v6074 = vpack.c.bf16 %v6010, %v6010
    %v6075 = vpack.c.bf16 %v6011, %v6011
    %v6076 = vpack.c.bf16 %v6012, %v6012
    %v6077 = vpack.c.bf16 %v6013, %v6013
    %v6078 = vpack.c.bf16 %v6014, %v6014
    %v6079 = vpack.c.bf16 %v6015, %v6015
    %v6080 = vpack.c.bf16 %v6016, %v6016
    %v6081 = vpack.c.bf16 %v6017, %v6017
    %v6082 = vpack.c.bf16 %v6018, %v6018
    %v6083 = vpack.c.bf16 %v6019, %v6019
    %v6084 = vpack.c.bf16 %v6020, %v6020
    %v6085 = vpack.c.bf16 %v6021, %v6021
    %v6086 = vpack.c.bf16 %v6022, %v6022
    %v6087 = vpack.c.bf16 %v6023, %v6023
    %v6088 = vpack.c.bf16 %v6024, %v6024
    %v6089 = vpack.c.bf16 %v6025, %v6025
    %v6090 = vpack.c.bf16 %v6026, %v6026
    %v6091 = vpack.c.bf16 %v6027, %v6027
    %v6092 = vpack.c.bf16 %v6028, %v6028
    %v6093 = vpack.c.bf16 %v6029, %v6029
    %v6094 = vpack.c.bf16 %v6030, %v6030
    %v6095 = vpack.c.bf16 %v6031, %v6031
    %6096 = vst [vmem:[%s240] sm:$0xf] %v6032
    %6097 = vst [vmem:[%s240 + $0x4] sm:$0xf] %v6033
    %6098 = vst [vmem:[%s240 + $0xc] sm:$0xf] %v6034
    %6099 = vst [vmem:[%s240 + $0x10] sm:$0xf] %v6035
    %6100 = vst [vmem:[%s240 + $0x18] sm:$0xf] %v6036
    %6101 = vst [vmem:[%s240 + $0x1c] sm:$0xf] %v6037
    %6102 = vst [vmem:[%s240 + $0x24] sm:$0xf] %v6038
    %6103 = vst [vmem:[%s240 + $0x28] sm:$0xf] %v6039
    %6104 = vst [vmem:[%s240 + $0x30] sm:$0xf] %v6040
    %6105 = vst [vmem:[%s240 + $0x34] sm:$0xf] %v6041
    %6106 = vst [vmem:[%s240 + $0x3c] sm:$0xf] %v6042
    %6107 = vst [vmem:[%s240 + $0x40] sm:$0xf] %v6043
    %6108 = vst [vmem:[%s240 + $0x48] sm:$0xf] %v6044
    %6109 = vst [vmem:[%s240 + $0x4c] sm:$0xf] %v6045
    %6110 = vst [vmem:[%s240 + $0x54] sm:$0xf] %v6046
    %6111 = vst [vmem:[%s240 + $0x58] sm:$0xf] %v6047
    %6112 = vst [vmem:[%s240 + $0x60] sm:$0xf] %v6048
    %6113 = vst [vmem:[%s240 + $0x64] sm:$0xf] %v6049
    %6114 = vst [vmem:[%s240 + $0x6c] sm:$0xf] %v6050
    %6115 = vst [vmem:[%s240 + $0x70] sm:$0xf] %v6051
    %6116 = vst [vmem:[%s240 + $0x78] sm:$0xf] %v6052
    %6117 = vst [vmem:[%s240 + $0x7c] sm:$0xf] %v6053
    %6118 = vst [vmem:[%s240 + $0x84] sm:$0xf] %v6054
    %6119 = vst [vmem:[%s240 + $0x88] sm:$0xf] %v6055
    %6120 = vst [vmem:[%s240 + $0x90] sm:$0xf] %v6056
    %6121 = vst [vmem:[%s240 + $0x94] sm:$0xf] %v6057
    %6122 = vst [vmem:[%s240 + $0x9c] sm:$0xf] %v6058
    %6123 = vst [vmem:[%s240 + $0xa0] sm:$0xf] %v6059
    %6124 = vst [vmem:[%s240 + $0xa8] sm:$0xf] %v6060
    %6125 = vst [vmem:[%s240 + $0xac] sm:$0xf] %v6061
    %6126 = vst [vmem:[%s240 + $0xb4] sm:$0xf] %v6062
    %6127 = vst [vmem:[%s240 + $0xb8] sm:$0xf] %v6063
    %6128 = vst [vmem:[%s240 + $0xd8] sm:$0xf] %v6064
    %6129 = vst [vmem:[%s240 + $0xdc] sm:$0xf] %v6065
    %6130 = vst [vmem:[%s240 + $0xe4] sm:$0xf] %v6066
    %6131 = vst [vmem:[%s240 + $0xe8] sm:$0xf] %v6067
    %6132 = vst [vmem:[%s240 + $0xf0] sm:$0xf] %v6068
    %6133 = vst [vmem:[%s240 + $0xf4] sm:$0xf] %v6069
    %6134 = vst [vmem:[%s240 + $0xfc] sm:$0xf] %v6070
    %6135 = vst [vmem:[%s240 + $0x100] sm:$0xf] %v6071
    %6136 = vst [vmem:[%s240 + $0x108] sm:$0xf] %v6072
    %6137 = vst [vmem:[%s240 + $0x10c] sm:$0xf] %v6073
    %6138 = vst [vmem:[%s240 + $0x114] sm:$0xf] %v6074
    %6139 = vst [vmem:[%s240 + $0x118] sm:$0xf] %v6075
    %6140 = vst [vmem:[%s240 + $0x120] sm:$0xf] %v6076
    %6141 = vst [vmem:[%s240 + $0x124] sm:$0xf] %v6077
    %6142 = vst [vmem:[%s240 + $0x12c] sm:$0xf] %v6078
    %6143 = vst [vmem:[%s240 + $0x130] sm:$0xf] %v6079
    %6144 = vst [vmem:[%s240 + $0x138] sm:$0xf] %v6080
    %6145 = vst [vmem:[%s240 + $0x13c] sm:$0xf] %v6081
    %6146 = vst [vmem:[%s240 + $0x144] sm:$0xf] %v6082
    %6147 = vst [vmem:[%s240 + $0x148] sm:$0xf] %v6083
    %6148 = vst [vmem:[%s240 + $0x150] sm:$0xf] %v6084
    %6149 = vst [vmem:[%s240 + $0x154] sm:$0xf] %v6085
    %6150 = vst [vmem:[%s240 + $0x15c] sm:$0xf] %v6086
    %6151 = vst [vmem:[%s240 + $0x160] sm:$0xf] %v6087
    %6152 = vst [vmem:[%s240 + $0x168] sm:$0xf] %v6088
    %6153 = vst [vmem:[%s240 + $0x16c] sm:$0xf] %v6089
    %6154 = vst [vmem:[%s240 + $0x174] sm:$0xf] %v6090
    %6155 = vst [vmem:[%s240 + $0x178] sm:$0xf] %v6091
    %6156 = vst [vmem:[%s240 + $0x180] sm:$0xf] %v6092
    %6157 = vst [vmem:[%s240 + $0x184] sm:$0xf] %v6093
    %6158 = vst [vmem:[%s240 + $0x18c] sm:$0xf] %v6094
    %6159 = vst [vmem:[%s240 + $0x190] sm:$0xf] %v6095
    %v6160 = vld [vmem:[#allocation2] sm:$0xf]
    %v6161 = vld [vmem:[#allocation2 + $0x4] sm:$0xf]
    %v6162 = vld [vmem:[#allocation2 + $0x8] sm:$0xf]
    %v6163 = vld [vmem:[#allocation2 + $0xc] sm:$0xf]
    %v6164 = vld [vmem:[#allocation2 + $0x10] sm:$0xf]
    %v6165 = vld [vmem:[#allocation2 + $0x14] sm:$0xf]
    %v6166 = vld [vmem:[#allocation2 + $0x18] sm:$0xf]
    %v6167 = vld [vmem:[#allocation2 + $0x1c] sm:$0xf]
    %v6168 = vld [vmem:[#allocation2 + $0x20] sm:$0xf]
    %v6169 = vld [vmem:[#allocation2 + $0x24] sm:$0xf]
    %v6170 = vld [vmem:[#allocation2 + $0x28] sm:$0xf]
    %v6171 = vld [vmem:[#allocation2 + $0x2c] sm:$0xf]
    %v6172 = vld [vmem:[#allocation2 + $0x30] sm:$0xf]
    %v6173 = vld [vmem:[#allocation2 + $0x34] sm:$0xf]
    %v6174 = vld [vmem:[#allocation2 + $0x38] sm:$0xf]
    %v6175 = vld [vmem:[#allocation2 + $0x3c] sm:$0xf]
    %v6176 = vld [vmem:[#allocation2 + $0x40] sm:$0xf]
    %v6177 = vld [vmem:[#allocation2 + $0x44] sm:$0xf]
    %v6178 = vld [vmem:[#allocation2 + $0x48] sm:$0xf]
    %v6179 = vld [vmem:[#allocation2 + $0x4c] sm:$0xf]
    %v6180 = vld [vmem:[#allocation2 + $0x50] sm:$0xf]
    %v6181 = vld [vmem:[#allocation2 + $0x54] sm:$0xf]
    %v6182 = vld [vmem:[#allocation2 + $0x58] sm:$0xf]
    %v6183 = vld [vmem:[#allocation2 + $0x5c] sm:$0xf]
    %v6184 = vld [vmem:[#allocation2 + $0x60] sm:$0xf]
    %v6185 = vld [vmem:[#allocation2 + $0x64] sm:$0xf]
    %v6186 = vld [vmem:[#allocation2 + $0x68] sm:$0xf]
    %v6187 = vld [vmem:[#allocation2 + $0x6c] sm:$0xf]
    %v6188 = vld [vmem:[#allocation2 + $0x70] sm:$0xf]
    %v6189 = vld [vmem:[#allocation2 + $0x74] sm:$0xf]
    %v6190 = vld [vmem:[#allocation2 + $0x78] sm:$0xf]
    %v6191 = vld [vmem:[#allocation2 + $0x7c] sm:$0xf]
    %v6192 = vld [vmem:[#allocation2 + $0x80] sm:$0xf]
    %v6193 = vld [vmem:[#allocation2 + $0x84] sm:$0xf]
    %v6194 = vld [vmem:[#allocation2 + $0x88] sm:$0xf]
    %v6195 = vld [vmem:[#allocation2 + $0x8c] sm:$0xf]
    %v6196 = vld [vmem:[#allocation2 + $0x90] sm:$0xf]
    %v6197 = vld [vmem:[#allocation2 + $0x94] sm:$0xf]
    %v6198 = vld [vmem:[#allocation2 + $0x98] sm:$0xf]
    %v6199 = vld [vmem:[#allocation2 + $0x9c] sm:$0xf]
    %v6200 = vld [vmem:[#allocation2 + $0xa0] sm:$0xf]
    %v6201 = vld [vmem:[#allocation2 + $0xa4] sm:$0xf]
    %v6202 = vld [vmem:[#allocation2 + $0xa8] sm:$0xf]
    %v6203 = vld [vmem:[#allocation2 + $0xac] sm:$0xf]
    %v6204 = vld [vmem:[#allocation2 + $0xb0] sm:$0xf]
    %v6205 = vld [vmem:[#allocation2 + $0xb4] sm:$0xf]
    %v6206 = vld [vmem:[#allocation2 + $0xb8] sm:$0xf]
    %v6207 = vld [vmem:[#allocation2 + $0xbc] sm:$0xf]
    %v6208 = vld [vmem:[#allocation2 + $0xd8] sm:$0xf]
    %v6209 = vld [vmem:[#allocation2 + $0xdc] sm:$0xf]
    %v6210 = vld [vmem:[#allocation2 + $0xe0] sm:$0xf]
    %v6211 = vld [vmem:[#allocation2 + $0xe4] sm:$0xf]
    %v6212 = vld [vmem:[#allocation2 + $0xe8] sm:$0xf]
    %v6213 = vld [vmem:[#allocation2 + $0xec] sm:$0xf]
    %v6214 = vld [vmem:[#allocation2 + $0xf0] sm:$0xf]
    %v6215 = vld [vmem:[#allocation2 + $0xf4] sm:$0xf]
    %v6216 = vld [vmem:[#allocation2 + $0xf8] sm:$0xf]
    %v6217 = vld [vmem:[#allocation2 + $0xfc] sm:$0xf]
    %v6218 = vld [vmem:[#allocation2 + $0x100] sm:$0xf]
    %v6219 = vld [vmem:[#allocation2 + $0x104] sm:$0xf]
    %v6220 = vld [vmem:[#allocation2 + $0x108] sm:$0xf]
    %v6221 = vld [vmem:[#allocation2 + $0x10c] sm:$0xf]
    %v6222 = vld [vmem:[#allocation2 + $0x110] sm:$0xf]
    %v6223 = vld [vmem:[#allocation2 + $0x114] sm:$0xf]
    %v6224 = vld [vmem:[#allocation2 + $0x118] sm:$0xf]
    %v6225 = vld [vmem:[#allocation2 + $0x11c] sm:$0xf]
    %v6226 = vld [vmem:[#allocation2 + $0x120] sm:$0xf]
    %v6227 = vld [vmem:[#allocation2 + $0x124] sm:$0xf]
    %v6228 = vld [vmem:[#allocation2 + $0x128] sm:$0xf]
    %v6229 = vld [vmem:[#allocation2 + $0x12c] sm:$0xf]
    %v6230 = vld [vmem:[#allocation2 + $0x130] sm:$0xf]
    %v6231 = vld [vmem:[#allocation2 + $0x134] sm:$0xf]
    %v6232 = vld [vmem:[#allocation2 + $0x138] sm:$0xf]
    %v6233 = vld [vmem:[#allocation2 + $0x13c] sm:$0xf]
    %v6234 = vld [vmem:[#allocation2 + $0x140] sm:$0xf]
    %v6235 = vld [vmem:[#allocation2 + $0x144] sm:$0xf]
    %v6236 = vld [vmem:[#allocation2 + $0x148] sm:$0xf]
    %v6237 = vld [vmem:[#allocation2 + $0x14c] sm:$0xf]
    %v6238 = vld [vmem:[#allocation2 + $0x150] sm:$0xf]
    %v6239 = vld [vmem:[#allocation2 + $0x154] sm:$0xf]
    %v6240 = vld [vmem:[#allocation2 + $0x158] sm:$0xf]
    %v6241 = vld [vmem:[#allocation2 + $0x15c] sm:$0xf]
    %v6242 = vld [vmem:[#allocation2 + $0x160] sm:$0xf]
    %v6243 = vld [vmem:[#allocation2 + $0x164] sm:$0xf]
    %v6244 = vld [vmem:[#allocation2 + $0x168] sm:$0xf]
    %v6245 = vld [vmem:[#allocation2 + $0x16c] sm:$0xf]
    %v6246 = vld [vmem:[#allocation2 + $0x170] sm:$0xf]
    %v6247 = vld [vmem:[#allocation2 + $0x174] sm:$0xf]
    %v6248 = vld [vmem:[#allocation2 + $0x178] sm:$0xf]
    %v6249 = vld [vmem:[#allocation2 + $0x17c] sm:$0xf]
    %v6250 = vld [vmem:[#allocation2 + $0x180] sm:$0xf]
    %v6251 = vld [vmem:[#allocation2 + $0x184] sm:$0xf]
    %v6252 = vld [vmem:[#allocation2 + $0x188] sm:$0xf]
    %v6253 = vld [vmem:[#allocation2 + $0x18c] sm:$0xf]
    %v6254 = vld [vmem:[#allocation2 + $0x190] sm:$0xf]
    %v6255 = vld [vmem:[#allocation2 + $0x194] sm:$0xf]
    %v6256 = vld [vmem:[#allocation8] sm:$0xff]
    %v6257 = vld [vmem:[#allocation8 + $0x8] sm:$0xf]
    %v6258 = vld [vmem:[#allocation8 + $0xc] sm:$0xff]
    %v6259 = vld [vmem:[#allocation8 + $0x14] sm:$0xf]
    %v6260 = vld [vmem:[#allocation8 + $0x18] sm:$0xff]
    %v6261 = vld [vmem:[#allocation8 + $0x20] sm:$0xf]
    %v6262 = vld [vmem:[#allocation8 + $0x24] sm:$0xff]
    %v6263 = vld [vmem:[#allocation8 + $0x2c] sm:$0xf]
    %v6264 = vld [vmem:[#allocation8 + $0x30] sm:$0xff]
    %v6265 = vld [vmem:[#allocation8 + $0x38] sm:$0xf]
    %v6266 = vld [vmem:[#allocation8 + $0x3c] sm:$0xff]
    %v6267 = vld [vmem:[#allocation8 + $0x44] sm:$0xf]
    %v6268 = vld [vmem:[#allocation8 + $0x48] sm:$0xff]
    %v6269 = vld [vmem:[#allocation8 + $0x50] sm:$0xf]
    %v6270 = vld [vmem:[#allocation8 + $0x54] sm:$0xff]
    %v6271 = vld [vmem:[#allocation8 + $0x5c] sm:$0xf]
    %v6272 = vld [vmem:[#allocation8 + $0x60] sm:$0xff]
    %v6273 = vld [vmem:[#allocation8 + $0x68] sm:$0xf]
    %v6274 = vld [vmem:[#allocation8 + $0x6c] sm:$0xff]
    %v6275 = vld [vmem:[#allocation8 + $0x74] sm:$0xf]
    %v6276 = vld [vmem:[#allocation8 + $0x78] sm:$0xff]
    %v6277 = vld [vmem:[#allocation8 + $0x80] sm:$0xf]
    %v6278 = vld [vmem:[#allocation8 + $0x84] sm:$0xff]
    %v6279 = vld [vmem:[#allocation8 + $0x8c] sm:$0xf]
    %v6280 = vld [vmem:[#allocation8 + $0x90] sm:$0xff]
    %v6281 = vld [vmem:[#allocation8 + $0x98] sm:$0xf]
    %v6282 = vld [vmem:[#allocation8 + $0x9c] sm:$0xff]
    %v6283 = vld [vmem:[#allocation8 + $0xa4] sm:$0xf]
    %v6284 = vld [vmem:[#allocation8 + $0xa8] sm:$0xff]
    %v6285 = vld [vmem:[#allocation8 + $0xb0] sm:$0xf]
    %v6286 = vld [vmem:[#allocation8 + $0xb4] sm:$0xff]
    %v6287 = vld [vmem:[#allocation8 + $0xbc] sm:$0xf]
    %v6384 = vunpack.c.l.b16 %v6160
    %v6385 = vunpack.c.l.b16 %v6161
    %v6386 = vunpack.c.l.b16 %v6162
    %v6387 = vunpack.c.l.b16 %v6163
    %v6388 = vunpack.c.l.b16 %v6164
    %v6389 = vunpack.c.l.b16 %v6165
    %v6390 = vunpack.c.l.b16 %v6166
    %v6391 = vunpack.c.l.b16 %v6167
    %v6392 = vunpack.c.l.b16 %v6168
    %v6393 = vunpack.c.l.b16 %v6169
    %v6394 = vunpack.c.l.b16 %v6170
    %v6395 = vunpack.c.l.b16 %v6171
    %v6396 = vunpack.c.l.b16 %v6172
    %v6397 = vunpack.c.l.b16 %v6173
    %v6398 = vunpack.c.l.b16 %v6174
    %v6399 = vunpack.c.l.b16 %v6175
    %v6400 = vunpack.c.l.b16 %v6176
    %v6401 = vunpack.c.l.b16 %v6177
    %v6402 = vunpack.c.l.b16 %v6178
    %v6403 = vunpack.c.l.b16 %v6179
    %v6404 = vunpack.c.l.b16 %v6180
    %v6405 = vunpack.c.l.b16 %v6181
    %v6406 = vunpack.c.l.b16 %v6182
    %v6407 = vunpack.c.l.b16 %v6183
    %v6408 = vunpack.c.l.b16 %v6184
    %v6409 = vunpack.c.l.b16 %v6185
    %v6410 = vunpack.c.l.b16 %v6186
    %v6411 = vunpack.c.l.b16 %v6187
    %v6412 = vunpack.c.l.b16 %v6188
    %v6413 = vunpack.c.l.b16 %v6189
    %v6414 = vunpack.c.l.b16 %v6190
    %v6415 = vunpack.c.l.b16 %v6191
    %v6416 = vunpack.c.l.b16 %v6192
    %v6417 = vunpack.c.l.b16 %v6193
    %v6418 = vunpack.c.l.b16 %v6194
    %v6419 = vunpack.c.l.b16 %v6195
    %v6420 = vunpack.c.l.b16 %v6196
    %v6421 = vunpack.c.l.b16 %v6197
    %v6422 = vunpack.c.l.b16 %v6198
    %v6423 = vunpack.c.l.b16 %v6199
    %v6424 = vunpack.c.l.b16 %v6200
    %v6425 = vunpack.c.l.b16 %v6201
    %v6426 = vunpack.c.l.b16 %v6202
    %v6427 = vunpack.c.l.b16 %v6203
    %v6428 = vunpack.c.l.b16 %v6204
    %v6429 = vunpack.c.l.b16 %v6205
    %v6430 = vunpack.c.l.b16 %v6206
    %v6431 = vunpack.c.l.b16 %v6207
    %v6432 = vunpack.c.l.b16 %v6208
    %v6433 = vunpack.c.l.b16 %v6209
    %v6434 = vunpack.c.l.b16 %v6210
    %v6435 = vunpack.c.l.b16 %v6211
    %v6436 = vunpack.c.l.b16 %v6212
    %v6437 = vunpack.c.l.b16 %v6213
    %v6438 = vunpack.c.l.b16 %v6214
    %v6439 = vunpack.c.l.b16 %v6215
    %v6440 = vunpack.c.l.b16 %v6216
    %v6441 = vunpack.c.l.b16 %v6217
    %v6442 = vunpack.c.l.b16 %v6218
    %v6443 = vunpack.c.l.b16 %v6219
    %v6444 = vunpack.c.l.b16 %v6220
    %v6445 = vunpack.c.l.b16 %v6221
    %v6446 = vunpack.c.l.b16 %v6222
    %v6447 = vunpack.c.l.b16 %v6223
    %v6448 = vunpack.c.l.b16 %v6224
    %v6449 = vunpack.c.l.b16 %v6225
    %v6450 = vunpack.c.l.b16 %v6226
    %v6451 = vunpack.c.l.b16 %v6227
    %v6452 = vunpack.c.l.b16 %v6228
    %v6453 = vunpack.c.l.b16 %v6229
    %v6454 = vunpack.c.l.b16 %v6230
    %v6455 = vunpack.c.l.b16 %v6231
    %v6456 = vunpack.c.l.b16 %v6232
    %v6457 = vunpack.c.l.b16 %v6233
    %v6458 = vunpack.c.l.b16 %v6234
    %v6459 = vunpack.c.l.b16 %v6235
    %v6460 = vunpack.c.l.b16 %v6236
    %v6461 = vunpack.c.l.b16 %v6237
    %v6462 = vunpack.c.l.b16 %v6238
    %v6463 = vunpack.c.l.b16 %v6239
    %v6464 = vunpack.c.l.b16 %v6240
    %v6465 = vunpack.c.l.b16 %v6241
    %v6466 = vunpack.c.l.b16 %v6242
    %v6467 = vunpack.c.l.b16 %v6243
    %v6468 = vunpack.c.l.b16 %v6244
    %v6469 = vunpack.c.l.b16 %v6245
    %v6470 = vunpack.c.l.b16 %v6246
    %v6471 = vunpack.c.l.b16 %v6247
    %v6472 = vunpack.c.l.b16 %v6248
    %v6473 = vunpack.c.l.b16 %v6249
    %v6474 = vunpack.c.l.b16 %v6250
    %v6475 = vunpack.c.l.b16 %v6251
    %v6476 = vunpack.c.l.b16 %v6252
    %v6477 = vunpack.c.l.b16 %v6253
    %v6478 = vunpack.c.l.b16 %v6254
    %v6479 = vunpack.c.l.b16 %v6255
    %v6480 = vpack.c.b16 %v6385, %v6384
    %v6481 = vpack.c.b16 %v6387, %v6386
    %v6482 = vpack.c.b16 %v6389, %v6388
    %v6483 = vpack.c.b16 %v6391, %v6390
    %v6484 = vpack.c.b16 %v6393, %v6392
    %v6485 = vpack.c.b16 %v6395, %v6394
    %v6486 = vpack.c.b16 %v6397, %v6396
    %v6487 = vpack.c.b16 %v6399, %v6398
    %v6488 = vpack.c.b16 %v6401, %v6400
    %v6489 = vpack.c.b16 %v6403, %v6402
    %v6490 = vpack.c.b16 %v6405, %v6404
    %v6491 = vpack.c.b16 %v6407, %v6406
    %v6492 = vpack.c.b16 %v6409, %v6408
    %v6493 = vpack.c.b16 %v6411, %v6410
    %v6494 = vpack.c.b16 %v6413, %v6412
    %v6495 = vpack.c.b16 %v6415, %v6414
    %v6496 = vpack.c.b16 %v6417, %v6416
    %v6497 = vpack.c.b16 %v6419, %v6418
    %v6498 = vpack.c.b16 %v6421, %v6420
    %v6499 = vpack.c.b16 %v6423, %v6422
    %v6500 = vpack.c.b16 %v6425, %v6424
    %v6501 = vpack.c.b16 %v6427, %v6426
    %v6502 = vpack.c.b16 %v6429, %v6428
    %v6503 = vpack.c.b16 %v6431, %v6430
    %v6504 = vpack.c.b16 %v6433, %v6432
    %v6505 = vpack.c.b16 %v6435, %v6434
    %v6506 = vpack.c.b16 %v6437, %v6436
    %v6507 = vpack.c.b16 %v6439, %v6438
    %v6508 = vpack.c.b16 %v6441, %v6440
    %v6509 = vpack.c.b16 %v6443, %v6442
    %v6510 = vpack.c.b16 %v6445, %v6444
    %v6511 = vpack.c.b16 %v6447, %v6446
    %v6512 = vpack.c.b16 %v6449, %v6448
    %v6513 = vpack.c.b16 %v6451, %v6450
    %v6514 = vpack.c.b16 %v6453, %v6452
    %v6515 = vpack.c.b16 %v6455, %v6454
    %v6516 = vpack.c.b16 %v6457, %v6456
    %v6517 = vpack.c.b16 %v6459, %v6458
    %v6518 = vpack.c.b16 %v6461, %v6460
    %v6519 = vpack.c.b16 %v6463, %v6462
    %v6520 = vpack.c.b16 %v6465, %v6464
    %v6521 = vpack.c.b16 %v6467, %v6466
    %v6522 = vpack.c.b16 %v6469, %v6468
    %v6523 = vpack.c.b16 %v6471, %v6470
    %v6524 = vpack.c.b16 %v6473, %v6472
    %v6525 = vpack.c.b16 %v6475, %v6474
    %v6526 = vpack.c.b16 %v6477, %v6476
    %v6527 = vpack.c.b16 %v6479, %v6478
    %v6608 = vunpack.c.l.b16 %v6256
    %v6609 = vunpack.c.h.b16 %v6256
    %v6610 = vunpack.c.l.b16 %v6257
    %v6611 = vunpack.c.l.b16 %v6258
    %v6612 = vunpack.c.h.b16 %v6258
    %v6613 = vunpack.c.l.b16 %v6259
    %v6614 = vunpack.c.l.b16 %v6260
    %v6615 = vunpack.c.h.b16 %v6260
    %v6616 = vunpack.c.l.b16 %v6261
    %v6617 = vunpack.c.l.b16 %v6262
    %v6618 = vunpack.c.h.b16 %v6262
    %v6619 = vunpack.c.l.b16 %v6263
    %v6620 = vunpack.c.l.b16 %v6264
    %v6621 = vunpack.c.h.b16 %v6264
    %v6622 = vunpack.c.l.b16 %v6265
    %v6623 = vunpack.c.l.b16 %v6266
    %v6624 = vunpack.c.h.b16 %v6266
    %v6625 = vunpack.c.l.b16 %v6267
    %v6626 = vunpack.c.l.b16 %v6268
    %v6627 = vunpack.c.h.b16 %v6268
    %v6628 = vunpack.c.l.b16 %v6269
    %v6629 = vunpack.c.l.b16 %v6270
    %v6630 = vunpack.c.h.b16 %v6270
    %v6631 = vunpack.c.l.b16 %v6271
    %v6632 = vunpack.c.l.b16 %v6272
    %v6633 = vunpack.c.h.b16 %v6272
    %v6634 = vunpack.c.l.b16 %v6273
    %v6635 = vunpack.c.l.b16 %v6274
    %v6636 = vunpack.c.h.b16 %v6274
    %v6637 = vunpack.c.l.b16 %v6275
    %v6638 = vunpack.c.l.b16 %v6276
    %v6639 = vunpack.c.h.b16 %v6276
    %v6640 = vunpack.c.l.b16 %v6277
    %v6641 = vunpack.c.l.b16 %v6278
    %v6642 = vunpack.c.h.b16 %v6278
    %v6643 = vunpack.c.l.b16 %v6279
    %v6644 = vunpack.c.l.b16 %v6280
    %v6645 = vunpack.c.h.b16 %v6280
    %v6646 = vunpack.c.l.b16 %v6281
    %v6647 = vunpack.c.l.b16 %v6282
    %v6648 = vunpack.c.h.b16 %v6282
    %v6649 = vunpack.c.l.b16 %v6283
    %v6650 = vunpack.c.l.b16 %v6284
    %v6651 = vunpack.c.h.b16 %v6284
    %v6652 = vunpack.c.l.b16 %v6285
    %v6653 = vunpack.c.l.b16 %v6286
    %v6654 = vunpack.c.h.b16 %v6286
    %v6655 = vunpack.c.l.b16 %v6287
    %v6656 = vpack.c.b16 %v6611, %v6608
    %v6657 = vpack.c.b16 %v6612, %v6609
    %v6658 = vpack.c.b16 %v6613, %v6610
    %v6659 = vpack.c.b16 %v6617, %v6614
    %v6660 = vpack.c.b16 %v6618, %v6615
    %v6661 = vpack.c.b16 %v6619, %v6616
    %v6662 = vpack.c.b16 %v6623, %v6620
    %v6663 = vpack.c.b16 %v6624, %v6621
    %v6664 = vpack.c.b16 %v6625, %v6622
    %v6665 = vpack.c.b16 %v6629, %v6626
    %v6666 = vpack.c.b16 %v6630, %v6627
    %v6667 = vpack.c.b16 %v6631, %v6628
    %v6668 = vpack.c.b16 %v6635, %v6632
    %v6669 = vpack.c.b16 %v6636, %v6633
    %v6670 = vpack.c.b16 %v6637, %v6634
    %v6671 = vpack.c.b16 %v6641, %v6638
    %v6672 = vpack.c.b16 %v6642, %v6639
    %v6673 = vpack.c.b16 %v6643, %v6640
    %v6674 = vpack.c.b16 %v6647, %v6644
    %v6675 = vpack.c.b16 %v6648, %v6645
    %v6676 = vpack.c.b16 %v6649, %v6646
    %v6677 = vpack.c.b16 %v6653, %v6650
    %v6678 = vpack.c.b16 %v6654, %v6651
    %v6679 = vpack.c.b16 %v6655, %v6652
    %6704 = vmatpush.bf16.msra.mxu0 %v6677
    %6705 = vmatpush.bf16.msra.mxu0 %v6674
    %6706 = vmatpush.bf16.msra.mxu0 %v6671
    %6707 = vmatpush.bf16.msra.mxu0 %v6668
    %6708 = vmatpush.bf16.msra.mxu0 %v6665
    %6709 = vmatpush.bf16.msra.mxu0 %v6662
    %6710 = vmatpush.bf16.msra.mxu0 %v6659
    %6711 = vmatpush.bf16.msra.mxu0 %v6656
    %6712 = vmatmul.bf16.gmra.mxu0 %v6480
    %v6713 = vpop.f32.mrf.mxu0
    %v6714 = vadd.f32 0.0, %v6713
    %v6715 = vpop.f32.mrf.mxu0
    %v6716 = vadd.f32 0.0, %v6715
    %6717 = vmatmul.bf16.gmra.mxu0 %v6481
    %v6718 = vpop.f32.mrf.mxu0
    %v6719 = vadd.f32 0.0, %v6718
    %v6720 = vpop.f32.mrf.mxu0
    %v6721 = vadd.f32 0.0, %v6720
    %6722 = vmatmul.bf16.gmra.mxu0 %v6482
    %v6723 = vpop.f32.mrf.mxu0
    %v6724 = vadd.f32 0.0, %v6723
    %v6725 = vpop.f32.mrf.mxu0
    %v6726 = vadd.f32 0.0, %v6725
    %6727 = vmatmul.bf16.gmra.mxu0 %v6483
    %v6728 = vpop.f32.mrf.mxu0
    %v6729 = vadd.f32 0.0, %v6728
    %v6730 = vpop.f32.mrf.mxu0
    %v6731 = vadd.f32 0.0, %v6730
    %6732 = vmatmul.bf16.gmra.mxu0 %v6484
    %v6733 = vpop.f32.mrf.mxu0
    %v6734 = vadd.f32 0.0, %v6733
    %v6735 = vpop.f32.mrf.mxu0
    %v6736 = vadd.f32 0.0, %v6735
    %6737 = vmatmul.bf16.gmra.mxu0 %v6485
    %v6738 = vpop.f32.mrf.mxu0
    %v6739 = vadd.f32 0.0, %v6738
    %v6740 = vpop.f32.mrf.mxu0
    %v6741 = vadd.f32 0.0, %v6740
    %6742 = vmatmul.bf16.gmra.mxu0 %v6486
    %v6743 = vpop.f32.mrf.mxu0
    %v6744 = vadd.f32 0.0, %v6743
    %v6745 = vpop.f32.mrf.mxu0
    %v6746 = vadd.f32 0.0, %v6745
    %6747 = vmatmul.bf16.gmra.mxu0 %v6487
    %v6748 = vpop.f32.mrf.mxu0
    %v6749 = vadd.f32 0.0, %v6748
    %v6750 = vpop.f32.mrf.mxu0
    %v6751 = vadd.f32 0.0, %v6750
    %6752 = vmatmul.bf16.gmra.mxu0 %v6488
    %v6753 = vpop.f32.mrf.mxu0
    %v6754 = vadd.f32 0.0, %v6753
    %v6755 = vpop.f32.mrf.mxu0
    %v6756 = vadd.f32 0.0, %v6755
    %6757 = vmatmul.bf16.gmra.mxu0 %v6489
    %v6758 = vpop.f32.mrf.mxu0
    %v6759 = vadd.f32 0.0, %v6758
    %v6760 = vpop.f32.mrf.mxu0
    %v6761 = vadd.f32 0.0, %v6760
    %6762 = vmatmul.bf16.gmra.mxu0 %v6490
    %v6763 = vpop.f32.mrf.mxu0
    %v6764 = vadd.f32 0.0, %v6763
    %v6765 = vpop.f32.mrf.mxu0
    %v6766 = vadd.f32 0.0, %v6765
    %6767 = vmatmul.bf16.gmra.mxu0 %v6491
    %v6768 = vpop.f32.mrf.mxu0
    %v6769 = vadd.f32 0.0, %v6768
    %v6770 = vpop.f32.mrf.mxu0
    %v6771 = vadd.f32 0.0, %v6770
    %6772 = vmatmul.bf16.gmra.mxu0 %v6492
    %v6773 = vpop.f32.mrf.mxu0
    %v6774 = vadd.f32 0.0, %v6773
    %v6775 = vpop.f32.mrf.mxu0
    %v6776 = vadd.f32 0.0, %v6775
    %6777 = vmatmul.bf16.gmra.mxu0 %v6493
    %v6778 = vpop.f32.mrf.mxu0
    %v6779 = vadd.f32 0.0, %v6778
    %v6780 = vpop.f32.mrf.mxu0
    %v6781 = vadd.f32 0.0, %v6780
    %6782 = vmatmul.bf16.gmra.mxu0 %v6494
    %v6783 = vpop.f32.mrf.mxu0
    %v6784 = vadd.f32 0.0, %v6783
    %v6785 = vpop.f32.mrf.mxu0
    %v6786 = vadd.f32 0.0, %v6785
    %6787 = vmatmul.bf16.gmra.mxu0 %v6495
    %v6788 = vpop.f32.mrf.mxu0
    %v6789 = vadd.f32 0.0, %v6788
    %v6790 = vpop.f32.mrf.mxu0
    %v6791 = vadd.f32 0.0, %v6790
    %6792 = vmatmul.bf16.gmra.mxu0 %v6496
    %v6793 = vpop.f32.mrf.mxu0
    %v6794 = vadd.f32 0.0, %v6793
    %v6795 = vpop.f32.mrf.mxu0
    %v6796 = vadd.f32 0.0, %v6795
    %6797 = vmatmul.bf16.gmra.mxu0 %v6497
    %v6798 = vpop.f32.mrf.mxu0
    %v6799 = vadd.f32 0.0, %v6798
    %v6800 = vpop.f32.mrf.mxu0
    %v6801 = vadd.f32 0.0, %v6800
    %6802 = vmatmul.bf16.gmra.mxu0 %v6498
    %v6803 = vpop.f32.mrf.mxu0
    %v6804 = vadd.f32 0.0, %v6803
    %v6805 = vpop.f32.mrf.mxu0
    %v6806 = vadd.f32 0.0, %v6805
    %6807 = vmatmul.bf16.gmra.mxu0 %v6499
    %v6808 = vpop.f32.mrf.mxu0
    %v6809 = vadd.f32 0.0, %v6808
    %v6810 = vpop.f32.mrf.mxu0
    %v6811 = vadd.f32 0.0, %v6810
    %6812 = vmatmul.bf16.gmra.mxu0 %v6500
    %v6813 = vpop.f32.mrf.mxu0
    %v6814 = vadd.f32 0.0, %v6813
    %v6815 = vpop.f32.mrf.mxu0
    %v6816 = vadd.f32 0.0, %v6815
    %6817 = vmatmul.bf16.gmra.mxu0 %v6501
    %v6818 = vpop.f32.mrf.mxu0
    %v6819 = vadd.f32 0.0, %v6818
    %v6820 = vpop.f32.mrf.mxu0
    %v6821 = vadd.f32 0.0, %v6820
    %6822 = vmatmul.bf16.gmra.mxu0 %v6502
    %v6823 = vpop.f32.mrf.mxu0
    %v6824 = vadd.f32 0.0, %v6823
    %v6825 = vpop.f32.mrf.mxu0
    %v6826 = vadd.f32 0.0, %v6825
    %6827 = vmatmul.bf16.gmra.mxu0 %v6503
    %v6828 = vpop.f32.mrf.mxu0
    %v6829 = vadd.f32 0.0, %v6828
    %v6830 = vpop.f32.mrf.mxu0
    %v6831 = vadd.f32 0.0, %v6830
    %6832 = vmatmul.bf16.gmra.mxu0 %v6504
    %v6833 = vpop.f32.mrf.mxu0
    %v6834 = vadd.f32 0.0, %v6833
    %v6835 = vpop.f32.mrf.mxu0
    %v6836 = vadd.f32 0.0, %v6835
    %6837 = vmatmul.bf16.gmra.mxu0 %v6505
    %v6838 = vpop.f32.mrf.mxu0
    %v6839 = vadd.f32 0.0, %v6838
    %v6840 = vpop.f32.mrf.mxu0
    %v6841 = vadd.f32 0.0, %v6840
    %6842 = vmatmul.bf16.gmra.mxu0 %v6506
    %v6843 = vpop.f32.mrf.mxu0
    %v6844 = vadd.f32 0.0, %v6843
    %v6845 = vpop.f32.mrf.mxu0
    %v6846 = vadd.f32 0.0, %v6845
    %6847 = vmatmul.bf16.gmra.mxu0 %v6507
    %v6848 = vpop.f32.mrf.mxu0
    %v6849 = vadd.f32 0.0, %v6848
    %v6850 = vpop.f32.mrf.mxu0
    %v6851 = vadd.f32 0.0, %v6850
    %6852 = vmatmul.bf16.gmra.mxu0 %v6508
    %v6853 = vpop.f32.mrf.mxu0
    %v6854 = vadd.f32 0.0, %v6853
    %v6855 = vpop.f32.mrf.mxu0
    %v6856 = vadd.f32 0.0, %v6855
    %6857 = vmatmul.bf16.gmra.mxu0 %v6509
    %v6858 = vpop.f32.mrf.mxu0
    %v6859 = vadd.f32 0.0, %v6858
    %v6860 = vpop.f32.mrf.mxu0
    %v6861 = vadd.f32 0.0, %v6860
    %6862 = vmatmul.bf16.gmra.mxu0 %v6510
    %v6863 = vpop.f32.mrf.mxu0
    %v6864 = vadd.f32 0.0, %v6863
    %v6865 = vpop.f32.mrf.mxu0
    %v6866 = vadd.f32 0.0, %v6865
    %6867 = vmatmul.bf16.gmra.mxu0 %v6511
    %v6868 = vpop.f32.mrf.mxu0
    %v6869 = vadd.f32 0.0, %v6868
    %v6870 = vpop.f32.mrf.mxu0
    %v6871 = vadd.f32 0.0, %v6870
    %6872 = vmatmul.bf16.gmra.mxu0 %v6512
    %v6873 = vpop.f32.mrf.mxu0
    %v6874 = vadd.f32 0.0, %v6873
    %v6875 = vpop.f32.mrf.mxu0
    %v6876 = vadd.f32 0.0, %v6875
    %6877 = vmatmul.bf16.gmra.mxu0 %v6513
    %v6878 = vpop.f32.mrf.mxu0
    %v6879 = vadd.f32 0.0, %v6878
    %v6880 = vpop.f32.mrf.mxu0
    %v6881 = vadd.f32 0.0, %v6880
    %6882 = vmatmul.bf16.gmra.mxu0 %v6514
    %v6883 = vpop.f32.mrf.mxu0
    %v6884 = vadd.f32 0.0, %v6883
    %v6885 = vpop.f32.mrf.mxu0
    %v6886 = vadd.f32 0.0, %v6885
    %6887 = vmatmul.bf16.gmra.mxu0 %v6515
    %v6888 = vpop.f32.mrf.mxu0
    %v6889 = vadd.f32 0.0, %v6888
    %v6890 = vpop.f32.mrf.mxu0
    %v6891 = vadd.f32 0.0, %v6890
    %6892 = vmatmul.bf16.gmra.mxu0 %v6516
    %v6893 = vpop.f32.mrf.mxu0
    %v6894 = vadd.f32 0.0, %v6893
    %v6895 = vpop.f32.mrf.mxu0
    %v6896 = vadd.f32 0.0, %v6895
    %6897 = vmatmul.bf16.gmra.mxu0 %v6517
    %v6898 = vpop.f32.mrf.mxu0
    %v6899 = vadd.f32 0.0, %v6898
    %v6900 = vpop.f32.mrf.mxu0
    %v6901 = vadd.f32 0.0, %v6900
    %6902 = vmatmul.bf16.gmra.mxu0 %v6518
    %v6903 = vpop.f32.mrf.mxu0
    %v6904 = vadd.f32 0.0, %v6903
    %v6905 = vpop.f32.mrf.mxu0
    %v6906 = vadd.f32 0.0, %v6905
    %6907 = vmatmul.bf16.gmra.mxu0 %v6519
    %v6908 = vpop.f32.mrf.mxu0
    %v6909 = vadd.f32 0.0, %v6908
    %v6910 = vpop.f32.mrf.mxu0
    %v6911 = vadd.f32 0.0, %v6910
    %6912 = vmatmul.bf16.gmra.mxu0 %v6520
    %v6913 = vpop.f32.mrf.mxu0
    %v6914 = vadd.f32 0.0, %v6913
    %v6915 = vpop.f32.mrf.mxu0
    %v6916 = vadd.f32 0.0, %v6915
    %6917 = vmatmul.bf16.gmra.mxu0 %v6521
    %v6918 = vpop.f32.mrf.mxu0
    %v6919 = vadd.f32 0.0, %v6918
    %v6920 = vpop.f32.mrf.mxu0
    %v6921 = vadd.f32 0.0, %v6920
    %6922 = vmatmul.bf16.gmra.mxu0 %v6522
    %v6923 = vpop.f32.mrf.mxu0
    %v6924 = vadd.f32 0.0, %v6923
    %v6925 = vpop.f32.mrf.mxu0
    %v6926 = vadd.f32 0.0, %v6925
    %6927 = vmatmul.bf16.gmra.mxu0 %v6523
    %v6928 = vpop.f32.mrf.mxu0
    %v6929 = vadd.f32 0.0, %v6928
    %v6930 = vpop.f32.mrf.mxu0
    %v6931 = vadd.f32 0.0, %v6930
    %6932 = vmatmul.bf16.gmra.mxu0 %v6524
    %v6933 = vpop.f32.mrf.mxu0
    %v6934 = vadd.f32 0.0, %v6933
    %v6935 = vpop.f32.mrf.mxu0
    %v6936 = vadd.f32 0.0, %v6935
    %6937 = vmatmul.bf16.gmra.mxu0 %v6525
    %v6938 = vpop.f32.mrf.mxu0
    %v6939 = vadd.f32 0.0, %v6938
    %v6940 = vpop.f32.mrf.mxu0
    %v6941 = vadd.f32 0.0, %v6940
    %6942 = vmatmul.bf16.gmra.mxu0 %v6526
    %v6943 = vpop.f32.mrf.mxu0
    %v6944 = vadd.f32 0.0, %v6943
    %v6945 = vpop.f32.mrf.mxu0
    %v6946 = vadd.f32 0.0, %v6945
    %6947 = vmatmul.bf16.gmra.mxu0 %v6527
    %v6948 = vpop.f32.mrf.mxu0
    %v6949 = vadd.f32 0.0, %v6948
    %v6950 = vpop.f32.mrf.mxu0
    %v6951 = vadd.f32 0.0, %v6950
    %6952 = vdwg.mxu0
    %6953 = vmatpush.bf16.msra.mxu0 %v6678
    %6954 = vmatpush.bf16.msra.mxu0 %v6675
    %6955 = vmatpush.bf16.msra.mxu0 %v6672
    %6956 = vmatpush.bf16.msra.mxu0 %v6669
    %6957 = vmatpush.bf16.msra.mxu0 %v6666
    %6958 = vmatpush.bf16.msra.mxu0 %v6663
    %6959 = vmatpush.bf16.msra.mxu0 %v6660
    %6960 = vmatpush.bf16.msra.mxu0 %v6657
    %6961 = vmatmul.bf16.gmra.mxu0 %v6480
    %v6962 = vpop.f32.mrf.mxu0
    %v6963 = vadd.f32 0.0, %v6962
    %v6964 = vpop.f32.mrf.mxu0
    %v6965 = vadd.f32 0.0, %v6964
    %6966 = vmatmul.bf16.gmra.mxu0 %v6481
    %v6967 = vpop.f32.mrf.mxu0
    %v6968 = vpop.f32.mrf.mxu0
    %v6969 = vadd.f32 0.0, %v6968
    %6970 = vmatmul.bf16.gmra.mxu0 %v6482
    %v6971 = vpop.f32.mrf.mxu0
    %v6972 = vadd.f32 0.0, %v6971
    %v6973 = vpop.f32.mrf.mxu0
    %6974 = vmatmul.bf16.gmra.mxu0 %v6483
    %v6975 = vpop.f32.mrf.mxu0
    %v6976 = vadd.f32 0.0, %v6975
    %v6977 = vpop.f32.mrf.mxu0
    %v6978 = vadd.f32 0.0, %v6977
    %6979 = vmatmul.bf16.gmra.mxu0 %v6484
    %v6980 = vpop.f32.mrf.mxu0
    %v6981 = vpop.f32.mrf.mxu0
    %v6982 = vadd.f32 0.0, %v6981
    %6983 = vmatmul.bf16.gmra.mxu0 %v6485
    %v6984 = vpop.f32.mrf.mxu0
    %v6985 = vadd.f32 0.0, %v6984
    %v6986 = vpop.f32.mrf.mxu0
    %6987 = vmatmul.bf16.gmra.mxu0 %v6486
    %v6988 = vpop.f32.mrf.mxu0
    %v6989 = vadd.f32 0.0, %v6988
    %v6990 = vpop.f32.mrf.mxu0
    %v6991 = vadd.f32 0.0, %v6990
    %6992 = vmatmul.bf16.gmra.mxu0 %v6487
    %v6993 = vpop.f32.mrf.mxu0
    %v6994 = vpop.f32.mrf.mxu0
    %v6995 = vadd.f32 0.0, %v6994
    %6996 = vmatmul.bf16.gmra.mxu0 %v6488
    %v6997 = vpop.f32.mrf.mxu0
    %v6998 = vadd.f32 0.0, %v6997
    %v6999 = vpop.f32.mrf.mxu0
    %7000 = vmatmul.bf16.gmra.mxu0 %v6489
    %v7001 = vpop.f32.mrf.mxu0
    %v7002 = vadd.f32 0.0, %v7001
    %v7003 = vpop.f32.mrf.mxu0
    %v7004 = vadd.f32 0.0, %v7003
    %7005 = vmatmul.bf16.gmra.mxu0 %v6490
    %v7006 = vpop.f32.mrf.mxu0
    %v7007 = vpop.f32.mrf.mxu0
    %v7008 = vadd.f32 0.0, %v7007
    %7009 = vmatmul.bf16.gmra.mxu0 %v6491
    %v7010 = vpop.f32.mrf.mxu0
    %v7011 = vadd.f32 0.0, %v7010
    %v7012 = vpop.f32.mrf.mxu0
    %7013 = vmatmul.bf16.gmra.mxu0 %v6492
    %v7014 = vpop.f32.mrf.mxu0
    %v7015 = vadd.f32 0.0, %v7014
    %v7016 = vpop.f32.mrf.mxu0
    %v7017 = vadd.f32 0.0, %v7016
    %7018 = vmatmul.bf16.gmra.mxu0 %v6493
    %v7019 = vpop.f32.mrf.mxu0
    %v7020 = vpop.f32.mrf.mxu0
    %v7021 = vadd.f32 0.0, %v7020
    %7022 = vmatmul.bf16.gmra.mxu0 %v6494
    %v7023 = vpop.f32.mrf.mxu0
    %v7024 = vadd.f32 0.0, %v7023
    %v7025 = vpop.f32.mrf.mxu0
    %7026 = vmatmul.bf16.gmra.mxu0 %v6495
    %v7027 = vpop.f32.mrf.mxu0
    %v7028 = vadd.f32 0.0, %v7027
    %v7029 = vpop.f32.mrf.mxu0
    %v7030 = vadd.f32 0.0, %v7029
    %7031 = vmatmul.bf16.gmra.mxu0 %v6496
    %v7032 = vpop.f32.mrf.mxu0
    %v7033 = vpop.f32.mrf.mxu0
    %v7034 = vadd.f32 0.0, %v7033
    %7035 = vmatmul.bf16.gmra.mxu0 %v6497
    %v7036 = vpop.f32.mrf.mxu0
    %v7037 = vadd.f32 0.0, %v7036
    %v7038 = vpop.f32.mrf.mxu0
    %7039 = vmatmul.bf16.gmra.mxu0 %v6498
    %v7040 = vpop.f32.mrf.mxu0
    %v7041 = vadd.f32 0.0, %v7040
    %v7042 = vpop.f32.mrf.mxu0
    %v7043 = vadd.f32 0.0, %v7042
    %7044 = vmatmul.bf16.gmra.mxu0 %v6499
    %v7045 = vpop.f32.mrf.mxu0
    %v7046 = vpop.f32.mrf.mxu0
    %v7047 = vadd.f32 0.0, %v7046
    %7048 = vmatmul.bf16.gmra.mxu0 %v6500
    %v7049 = vpop.f32.mrf.mxu0
    %v7050 = vadd.f32 0.0, %v7049
    %v7051 = vpop.f32.mrf.mxu0
    %7052 = vmatmul.bf16.gmra.mxu0 %v6501
    %v7053 = vpop.f32.mrf.mxu0
    %v7054 = vadd.f32 0.0, %v7053
    %v7055 = vpop.f32.mrf.mxu0
    %v7056 = vadd.f32 0.0, %v7055
    %7057 = vmatmul.bf16.gmra.mxu0 %v6502
    %v7058 = vpop.f32.mrf.mxu0
    %v7059 = vpop.f32.mrf.mxu0
    %v7060 = vadd.f32 0.0, %v7059
    %7061 = vmatmul.bf16.gmra.mxu0 %v6503
    %v7062 = vpop.f32.mrf.mxu0
    %v7063 = vadd.f32 0.0, %v7062
    %v7064 = vpop.f32.mrf.mxu0
    %7065 = vmatmul.bf16.gmra.mxu0 %v6504
    %v7066 = vpop.f32.mrf.mxu0
    %v7067 = vadd.f32 0.0, %v7066
    %v7068 = vpop.f32.mrf.mxu0
    %v7069 = vadd.f32 0.0, %v7068
    %7070 = vmatmul.bf16.gmra.mxu0 %v6505
    %v7071 = vpop.f32.mrf.mxu0
    %v7072 = vpop.f32.mrf.mxu0
    %v7073 = vadd.f32 0.0, %v7072
    %7074 = vmatmul.bf16.gmra.mxu0 %v6506
    %v7075 = vpop.f32.mrf.mxu0
    %v7076 = vadd.f32 0.0, %v7075
    %v7077 = vpop.f32.mrf.mxu0
    %7078 = vmatmul.bf16.gmra.mxu0 %v6507
    %v7079 = vpop.f32.mrf.mxu0
    %v7080 = vadd.f32 0.0, %v7079
    %v7081 = vpop.f32.mrf.mxu0
    %v7082 = vadd.f32 0.0, %v7081
    %7083 = vmatmul.bf16.gmra.mxu0 %v6508
    %v7084 = vpop.f32.mrf.mxu0
    %v7085 = vpop.f32.mrf.mxu0
    %v7086 = vadd.f32 0.0, %v7085
    %7087 = vmatmul.bf16.gmra.mxu0 %v6509
    %v7088 = vpop.f32.mrf.mxu0
    %v7089 = vadd.f32 0.0, %v7088
    %v7090 = vpop.f32.mrf.mxu0
    %7091 = vmatmul.bf16.gmra.mxu0 %v6510
    %v7092 = vpop.f32.mrf.mxu0
    %v7093 = vadd.f32 0.0, %v7092
    %v7094 = vpop.f32.mrf.mxu0
    %v7095 = vadd.f32 0.0, %v7094
    %7096 = vmatmul.bf16.gmra.mxu0 %v6511
    %v7097 = vpop.f32.mrf.mxu0
    %v7098 = vpop.f32.mrf.mxu0
    %v7099 = vadd.f32 0.0, %v7098
    %7100 = vmatmul.bf16.gmra.mxu0 %v6512
    %v7101 = vpop.f32.mrf.mxu0
    %v7102 = vadd.f32 0.0, %v7101
    %v7103 = vpop.f32.mrf.mxu0
    %7104 = vmatmul.bf16.gmra.mxu0 %v6513
    %v7105 = vpop.f32.mrf.mxu0
    %v7106 = vadd.f32 0.0, %v7105
    %v7107 = vpop.f32.mrf.mxu0
    %v7108 = vadd.f32 0.0, %v7107
    %7109 = vmatmul.bf16.gmra.mxu0 %v6514
    %v7110 = vpop.f32.mrf.mxu0
    %v7111 = vpop.f32.mrf.mxu0
    %v7112 = vadd.f32 0.0, %v7111
    %7113 = vmatmul.bf16.gmra.mxu0 %v6515
    %v7114 = vpop.f32.mrf.mxu0
    %v7115 = vadd.f32 0.0, %v7114
    %v7116 = vpop.f32.mrf.mxu0
    %7117 = vmatmul.bf16.gmra.mxu0 %v6516
    %v7118 = vpop.f32.mrf.mxu0
    %v7119 = vadd.f32 0.0, %v7118
    %v7120 = vpop.f32.mrf.mxu0
    %v7121 = vadd.f32 0.0, %v7120
    %7122 = vmatmul.bf16.gmra.mxu0 %v6517
    %v7123 = vpop.f32.mrf.mxu0
    %v7124 = vpop.f32.mrf.mxu0
    %v7125 = vadd.f32 0.0, %v7124
    %7126 = vmatmul.bf16.gmra.mxu0 %v6518
    %v7127 = vpop.f32.mrf.mxu0
    %v7128 = vadd.f32 0.0, %v7127
    %v7129 = vpop.f32.mrf.mxu0
    %7130 = vmatmul.bf16.gmra.mxu0 %v6519
    %v7131 = vpop.f32.mrf.mxu0
    %v7132 = vadd.f32 0.0, %v7131
    %v7133 = vpop.f32.mrf.mxu0
    %v7134 = vadd.f32 0.0, %v7133
    %7135 = vmatmul.bf16.gmra.mxu0 %v6520
    %v7136 = vpop.f32.mrf.mxu0
    %v7137 = vpop.f32.mrf.mxu0
    %v7138 = vadd.f32 0.0, %v7137
    %7139 = vmatmul.bf16.gmra.mxu0 %v6521
    %v7140 = vpop.f32.mrf.mxu0
    %v7141 = vadd.f32 0.0, %v7140
    %v7142 = vpop.f32.mrf.mxu0
    %7143 = vmatmul.bf16.gmra.mxu0 %v6522
    %v7144 = vpop.f32.mrf.mxu0
    %v7145 = vadd.f32 0.0, %v7144
    %v7146 = vpop.f32.mrf.mxu0
    %v7147 = vadd.f32 0.0, %v7146
    %7148 = vmatmul.bf16.gmra.mxu0 %v6523
    %v7149 = vpop.f32.mrf.mxu0
    %v7150 = vpop.f32.mrf.mxu0
    %v7151 = vadd.f32 0.0, %v7150
    %7152 = vmatmul.bf16.gmra.mxu0 %v6524
    %v7153 = vpop.f32.mrf.mxu0
    %v7154 = vadd.f32 0.0, %v7153
    %v7155 = vpop.f32.mrf.mxu0
    %7156 = vmatmul.bf16.gmra.mxu0 %v6525
    %v7157 = vpop.f32.mrf.mxu0
    %v7158 = vadd.f32 0.0, %v7157
    %v7159 = vpop.f32.mrf.mxu0
    %v7160 = vadd.f32 0.0, %v7159
    %7161 = vmatmul.bf16.gmra.mxu0 %v6526
    %v7162 = vpop.f32.mrf.mxu0
    %v7163 = vpop.f32.mrf.mxu0
    %v7164 = vadd.f32 0.0, %v7163
    %7165 = vmatmul.bf16.gmra.mxu0 %v6527
    %v7166 = vpop.f32.mrf.mxu0
    %v7167 = vadd.f32 0.0, %v7166
    %v7168 = vpop.f32.mrf.mxu0
    %7169 = vdwg.mxu0
    %7170 = vmatpush.bf16.msra.mxu0 %v6679
    %7171 = vmatpush.bf16.msra.mxu0 %v6676
    %7172 = vmatpush.bf16.msra.mxu0 %v6673
    %7173 = vmatpush.bf16.msra.mxu0 %v6670
    %7174 = vmatpush.bf16.msra.mxu0 %v6667
    %7175 = vmatpush.bf16.msra.mxu0 %v6664
    %7176 = vmatpush.bf16.msra.mxu0 %v6661
    %7177 = vmatpush.bf16.msra.mxu0 %v6658
    %7178 = vmatmul.bf16.gmra.mxu0 %v6480
    %v7179 = vpop.f32.mrf.mxu0
    %v7180 = vadd.f32 0.0, %v7179
    %v7181 = vpop.f32.mrf.mxu0
    %v7182 = vadd.f32 0.0, %v7181
    %7183 = vmatmul.bf16.gmra.mxu0 %v6481
    %v7184 = vpop.f32.mrf.mxu0
    %v7185 = vadd.f32 0.0, %v7184
    %v7186 = vpop.f32.mrf.mxu0
    %v7187 = vadd.f32 0.0, %v7186
    %7188 = vmatmul.bf16.gmra.mxu0 %v6482
    %v7189 = vpop.f32.mrf.mxu0
    %v7190 = vadd.f32 0.0, %v7189
    %v7191 = vpop.f32.mrf.mxu0
    %v7192 = vadd.f32 0.0, %v7191
    %7193 = vmatmul.bf16.gmra.mxu0 %v6483
    %v7194 = vpop.f32.mrf.mxu0
    %v7195 = vadd.f32 0.0, %v7194
    %v7196 = vpop.f32.mrf.mxu0
    %v7197 = vadd.f32 0.0, %v7196
    %7198 = vmatmul.bf16.gmra.mxu0 %v6484
    %v7199 = vpop.f32.mrf.mxu0
    %v7200 = vadd.f32 0.0, %v7199
    %v7201 = vpop.f32.mrf.mxu0
    %v7202 = vadd.f32 0.0, %v7201
    %7203 = vmatmul.bf16.gmra.mxu0 %v6485
    %v7204 = vpop.f32.mrf.mxu0
    %v7205 = vadd.f32 0.0, %v7204
    %v7206 = vpop.f32.mrf.mxu0
    %v7207 = vadd.f32 0.0, %v7206
    %7208 = vmatmul.bf16.gmra.mxu0 %v6486
    %v7209 = vpop.f32.mrf.mxu0
    %v7210 = vadd.f32 0.0, %v7209
    %v7211 = vpop.f32.mrf.mxu0
    %v7212 = vadd.f32 0.0, %v7211
    %7213 = vmatmul.bf16.gmra.mxu0 %v6487
    %v7214 = vpop.f32.mrf.mxu0
    %v7215 = vadd.f32 0.0, %v7214
    %v7216 = vpop.f32.mrf.mxu0
    %v7217 = vadd.f32 0.0, %v7216
    %7218 = vmatmul.bf16.gmra.mxu0 %v6488
    %v7219 = vpop.f32.mrf.mxu0
    %v7220 = vadd.f32 0.0, %v7219
    %v7221 = vpop.f32.mrf.mxu0
    %v7222 = vadd.f32 0.0, %v7221
    %7223 = vmatmul.bf16.gmra.mxu0 %v6489
    %v7224 = vpop.f32.mrf.mxu0
    %v7225 = vadd.f32 0.0, %v7224
    %v7226 = vpop.f32.mrf.mxu0
    %v7227 = vadd.f32 0.0, %v7226
    %7228 = vmatmul.bf16.gmra.mxu0 %v6490
    %v7229 = vpop.f32.mrf.mxu0
    %v7230 = vadd.f32 0.0, %v7229
    %v7231 = vpop.f32.mrf.mxu0
    %v7232 = vadd.f32 0.0, %v7231
    %7233 = vmatmul.bf16.gmra.mxu0 %v6491
    %v7234 = vpop.f32.mrf.mxu0
    %v7235 = vadd.f32 0.0, %v7234
    %v7236 = vpop.f32.mrf.mxu0
    %v7237 = vadd.f32 0.0, %v7236
    %7238 = vmatmul.bf16.gmra.mxu0 %v6492
    %v7239 = vpop.f32.mrf.mxu0
    %v7240 = vadd.f32 0.0, %v7239
    %v7241 = vpop.f32.mrf.mxu0
    %v7242 = vadd.f32 0.0, %v7241
    %7243 = vmatmul.bf16.gmra.mxu0 %v6493
    %v7244 = vpop.f32.mrf.mxu0
    %v7245 = vadd.f32 0.0, %v7244
    %v7246 = vpop.f32.mrf.mxu0
    %v7247 = vadd.f32 0.0, %v7246
    %7248 = vmatmul.bf16.gmra.mxu0 %v6494
    %v7249 = vpop.f32.mrf.mxu0
    %v7250 = vadd.f32 0.0, %v7249
    %v7251 = vpop.f32.mrf.mxu0
    %v7252 = vadd.f32 0.0, %v7251
    %7253 = vmatmul.bf16.gmra.mxu0 %v6495
    %v7254 = vpop.f32.mrf.mxu0
    %v7255 = vadd.f32 0.0, %v7254
    %v7256 = vpop.f32.mrf.mxu0
    %v7257 = vadd.f32 0.0, %v7256
    %7258 = vmatmul.bf16.gmra.mxu0 %v6496
    %v7259 = vpop.f32.mrf.mxu0
    %v7260 = vadd.f32 0.0, %v7259
    %v7261 = vpop.f32.mrf.mxu0
    %v7262 = vadd.f32 0.0, %v7261
    %7263 = vmatmul.bf16.gmra.mxu0 %v6497
    %v7264 = vpop.f32.mrf.mxu0
    %v7265 = vadd.f32 0.0, %v7264
    %v7266 = vpop.f32.mrf.mxu0
    %v7267 = vadd.f32 0.0, %v7266
    %7268 = vmatmul.bf16.gmra.mxu0 %v6498
    %v7269 = vpop.f32.mrf.mxu0
    %v7270 = vadd.f32 0.0, %v7269
    %v7271 = vpop.f32.mrf.mxu0
    %v7272 = vadd.f32 0.0, %v7271
    %7273 = vmatmul.bf16.gmra.mxu0 %v6499
    %v7274 = vpop.f32.mrf.mxu0
    %v7275 = vadd.f32 0.0, %v7274
    %v7276 = vpop.f32.mrf.mxu0
    %v7277 = vadd.f32 0.0, %v7276
    %7278 = vmatmul.bf16.gmra.mxu0 %v6500
    %v7279 = vpop.f32.mrf.mxu0
    %v7280 = vadd.f32 0.0, %v7279
    %v7281 = vpop.f32.mrf.mxu0
    %v7282 = vadd.f32 0.0, %v7281
    %7283 = vmatmul.bf16.gmra.mxu0 %v6501
    %v7284 = vpop.f32.mrf.mxu0
    %v7285 = vadd.f32 0.0, %v7284
    %v7286 = vpop.f32.mrf.mxu0
    %v7287 = vadd.f32 0.0, %v7286
    %7288 = vmatmul.bf16.gmra.mxu0 %v6502
    %v7289 = vpop.f32.mrf.mxu0
    %v7290 = vadd.f32 0.0, %v7289
    %v7291 = vpop.f32.mrf.mxu0
    %v7292 = vadd.f32 0.0, %v7291
    %7293 = vmatmul.bf16.gmra.mxu0 %v6503
    %v7294 = vpop.f32.mrf.mxu0
    %v7295 = vadd.f32 0.0, %v7294
    %v7296 = vpop.f32.mrf.mxu0
    %v7297 = vadd.f32 0.0, %v7296
    %7298 = vmatmul.bf16.gmra.mxu0 %v6504
    %v7299 = vpop.f32.mrf.mxu0
    %v7300 = vadd.f32 0.0, %v7299
    %v7301 = vpop.f32.mrf.mxu0
    %v7302 = vadd.f32 0.0, %v7301
    %7303 = vmatmul.bf16.gmra.mxu0 %v6505
    %v7304 = vpop.f32.mrf.mxu0
    %v7305 = vadd.f32 0.0, %v7304
    %v7306 = vpop.f32.mrf.mxu0
    %v7307 = vadd.f32 0.0, %v7306
    %7308 = vmatmul.bf16.gmra.mxu0 %v6506
    %v7309 = vpop.f32.mrf.mxu0
    %v7310 = vadd.f32 0.0, %v7309
    %v7311 = vpop.f32.mrf.mxu0
    %v7312 = vadd.f32 0.0, %v7311
    %7313 = vmatmul.bf16.gmra.mxu0 %v6507
    %v7314 = vpop.f32.mrf.mxu0
    %v7315 = vadd.f32 0.0, %v7314
    %v7316 = vpop.f32.mrf.mxu0
    %v7317 = vadd.f32 0.0, %v7316
    %7318 = vmatmul.bf16.gmra.mxu0 %v6508
    %v7319 = vpop.f32.mrf.mxu0
    %v7320 = vadd.f32 0.0, %v7319
    %v7321 = vpop.f32.mrf.mxu0
    %v7322 = vadd.f32 0.0, %v7321
    %7323 = vmatmul.bf16.gmra.mxu0 %v6509
    %v7324 = vpop.f32.mrf.mxu0
    %v7325 = vadd.f32 0.0, %v7324
    %v7326 = vpop.f32.mrf.mxu0
    %v7327 = vadd.f32 0.0, %v7326
    %7328 = vmatmul.bf16.gmra.mxu0 %v6510
    %v7329 = vpop.f32.mrf.mxu0
    %v7330 = vadd.f32 0.0, %v7329
    %v7331 = vpop.f32.mrf.mxu0
    %v7332 = vadd.f32 0.0, %v7331
    %7333 = vmatmul.bf16.gmra.mxu0 %v6511
    %v7334 = vpop.f32.mrf.mxu0
    %v7335 = vadd.f32 0.0, %v7334
    %v7336 = vpop.f32.mrf.mxu0
    %v7337 = vadd.f32 0.0, %v7336
    %7338 = vmatmul.bf16.gmra.mxu0 %v6512
    %v7339 = vpop.f32.mrf.mxu0
    %v7340 = vadd.f32 0.0, %v7339
    %v7341 = vpop.f32.mrf.mxu0
    %v7342 = vadd.f32 0.0, %v7341
    %7343 = vmatmul.bf16.gmra.mxu0 %v6513
    %v7344 = vpop.f32.mrf.mxu0
    %v7345 = vadd.f32 0.0, %v7344
    %v7346 = vpop.f32.mrf.mxu0
    %v7347 = vadd.f32 0.0, %v7346
    %7348 = vmatmul.bf16.gmra.mxu0 %v6514
    %v7349 = vpop.f32.mrf.mxu0
    %v7350 = vadd.f32 0.0, %v7349
    %v7351 = vpop.f32.mrf.mxu0
    %v7352 = vadd.f32 0.0, %v7351
    %7353 = vmatmul.bf16.gmra.mxu0 %v6515
    %v7354 = vpop.f32.mrf.mxu0
    %v7355 = vadd.f32 0.0, %v7354
    %v7356 = vpop.f32.mrf.mxu0
    %v7357 = vadd.f32 0.0, %v7356
    %7358 = vmatmul.bf16.gmra.mxu0 %v6516
    %v7359 = vpop.f32.mrf.mxu0
    %v7360 = vadd.f32 0.0, %v7359
    %v7361 = vpop.f32.mrf.mxu0
    %v7362 = vadd.f32 0.0, %v7361
    %7363 = vmatmul.bf16.gmra.mxu0 %v6517
    %v7364 = vpop.f32.mrf.mxu0
    %v7365 = vadd.f32 0.0, %v7364
    %v7366 = vpop.f32.mrf.mxu0
    %v7367 = vadd.f32 0.0, %v7366
    %7368 = vmatmul.bf16.gmra.mxu0 %v6518
    %v7369 = vpop.f32.mrf.mxu0
    %v7370 = vadd.f32 0.0, %v7369
    %v7371 = vpop.f32.mrf.mxu0
    %v7372 = vadd.f32 0.0, %v7371
    %7373 = vmatmul.bf16.gmra.mxu0 %v6519
    %v7374 = vpop.f32.mrf.mxu0
    %v7375 = vadd.f32 0.0, %v7374
    %v7376 = vpop.f32.mrf.mxu0
    %v7377 = vadd.f32 0.0, %v7376
    %7378 = vmatmul.bf16.gmra.mxu0 %v6520
    %v7379 = vpop.f32.mrf.mxu0
    %v7380 = vadd.f32 0.0, %v7379
    %v7381 = vpop.f32.mrf.mxu0
    %v7382 = vadd.f32 0.0, %v7381
    %7383 = vmatmul.bf16.gmra.mxu0 %v6521
    %v7384 = vpop.f32.mrf.mxu0
    %v7385 = vadd.f32 0.0, %v7384
    %v7386 = vpop.f32.mrf.mxu0
    %v7387 = vadd.f32 0.0, %v7386
    %7388 = vmatmul.bf16.gmra.mxu0 %v6522
    %v7389 = vpop.f32.mrf.mxu0
    %v7390 = vadd.f32 0.0, %v7389
    %v7391 = vpop.f32.mrf.mxu0
    %v7392 = vadd.f32 0.0, %v7391
    %7393 = vmatmul.bf16.gmra.mxu0 %v6523
    %v7394 = vpop.f32.mrf.mxu0
    %v7395 = vadd.f32 0.0, %v7394
    %v7396 = vpop.f32.mrf.mxu0
    %v7397 = vadd.f32 0.0, %v7396
    %7398 = vmatmul.bf16.gmra.mxu0 %v6524
    %v7399 = vpop.f32.mrf.mxu0
    %v7400 = vadd.f32 0.0, %v7399
    %v7401 = vpop.f32.mrf.mxu0
    %v7402 = vadd.f32 0.0, %v7401
    %7403 = vmatmul.bf16.gmra.mxu0 %v6525
    %v7404 = vpop.f32.mrf.mxu0
    %v7405 = vadd.f32 0.0, %v7404
    %v7406 = vpop.f32.mrf.mxu0
    %v7407 = vadd.f32 0.0, %v7406
    %7408 = vmatmul.bf16.gmra.mxu0 %v6526
    %v7409 = vpop.f32.mrf.mxu0
    %v7410 = vadd.f32 0.0, %v7409
    %v7411 = vpop.f32.mrf.mxu0
    %v7412 = vadd.f32 0.0, %v7411
    %7413 = vmatmul.bf16.gmra.mxu0 %v6527
    %v7414 = vpop.f32.mrf.mxu0
    %v7415 = vadd.f32 0.0, %v7414
    %v7416 = vpop.f32.mrf.mxu0
    %v7417 = vadd.f32 0.0, %v7416
    %7418 = vdwg.mxu0
    %v7419 = vrot.slane %v6714, 7
    %v7420 = vrot.slane %v6716, 7
    %v7421 = vrot.slane %v6719, 7
    %v7422 = vrot.slane %v6721, 7
    %v7423 = vrot.slane %v6724, 7
    %v7424 = vrot.slane %v6726, 7
    %v7425 = vrot.slane %v6729, 7
    %v7426 = vrot.slane %v6731, 7
    %v7427 = vrot.slane %v6734, 7
    %v7428 = vrot.slane %v6736, 7
    %v7429 = vrot.slane %v6739, 7
    %v7430 = vrot.slane %v6741, 7
    %v7431 = vrot.slane %v6744, 7
    %v7432 = vrot.slane %v6746, 7
    %v7433 = vrot.slane %v6749, 7
    %v7434 = vrot.slane %v6751, 7
    %v7435 = vrot.slane %v6754, 7
    %v7436 = vrot.slane %v6756, 7
    %v7437 = vrot.slane %v6759, 7
    %v7438 = vrot.slane %v6761, 7
    %v7439 = vrot.slane %v6764, 7
    %v7440 = vrot.slane %v6766, 7
    %v7441 = vrot.slane %v6769, 7
    %v7442 = vrot.slane %v6771, 7
    %v7443 = vrot.slane %v6774, 7
    %v7444 = vrot.slane %v6776, 7
    %v7445 = vrot.slane %v6779, 7
    %v7446 = vrot.slane %v6781, 7
    %v7447 = vrot.slane %v6784, 7
    %v7448 = vrot.slane %v6786, 7
    %v7449 = vrot.slane %v6789, 7
    %v7450 = vrot.slane %v6791, 7
    %v7451 = vrot.slane %v6794, 7
    %v7452 = vrot.slane %v6796, 7
    %v7453 = vrot.slane %v6799, 7
    %v7454 = vrot.slane %v6801, 7
    %v7455 = vrot.slane %v6804, 7
    %v7456 = vrot.slane %v6806, 7
    %v7457 = vrot.slane %v6809, 7
    %v7458 = vrot.slane %v6811, 7
    %v7459 = vrot.slane %v6814, 7
    %v7460 = vrot.slane %v6816, 7
    %v7461 = vrot.slane %v6819, 7
    %v7462 = vrot.slane %v6821, 7
    %v7463 = vrot.slane %v6824, 7
    %v7464 = vrot.slane %v6826, 7
    %v7465 = vrot.slane %v6829, 7
    %v7466 = vrot.slane %v6831, 7
    %v7467 = vrot.slane %v6834, 7
    %v7468 = vrot.slane %v6836, 7
    %v7469 = vrot.slane %v6839, 7
    %v7470 = vrot.slane %v6841, 7
    %v7471 = vrot.slane %v6844, 7
    %v7472 = vrot.slane %v6846, 7
    %v7473 = vrot.slane %v6849, 7
    %v7474 = vrot.slane %v6851, 7
    %v7475 = vrot.slane %v6854, 7
    %v7476 = vrot.slane %v6856, 7
    %v7477 = vrot.slane %v6859, 7
    %v7478 = vrot.slane %v6861, 7
    %v7479 = vrot.slane %v6864, 7
    %v7480 = vrot.slane %v6866, 7
    %v7481 = vrot.slane %v6869, 7
    %v7482 = vrot.slane %v6871, 7
    %v7483 = vrot.slane %v6874, 7
    %v7484 = vrot.slane %v6876, 7
    %v7485 = vrot.slane %v6879, 7
    %v7486 = vrot.slane %v6881, 7
    %v7487 = vrot.slane %v6884, 7
    %v7488 = vrot.slane %v6886, 7
    %v7489 = vrot.slane %v6889, 7
    %v7490 = vrot.slane %v6891, 7
    %v7491 = vrot.slane %v6894, 7
    %v7492 = vrot.slane %v6896, 7
    %v7493 = vrot.slane %v6899, 7
    %v7494 = vrot.slane %v6901, 7
    %v7495 = vrot.slane %v6904, 7
    %v7496 = vrot.slane %v6906, 7
    %v7497 = vrot.slane %v6909, 7
    %v7498 = vrot.slane %v6911, 7
    %v7499 = vrot.slane %v6914, 7
    %v7500 = vrot.slane %v6916, 7
    %v7501 = vrot.slane %v6919, 7
    %v7502 = vrot.slane %v6921, 7
    %v7503 = vrot.slane %v6924, 7
    %v7504 = vrot.slane %v6926, 7
    %v7505 = vrot.slane %v6929, 7
    %v7506 = vrot.slane %v6931, 7
    %v7507 = vrot.slane %v6934, 7
    %v7508 = vrot.slane %v6936, 7
    %v7509 = vrot.slane %v6939, 7
    %v7510 = vrot.slane %v6941, 7
    %v7511 = vrot.slane %v6944, 7
    %v7512 = vrot.slane %v6946, 7
    %v7513 = vrot.slane %v6949, 7
    %v7514 = vrot.slane %v6951, 7
    %v7515 = vsel %vm1662, %v7512, %v7513
    %v7516 = vsel %vm1662, %v7511, %v7512
    %v7517 = vsel %vm1662, %v7509, %v7510
    %v7518 = vsel %vm1662, %v7508, %v7509
    %v7519 = vsel %vm1662, %v7506, %v7507
    %v7520 = vsel %vm1662, %v7505, %v7506
    %v7521 = vsel %vm1662, %v7503, %v7504
    %v7522 = vsel %vm1662, %v7502, %v7503
    %v7523 = vsel %vm1662, %v7500, %v7501
    %v7524 = vsel %vm1662, %v7499, %v7500
    %v7525 = vsel %vm1662, %v7497, %v7498
    %v7526 = vsel %vm1662, %v7496, %v7497
    %v7527 = vsel %vm1662, %v7494, %v7495
    %v7528 = vsel %vm1662, %v7493, %v7494
    %v7529 = vsel %vm1662, %v7491, %v7492
    %v7530 = vsel %vm1662, %v7490, %v7491
    %v7531 = vsel %vm1662, %v7488, %v7489
    %v7532 = vsel %vm1662, %v7487, %v7488
    %v7533 = vsel %vm1662, %v7485, %v7486
    %v7534 = vsel %vm1662, %v7484, %v7485
    %v7535 = vsel %vm1662, %v7482, %v7483
    %v7536 = vsel %vm1662, %v7481, %v7482
    %v7537 = vsel %vm1662, %v7479, %v7480
    %v7538 = vsel %vm1662, %v7478, %v7479
    %v7539 = vsel %vm1662, %v7476, %v7477
    %v7540 = vsel %vm1662, %v7475, %v7476
    %v7541 = vsel %vm1662, %v7473, %v7474
    %v7542 = vsel %vm1662, %v7472, %v7473
    %v7543 = vsel %vm1662, %v7470, %v7471
    %v7544 = vsel %vm1662, %v7469, %v7470
    %v7545 = vsel %vm1662, %v7467, %v7468
    %v7546 = vsel %vm1662, %v7466, %v7467
    %v7547 = vsel %vm1662, %v7464, %v7465
    %v7548 = vsel %vm1662, %v7463, %v7464
    %v7549 = vsel %vm1662, %v7461, %v7462
    %v7550 = vsel %vm1662, %v7460, %v7461
    %v7551 = vsel %vm1662, %v7458, %v7459
    %v7552 = vsel %vm1662, %v7457, %v7458
    %v7553 = vsel %vm1662, %v7455, %v7456
    %v7554 = vsel %vm1662, %v7454, %v7455
    %v7555 = vsel %vm1662, %v7452, %v7453
    %v7556 = vsel %vm1662, %v7451, %v7452
    %v7557 = vsel %vm1662, %v7449, %v7450
    %v7558 = vsel %vm1662, %v7448, %v7449
    %v7559 = vsel %vm1662, %v7446, %v7447
    %v7560 = vsel %vm1662, %v7445, %v7446
    %v7561 = vsel %vm1662, %v7443, %v7444
    %v7562 = vsel %vm1662, %v7442, %v7443
    %v7563 = vsel %vm1662, %v7440, %v7441
    %v7564 = vsel %vm1662, %v7439, %v7440
    %v7565 = vsel %vm1662, %v7437, %v7438
    %v7566 = vsel %vm1662, %v7436, %v7437
    %v7567 = vsel %vm1662, %v7434, %v7435
    %v7568 = vsel %vm1662, %v7433, %v7434
    %v7569 = vsel %vm1662, %v7431, %v7432
    %v7570 = vsel %vm1662, %v7430, %v7431
    %v7571 = vsel %vm1662, %v7428, %v7429
    %v7572 = vsel %vm1662, %v7427, %v7428
    %v7573 = vsel %vm1662, %v7425, %v7426
    %v7574 = vsel %vm1662, %v7424, %v7425
    %v7575 = vsel %vm1662, %v7422, %v7423
    %v7576 = vsel %vm1662, %v7421, %v7422
    %v7577 = vsel %vm1662, %v7419, %v7420
    %v7578 = vsel %vm1662, %v7514, %v7419
    %v7579 = vadd.f32 %v7578, 0.0
    %v7580 = vadd.f32 %v7577, 0.0
    %v7581 = vadd.f32 %v7576, 0.0
    %v7582 = vadd.f32 %v7575, 0.0
    %v7583 = vadd.f32 %v7574, 0.0
    %v7584 = vadd.f32 %v7573, 0.0
    %v7585 = vadd.f32 %v7572, 0.0
    %v7586 = vadd.f32 %v7571, 0.0
    %v7587 = vadd.f32 %v7570, 0.0
    %v7588 = vadd.f32 %v7569, 0.0
    %v7589 = vadd.f32 %v7568, 0.0
    %v7590 = vadd.f32 %v7567, 0.0
    %v7591 = vadd.f32 %v7566, 0.0
    %v7592 = vadd.f32 %v7565, 0.0
    %v7593 = vadd.f32 %v7564, 0.0
    %v7594 = vadd.f32 %v7563, 0.0
    %v7595 = vadd.f32 %v7562, 0.0
    %v7596 = vadd.f32 %v7561, 0.0
    %v7597 = vadd.f32 %v7560, 0.0
    %v7598 = vadd.f32 %v7559, 0.0
    %v7599 = vadd.f32 %v7558, 0.0
    %v7600 = vadd.f32 %v7557, 0.0
    %v7601 = vadd.f32 %v7556, 0.0
    %v7602 = vadd.f32 %v7555, 0.0
    %v7603 = vadd.f32 %v7554, 0.0
    %v7604 = vadd.f32 %v7553, 0.0
    %v7605 = vadd.f32 %v7552, 0.0
    %v7606 = vadd.f32 %v7551, 0.0
    %v7607 = vadd.f32 %v7550, 0.0
    %v7608 = vadd.f32 %v7549, 0.0
    %v7609 = vadd.f32 %v7548, 0.0
    %v7610 = vadd.f32 %v7547, 0.0
    %v7611 = vadd.f32 %v7546, 0.0
    %v7612 = vadd.f32 %v7545, 0.0
    %v7613 = vadd.f32 %v7544, 0.0
    %v7614 = vadd.f32 %v7543, 0.0
    %v7615 = vadd.f32 %v7542, 0.0
    %v7616 = vadd.f32 %v7541, 0.0
    %v7617 = vadd.f32 %v7540, 0.0
    %v7618 = vadd.f32 %v7539, 0.0
    %v7619 = vadd.f32 %v7538, 0.0
    %v7620 = vadd.f32 %v7537, 0.0
    %v7621 = vadd.f32 %v7536, 0.0
    %v7622 = vadd.f32 %v7535, 0.0
    %v7623 = vadd.f32 %v7534, 0.0
    %v7624 = vadd.f32 %v7533, 0.0
    %v7625 = vadd.f32 %v7532, 0.0
    %v7626 = vadd.f32 %v7531, 0.0
    %v7627 = vadd.f32 %v7530, 0.0
    %v7628 = vadd.f32 %v7529, 0.0
    %v7629 = vadd.f32 %v7528, 0.0
    %v7630 = vadd.f32 %v7527, 0.0
    %v7631 = vadd.f32 %v7526, 0.0
    %v7632 = vadd.f32 %v7525, 0.0
    %v7633 = vadd.f32 %v7524, 0.0
    %v7634 = vadd.f32 %v7523, 0.0
    %v7635 = vadd.f32 %v7522, 0.0
    %v7636 = vadd.f32 %v7521, 0.0
    %v7637 = vadd.f32 %v7520, 0.0
    %v7638 = vadd.f32 %v7519, 0.0
    %v7639 = vadd.f32 %v7518, 0.0
    %v7640 = vadd.f32 %v7517, 0.0
    %v7641 = vadd.f32 %v7516, 0.0
    %v7642 = vadd.f32 %v7515, 0.0
    %v7643 = vadd.f32 %v7579, %v6963
    %v7644 = vadd.f32 %v7580, %v6965
    %v7645 = vadd.f32 %v7581, %v6969
    %v7646 = vadd.f32 %v7582, %v6972
    %v7647 = vadd.f32 %v7583, %v6976
    %v7648 = vadd.f32 %v7584, %v6978
    %v7649 = vadd.f32 %v7585, %v6982
    %v7650 = vadd.f32 %v7586, %v6985
    %v7651 = vadd.f32 %v7587, %v6989
    %v7652 = vadd.f32 %v7588, %v6991
    %v7653 = vadd.f32 %v7589, %v6995
    %v7654 = vadd.f32 %v7590, %v6998
    %v7655 = vadd.f32 %v7591, %v7002
    %v7656 = vadd.f32 %v7592, %v7004
    %v7657 = vadd.f32 %v7593, %v7008
    %v7658 = vadd.f32 %v7594, %v7011
    %v7659 = vadd.f32 %v7595, %v7015
    %v7660 = vadd.f32 %v7596, %v7017
    %v7661 = vadd.f32 %v7597, %v7021
    %v7662 = vadd.f32 %v7598, %v7024
    %v7663 = vadd.f32 %v7599, %v7028
    %v7664 = vadd.f32 %v7600, %v7030
    %v7665 = vadd.f32 %v7601, %v7034
    %v7666 = vadd.f32 %v7602, %v7037
    %v7667 = vadd.f32 %v7603, %v7041
    %v7668 = vadd.f32 %v7604, %v7043
    %v7669 = vadd.f32 %v7605, %v7047
    %v7670 = vadd.f32 %v7606, %v7050
    %v7671 = vadd.f32 %v7607, %v7054
    %v7672 = vadd.f32 %v7608, %v7056
    %v7673 = vadd.f32 %v7609, %v7060
    %v7674 = vadd.f32 %v7610, %v7063
    %v7675 = vadd.f32 %v7611, %v7067
    %v7676 = vadd.f32 %v7612, %v7069
    %v7677 = vadd.f32 %v7613, %v7073
    %v7678 = vadd.f32 %v7614, %v7076
    %v7679 = vadd.f32 %v7615, %v7080
    %v7680 = vadd.f32 %v7616, %v7082
    %v7681 = vadd.f32 %v7617, %v7086
    %v7682 = vadd.f32 %v7618, %v7089
    %v7683 = vadd.f32 %v7619, %v7093
    %v7684 = vadd.f32 %v7620, %v7095
    %v7685 = vadd.f32 %v7621, %v7099
    %v7686 = vadd.f32 %v7622, %v7102
    %v7687 = vadd.f32 %v7623, %v7106
    %v7688 = vadd.f32 %v7624, %v7108
    %v7689 = vadd.f32 %v7625, %v7112
    %v7690 = vadd.f32 %v7626, %v7115
    %v7691 = vadd.f32 %v7627, %v7119
    %v7692 = vadd.f32 %v7628, %v7121
    %v7693 = vadd.f32 %v7629, %v7125
    %v7694 = vadd.f32 %v7630, %v7128
    %v7695 = vadd.f32 %v7631, %v7132
    %v7696 = vadd.f32 %v7632, %v7134
    %v7697 = vadd.f32 %v7633, %v7138
    %v7698 = vadd.f32 %v7634, %v7141
    %v7699 = vadd.f32 %v7635, %v7145
    %v7700 = vadd.f32 %v7636, %v7147
    %v7701 = vadd.f32 %v7637, %v7151
    %v7702 = vadd.f32 %v7638, %v7154
    %v7703 = vadd.f32 %v7639, %v7158
    %v7704 = vadd.f32 %v7640, %v7160
    %v7705 = vadd.f32 %v7641, %v7164
    %v7706 = vadd.f32 %v7642, %v7167
    %v7707 = vrot.slane %v7180, 1
    %v7708 = vrot.slane %v7182, 1
    %v7709 = vrot.slane %v7185, 1
    %v7710 = vrot.slane %v7187, 1
    %v7711 = vrot.slane %v7190, 1
    %v7712 = vrot.slane %v7192, 1
    %v7713 = vrot.slane %v7195, 1
    %v7714 = vrot.slane %v7197, 1
    %v7715 = vrot.slane %v7200, 1
    %v7716 = vrot.slane %v7202, 1
    %v7717 = vrot.slane %v7205, 1
    %v7718 = vrot.slane %v7207, 1
    %v7719 = vrot.slane %v7210, 1
    %v7720 = vrot.slane %v7212, 1
    %v7721 = vrot.slane %v7215, 1
    %v7722 = vrot.slane %v7217, 1
    %v7723 = vrot.slane %v7220, 1
    %v7724 = vrot.slane %v7222, 1
    %v7725 = vrot.slane %v7225, 1
    %v7726 = vrot.slane %v7227, 1
    %v7727 = vrot.slane %v7230, 1
    %v7728 = vrot.slane %v7232, 1
    %v7729 = vrot.slane %v7235, 1
    %v7730 = vrot.slane %v7237, 1
    %v7731 = vrot.slane %v7240, 1
    %v7732 = vrot.slane %v7242, 1
    %v7733 = vrot.slane %v7245, 1
    %v7734 = vrot.slane %v7247, 1
    %v7735 = vrot.slane %v7250, 1
    %v7736 = vrot.slane %v7252, 1
    %v7737 = vrot.slane %v7255, 1
    %v7738 = vrot.slane %v7257, 1
    %v7739 = vrot.slane %v7260, 1
    %v7740 = vrot.slane %v7262, 1
    %v7741 = vrot.slane %v7265, 1
    %v7742 = vrot.slane %v7267, 1
    %v7743 = vrot.slane %v7270, 1
    %v7744 = vrot.slane %v7272, 1
    %v7745 = vrot.slane %v7275, 1
    %v7746 = vrot.slane %v7277, 1
    %v7747 = vrot.slane %v7280, 1
    %v7748 = vrot.slane %v7282, 1
    %v7749 = vrot.slane %v7285, 1
    %v7750 = vrot.slane %v7287, 1
    %v7751 = vrot.slane %v7290, 1
    %v7752 = vrot.slane %v7292, 1
    %v7753 = vrot.slane %v7295, 1
    %v7754 = vrot.slane %v7297, 1
    %v7755 = vrot.slane %v7300, 1
    %v7756 = vrot.slane %v7302, 1
    %v7757 = vrot.slane %v7305, 1
    %v7758 = vrot.slane %v7307, 1
    %v7759 = vrot.slane %v7310, 1
    %v7760 = vrot.slane %v7312, 1
    %v7761 = vrot.slane %v7315, 1
    %v7762 = vrot.slane %v7317, 1
    %v7763 = vrot.slane %v7320, 1
    %v7764 = vrot.slane %v7322, 1
    %v7765 = vrot.slane %v7325, 1
    %v7766 = vrot.slane %v7327, 1
    %v7767 = vrot.slane %v7330, 1
    %v7768 = vrot.slane %v7332, 1
    %v7769 = vrot.slane %v7335, 1
    %v7770 = vrot.slane %v7337, 1
    %v7771 = vrot.slane %v7340, 1
    %v7772 = vrot.slane %v7342, 1
    %v7773 = vrot.slane %v7345, 1
    %v7774 = vrot.slane %v7347, 1
    %v7775 = vrot.slane %v7350, 1
    %v7776 = vrot.slane %v7352, 1
    %v7777 = vrot.slane %v7355, 1
    %v7778 = vrot.slane %v7357, 1
    %v7779 = vrot.slane %v7360, 1
    %v7780 = vrot.slane %v7362, 1
    %v7781 = vrot.slane %v7365, 1
    %v7782 = vrot.slane %v7367, 1
    %v7783 = vrot.slane %v7370, 1
    %v7784 = vrot.slane %v7372, 1
    %v7785 = vrot.slane %v7375, 1
    %v7786 = vrot.slane %v7377, 1
    %v7787 = vrot.slane %v7380, 1
    %v7788 = vrot.slane %v7382, 1
    %v7789 = vrot.slane %v7385, 1
    %v7790 = vrot.slane %v7387, 1
    %v7791 = vrot.slane %v7390, 1
    %v7792 = vrot.slane %v7392, 1
    %v7793 = vrot.slane %v7395, 1
    %v7794 = vrot.slane %v7397, 1
    %v7795 = vrot.slane %v7400, 1
    %v7796 = vrot.slane %v7402, 1
    %v7797 = vrot.slane %v7405, 1
    %v7798 = vrot.slane %v7407, 1
    %v7799 = vrot.slane %v7410, 1
    %v7800 = vrot.slane %v7412, 1
    %v7801 = vrot.slane %v7415, 1
    %v7802 = vrot.slane %v7417, 1
    %v7803 = vsel %vm1951, %v7801, %v7802
    %v7804 = vsel %vm1951, %v7800, %v7801
    %v7805 = vsel %vm1951, %v7798, %v7799
    %v7806 = vsel %vm1951, %v7797, %v7798
    %v7807 = vsel %vm1951, %v7795, %v7796
    %v7808 = vsel %vm1951, %v7794, %v7795
    %v7809 = vsel %vm1951, %v7792, %v7793
    %v7810 = vsel %vm1951, %v7791, %v7792
    %v7811 = vsel %vm1951, %v7789, %v7790
    %v7812 = vsel %vm1951, %v7788, %v7789
    %v7813 = vsel %vm1951, %v7786, %v7787
    %v7814 = vsel %vm1951, %v7785, %v7786
    %v7815 = vsel %vm1951, %v7783, %v7784
    %v7816 = vsel %vm1951, %v7782, %v7783
    %v7817 = vsel %vm1951, %v7780, %v7781
    %v7818 = vsel %vm1951, %v7779, %v7780
    %v7819 = vsel %vm1951, %v7777, %v7778
    %v7820 = vsel %vm1951, %v7776, %v7777
    %v7821 = vsel %vm1951, %v7774, %v7775
    %v7822 = vsel %vm1951, %v7773, %v7774
    %v7823 = vsel %vm1951, %v7771, %v7772
    %v7824 = vsel %vm1951, %v7770, %v7771
    %v7825 = vsel %vm1951, %v7768, %v7769
    %v7826 = vsel %vm1951, %v7767, %v7768
    %v7827 = vsel %vm1951, %v7765, %v7766
    %v7828 = vsel %vm1951, %v7764, %v7765
    %v7829 = vsel %vm1951, %v7762, %v7763
    %v7830 = vsel %vm1951, %v7761, %v7762
    %v7831 = vsel %vm1951, %v7759, %v7760
    %v7832 = vsel %vm1951, %v7758, %v7759
    %v7833 = vsel %vm1951, %v7756, %v7757
    %v7834 = vsel %vm1951, %v7755, %v7756
    %v7835 = vsel %vm1951, %v7753, %v7754
    %v7836 = vsel %vm1951, %v7752, %v7753
    %v7837 = vsel %vm1951, %v7750, %v7751
    %v7838 = vsel %vm1951, %v7749, %v7750
    %v7839 = vsel %vm1951, %v7747, %v7748
    %v7840 = vsel %vm1951, %v7746, %v7747
    %v7841 = vsel %vm1951, %v7744, %v7745
    %v7842 = vsel %vm1951, %v7743, %v7744
    %v7843 = vsel %vm1951, %v7741, %v7742
    %v7844 = vsel %vm1951, %v7740, %v7741
    %v7845 = vsel %vm1951, %v7738, %v7739
    %v7846 = vsel %vm1951, %v7737, %v7738
    %v7847 = vsel %vm1951, %v7735, %v7736
    %v7848 = vsel %vm1951, %v7734, %v7735
    %v7849 = vsel %vm1951, %v7732, %v7733
    %v7850 = vsel %vm1951, %v7731, %v7732
    %v7851 = vsel %vm1951, %v7729, %v7730
    %v7852 = vsel %vm1951, %v7728, %v7729
    %v7853 = vsel %vm1951, %v7726, %v7727
    %v7854 = vsel %vm1951, %v7725, %v7726
    %v7855 = vsel %vm1951, %v7723, %v7724
    %v7856 = vsel %vm1951, %v7722, %v7723
    %v7857 = vsel %vm1951, %v7720, %v7721
    %v7858 = vsel %vm1951, %v7719, %v7720
    %v7859 = vsel %vm1951, %v7717, %v7718
    %v7860 = vsel %vm1951, %v7716, %v7717
    %v7861 = vsel %vm1951, %v7714, %v7715
    %v7862 = vsel %vm1951, %v7713, %v7714
    %v7863 = vsel %vm1951, %v7711, %v7712
    %v7864 = vsel %vm1951, %v7710, %v7711
    %v7865 = vsel %vm1951, %v7708, %v7709
    %v7866 = vsel %vm1951, %v7707, %v7708
    %v7867 = vadd.f32 %v7643, %v7866
    %v7868 = vadd.f32 %v7644, %v7865
    %v7869 = vadd.f32 %v7645, %v7864
    %v7870 = vadd.f32 %v7646, %v7863
    %v7871 = vadd.f32 %v7647, %v7862
    %v7872 = vadd.f32 %v7648, %v7861
    %v7873 = vadd.f32 %v7649, %v7860
    %v7874 = vadd.f32 %v7650, %v7859
    %v7875 = vadd.f32 %v7651, %v7858
    %v7876 = vadd.f32 %v7652, %v7857
    %v7877 = vadd.f32 %v7653, %v7856
    %v7878 = vadd.f32 %v7654, %v7855
    %v7879 = vadd.f32 %v7655, %v7854
    %v7880 = vadd.f32 %v7656, %v7853
    %v7881 = vadd.f32 %v7657, %v7852
    %v7882 = vadd.f32 %v7658, %v7851
    %v7883 = vadd.f32 %v7659, %v7850
    %v7884 = vadd.f32 %v7660, %v7849
    %v7885 = vadd.f32 %v7661, %v7848
    %v7886 = vadd.f32 %v7662, %v7847
    %v7887 = vadd.f32 %v7663, %v7846
    %v7888 = vadd.f32 %v7664, %v7845
    %v7889 = vadd.f32 %v7665, %v7844
    %v7890 = vadd.f32 %v7666, %v7843
    %v7891 = vadd.f32 %v7667, %v7842
    %v7892 = vadd.f32 %v7668, %v7841
    %v7893 = vadd.f32 %v7669, %v7840
    %v7894 = vadd.f32 %v7670, %v7839
    %v7895 = vadd.f32 %v7671, %v7838
    %v7896 = vadd.f32 %v7672, %v7837
    %v7897 = vadd.f32 %v7673, %v7836
    %v7898 = vadd.f32 %v7674, %v7835
    %v7899 = vadd.f32 %v7675, %v7834
    %v7900 = vadd.f32 %v7676, %v7833
    %v7901 = vadd.f32 %v7677, %v7832
    %v7902 = vadd.f32 %v7678, %v7831
    %v7903 = vadd.f32 %v7679, %v7830
    %v7904 = vadd.f32 %v7680, %v7829
    %v7905 = vadd.f32 %v7681, %v7828
    %v7906 = vadd.f32 %v7682, %v7827
    %v7907 = vadd.f32 %v7683, %v7826
    %v7908 = vadd.f32 %v7684, %v7825
    %v7909 = vadd.f32 %v7685, %v7824
    %v7910 = vadd.f32 %v7686, %v7823
    %v7911 = vadd.f32 %v7687, %v7822
    %v7912 = vadd.f32 %v7688, %v7821
    %v7913 = vadd.f32 %v7689, %v7820
    %v7914 = vadd.f32 %v7690, %v7819
    %v7915 = vadd.f32 %v7691, %v7818
    %v7916 = vadd.f32 %v7692, %v7817
    %v7917 = vadd.f32 %v7693, %v7816
    %v7918 = vadd.f32 %v7694, %v7815
    %v7919 = vadd.f32 %v7695, %v7814
    %v7920 = vadd.f32 %v7696, %v7813
    %v7921 = vadd.f32 %v7697, %v7812
    %v7922 = vadd.f32 %v7698, %v7811
    %v7923 = vadd.f32 %v7699, %v7810
    %v7924 = vadd.f32 %v7700, %v7809
    %v7925 = vadd.f32 %v7701, %v7808
    %v7926 = vadd.f32 %v7702, %v7807
    %v7927 = vadd.f32 %v7703, %v7806
    %v7928 = vadd.f32 %v7704, %v7805
    %v7929 = vadd.f32 %v7705, %v7804
    %v7930 = vadd.f32 %v7706, %v7803
    %v7931 = vld [vmem:[%s240] sm:$0xf]
    %v7932 = vld [vmem:[%s240 + $0x4] sm:$0xf]
    %v7933 = vld [vmem:[%s240 + $0x8] sm:$0xf]
    %v7934 = vld [vmem:[%s240 + $0xc] sm:$0xf]
    %v7935 = vld [vmem:[%s240 + $0x10] sm:$0xf]
    %v7936 = vld [vmem:[%s240 + $0x14] sm:$0xf]
    %v7937 = vld [vmem:[%s240 + $0x18] sm:$0xf]
    %v7938 = vld [vmem:[%s240 + $0x1c] sm:$0xf]
    %v7939 = vld [vmem:[%s240 + $0x20] sm:$0xf]
    %v7940 = vld [vmem:[%s240 + $0x24] sm:$0xf]
    %v7941 = vld [vmem:[%s240 + $0x28] sm:$0xf]
    %v7942 = vld [vmem:[%s240 + $0x2c] sm:$0xf]
    %v7943 = vld [vmem:[%s240 + $0x30] sm:$0xf]
    %v7944 = vld [vmem:[%s240 + $0x34] sm:$0xf]
    %v7945 = vld [vmem:[%s240 + $0x38] sm:$0xf]
    %v7946 = vld [vmem:[%s240 + $0x3c] sm:$0xf]
    %v7947 = vld [vmem:[%s240 + $0x40] sm:$0xf]
    %v7948 = vld [vmem:[%s240 + $0x44] sm:$0xf]
    %v7949 = vld [vmem:[%s240 + $0x48] sm:$0xf]
    %v7950 = vld [vmem:[%s240 + $0x4c] sm:$0xf]
    %v7951 = vld [vmem:[%s240 + $0x50] sm:$0xf]
    %v7952 = vld [vmem:[%s240 + $0x54] sm:$0xf]
    %v7953 = vld [vmem:[%s240 + $0x58] sm:$0xf]
    %v7954 = vld [vmem:[%s240 + $0x5c] sm:$0xf]
    %v7955 = vld [vmem:[%s240 + $0x60] sm:$0xf]
    %v7956 = vld [vmem:[%s240 + $0x64] sm:$0xf]
    %v7957 = vld [vmem:[%s240 + $0x68] sm:$0xf]
    %v7958 = vld [vmem:[%s240 + $0x6c] sm:$0xf]
    %v7959 = vld [vmem:[%s240 + $0x70] sm:$0xf]
    %v7960 = vld [vmem:[%s240 + $0x74] sm:$0xf]
    %v7961 = vld [vmem:[%s240 + $0x78] sm:$0xf]
    %v7962 = vld [vmem:[%s240 + $0x7c] sm:$0xf]
    %v7963 = vld [vmem:[%s240 + $0x80] sm:$0xf]
    %v7964 = vld [vmem:[%s240 + $0x84] sm:$0xf]
    %v7965 = vld [vmem:[%s240 + $0x88] sm:$0xf]
    %v7966 = vld [vmem:[%s240 + $0x8c] sm:$0xf]
    %v7967 = vld [vmem:[%s240 + $0x90] sm:$0xf]
    %v7968 = vld [vmem:[%s240 + $0x94] sm:$0xf]
    %v7969 = vld [vmem:[%s240 + $0x98] sm:$0xf]
    %v7970 = vld [vmem:[%s240 + $0x9c] sm:$0xf]
    %v7971 = vld [vmem:[%s240 + $0xa0] sm:$0xf]
    %v7972 = vld [vmem:[%s240 + $0xa4] sm:$0xf]
    %v7973 = vld [vmem:[%s240 + $0xa8] sm:$0xf]
    %v7974 = vld [vmem:[%s240 + $0xac] sm:$0xf]
    %v7975 = vld [vmem:[%s240 + $0xb0] sm:$0xf]
    %v7976 = vld [vmem:[%s240 + $0xb4] sm:$0xf]
    %v7977 = vld [vmem:[%s240 + $0xb8] sm:$0xf]
    %v7978 = vld [vmem:[%s240 + $0xbc] sm:$0xf]
    %v7979 = vld [vmem:[%s240 + $0xd8] sm:$0xf]
    %v7980 = vld [vmem:[%s240 + $0xdc] sm:$0xf]
    %v7981 = vld [vmem:[%s240 + $0xe0] sm:$0xf]
    %v7982 = vld [vmem:[%s240 + $0xe4] sm:$0xf]
    %v7983 = vld [vmem:[%s240 + $0xe8] sm:$0xf]
    %v7984 = vld [vmem:[%s240 + $0xec] sm:$0xf]
    %v7985 = vld [vmem:[%s240 + $0xf0] sm:$0xf]
    %v7986 = vld [vmem:[%s240 + $0xf4] sm:$0xf]
    %v7987 = vld [vmem:[%s240 + $0xf8] sm:$0xf]
    %v7988 = vld [vmem:[%s240 + $0xfc] sm:$0xf]
    %v7989 = vld [vmem:[%s240 + $0x100] sm:$0xf]
    %v7990 = vld [vmem:[%s240 + $0x104] sm:$0xf]
    %v7991 = vld [vmem:[%s240 + $0x108] sm:$0xf]
    %v7992 = vld [vmem:[%s240 + $0x10c] sm:$0xf]
    %v7993 = vld [vmem:[%s240 + $0x110] sm:$0xf]
    %v7994 = vld [vmem:[%s240 + $0x114] sm:$0xf]
    %v7995 = vld [vmem:[%s240 + $0x118] sm:$0xf]
    %v7996 = vld [vmem:[%s240 + $0x11c] sm:$0xf]
    %v7997 = vld [vmem:[%s240 + $0x120] sm:$0xf]
    %v7998 = vld [vmem:[%s240 + $0x124] sm:$0xf]
    %v7999 = vld [vmem:[%s240 + $0x128] sm:$0xf]
    %v8000 = vld [vmem:[%s240 + $0x12c] sm:$0xf]
    %v8001 = vld [vmem:[%s240 + $0x130] sm:$0xf]
    %v8002 = vld [vmem:[%s240 + $0x134] sm:$0xf]
    %v8003 = vld [vmem:[%s240 + $0x138] sm:$0xf]
    %v8004 = vld [vmem:[%s240 + $0x13c] sm:$0xf]
    %v8005 = vld [vmem:[%s240 + $0x140] sm:$0xf]
    %v8006 = vld [vmem:[%s240 + $0x144] sm:$0xf]
    %v8007 = vld [vmem:[%s240 + $0x148] sm:$0xf]
    %v8008 = vld [vmem:[%s240 + $0x14c] sm:$0xf]
    %v8009 = vld [vmem:[%s240 + $0x150] sm:$0xf]
    %v8010 = vld [vmem:[%s240 + $0x154] sm:$0xf]
    %v8011 = vld [vmem:[%s240 + $0x158] sm:$0xf]
    %v8012 = vld [vmem:[%s240 + $0x15c] sm:$0xf]
    %v8013 = vld [vmem:[%s240 + $0x160] sm:$0xf]
    %v8014 = vld [vmem:[%s240 + $0x164] sm:$0xf]
    %v8015 = vld [vmem:[%s240 + $0x168] sm:$0xf]
    %v8016 = vld [vmem:[%s240 + $0x16c] sm:$0xf]
    %v8017 = vld [vmem:[%s240 + $0x170] sm:$0xf]
    %v8018 = vld [vmem:[%s240 + $0x174] sm:$0xf]
    %v8019 = vld [vmem:[%s240 + $0x178] sm:$0xf]
    %v8020 = vld [vmem:[%s240 + $0x17c] sm:$0xf]
    %v8021 = vld [vmem:[%s240 + $0x180] sm:$0xf]
    %v8022 = vld [vmem:[%s240 + $0x184] sm:$0xf]
    %v8023 = vld [vmem:[%s240 + $0x188] sm:$0xf]
    %v8024 = vld [vmem:[%s240 + $0x18c] sm:$0xf]
    %v8025 = vld [vmem:[%s240 + $0x190] sm:$0xf]
    %v8026 = vld [vmem:[%s240 + $0x194] sm:$0xf]
    %s8027 = scalar_lea.vmem [#allocation8], 192
    %v8028 = vld [vmem:[%s8027] sm:$0xff]
    %v8029 = vld [vmem:[%s8027 + $0x8] sm:$0xf]
    %v8030 = vld [vmem:[%s8027 + $0xc] sm:$0xff]
    %v8031 = vld [vmem:[%s8027 + $0x14] sm:$0xf]
    %v8032 = vld [vmem:[%s8027 + $0x18] sm:$0xff]
    %v8033 = vld [vmem:[%s8027 + $0x20] sm:$0xf]
    %v8034 = vld [vmem:[%s8027 + $0x24] sm:$0xff]
    %v8035 = vld [vmem:[%s8027 + $0x2c] sm:$0xf]
    %v8036 = vld [vmem:[%s8027 + $0x30] sm:$0xff]
    %v8037 = vld [vmem:[%s8027 + $0x38] sm:$0xf]
    %v8038 = vld [vmem:[%s8027 + $0x3c] sm:$0xff]
    %v8039 = vld [vmem:[%s8027 + $0x44] sm:$0xf]
    %v8040 = vld [vmem:[%s8027 + $0x48] sm:$0xff]
    %v8041 = vld [vmem:[%s8027 + $0x50] sm:$0xf]
    %v8042 = vld [vmem:[%s8027 + $0x54] sm:$0xff]
    %v8043 = vld [vmem:[%s8027 + $0x5c] sm:$0xf]
    %v8044 = vld [vmem:[%s8027 + $0x60] sm:$0xff]
    %v8045 = vld [vmem:[%s8027 + $0x68] sm:$0xf]
    %v8046 = vld [vmem:[%s8027 + $0x6c] sm:$0xff]
    %v8047 = vld [vmem:[%s8027 + $0x74] sm:$0xf]
    %v8048 = vld [vmem:[%s8027 + $0x78] sm:$0xff]
    %v8049 = vld [vmem:[%s8027 + $0x80] sm:$0xf]
    %v8050 = vld [vmem:[%s8027 + $0x84] sm:$0xff]
    %v8051 = vld [vmem:[%s8027 + $0x8c] sm:$0xf]
    %v8052 = vld [vmem:[%s8027 + $0x90] sm:$0xff]
    %v8053 = vld [vmem:[%s8027 + $0x98] sm:$0xf]
    %v8054 = vld [vmem:[%s8027 + $0x9c] sm:$0xff]
    %v8055 = vld [vmem:[%s8027 + $0xa4] sm:$0xf]
    %v8056 = vld [vmem:[%s8027 + $0xa8] sm:$0xff]
    %v8057 = vld [vmem:[%s8027 + $0xb0] sm:$0xf]
    %v8058 = vld [vmem:[%s8027 + $0xb4] sm:$0xff]
    %v8059 = vld [vmem:[%s8027 + $0xbc] sm:$0xf]
    %v8156 = vunpack.c.l.b16 %v7931
    %v8157 = vunpack.c.l.b16 %v7932
    %v8158 = vunpack.c.l.b16 %v7933
    %v8159 = vunpack.c.l.b16 %v7934
    %v8160 = vunpack.c.l.b16 %v7935
    %v8161 = vunpack.c.l.b16 %v7936
    %v8162 = vunpack.c.l.b16 %v7937
    %v8163 = vunpack.c.l.b16 %v7938
    %v8164 = vunpack.c.l.b16 %v7939
    %v8165 = vunpack.c.l.b16 %v7940
    %v8166 = vunpack.c.l.b16 %v7941
    %v8167 = vunpack.c.l.b16 %v7942
    %v8168 = vunpack.c.l.b16 %v7943
    %v8169 = vunpack.c.l.b16 %v7944
    %v8170 = vunpack.c.l.b16 %v7945
    %v8171 = vunpack.c.l.b16 %v7946
    %v8172 = vunpack.c.l.b16 %v7947
    %v8173 = vunpack.c.l.b16 %v7948
    %v8174 = vunpack.c.l.b16 %v7949
    %v8175 = vunpack.c.l.b16 %v7950
    %v8176 = vunpack.c.l.b16 %v7951
    %v8177 = vunpack.c.l.b16 %v7952
    %v8178 = vunpack.c.l.b16 %v7953
    %v8179 = vunpack.c.l.b16 %v7954
    %v8180 = vunpack.c.l.b16 %v7955
    %v8181 = vunpack.c.l.b16 %v7956
    %v8182 = vunpack.c.l.b16 %v7957
    %v8183 = vunpack.c.l.b16 %v7958
    %v8184 = vunpack.c.l.b16 %v7959
    %v8185 = vunpack.c.l.b16 %v7960
    %v8186 = vunpack.c.l.b16 %v7961
    %v8187 = vunpack.c.l.b16 %v7962
    %v8188 = vunpack.c.l.b16 %v7963
    %v8189 = vunpack.c.l.b16 %v7964
    %v8190 = vunpack.c.l.b16 %v7965
    %v8191 = vunpack.c.l.b16 %v7966
    %v8192 = vunpack.c.l.b16 %v7967
    %v8193 = vunpack.c.l.b16 %v7968
    %v8194 = vunpack.c.l.b16 %v7969
    %v8195 = vunpack.c.l.b16 %v7970
    %v8196 = vunpack.c.l.b16 %v7971
    %v8197 = vunpack.c.l.b16 %v7972
    %v8198 = vunpack.c.l.b16 %v7973
    %v8199 = vunpack.c.l.b16 %v7974
    %v8200 = vunpack.c.l.b16 %v7975
    %v8201 = vunpack.c.l.b16 %v7976
    %v8202 = vunpack.c.l.b16 %v7977
    %v8203 = vunpack.c.l.b16 %v7978
    %v8204 = vunpack.c.l.b16 %v7979
    %v8205 = vunpack.c.l.b16 %v7980
    %v8206 = vunpack.c.l.b16 %v7981
    %v8207 = vunpack.c.l.b16 %v7982
    %v8208 = vunpack.c.l.b16 %v7983
    %v8209 = vunpack.c.l.b16 %v7984
    %v8210 = vunpack.c.l.b16 %v7985
    %v8211 = vunpack.c.l.b16 %v7986
    %v8212 = vunpack.c.l.b16 %v7987
    %v8213 = vunpack.c.l.b16 %v7988
    %v8214 = vunpack.c.l.b16 %v7989
    %v8215 = vunpack.c.l.b16 %v7990
    %v8216 = vunpack.c.l.b16 %v7991
    %v8217 = vunpack.c.l.b16 %v7992
    %v8218 = vunpack.c.l.b16 %v7993
    %v8219 = vunpack.c.l.b16 %v7994
    %v8220 = vunpack.c.l.b16 %v7995
    %v8221 = vunpack.c.l.b16 %v7996
    %v8222 = vunpack.c.l.b16 %v7997
    %v8223 = vunpack.c.l.b16 %v7998
    %v8224 = vunpack.c.l.b16 %v7999
    %v8225 = vunpack.c.l.b16 %v8000
    %v8226 = vunpack.c.l.b16 %v8001
    %v8227 = vunpack.c.l.b16 %v8002
    %v8228 = vunpack.c.l.b16 %v8003
    %v8229 = vunpack.c.l.b16 %v8004
    %v8230 = vunpack.c.l.b16 %v8005
    %v8231 = vunpack.c.l.b16 %v8006
    %v8232 = vunpack.c.l.b16 %v8007
    %v8233 = vunpack.c.l.b16 %v8008
    %v8234 = vunpack.c.l.b16 %v8009
    %v8235 = vunpack.c.l.b16 %v8010
    %v8236 = vunpack.c.l.b16 %v8011
    %v8237 = vunpack.c.l.b16 %v8012
    %v8238 = vunpack.c.l.b16 %v8013
    %v8239 = vunpack.c.l.b16 %v8014
    %v8240 = vunpack.c.l.b16 %v8015
    %v8241 = vunpack.c.l.b16 %v8016
    %v8242 = vunpack.c.l.b16 %v8017
    %v8243 = vunpack.c.l.b16 %v8018
    %v8244 = vunpack.c.l.b16 %v8019
    %v8245 = vunpack.c.l.b16 %v8020
    %v8246 = vunpack.c.l.b16 %v8021
    %v8247 = vunpack.c.l.b16 %v8022
    %v8248 = vunpack.c.l.b16 %v8023
    %v8249 = vunpack.c.l.b16 %v8024
    %v8250 = vunpack.c.l.b16 %v8025
    %v8251 = vunpack.c.l.b16 %v8026
    %v8252 = vpack.c.b16 %v8157, %v8156
    %v8253 = vpack.c.b16 %v8159, %v8158
    %v8254 = vpack.c.b16 %v8161, %v8160
    %v8255 = vpack.c.b16 %v8163, %v8162
    %v8256 = vpack.c.b16 %v8165, %v8164
    %v8257 = vpack.c.b16 %v8167, %v8166
    %v8258 = vpack.c.b16 %v8169, %v8168
    %v8259 = vpack.c.b16 %v8171, %v8170
    %v8260 = vpack.c.b16 %v8173, %v8172
    %v8261 = vpack.c.b16 %v8175, %v8174
    %v8262 = vpack.c.b16 %v8177, %v8176
    %v8263 = vpack.c.b16 %v8179, %v8178
    %v8264 = vpack.c.b16 %v8181, %v8180
    %v8265 = vpack.c.b16 %v8183, %v8182
    %v8266 = vpack.c.b16 %v8185, %v8184
    %v8267 = vpack.c.b16 %v8187, %v8186
    %v8268 = vpack.c.b16 %v8189, %v8188
    %v8269 = vpack.c.b16 %v8191, %v8190
    %v8270 = vpack.c.b16 %v8193, %v8192
    %v8271 = vpack.c.b16 %v8195, %v8194
    %v8272 = vpack.c.b16 %v8197, %v8196
    %v8273 = vpack.c.b16 %v8199, %v8198
    %v8274 = vpack.c.b16 %v8201, %v8200
    %v8275 = vpack.c.b16 %v8203, %v8202
    %v8276 = vpack.c.b16 %v8205, %v8204
    %v8277 = vpack.c.b16 %v8207, %v8206
    %v8278 = vpack.c.b16 %v8209, %v8208
    %v8279 = vpack.c.b16 %v8211, %v8210
    %v8280 = vpack.c.b16 %v8213, %v8212
    %v8281 = vpack.c.b16 %v8215, %v8214
    %v8282 = vpack.c.b16 %v8217, %v8216
    %v8283 = vpack.c.b16 %v8219, %v8218
    %v8284 = vpack.c.b16 %v8221, %v8220
    %v8285 = vpack.c.b16 %v8223, %v8222
    %v8286 = vpack.c.b16 %v8225, %v8224
    %v8287 = vpack.c.b16 %v8227, %v8226
    %v8288 = vpack.c.b16 %v8229, %v8228
    %v8289 = vpack.c.b16 %v8231, %v8230
    %v8290 = vpack.c.b16 %v8233, %v8232
    %v8291 = vpack.c.b16 %v8235, %v8234
    %v8292 = vpack.c.b16 %v8237, %v8236
    %v8293 = vpack.c.b16 %v8239, %v8238
    %v8294 = vpack.c.b16 %v8241, %v8240
    %v8295 = vpack.c.b16 %v8243, %v8242
    %v8296 = vpack.c.b16 %v8245, %v8244
    %v8297 = vpack.c.b16 %v8247, %v8246
    %v8298 = vpack.c.b16 %v8249, %v8248
    %v8299 = vpack.c.b16 %v8251, %v8250
    %v8380 = vunpack.c.l.b16 %v8028
    %v8381 = vunpack.c.h.b16 %v8028
    %v8382 = vunpack.c.l.b16 %v8029
    %v8383 = vunpack.c.l.b16 %v8030
    %v8384 = vunpack.c.h.b16 %v8030
    %v8385 = vunpack.c.l.b16 %v8031
    %v8386 = vunpack.c.l.b16 %v8032
    %v8387 = vunpack.c.h.b16 %v8032
    %v8388 = vunpack.c.l.b16 %v8033
    %v8389 = vunpack.c.l.b16 %v8034
    %v8390 = vunpack.c.h.b16 %v8034
    %v8391 = vunpack.c.l.b16 %v8035
    %v8392 = vunpack.c.l.b16 %v8036
    %v8393 = vunpack.c.h.b16 %v8036
    %v8394 = vunpack.c.l.b16 %v8037
    %v8395 = vunpack.c.l.b16 %v8038
    %v8396 = vunpack.c.h.b16 %v8038
    %v8397 = vunpack.c.l.b16 %v8039
    %v8398 = vunpack.c.l.b16 %v8040
    %v8399 = vunpack.c.h.b16 %v8040
    %v8400 = vunpack.c.l.b16 %v8041
    %v8401 = vunpack.c.l.b16 %v8042
    %v8402 = vunpack.c.h.b16 %v8042
    %v8403 = vunpack.c.l.b16 %v8043
    %v8404 = vunpack.c.l.b16 %v8044
    %v8405 = vunpack.c.h.b16 %v8044
    %v8406 = vunpack.c.l.b16 %v8045
    %v8407 = vunpack.c.l.b16 %v8046
    %v8408 = vunpack.c.h.b16 %v8046
    %v8409 = vunpack.c.l.b16 %v8047
    %v8410 = vunpack.c.l.b16 %v8048
    %v8411 = vunpack.c.h.b16 %v8048
    %v8412 = vunpack.c.l.b16 %v8049
    %v8413 = vunpack.c.l.b16 %v8050
    %v8414 = vunpack.c.h.b16 %v8050
    %v8415 = vunpack.c.l.b16 %v8051
    %v8416 = vunpack.c.l.b16 %v8052
    %v8417 = vunpack.c.h.b16 %v8052
    %v8418 = vunpack.c.l.b16 %v8053
    %v8419 = vunpack.c.l.b16 %v8054
    %v8420 = vunpack.c.h.b16 %v8054
    %v8421 = vunpack.c.l.b16 %v8055
    %v8422 = vunpack.c.l.b16 %v8056
    %v8423 = vunpack.c.h.b16 %v8056
    %v8424 = vunpack.c.l.b16 %v8057
    %v8425 = vunpack.c.l.b16 %v8058
    %v8426 = vunpack.c.h.b16 %v8058
    %v8427 = vunpack.c.l.b16 %v8059
    %v8428 = vpack.c.b16 %v8383, %v8380
    %v8429 = vpack.c.b16 %v8384, %v8381
    %v8430 = vpack.c.b16 %v8385, %v8382
    %v8431 = vpack.c.b16 %v8389, %v8386
    %v8432 = vpack.c.b16 %v8390, %v8387
    %v8433 = vpack.c.b16 %v8391, %v8388
    %v8434 = vpack.c.b16 %v8395, %v8392
    %v8435 = vpack.c.b16 %v8396, %v8393
    %v8436 = vpack.c.b16 %v8397, %v8394
    %v8437 = vpack.c.b16 %v8401, %v8398
    %v8438 = vpack.c.b16 %v8402, %v8399
    %v8439 = vpack.c.b16 %v8403, %v8400
    %v8440 = vpack.c.b16 %v8407, %v8404
    %v8441 = vpack.c.b16 %v8408, %v8405
    %v8442 = vpack.c.b16 %v8409, %v8406
    %v8443 = vpack.c.b16 %v8413, %v8410
    %v8444 = vpack.c.b16 %v8414, %v8411
    %v8445 = vpack.c.b16 %v8415, %v8412
    %v8446 = vpack.c.b16 %v8419, %v8416
    %v8447 = vpack.c.b16 %v8420, %v8417
    %v8448 = vpack.c.b16 %v8421, %v8418
    %v8449 = vpack.c.b16 %v8425, %v8422
    %v8450 = vpack.c.b16 %v8426, %v8423
    %v8451 = vpack.c.b16 %v8427, %v8424
    %8476 = vmatpush.bf16.msra.mxu0 %v8449
    %8477 = vmatpush.bf16.msra.mxu0 %v8446
    %8478 = vmatpush.bf16.msra.mxu0 %v8443
    %8479 = vmatpush.bf16.msra.mxu0 %v8440
    %8480 = vmatpush.bf16.msra.mxu0 %v8437
    %8481 = vmatpush.bf16.msra.mxu0 %v8434
    %8482 = vmatpush.bf16.msra.mxu0 %v8431
    %8483 = vmatpush.bf16.msra.mxu0 %v8428
    %8484 = vmatmul.bf16.gmra.mxu0 %v8252
    %v8485 = vpop.f32.mrf.mxu0
    %v8486 = vadd.f32 0.0, %v8485
    %v8487 = vpop.f32.mrf.mxu0
    %v8488 = vadd.f32 0.0, %v8487
    %8489 = vmatmul.bf16.gmra.mxu0 %v8253
    %v8490 = vpop.f32.mrf.mxu0
    %v8491 = vadd.f32 0.0, %v8490
    %v8492 = vpop.f32.mrf.mxu0
    %v8493 = vadd.f32 0.0, %v8492
    %8494 = vmatmul.bf16.gmra.mxu0 %v8254
    %v8495 = vpop.f32.mrf.mxu0
    %v8496 = vadd.f32 0.0, %v8495
    %v8497 = vpop.f32.mrf.mxu0
    %v8498 = vadd.f32 0.0, %v8497
    %8499 = vmatmul.bf16.gmra.mxu0 %v8255
    %v8500 = vpop.f32.mrf.mxu0
    %v8501 = vadd.f32 0.0, %v8500
    %v8502 = vpop.f32.mrf.mxu0
    %v8503 = vadd.f32 0.0, %v8502
    %8504 = vmatmul.bf16.gmra.mxu0 %v8256
    %v8505 = vpop.f32.mrf.mxu0
    %v8506 = vadd.f32 0.0, %v8505
    %v8507 = vpop.f32.mrf.mxu0
    %v8508 = vadd.f32 0.0, %v8507
    %8509 = vmatmul.bf16.gmra.mxu0 %v8257
    %v8510 = vpop.f32.mrf.mxu0
    %v8511 = vadd.f32 0.0, %v8510
    %v8512 = vpop.f32.mrf.mxu0
    %v8513 = vadd.f32 0.0, %v8512
    %8514 = vmatmul.bf16.gmra.mxu0 %v8258
    %v8515 = vpop.f32.mrf.mxu0
    %v8516 = vadd.f32 0.0, %v8515
    %v8517 = vpop.f32.mrf.mxu0
    %v8518 = vadd.f32 0.0, %v8517
    %8519 = vmatmul.bf16.gmra.mxu0 %v8259
    %v8520 = vpop.f32.mrf.mxu0
    %v8521 = vadd.f32 0.0, %v8520
    %v8522 = vpop.f32.mrf.mxu0
    %v8523 = vadd.f32 0.0, %v8522
    %8524 = vmatmul.bf16.gmra.mxu0 %v8260
    %v8525 = vpop.f32.mrf.mxu0
    %v8526 = vadd.f32 0.0, %v8525
    %v8527 = vpop.f32.mrf.mxu0
    %v8528 = vadd.f32 0.0, %v8527
    %8529 = vmatmul.bf16.gmra.mxu0 %v8261
    %v8530 = vpop.f32.mrf.mxu0
    %v8531 = vadd.f32 0.0, %v8530
    %v8532 = vpop.f32.mrf.mxu0
    %v8533 = vadd.f32 0.0, %v8532
    %8534 = vmatmul.bf16.gmra.mxu0 %v8262
    %v8535 = vpop.f32.mrf.mxu0
    %v8536 = vadd.f32 0.0, %v8535
    %v8537 = vpop.f32.mrf.mxu0
    %v8538 = vadd.f32 0.0, %v8537
    %8539 = vmatmul.bf16.gmra.mxu0 %v8263
    %v8540 = vpop.f32.mrf.mxu0
    %v8541 = vadd.f32 0.0, %v8540
    %v8542 = vpop.f32.mrf.mxu0
    %v8543 = vadd.f32 0.0, %v8542
    %8544 = vmatmul.bf16.gmra.mxu0 %v8264
    %v8545 = vpop.f32.mrf.mxu0
    %v8546 = vadd.f32 0.0, %v8545
    %v8547 = vpop.f32.mrf.mxu0
    %v8548 = vadd.f32 0.0, %v8547
    %8549 = vmatmul.bf16.gmra.mxu0 %v8265
    %v8550 = vpop.f32.mrf.mxu0
    %v8551 = vadd.f32 0.0, %v8550
    %v8552 = vpop.f32.mrf.mxu0
    %v8553 = vadd.f32 0.0, %v8552
    %8554 = vmatmul.bf16.gmra.mxu0 %v8266
    %v8555 = vpop.f32.mrf.mxu0
    %v8556 = vadd.f32 0.0, %v8555
    %v8557 = vpop.f32.mrf.mxu0
    %v8558 = vadd.f32 0.0, %v8557
    %8559 = vmatmul.bf16.gmra.mxu0 %v8267
    %v8560 = vpop.f32.mrf.mxu0
    %v8561 = vadd.f32 0.0, %v8560
    %v8562 = vpop.f32.mrf.mxu0
    %v8563 = vadd.f32 0.0, %v8562
    %8564 = vmatmul.bf16.gmra.mxu0 %v8268
    %v8565 = vpop.f32.mrf.mxu0
    %v8566 = vadd.f32 0.0, %v8565
    %v8567 = vpop.f32.mrf.mxu0
    %v8568 = vadd.f32 0.0, %v8567
    %8569 = vmatmul.bf16.gmra.mxu0 %v8269
    %v8570 = vpop.f32.mrf.mxu0
    %v8571 = vadd.f32 0.0, %v8570
    %v8572 = vpop.f32.mrf.mxu0
    %v8573 = vadd.f32 0.0, %v8572
    %8574 = vmatmul.bf16.gmra.mxu0 %v8270
    %v8575 = vpop.f32.mrf.mxu0
    %v8576 = vadd.f32 0.0, %v8575
    %v8577 = vpop.f32.mrf.mxu0
    %v8578 = vadd.f32 0.0, %v8577
    %8579 = vmatmul.bf16.gmra.mxu0 %v8271
    %v8580 = vpop.f32.mrf.mxu0
    %v8581 = vadd.f32 0.0, %v8580
    %v8582 = vpop.f32.mrf.mxu0
    %v8583 = vadd.f32 0.0, %v8582
    %8584 = vmatmul.bf16.gmra.mxu0 %v8272
    %v8585 = vpop.f32.mrf.mxu0
    %v8586 = vadd.f32 0.0, %v8585
    %v8587 = vpop.f32.mrf.mxu0
    %v8588 = vadd.f32 0.0, %v8587
    %8589 = vmatmul.bf16.gmra.mxu0 %v8273
    %v8590 = vpop.f32.mrf.mxu0
    %v8591 = vadd.f32 0.0, %v8590
    %v8592 = vpop.f32.mrf.mxu0
    %v8593 = vadd.f32 0.0, %v8592
    %8594 = vmatmul.bf16.gmra.mxu0 %v8274
    %v8595 = vpop.f32.mrf.mxu0
    %v8596 = vadd.f32 0.0, %v8595
    %v8597 = vpop.f32.mrf.mxu0
    %v8598 = vadd.f32 0.0, %v8597
    %8599 = vmatmul.bf16.gmra.mxu0 %v8275
    %v8600 = vpop.f32.mrf.mxu0
    %v8601 = vadd.f32 0.0, %v8600
    %v8602 = vpop.f32.mrf.mxu0
    %v8603 = vadd.f32 0.0, %v8602
    %8604 = vmatmul.bf16.gmra.mxu0 %v8276
    %v8605 = vpop.f32.mrf.mxu0
    %v8606 = vadd.f32 0.0, %v8605
    %v8607 = vpop.f32.mrf.mxu0
    %v8608 = vadd.f32 0.0, %v8607
    %8609 = vmatmul.bf16.gmra.mxu0 %v8277
    %v8610 = vpop.f32.mrf.mxu0
    %v8611 = vadd.f32 0.0, %v8610
    %v8612 = vpop.f32.mrf.mxu0
    %v8613 = vadd.f32 0.0, %v8612
    %8614 = vmatmul.bf16.gmra.mxu0 %v8278
    %v8615 = vpop.f32.mrf.mxu0
    %v8616 = vadd.f32 0.0, %v8615
    %v8617 = vpop.f32.mrf.mxu0
    %v8618 = vadd.f32 0.0, %v8617
    %8619 = vmatmul.bf16.gmra.mxu0 %v8279
    %v8620 = vpop.f32.mrf.mxu0
    %v8621 = vadd.f32 0.0, %v8620
    %v8622 = vpop.f32.mrf.mxu0
    %v8623 = vadd.f32 0.0, %v8622
    %8624 = vmatmul.bf16.gmra.mxu0 %v8280
    %v8625 = vpop.f32.mrf.mxu0
    %v8626 = vadd.f32 0.0, %v8625
    %v8627 = vpop.f32.mrf.mxu0
    %v8628 = vadd.f32 0.0, %v8627
    %8629 = vmatmul.bf16.gmra.mxu0 %v8281
    %v8630 = vpop.f32.mrf.mxu0
    %v8631 = vadd.f32 0.0, %v8630
    %v8632 = vpop.f32.mrf.mxu0
    %v8633 = vadd.f32 0.0, %v8632
    %8634 = vmatmul.bf16.gmra.mxu0 %v8282
    %v8635 = vpop.f32.mrf.mxu0
    %v8636 = vadd.f32 0.0, %v8635
    %v8637 = vpop.f32.mrf.mxu0
    %v8638 = vadd.f32 0.0, %v8637
    %8639 = vmatmul.bf16.gmra.mxu0 %v8283
    %v8640 = vpop.f32.mrf.mxu0
    %v8641 = vadd.f32 0.0, %v8640
    %v8642 = vpop.f32.mrf.mxu0
    %v8643 = vadd.f32 0.0, %v8642
    %8644 = vmatmul.bf16.gmra.mxu0 %v8284
    %v8645 = vpop.f32.mrf.mxu0
    %v8646 = vadd.f32 0.0, %v8645
    %v8647 = vpop.f32.mrf.mxu0
    %v8648 = vadd.f32 0.0, %v8647
    %8649 = vmatmul.bf16.gmra.mxu0 %v8285
    %v8650 = vpop.f32.mrf.mxu0
    %v8651 = vadd.f32 0.0, %v8650
    %v8652 = vpop.f32.mrf.mxu0
    %v8653 = vadd.f32 0.0, %v8652
    %8654 = vmatmul.bf16.gmra.mxu0 %v8286
    %v8655 = vpop.f32.mrf.mxu0
    %v8656 = vadd.f32 0.0, %v8655
    %v8657 = vpop.f32.mrf.mxu0
    %v8658 = vadd.f32 0.0, %v8657
    %8659 = vmatmul.bf16.gmra.mxu0 %v8287
    %v8660 = vpop.f32.mrf.mxu0
    %v8661 = vadd.f32 0.0, %v8660
    %v8662 = vpop.f32.mrf.mxu0
    %v8663 = vadd.f32 0.0, %v8662
    %8664 = vmatmul.bf16.gmra.mxu0 %v8288
    %v8665 = vpop.f32.mrf.mxu0
    %v8666 = vadd.f32 0.0, %v8665
    %v8667 = vpop.f32.mrf.mxu0
    %v8668 = vadd.f32 0.0, %v8667
    %8669 = vmatmul.bf16.gmra.mxu0 %v8289
    %v8670 = vpop.f32.mrf.mxu0
    %v8671 = vadd.f32 0.0, %v8670
    %v8672 = vpop.f32.mrf.mxu0
    %v8673 = vadd.f32 0.0, %v8672
    %8674 = vmatmul.bf16.gmra.mxu0 %v8290
    %v8675 = vpop.f32.mrf.mxu0
    %v8676 = vadd.f32 0.0, %v8675
    %v8677 = vpop.f32.mrf.mxu0
    %v8678 = vadd.f32 0.0, %v8677
    %8679 = vmatmul.bf16.gmra.mxu0 %v8291
    %v8680 = vpop.f32.mrf.mxu0
    %v8681 = vadd.f32 0.0, %v8680
    %v8682 = vpop.f32.mrf.mxu0
    %v8683 = vadd.f32 0.0, %v8682
    %8684 = vmatmul.bf16.gmra.mxu0 %v8292
    %v8685 = vpop.f32.mrf.mxu0
    %v8686 = vadd.f32 0.0, %v8685
    %v8687 = vpop.f32.mrf.mxu0
    %v8688 = vadd.f32 0.0, %v8687
    %8689 = vmatmul.bf16.gmra.mxu0 %v8293
    %v8690 = vpop.f32.mrf.mxu0
    %v8691 = vadd.f32 0.0, %v8690
    %v8692 = vpop.f32.mrf.mxu0
    %v8693 = vadd.f32 0.0, %v8692
    %8694 = vmatmul.bf16.gmra.mxu0 %v8294
    %v8695 = vpop.f32.mrf.mxu0
    %v8696 = vadd.f32 0.0, %v8695
    %v8697 = vpop.f32.mrf.mxu0
    %v8698 = vadd.f32 0.0, %v8697
    %8699 = vmatmul.bf16.gmra.mxu0 %v8295
    %v8700 = vpop.f32.mrf.mxu0
    %v8701 = vadd.f32 0.0, %v8700
    %v8702 = vpop.f32.mrf.mxu0
    %v8703 = vadd.f32 0.0, %v8702
    %8704 = vmatmul.bf16.gmra.mxu0 %v8296
    %v8705 = vpop.f32.mrf.mxu0
    %v8706 = vadd.f32 0.0, %v8705
    %v8707 = vpop.f32.mrf.mxu0
    %v8708 = vadd.f32 0.0, %v8707
    %8709 = vmatmul.bf16.gmra.mxu0 %v8297
    %v8710 = vpop.f32.mrf.mxu0
    %v8711 = vadd.f32 0.0, %v8710
    %v8712 = vpop.f32.mrf.mxu0
    %v8713 = vadd.f32 0.0, %v8712
    %8714 = vmatmul.bf16.gmra.mxu0 %v8298
    %v8715 = vpop.f32.mrf.mxu0
    %v8716 = vadd.f32 0.0, %v8715
    %v8717 = vpop.f32.mrf.mxu0
    %v8718 = vadd.f32 0.0, %v8717
    %8719 = vmatmul.bf16.gmra.mxu0 %v8299
    %v8720 = vpop.f32.mrf.mxu0
    %v8721 = vadd.f32 0.0, %v8720
    %v8722 = vpop.f32.mrf.mxu0
    %v8723 = vadd.f32 0.0, %v8722
    %8724 = vdwg.mxu0
    %8725 = vmatpush.bf16.msra.mxu0 %v8450
    %8726 = vmatpush.bf16.msra.mxu0 %v8447
    %8727 = vmatpush.bf16.msra.mxu0 %v8444
    %8728 = vmatpush.bf16.msra.mxu0 %v8441
    %8729 = vmatpush.bf16.msra.mxu0 %v8438
    %8730 = vmatpush.bf16.msra.mxu0 %v8435
    %8731 = vmatpush.bf16.msra.mxu0 %v8432
    %8732 = vmatpush.bf16.msra.mxu0 %v8429
    %8733 = vmatmul.bf16.gmra.mxu0 %v8252
    %v8734 = vpop.f32.mrf.mxu0
    %v8735 = vadd.f32 0.0, %v8734
    %v8736 = vpop.f32.mrf.mxu0
    %v8737 = vadd.f32 0.0, %v8736
    %8738 = vmatmul.bf16.gmra.mxu0 %v8253
    %v8739 = vpop.f32.mrf.mxu0
    %v8740 = vpop.f32.mrf.mxu0
    %v8741 = vadd.f32 0.0, %v8740
    %8742 = vmatmul.bf16.gmra.mxu0 %v8254
    %v8743 = vpop.f32.mrf.mxu0
    %v8744 = vadd.f32 0.0, %v8743
    %v8745 = vpop.f32.mrf.mxu0
    %8746 = vmatmul.bf16.gmra.mxu0 %v8255
    %v8747 = vpop.f32.mrf.mxu0
    %v8748 = vadd.f32 0.0, %v8747
    %v8749 = vpop.f32.mrf.mxu0
    %v8750 = vadd.f32 0.0, %v8749
    %8751 = vmatmul.bf16.gmra.mxu0 %v8256
    %v8752 = vpop.f32.mrf.mxu0
    %v8753 = vpop.f32.mrf.mxu0
    %v8754 = vadd.f32 0.0, %v8753
    %8755 = vmatmul.bf16.gmra.mxu0 %v8257
    %v8756 = vpop.f32.mrf.mxu0
    %v8757 = vadd.f32 0.0, %v8756
    %v8758 = vpop.f32.mrf.mxu0
    %8759 = vmatmul.bf16.gmra.mxu0 %v8258
    %v8760 = vpop.f32.mrf.mxu0
    %v8761 = vadd.f32 0.0, %v8760
    %v8762 = vpop.f32.mrf.mxu0
    %v8763 = vadd.f32 0.0, %v8762
    %8764 = vmatmul.bf16.gmra.mxu0 %v8259
    %v8765 = vpop.f32.mrf.mxu0
    %v8766 = vpop.f32.mrf.mxu0
    %v8767 = vadd.f32 0.0, %v8766
    %8768 = vmatmul.bf16.gmra.mxu0 %v8260
    %v8769 = vpop.f32.mrf.mxu0
    %v8770 = vadd.f32 0.0, %v8769
    %v8771 = vpop.f32.mrf.mxu0
    %8772 = vmatmul.bf16.gmra.mxu0 %v8261
    %v8773 = vpop.f32.mrf.mxu0
    %v8774 = vadd.f32 0.0, %v8773
    %v8775 = vpop.f32.mrf.mxu0
    %v8776 = vadd.f32 0.0, %v8775
    %8777 = vmatmul.bf16.gmra.mxu0 %v8262
    %v8778 = vpop.f32.mrf.mxu0
    %v8779 = vpop.f32.mrf.mxu0
    %v8780 = vadd.f32 0.0, %v8779
    %8781 = vmatmul.bf16.gmra.mxu0 %v8263
    %v8782 = vpop.f32.mrf.mxu0
    %v8783 = vadd.f32 0.0, %v8782
    %v8784 = vpop.f32.mrf.mxu0
    %8785 = vmatmul.bf16.gmra.mxu0 %v8264
    %v8786 = vpop.f32.mrf.mxu0
    %v8787 = vadd.f32 0.0, %v8786
    %v8788 = vpop.f32.mrf.mxu0
    %v8789 = vadd.f32 0.0, %v8788
    %8790 = vmatmul.bf16.gmra.mxu0 %v8265
    %v8791 = vpop.f32.mrf.mxu0
    %v8792 = vpop.f32.mrf.mxu0
    %v8793 = vadd.f32 0.0, %v8792
    %8794 = vmatmul.bf16.gmra.mxu0 %v8266
    %v8795 = vpop.f32.mrf.mxu0
    %v8796 = vadd.f32 0.0, %v8795
    %v8797 = vpop.f32.mrf.mxu0
    %8798 = vmatmul.bf16.gmra.mxu0 %v8267
    %v8799 = vpop.f32.mrf.mxu0
    %v8800 = vadd.f32 0.0, %v8799
    %v8801 = vpop.f32.mrf.mxu0
    %v8802 = vadd.f32 0.0, %v8801
    %8803 = vmatmul.bf16.gmra.mxu0 %v8268
    %v8804 = vpop.f32.mrf.mxu0
    %v8805 = vpop.f32.mrf.mxu0
    %v8806 = vadd.f32 0.0, %v8805
    %8807 = vmatmul.bf16.gmra.mxu0 %v8269
    %v8808 = vpop.f32.mrf.mxu0
    %v8809 = vadd.f32 0.0, %v8808
    %v8810 = vpop.f32.mrf.mxu0
    %8811 = vmatmul.bf16.gmra.mxu0 %v8270
    %v8812 = vpop.f32.mrf.mxu0
    %v8813 = vadd.f32 0.0, %v8812
    %v8814 = vpop.f32.mrf.mxu0
    %v8815 = vadd.f32 0.0, %v8814
    %8816 = vmatmul.bf16.gmra.mxu0 %v8271
    %v8817 = vpop.f32.mrf.mxu0
    %v8818 = vpop.f32.mrf.mxu0
    %v8819 = vadd.f32 0.0, %v8818
    %8820 = vmatmul.bf16.gmra.mxu0 %v8272
    %v8821 = vpop.f32.mrf.mxu0
    %v8822 = vadd.f32 0.0, %v8821
    %v8823 = vpop.f32.mrf.mxu0
    %8824 = vmatmul.bf16.gmra.mxu0 %v8273
    %v8825 = vpop.f32.mrf.mxu0
    %v8826 = vadd.f32 0.0, %v8825
    %v8827 = vpop.f32.mrf.mxu0
    %v8828 = vadd.f32 0.0, %v8827
    %8829 = vmatmul.bf16.gmra.mxu0 %v8274
    %v8830 = vpop.f32.mrf.mxu0
    %v8831 = vpop.f32.mrf.mxu0
    %v8832 = vadd.f32 0.0, %v8831
    %8833 = vmatmul.bf16.gmra.mxu0 %v8275
    %v8834 = vpop.f32.mrf.mxu0
    %v8835 = vadd.f32 0.0, %v8834
    %v8836 = vpop.f32.mrf.mxu0
    %8837 = vmatmul.bf16.gmra.mxu0 %v8276
    %v8838 = vpop.f32.mrf.mxu0
    %v8839 = vadd.f32 0.0, %v8838
    %v8840 = vpop.f32.mrf.mxu0
    %v8841 = vadd.f32 0.0, %v8840
    %8842 = vmatmul.bf16.gmra.mxu0 %v8277
    %v8843 = vpop.f32.mrf.mxu0
    %v8844 = vpop.f32.mrf.mxu0
    %v8845 = vadd.f32 0.0, %v8844
    %8846 = vmatmul.bf16.gmra.mxu0 %v8278
    %v8847 = vpop.f32.mrf.mxu0
    %v8848 = vadd.f32 0.0, %v8847
    %v8849 = vpop.f32.mrf.mxu0
    %8850 = vmatmul.bf16.gmra.mxu0 %v8279
    %v8851 = vpop.f32.mrf.mxu0
    %v8852 = vadd.f32 0.0, %v8851
    %v8853 = vpop.f32.mrf.mxu0
    %v8854 = vadd.f32 0.0, %v8853
    %8855 = vmatmul.bf16.gmra.mxu0 %v8280
    %v8856 = vpop.f32.mrf.mxu0
    %v8857 = vpop.f32.mrf.mxu0
    %v8858 = vadd.f32 0.0, %v8857
    %8859 = vmatmul.bf16.gmra.mxu0 %v8281
    %v8860 = vpop.f32.mrf.mxu0
    %v8861 = vadd.f32 0.0, %v8860
    %v8862 = vpop.f32.mrf.mxu0
    %8863 = vmatmul.bf16.gmra.mxu0 %v8282
    %v8864 = vpop.f32.mrf.mxu0
    %v8865 = vadd.f32 0.0, %v8864
    %v8866 = vpop.f32.mrf.mxu0
    %v8867 = vadd.f32 0.0, %v8866
    %8868 = vmatmul.bf16.gmra.mxu0 %v8283
    %v8869 = vpop.f32.mrf.mxu0
    %v8870 = vpop.f32.mrf.mxu0
    %v8871 = vadd.f32 0.0, %v8870
    %8872 = vmatmul.bf16.gmra.mxu0 %v8284
    %v8873 = vpop.f32.mrf.mxu0
    %v8874 = vadd.f32 0.0, %v8873
    %v8875 = vpop.f32.mrf.mxu0
    %8876 = vmatmul.bf16.gmra.mxu0 %v8285
    %v8877 = vpop.f32.mrf.mxu0
    %v8878 = vadd.f32 0.0, %v8877
    %v8879 = vpop.f32.mrf.mxu0
    %v8880 = vadd.f32 0.0, %v8879
    %8881 = vmatmul.bf16.gmra.mxu0 %v8286
    %v8882 = vpop.f32.mrf.mxu0
    %v8883 = vpop.f32.mrf.mxu0
    %v8884 = vadd.f32 0.0, %v8883
    %8885 = vmatmul.bf16.gmra.mxu0 %v8287
    %v8886 = vpop.f32.mrf.mxu0
    %v8887 = vadd.f32 0.0, %v8886
    %v8888 = vpop.f32.mrf.mxu0
    %8889 = vmatmul.bf16.gmra.mxu0 %v8288
    %v8890 = vpop.f32.mrf.mxu0
    %v8891 = vadd.f32 0.0, %v8890
    %v8892 = vpop.f32.mrf.mxu0
    %v8893 = vadd.f32 0.0, %v8892
    %8894 = vmatmul.bf16.gmra.mxu0 %v8289
    %v8895 = vpop.f32.mrf.mxu0
    %v8896 = vpop.f32.mrf.mxu0
    %v8897 = vadd.f32 0.0, %v8896
    %8898 = vmatmul.bf16.gmra.mxu0 %v8290
    %v8899 = vpop.f32.mrf.mxu0
    %v8900 = vadd.f32 0.0, %v8899
    %v8901 = vpop.f32.mrf.mxu0
    %8902 = vmatmul.bf16.gmra.mxu0 %v8291
    %v8903 = vpop.f32.mrf.mxu0
    %v8904 = vadd.f32 0.0, %v8903
    %v8905 = vpop.f32.mrf.mxu0
    %v8906 = vadd.f32 0.0, %v8905
    %8907 = vmatmul.bf16.gmra.mxu0 %v8292
    %v8908 = vpop.f32.mrf.mxu0
    %v8909 = vpop.f32.mrf.mxu0
    %v8910 = vadd.f32 0.0, %v8909
    %8911 = vmatmul.bf16.gmra.mxu0 %v8293
    %v8912 = vpop.f32.mrf.mxu0
    %v8913 = vadd.f32 0.0, %v8912
    %v8914 = vpop.f32.mrf.mxu0
    %8915 = vmatmul.bf16.gmra.mxu0 %v8294
    %v8916 = vpop.f32.mrf.mxu0
    %v8917 = vadd.f32 0.0, %v8916
    %v8918 = vpop.f32.mrf.mxu0
    %v8919 = vadd.f32 0.0, %v8918
    %8920 = vmatmul.bf16.gmra.mxu0 %v8295
    %v8921 = vpop.f32.mrf.mxu0
    %v8922 = vpop.f32.mrf.mxu0
    %v8923 = vadd.f32 0.0, %v8922
    %8924 = vmatmul.bf16.gmra.mxu0 %v8296
    %v8925 = vpop.f32.mrf.mxu0
    %v8926 = vadd.f32 0.0, %v8925
    %v8927 = vpop.f32.mrf.mxu0
    %8928 = vmatmul.bf16.gmra.mxu0 %v8297
    %v8929 = vpop.f32.mrf.mxu0
    %v8930 = vadd.f32 0.0, %v8929
    %v8931 = vpop.f32.mrf.mxu0
    %v8932 = vadd.f32 0.0, %v8931
    %8933 = vmatmul.bf16.gmra.mxu0 %v8298
    %v8934 = vpop.f32.mrf.mxu0
    %v8935 = vpop.f32.mrf.mxu0
    %v8936 = vadd.f32 0.0, %v8935
    %8937 = vmatmul.bf16.gmra.mxu0 %v8299
    %v8938 = vpop.f32.mrf.mxu0
    %v8939 = vadd.f32 0.0, %v8938
    %v8940 = vpop.f32.mrf.mxu0
    %8941 = vdwg.mxu0
    %8942 = vmatpush.bf16.msra.mxu0 %v8451
    %8943 = vmatpush.bf16.msra.mxu0 %v8448
    %8944 = vmatpush.bf16.msra.mxu0 %v8445
    %8945 = vmatpush.bf16.msra.mxu0 %v8442
    %8946 = vmatpush.bf16.msra.mxu0 %v8439
    %8947 = vmatpush.bf16.msra.mxu0 %v8436
    %8948 = vmatpush.bf16.msra.mxu0 %v8433
    %8949 = vmatpush.bf16.msra.mxu0 %v8430
    %8950 = vmatmul.bf16.gmra.mxu0 %v8252
    %v8951 = vpop.f32.mrf.mxu0
    %v8952 = vadd.f32 0.0, %v8951
    %v8953 = vpop.f32.mrf.mxu0
    %v8954 = vadd.f32 0.0, %v8953
    %8955 = vmatmul.bf16.gmra.mxu0 %v8253
    %v8956 = vpop.f32.mrf.mxu0
    %v8957 = vadd.f32 0.0, %v8956
    %v8958 = vpop.f32.mrf.mxu0
    %v8959 = vadd.f32 0.0, %v8958
    %8960 = vmatmul.bf16.gmra.mxu0 %v8254
    %v8961 = vpop.f32.mrf.mxu0
    %v8962 = vadd.f32 0.0, %v8961
    %v8963 = vpop.f32.mrf.mxu0
    %v8964 = vadd.f32 0.0, %v8963
    %8965 = vmatmul.bf16.gmra.mxu0 %v8255
    %v8966 = vpop.f32.mrf.mxu0
    %v8967 = vadd.f32 0.0, %v8966
    %v8968 = vpop.f32.mrf.mxu0
    %v8969 = vadd.f32 0.0, %v8968
    %8970 = vmatmul.bf16.gmra.mxu0 %v8256
    %v8971 = vpop.f32.mrf.mxu0
    %v8972 = vadd.f32 0.0, %v8971
    %v8973 = vpop.f32.mrf.mxu0
    %v8974 = vadd.f32 0.0, %v8973
    %8975 = vmatmul.bf16.gmra.mxu0 %v8257
    %v8976 = vpop.f32.mrf.mxu0
    %v8977 = vadd.f32 0.0, %v8976
    %v8978 = vpop.f32.mrf.mxu0
    %v8979 = vadd.f32 0.0, %v8978
    %8980 = vmatmul.bf16.gmra.mxu0 %v8258
    %v8981 = vpop.f32.mrf.mxu0
    %v8982 = vadd.f32 0.0, %v8981
    %v8983 = vpop.f32.mrf.mxu0
    %v8984 = vadd.f32 0.0, %v8983
    %8985 = vmatmul.bf16.gmra.mxu0 %v8259
    %v8986 = vpop.f32.mrf.mxu0
    %v8987 = vadd.f32 0.0, %v8986
    %v8988 = vpop.f32.mrf.mxu0
    %v8989 = vadd.f32 0.0, %v8988
    %8990 = vmatmul.bf16.gmra.mxu0 %v8260
    %v8991 = vpop.f32.mrf.mxu0
    %v8992 = vadd.f32 0.0, %v8991
    %v8993 = vpop.f32.mrf.mxu0
    %v8994 = vadd.f32 0.0, %v8993
    %8995 = vmatmul.bf16.gmra.mxu0 %v8261
    %v8996 = vpop.f32.mrf.mxu0
    %v8997 = vadd.f32 0.0, %v8996
    %v8998 = vpop.f32.mrf.mxu0
    %v8999 = vadd.f32 0.0, %v8998
    %9000 = vmatmul.bf16.gmra.mxu0 %v8262
    %v9001 = vpop.f32.mrf.mxu0
    %v9002 = vadd.f32 0.0, %v9001
    %v9003 = vpop.f32.mrf.mxu0
    %v9004 = vadd.f32 0.0, %v9003
    %9005 = vmatmul.bf16.gmra.mxu0 %v8263
    %v9006 = vpop.f32.mrf.mxu0
    %v9007 = vadd.f32 0.0, %v9006
    %v9008 = vpop.f32.mrf.mxu0
    %v9009 = vadd.f32 0.0, %v9008
    %9010 = vmatmul.bf16.gmra.mxu0 %v8264
    %v9011 = vpop.f32.mrf.mxu0
    %v9012 = vadd.f32 0.0, %v9011
    %v9013 = vpop.f32.mrf.mxu0
    %v9014 = vadd.f32 0.0, %v9013
    %9015 = vmatmul.bf16.gmra.mxu0 %v8265
    %v9016 = vpop.f32.mrf.mxu0
    %v9017 = vadd.f32 0.0, %v9016
    %v9018 = vpop.f32.mrf.mxu0
    %v9019 = vadd.f32 0.0, %v9018
    %9020 = vmatmul.bf16.gmra.mxu0 %v8266
    %v9021 = vpop.f32.mrf.mxu0
    %v9022 = vadd.f32 0.0, %v9021
    %v9023 = vpop.f32.mrf.mxu0
    %v9024 = vadd.f32 0.0, %v9023
    %9025 = vmatmul.bf16.gmra.mxu0 %v8267
    %v9026 = vpop.f32.mrf.mxu0
    %v9027 = vadd.f32 0.0, %v9026
    %v9028 = vpop.f32.mrf.mxu0
    %v9029 = vadd.f32 0.0, %v9028
    %9030 = vmatmul.bf16.gmra.mxu0 %v8268
    %v9031 = vpop.f32.mrf.mxu0
    %v9032 = vadd.f32 0.0, %v9031
    %v9033 = vpop.f32.mrf.mxu0
    %v9034 = vadd.f32 0.0, %v9033
    %9035 = vmatmul.bf16.gmra.mxu0 %v8269
    %v9036 = vpop.f32.mrf.mxu0
    %v9037 = vadd.f32 0.0, %v9036
    %v9038 = vpop.f32.mrf.mxu0
    %v9039 = vadd.f32 0.0, %v9038
    %9040 = vmatmul.bf16.gmra.mxu0 %v8270
    %v9041 = vpop.f32.mrf.mxu0
    %v9042 = vadd.f32 0.0, %v9041
    %v9043 = vpop.f32.mrf.mxu0
    %v9044 = vadd.f32 0.0, %v9043
    %9045 = vmatmul.bf16.gmra.mxu0 %v8271
    %v9046 = vpop.f32.mrf.mxu0
    %v9047 = vadd.f32 0.0, %v9046
    %v9048 = vpop.f32.mrf.mxu0
    %v9049 = vadd.f32 0.0, %v9048
    %9050 = vmatmul.bf16.gmra.mxu0 %v8272
    %v9051 = vpop.f32.mrf.mxu0
    %v9052 = vadd.f32 0.0, %v9051
    %v9053 = vpop.f32.mrf.mxu0
    %v9054 = vadd.f32 0.0, %v9053
    %9055 = vmatmul.bf16.gmra.mxu0 %v8273
    %v9056 = vpop.f32.mrf.mxu0
    %v9057 = vadd.f32 0.0, %v9056
    %v9058 = vpop.f32.mrf.mxu0
    %v9059 = vadd.f32 0.0, %v9058
    %9060 = vmatmul.bf16.gmra.mxu0 %v8274
    %v9061 = vpop.f32.mrf.mxu0
    %v9062 = vadd.f32 0.0, %v9061
    %v9063 = vpop.f32.mrf.mxu0
    %v9064 = vadd.f32 0.0, %v9063
    %9065 = vmatmul.bf16.gmra.mxu0 %v8275
    %v9066 = vpop.f32.mrf.mxu0
    %v9067 = vadd.f32 0.0, %v9066
    %v9068 = vpop.f32.mrf.mxu0
    %v9069 = vadd.f32 0.0, %v9068
    %9070 = vmatmul.bf16.gmra.mxu0 %v8276
    %v9071 = vpop.f32.mrf.mxu0
    %v9072 = vadd.f32 0.0, %v9071
    %v9073 = vpop.f32.mrf.mxu0
    %v9074 = vadd.f32 0.0, %v9073
    %9075 = vmatmul.bf16.gmra.mxu0 %v8277
    %v9076 = vpop.f32.mrf.mxu0
    %v9077 = vadd.f32 0.0, %v9076
    %v9078 = vpop.f32.mrf.mxu0
    %v9079 = vadd.f32 0.0, %v9078
    %9080 = vmatmul.bf16.gmra.mxu0 %v8278
    %v9081 = vpop.f32.mrf.mxu0
    %v9082 = vadd.f32 0.0, %v9081
    %v9083 = vpop.f32.mrf.mxu0
    %v9084 = vadd.f32 0.0, %v9083
    %9085 = vmatmul.bf16.gmra.mxu0 %v8279
    %v9086 = vpop.f32.mrf.mxu0
    %v9087 = vadd.f32 0.0, %v9086
    %v9088 = vpop.f32.mrf.mxu0
    %v9089 = vadd.f32 0.0, %v9088
    %9090 = vmatmul.bf16.gmra.mxu0 %v8280
    %v9091 = vpop.f32.mrf.mxu0
    %v9092 = vadd.f32 0.0, %v9091
    %v9093 = vpop.f32.mrf.mxu0
    %v9094 = vadd.f32 0.0, %v9093
    %9095 = vmatmul.bf16.gmra.mxu0 %v8281
    %v9096 = vpop.f32.mrf.mxu0
    %v9097 = vadd.f32 0.0, %v9096
    %v9098 = vpop.f32.mrf.mxu0
    %v9099 = vadd.f32 0.0, %v9098
    %9100 = vmatmul.bf16.gmra.mxu0 %v8282
    %v9101 = vpop.f32.mrf.mxu0
    %v9102 = vadd.f32 0.0, %v9101
    %v9103 = vpop.f32.mrf.mxu0
    %v9104 = vadd.f32 0.0, %v9103
    %9105 = vmatmul.bf16.gmra.mxu0 %v8283
    %v9106 = vpop.f32.mrf.mxu0
    %v9107 = vadd.f32 0.0, %v9106
    %v9108 = vpop.f32.mrf.mxu0
    %v9109 = vadd.f32 0.0, %v9108
    %9110 = vmatmul.bf16.gmra.mxu0 %v8284
    %v9111 = vpop.f32.mrf.mxu0
    %v9112 = vadd.f32 0.0, %v9111
    %v9113 = vpop.f32.mrf.mxu0
    %v9114 = vadd.f32 0.0, %v9113
    %9115 = vmatmul.bf16.gmra.mxu0 %v8285
    %v9116 = vpop.f32.mrf.mxu0
    %v9117 = vadd.f32 0.0, %v9116
    %v9118 = vpop.f32.mrf.mxu0
    %v9119 = vadd.f32 0.0, %v9118
    %9120 = vmatmul.bf16.gmra.mxu0 %v8286
    %v9121 = vpop.f32.mrf.mxu0
    %v9122 = vadd.f32 0.0, %v9121
    %v9123 = vpop.f32.mrf.mxu0
    %v9124 = vadd.f32 0.0, %v9123
    %9125 = vmatmul.bf16.gmra.mxu0 %v8287
    %v9126 = vpop.f32.mrf.mxu0
    %v9127 = vadd.f32 0.0, %v9126
    %v9128 = vpop.f32.mrf.mxu0
    %v9129 = vadd.f32 0.0, %v9128
    %9130 = vmatmul.bf16.gmra.mxu0 %v8288
    %v9131 = vpop.f32.mrf.mxu0
    %v9132 = vadd.f32 0.0, %v9131
    %v9133 = vpop.f32.mrf.mxu0
    %v9134 = vadd.f32 0.0, %v9133
    %9135 = vmatmul.bf16.gmra.mxu0 %v8289
    %v9136 = vpop.f32.mrf.mxu0
    %v9137 = vadd.f32 0.0, %v9136
    %v9138 = vpop.f32.mrf.mxu0
    %v9139 = vadd.f32 0.0, %v9138
    %9140 = vmatmul.bf16.gmra.mxu0 %v8290
    %v9141 = vpop.f32.mrf.mxu0
    %v9142 = vadd.f32 0.0, %v9141
    %v9143 = vpop.f32.mrf.mxu0
    %v9144 = vadd.f32 0.0, %v9143
    %9145 = vmatmul.bf16.gmra.mxu0 %v8291
    %v9146 = vpop.f32.mrf.mxu0
    %v9147 = vadd.f32 0.0, %v9146
    %v9148 = vpop.f32.mrf.mxu0
    %v9149 = vadd.f32 0.0, %v9148
    %9150 = vmatmul.bf16.gmra.mxu0 %v8292
    %v9151 = vpop.f32.mrf.mxu0
    %v9152 = vadd.f32 0.0, %v9151
    %v9153 = vpop.f32.mrf.mxu0
    %v9154 = vadd.f32 0.0, %v9153
    %9155 = vmatmul.bf16.gmra.mxu0 %v8293
    %v9156 = vpop.f32.mrf.mxu0
    %v9157 = vadd.f32 0.0, %v9156
    %v9158 = vpop.f32.mrf.mxu0
    %v9159 = vadd.f32 0.0, %v9158
    %9160 = vmatmul.bf16.gmra.mxu0 %v8294
    %v9161 = vpop.f32.mrf.mxu0
    %v9162 = vadd.f32 0.0, %v9161
    %v9163 = vpop.f32.mrf.mxu0
    %v9164 = vadd.f32 0.0, %v9163
    %9165 = vmatmul.bf16.gmra.mxu0 %v8295
    %v9166 = vpop.f32.mrf.mxu0
    %v9167 = vadd.f32 0.0, %v9166
    %v9168 = vpop.f32.mrf.mxu0
    %v9169 = vadd.f32 0.0, %v9168
    %9170 = vmatmul.bf16.gmra.mxu0 %v8296
    %v9171 = vpop.f32.mrf.mxu0
    %v9172 = vadd.f32 0.0, %v9171
    %v9173 = vpop.f32.mrf.mxu0
    %v9174 = vadd.f32 0.0, %v9173
    %9175 = vmatmul.bf16.gmra.mxu0 %v8297
    %v9176 = vpop.f32.mrf.mxu0
    %v9177 = vadd.f32 0.0, %v9176
    %v9178 = vpop.f32.mrf.mxu0
    %v9179 = vadd.f32 0.0, %v9178
    %9180 = vmatmul.bf16.gmra.mxu0 %v8298
    %v9181 = vpop.f32.mrf.mxu0
    %v9182 = vadd.f32 0.0, %v9181
    %v9183 = vpop.f32.mrf.mxu0
    %v9184 = vadd.f32 0.0, %v9183
    %9185 = vmatmul.bf16.gmra.mxu0 %v8299
    %v9186 = vpop.f32.mrf.mxu0
    %v9187 = vadd.f32 0.0, %v9186
    %v9188 = vpop.f32.mrf.mxu0
    %v9189 = vadd.f32 0.0, %v9188
    %9190 = vdwg.mxu0
    %v9191 = vrot.slane %v8486, 7
    %v9192 = vrot.slane %v8488, 7
    %v9193 = vrot.slane %v8491, 7
    %v9194 = vrot.slane %v8493, 7
    %v9195 = vrot.slane %v8496, 7
    %v9196 = vrot.slane %v8498, 7
    %v9197 = vrot.slane %v8501, 7
    %v9198 = vrot.slane %v8503, 7
    %v9199 = vrot.slane %v8506, 7
    %v9200 = vrot.slane %v8508, 7
    %v9201 = vrot.slane %v8511, 7
    %v9202 = vrot.slane %v8513, 7
    %v9203 = vrot.slane %v8516, 7
    %v9204 = vrot.slane %v8518, 7
    %v9205 = vrot.slane %v8521, 7
    %v9206 = vrot.slane %v8523, 7
    %v9207 = vrot.slane %v8526, 7
    %v9208 = vrot.slane %v8528, 7
    %v9209 = vrot.slane %v8531, 7
    %v9210 = vrot.slane %v8533, 7
    %v9211 = vrot.slane %v8536, 7
    %v9212 = vrot.slane %v8538, 7
    %v9213 = vrot.slane %v8541, 7
    %v9214 = vrot.slane %v8543, 7
    %v9215 = vrot.slane %v8546, 7
    %v9216 = vrot.slane %v8548, 7
    %v9217 = vrot.slane %v8551, 7
    %v9218 = vrot.slane %v8553, 7
    %v9219 = vrot.slane %v8556, 7
    %v9220 = vrot.slane %v8558, 7
    %v9221 = vrot.slane %v8561, 7
    %v9222 = vrot.slane %v8563, 7
    %v9223 = vrot.slane %v8566, 7
    %v9224 = vrot.slane %v8568, 7
    %v9225 = vrot.slane %v8571, 7
    %v9226 = vrot.slane %v8573, 7
    %v9227 = vrot.slane %v8576, 7
    %v9228 = vrot.slane %v8578, 7
    %v9229 = vrot.slane %v8581, 7
    %v9230 = vrot.slane %v8583, 7
    %v9231 = vrot.slane %v8586, 7
    %v9232 = vrot.slane %v8588, 7
    %v9233 = vrot.slane %v8591, 7
    %v9234 = vrot.slane %v8593, 7
    %v9235 = vrot.slane %v8596, 7
    %v9236 = vrot.slane %v8598, 7
    %v9237 = vrot.slane %v8601, 7
    %v9238 = vrot.slane %v8603, 7
    %v9239 = vrot.slane %v8606, 7
    %v9240 = vrot.slane %v8608, 7
    %v9241 = vrot.slane %v8611, 7
    %v9242 = vrot.slane %v8613, 7
    %v9243 = vrot.slane %v8616, 7
    %v9244 = vrot.slane %v8618, 7
    %v9245 = vrot.slane %v8621, 7
    %v9246 = vrot.slane %v8623, 7
    %v9247 = vrot.slane %v8626, 7
    %v9248 = vrot.slane %v8628, 7
    %v9249 = vrot.slane %v8631, 7
    %v9250 = vrot.slane %v8633, 7
    %v9251 = vrot.slane %v8636, 7
    %v9252 = vrot.slane %v8638, 7
    %v9253 = vrot.slane %v8641, 7
    %v9254 = vrot.slane %v8643, 7
    %v9255 = vrot.slane %v8646, 7
    %v9256 = vrot.slane %v8648, 7
    %v9257 = vrot.slane %v8651, 7
    %v9258 = vrot.slane %v8653, 7
    %v9259 = vrot.slane %v8656, 7
    %v9260 = vrot.slane %v8658, 7
    %v9261 = vrot.slane %v8661, 7
    %v9262 = vrot.slane %v8663, 7
    %v9263 = vrot.slane %v8666, 7
    %v9264 = vrot.slane %v8668, 7
    %v9265 = vrot.slane %v8671, 7
    %v9266 = vrot.slane %v8673, 7
    %v9267 = vrot.slane %v8676, 7
    %v9268 = vrot.slane %v8678, 7
    %v9269 = vrot.slane %v8681, 7
    %v9270 = vrot.slane %v8683, 7
    %v9271 = vrot.slane %v8686, 7
    %v9272 = vrot.slane %v8688, 7
    %v9273 = vrot.slane %v8691, 7
    %v9274 = vrot.slane %v8693, 7
    %v9275 = vrot.slane %v8696, 7
    %v9276 = vrot.slane %v8698, 7
    %v9277 = vrot.slane %v8701, 7
    %v9278 = vrot.slane %v8703, 7
    %v9279 = vrot.slane %v8706, 7
    %v9280 = vrot.slane %v8708, 7
    %v9281 = vrot.slane %v8711, 7
    %v9282 = vrot.slane %v8713, 7
    %v9283 = vrot.slane %v8716, 7
    %v9284 = vrot.slane %v8718, 7
    %v9285 = vrot.slane %v8721, 7
    %v9286 = vrot.slane %v8723, 7
    %v9287 = vsel %vm1662, %v9284, %v9285
    %v9288 = vsel %vm1662, %v9283, %v9284
    %v9289 = vsel %vm1662, %v9281, %v9282
    %v9290 = vsel %vm1662, %v9280, %v9281
    %v9291 = vsel %vm1662, %v9278, %v9279
    %v9292 = vsel %vm1662, %v9277, %v9278
    %v9293 = vsel %vm1662, %v9275, %v9276
    %v9294 = vsel %vm1662, %v9274, %v9275
    %v9295 = vsel %vm1662, %v9272, %v9273
    %v9296 = vsel %vm1662, %v9271, %v9272
    %v9297 = vsel %vm1662, %v9269, %v9270
    %v9298 = vsel %vm1662, %v9268, %v9269
    %v9299 = vsel %vm1662, %v9266, %v9267
    %v9300 = vsel %vm1662, %v9265, %v9266
    %v9301 = vsel %vm1662, %v9263, %v9264
    %v9302 = vsel %vm1662, %v9262, %v9263
    %v9303 = vsel %vm1662, %v9260, %v9261
    %v9304 = vsel %vm1662, %v9259, %v9260
    %v9305 = vsel %vm1662, %v9257, %v9258
    %v9306 = vsel %vm1662, %v9256, %v9257
    %v9307 = vsel %vm1662, %v9254, %v9255
    %v9308 = vsel %vm1662, %v9253, %v9254
    %v9309 = vsel %vm1662, %v9251, %v9252
    %v9310 = vsel %vm1662, %v9250, %v9251
    %v9311 = vsel %vm1662, %v9248, %v9249
    %v9312 = vsel %vm1662, %v9247, %v9248
    %v9313 = vsel %vm1662, %v9245, %v9246
    %v9314 = vsel %vm1662, %v9244, %v9245
    %v9315 = vsel %vm1662, %v9242, %v9243
    %v9316 = vsel %vm1662, %v9241, %v9242
    %v9317 = vsel %vm1662, %v9239, %v9240
    %v9318 = vsel %vm1662, %v9238, %v9239
    %v9319 = vsel %vm1662, %v9236, %v9237
    %v9320 = vsel %vm1662, %v9235, %v9236
    %v9321 = vsel %vm1662, %v9233, %v9234
    %v9322 = vsel %vm1662, %v9232, %v9233
    %v9323 = vsel %vm1662, %v9230, %v9231
    %v9324 = vsel %vm1662, %v9229, %v9230
    %v9325 = vsel %vm1662, %v9227, %v9228
    %v9326 = vsel %vm1662, %v9226, %v9227
    %v9327 = vsel %vm1662, %v9224, %v9225
    %v9328 = vsel %vm1662, %v9223, %v9224
    %v9329 = vsel %vm1662, %v9221, %v9222
    %v9330 = vsel %vm1662, %v9220, %v9221
    %v9331 = vsel %vm1662, %v9218, %v9219
    %v9332 = vsel %vm1662, %v9217, %v9218
    %v9333 = vsel %vm1662, %v9215, %v9216
    %v9334 = vsel %vm1662, %v9214, %v9215
    %v9335 = vsel %vm1662, %v9212, %v9213
    %v9336 = vsel %vm1662, %v9211, %v9212
    %v9337 = vsel %vm1662, %v9209, %v9210
    %v9338 = vsel %vm1662, %v9208, %v9209
    %v9339 = vsel %vm1662, %v9206, %v9207
    %v9340 = vsel %vm1662, %v9205, %v9206
    %v9341 = vsel %vm1662, %v9203, %v9204
    %v9342 = vsel %vm1662, %v9202, %v9203
    %v9343 = vsel %vm1662, %v9200, %v9201
    %v9344 = vsel %vm1662, %v9199, %v9200
    %v9345 = vsel %vm1662, %v9197, %v9198
    %v9346 = vsel %vm1662, %v9196, %v9197
    %v9347 = vsel %vm1662, %v9194, %v9195
    %v9348 = vsel %vm1662, %v9193, %v9194
    %v9349 = vsel %vm1662, %v9191, %v9192
    %v9350 = vsel %vm1662, %v9286, %v9191
    %v9351 = vadd.f32 %v7867, %v9350
    %v9352 = vadd.f32 %v7868, %v9349
    %v9353 = vadd.f32 %v7869, %v9348
    %v9354 = vadd.f32 %v7870, %v9347
    %v9355 = vadd.f32 %v7871, %v9346
    %v9356 = vadd.f32 %v7872, %v9345
    %v9357 = vadd.f32 %v7873, %v9344
    %v9358 = vadd.f32 %v7874, %v9343
    %v9359 = vadd.f32 %v7875, %v9342
    %v9360 = vadd.f32 %v7876, %v9341
    %v9361 = vadd.f32 %v7877, %v9340
    %v9362 = vadd.f32 %v7878, %v9339
    %v9363 = vadd.f32 %v7879, %v9338
    %v9364 = vadd.f32 %v7880, %v9337
    %v9365 = vadd.f32 %v7881, %v9336
    %v9366 = vadd.f32 %v7882, %v9335
    %v9367 = vadd.f32 %v7883, %v9334
    %v9368 = vadd.f32 %v7884, %v9333
    %v9369 = vadd.f32 %v7885, %v9332
    %v9370 = vadd.f32 %v7886, %v9331
    %v9371 = vadd.f32 %v7887, %v9330
    %v9372 = vadd.f32 %v7888, %v9329
    %v9373 = vadd.f32 %v7889, %v9328
    %v9374 = vadd.f32 %v7890, %v9327
    %v9375 = vadd.f32 %v7891, %v9326
    %v9376 = vadd.f32 %v7892, %v9325
    %v9377 = vadd.f32 %v7893, %v9324
    %v9378 = vadd.f32 %v7894, %v9323
    %v9379 = vadd.f32 %v7895, %v9322
    %v9380 = vadd.f32 %v7896, %v9321
    %v9381 = vadd.f32 %v7897, %v9320
    %v9382 = vadd.f32 %v7898, %v9319
    %v9383 = vadd.f32 %v7899, %v9318
    %v9384 = vadd.f32 %v7900, %v9317
    %v9385 = vadd.f32 %v7901, %v9316
    %v9386 = vadd.f32 %v7902, %v9315
    %v9387 = vadd.f32 %v7903, %v9314
    %v9388 = vadd.f32 %v7904, %v9313
    %v9389 = vadd.f32 %v7905, %v9312
    %v9390 = vadd.f32 %v7906, %v9311
    %v9391 = vadd.f32 %v7907, %v9310
    %v9392 = vadd.f32 %v7908, %v9309
    %v9393 = vadd.f32 %v7909, %v9308
    %v9394 = vadd.f32 %v7910, %v9307
    %v9395 = vadd.f32 %v7911, %v9306
    %v9396 = vadd.f32 %v7912, %v9305
    %v9397 = vadd.f32 %v7913, %v9304
    %v9398 = vadd.f32 %v7914, %v9303
    %v9399 = vadd.f32 %v7915, %v9302
    %v9400 = vadd.f32 %v7916, %v9301
    %v9401 = vadd.f32 %v7917, %v9300
    %v9402 = vadd.f32 %v7918, %v9299
    %v9403 = vadd.f32 %v7919, %v9298
    %v9404 = vadd.f32 %v7920, %v9297
    %v9405 = vadd.f32 %v7921, %v9296
    %v9406 = vadd.f32 %v7922, %v9295
    %v9407 = vadd.f32 %v7923, %v9294
    %v9408 = vadd.f32 %v7924, %v9293
    %v9409 = vadd.f32 %v7925, %v9292
    %v9410 = vadd.f32 %v7926, %v9291
    %v9411 = vadd.f32 %v7927, %v9290
    %v9412 = vadd.f32 %v7928, %v9289
    %v9413 = vadd.f32 %v7929, %v9288
    %v9414 = vadd.f32 %v7930, %v9287
    %v9415 = vadd.f32 %v9351, %v8735
    %v9416 = vadd.f32 %v9352, %v8737
    %v9417 = vadd.f32 %v9353, %v8741
    %v9418 = vadd.f32 %v9354, %v8744
    %v9419 = vadd.f32 %v9355, %v8748
    %v9420 = vadd.f32 %v9356, %v8750
    %v9421 = vadd.f32 %v9357, %v8754
    %v9422 = vadd.f32 %v9358, %v8757
    %v9423 = vadd.f32 %v9359, %v8761
    %v9424 = vadd.f32 %v9360, %v8763
    %v9425 = vadd.f32 %v9361, %v8767
    %v9426 = vadd.f32 %v9362, %v8770
    %v9427 = vadd.f32 %v9363, %v8774
    %v9428 = vadd.f32 %v9364, %v8776
    %v9429 = vadd.f32 %v9365, %v8780
    %v9430 = vadd.f32 %v9366, %v8783
    %v9431 = vadd.f32 %v9367, %v8787
    %v9432 = vadd.f32 %v9368, %v8789
    %v9433 = vadd.f32 %v9369, %v8793
    %v9434 = vadd.f32 %v9370, %v8796
    %v9435 = vadd.f32 %v9371, %v8800
    %v9436 = vadd.f32 %v9372, %v8802
    %v9437 = vadd.f32 %v9373, %v8806
    %v9438 = vadd.f32 %v9374, %v8809
    %v9439 = vadd.f32 %v9375, %v8813
    %v9440 = vadd.f32 %v9376, %v8815
    %v9441 = vadd.f32 %v9377, %v8819
    %v9442 = vadd.f32 %v9378, %v8822
    %v9443 = vadd.f32 %v9379, %v8826
    %v9444 = vadd.f32 %v9380, %v8828
    %v9445 = vadd.f32 %v9381, %v8832
    %v9446 = vadd.f32 %v9382, %v8835
    %v9447 = vadd.f32 %v9383, %v8839
    %v9448 = vadd.f32 %v9384, %v8841
    %v9449 = vadd.f32 %v9385, %v8845
    %v9450 = vadd.f32 %v9386, %v8848
    %v9451 = vadd.f32 %v9387, %v8852
    %v9452 = vadd.f32 %v9388, %v8854
    %v9453 = vadd.f32 %v9389, %v8858
    %v9454 = vadd.f32 %v9390, %v8861
    %v9455 = vadd.f32 %v9391, %v8865
    %v9456 = vadd.f32 %v9392, %v8867
    %v9457 = vadd.f32 %v9393, %v8871
    %v9458 = vadd.f32 %v9394, %v8874
    %v9459 = vadd.f32 %v9395, %v8878
    %v9460 = vadd.f32 %v9396, %v8880
    %v9461 = vadd.f32 %v9397, %v8884
    %v9462 = vadd.f32 %v9398, %v8887
    %v9463 = vadd.f32 %v9399, %v8891
    %v9464 = vadd.f32 %v9400, %v8893
    %v9465 = vadd.f32 %v9401, %v8897
    %v9466 = vadd.f32 %v9402, %v8900
    %v9467 = vadd.f32 %v9403, %v8904
    %v9468 = vadd.f32 %v9404, %v8906
    %v9469 = vadd.f32 %v9405, %v8910
    %v9470 = vadd.f32 %v9406, %v8913
    %v9471 = vadd.f32 %v9407, %v8917
    %v9472 = vadd.f32 %v9408, %v8919
    %v9473 = vadd.f32 %v9409, %v8923
    %v9474 = vadd.f32 %v9410, %v8926
    %v9475 = vadd.f32 %v9411, %v8930
    %v9476 = vadd.f32 %v9412, %v8932
    %v9477 = vadd.f32 %v9413, %v8936
    %v9478 = vadd.f32 %v9414, %v8939
    %v9479 = vrot.slane %v8952, 1
    %v9480 = vrot.slane %v8954, 1
    %v9481 = vrot.slane %v8957, 1
    %v9482 = vrot.slane %v8959, 1
    %v9483 = vrot.slane %v8962, 1
    %v9484 = vrot.slane %v8964, 1
    %v9485 = vrot.slane %v8967, 1
    %v9486 = vrot.slane %v8969, 1
    %v9487 = vrot.slane %v8972, 1
    %v9488 = vrot.slane %v8974, 1
    %v9489 = vrot.slane %v8977, 1
    %v9490 = vrot.slane %v8979, 1
    %v9491 = vrot.slane %v8982, 1
    %v9492 = vrot.slane %v8984, 1
    %v9493 = vrot.slane %v8987, 1
    %v9494 = vrot.slane %v8989, 1
    %v9495 = vrot.slane %v8992, 1
    %v9496 = vrot.slane %v8994, 1
    %v9497 = vrot.slane %v8997, 1
    %v9498 = vrot.slane %v8999, 1
    %v9499 = vrot.slane %v9002, 1
    %v9500 = vrot.slane %v9004, 1
    %v9501 = vrot.slane %v9007, 1
    %v9502 = vrot.slane %v9009, 1
    %v9503 = vrot.slane %v9012, 1
    %v9504 = vrot.slane %v9014, 1
    %v9505 = vrot.slane %v9017, 1
    %v9506 = vrot.slane %v9019, 1
    %v9507 = vrot.slane %v9022, 1
    %v9508 = vrot.slane %v9024, 1
    %v9509 = vrot.slane %v9027, 1
    %v9510 = vrot.slane %v9029, 1
    %v9511 = vrot.slane %v9032, 1
    %v9512 = vrot.slane %v9034, 1
    %v9513 = vrot.slane %v9037, 1
    %v9514 = vrot.slane %v9039, 1
    %v9515 = vrot.slane %v9042, 1
    %v9516 = vrot.slane %v9044, 1
    %v9517 = vrot.slane %v9047, 1
    %v9518 = vrot.slane %v9049, 1
    %v9519 = vrot.slane %v9052, 1
    %v9520 = vrot.slane %v9054, 1
    %v9521 = vrot.slane %v9057, 1
    %v9522 = vrot.slane %v9059, 1
    %v9523 = vrot.slane %v9062, 1
    %v9524 = vrot.slane %v9064, 1
    %v9525 = vrot.slane %v9067, 1
    %v9526 = vrot.slane %v9069, 1
    %v9527 = vrot.slane %v9072, 1
    %v9528 = vrot.slane %v9074, 1
    %v9529 = vrot.slane %v9077, 1
    %v9530 = vrot.slane %v9079, 1
    %v9531 = vrot.slane %v9082, 1
    %v9532 = vrot.slane %v9084, 1
    %v9533 = vrot.slane %v9087, 1
    %v9534 = vrot.slane %v9089, 1
    %v9535 = vrot.slane %v9092, 1
    %v9536 = vrot.slane %v9094, 1
    %v9537 = vrot.slane %v9097, 1
    %v9538 = vrot.slane %v9099, 1
    %v9539 = vrot.slane %v9102, 1
    %v9540 = vrot.slane %v9104, 1
    %v9541 = vrot.slane %v9107, 1
    %v9542 = vrot.slane %v9109, 1
    %v9543 = vrot.slane %v9112, 1
    %v9544 = vrot.slane %v9114, 1
    %v9545 = vrot.slane %v9117, 1
    %v9546 = vrot.slane %v9119, 1
    %v9547 = vrot.slane %v9122, 1
    %v9548 = vrot.slane %v9124, 1
    %v9549 = vrot.slane %v9127, 1
    %v9550 = vrot.slane %v9129, 1
    %v9551 = vrot.slane %v9132, 1
    %v9552 = vrot.slane %v9134, 1
    %v9553 = vrot.slane %v9137, 1
    %v9554 = vrot.slane %v9139, 1
    %v9555 = vrot.slane %v9142, 1
    %v9556 = vrot.slane %v9144, 1
    %v9557 = vrot.slane %v9147, 1
    %v9558 = vrot.slane %v9149, 1
    %v9559 = vrot.slane %v9152, 1
    %v9560 = vrot.slane %v9154, 1
    %v9561 = vrot.slane %v9157, 1
    %v9562 = vrot.slane %v9159, 1
    %v9563 = vrot.slane %v9162, 1
    %v9564 = vrot.slane %v9164, 1
    %v9565 = vrot.slane %v9167, 1
    %v9566 = vrot.slane %v9169, 1
    %v9567 = vrot.slane %v9172, 1
    %v9568 = vrot.slane %v9174, 1
    %v9569 = vrot.slane %v9177, 1
    %v9570 = vrot.slane %v9179, 1
    %v9571 = vrot.slane %v9182, 1
    %v9572 = vrot.slane %v9184, 1
    %v9573 = vrot.slane %v9187, 1
    %v9574 = vrot.slane %v9189, 1
    %v9575 = vsel %vm1951, %v9573, %v9574
    %v9576 = vsel %vm1951, %v9572, %v9573
    %v9577 = vsel %vm1951, %v9570, %v9571
    %v9578 = vsel %vm1951, %v9569, %v9570
    %v9579 = vsel %vm1951, %v9567, %v9568
    %v9580 = vsel %vm1951, %v9566, %v9567
    %v9581 = vsel %vm1951, %v9564, %v9565
    %v9582 = vsel %vm1951, %v9563, %v9564
    %v9583 = vsel %vm1951, %v9561, %v9562
    %v9584 = vsel %vm1951, %v9560, %v9561
    %v9585 = vsel %vm1951, %v9558, %v9559
    %v9586 = vsel %vm1951, %v9557, %v9558
    %v9587 = vsel %vm1951, %v9555, %v9556
    %v9588 = vsel %vm1951, %v9554, %v9555
    %v9589 = vsel %vm1951, %v9552, %v9553
    %v9590 = vsel %vm1951, %v9551, %v9552
    %v9591 = vsel %vm1951, %v9549, %v9550
    %v9592 = vsel %vm1951, %v9548, %v9549
    %v9593 = vsel %vm1951, %v9546, %v9547
    %v9594 = vsel %vm1951, %v9545, %v9546
    %v9595 = vsel %vm1951, %v9543, %v9544
    %v9596 = vsel %vm1951, %v9542, %v9543
    %v9597 = vsel %vm1951, %v9540, %v9541
    %v9598 = vsel %vm1951, %v9539, %v9540
    %v9599 = vsel %vm1951, %v9537, %v9538
    %v9600 = vsel %vm1951, %v9536, %v9537
    %v9601 = vsel %vm1951, %v9534, %v9535
    %v9602 = vsel %vm1951, %v9533, %v9534
    %v9603 = vsel %vm1951, %v9531, %v9532
    %v9604 = vsel %vm1951, %v9530, %v9531
    %v9605 = vsel %vm1951, %v9528, %v9529
    %v9606 = vsel %vm1951, %v9527, %v9528
    %v9607 = vsel %vm1951, %v9525, %v9526
    %v9608 = vsel %vm1951, %v9524, %v9525
    %v9609 = vsel %vm1951, %v9522, %v9523
    %v9610 = vsel %vm1951, %v9521, %v9522
    %v9611 = vsel %vm1951, %v9519, %v9520
    %v9612 = vsel %vm1951, %v9518, %v9519
    %v9613 = vsel %vm1951, %v9516, %v9517
    %v9614 = vsel %vm1951, %v9515, %v9516
    %v9615 = vsel %vm1951, %v9513, %v9514
    %v9616 = vsel %vm1951, %v9512, %v9513
    %v9617 = vsel %vm1951, %v9510, %v9511
    %v9618 = vsel %vm1951, %v9509, %v9510
    %v9619 = vsel %vm1951, %v9507, %v9508
    %v9620 = vsel %vm1951, %v9506, %v9507
    %v9621 = vsel %vm1951, %v9504, %v9505
    %v9622 = vsel %vm1951, %v9503, %v9504
    %v9623 = vsel %vm1951, %v9501, %v9502
    %v9624 = vsel %vm1951, %v9500, %v9501
    %v9625 = vsel %vm1951, %v9498, %v9499
    %v9626 = vsel %vm1951, %v9497, %v9498
    %v9627 = vsel %vm1951, %v9495, %v9496
    %v9628 = vsel %vm1951, %v9494, %v9495
    %v9629 = vsel %vm1951, %v9492, %v9493
    %v9630 = vsel %vm1951, %v9491, %v9492
    %v9631 = vsel %vm1951, %v9489, %v9490
    %v9632 = vsel %vm1951, %v9488, %v9489
    %v9633 = vsel %vm1951, %v9486, %v9487
    %v9634 = vsel %vm1951, %v9485, %v9486
    %v9635 = vsel %vm1951, %v9483, %v9484
    %v9636 = vsel %vm1951, %v9482, %v9483
    %v9637 = vsel %vm1951, %v9480, %v9481
    %v9638 = vsel %vm1951, %v9479, %v9480
    %v9639 = vadd.f32 %v9415, %v9638
    %v9640 = vadd.f32 %v9416, %v9637
    %v9641 = vadd.f32 %v9417, %v9636
    %v9642 = vadd.f32 %v9418, %v9635
    %v9643 = vadd.f32 %v9419, %v9634
    %v9644 = vadd.f32 %v9420, %v9633
    %v9645 = vadd.f32 %v9421, %v9632
    %v9646 = vadd.f32 %v9422, %v9631
    %v9647 = vadd.f32 %v9423, %v9630
    %v9648 = vadd.f32 %v9424, %v9629
    %v9649 = vadd.f32 %v9425, %v9628
    %v9650 = vadd.f32 %v9426, %v9627
    %v9651 = vadd.f32 %v9427, %v9626
    %v9652 = vadd.f32 %v9428, %v9625
    %v9653 = vadd.f32 %v9429, %v9624
    %v9654 = vadd.f32 %v9430, %v9623
    %v9655 = vadd.f32 %v9431, %v9622
    %v9656 = vadd.f32 %v9432, %v9621
    %v9657 = vadd.f32 %v9433, %v9620
    %v9658 = vadd.f32 %v9434, %v9619
    %v9659 = vadd.f32 %v9435, %v9618
    %v9660 = vadd.f32 %v9436, %v9617
    %v9661 = vadd.f32 %v9437, %v9616
    %v9662 = vadd.f32 %v9438, %v9615
    %v9663 = vadd.f32 %v9439, %v9614
    %v9664 = vadd.f32 %v9440, %v9613
    %v9665 = vadd.f32 %v9441, %v9612
    %v9666 = vadd.f32 %v9442, %v9611
    %v9667 = vadd.f32 %v9443, %v9610
    %v9668 = vadd.f32 %v9444, %v9609
    %v9669 = vadd.f32 %v9445, %v9608
    %v9670 = vadd.f32 %v9446, %v9607
    %v9671 = vadd.f32 %v9447, %v9606
    %v9672 = vadd.f32 %v9448, %v9605
    %v9673 = vadd.f32 %v9449, %v9604
    %v9674 = vadd.f32 %v9450, %v9603
    %v9675 = vadd.f32 %v9451, %v9602
    %v9676 = vadd.f32 %v9452, %v9601
    %v9677 = vadd.f32 %v9453, %v9600
    %v9678 = vadd.f32 %v9454, %v9599
    %v9679 = vadd.f32 %v9455, %v9598
    %v9680 = vadd.f32 %v9456, %v9597
    %v9681 = vadd.f32 %v9457, %v9596
    %v9682 = vadd.f32 %v9458, %v9595
    %v9683 = vadd.f32 %v9459, %v9594
    %v9684 = vadd.f32 %v9460, %v9593
    %v9685 = vadd.f32 %v9461, %v9592
    %v9686 = vadd.f32 %v9462, %v9591
    %v9687 = vadd.f32 %v9463, %v9590
    %v9688 = vadd.f32 %v9464, %v9589
    %v9689 = vadd.f32 %v9465, %v9588
    %v9690 = vadd.f32 %v9466, %v9587
    %v9691 = vadd.f32 %v9467, %v9586
    %v9692 = vadd.f32 %v9468, %v9585
    %v9693 = vadd.f32 %v9469, %v9584
    %v9694 = vadd.f32 %v9470, %v9583
    %v9695 = vadd.f32 %v9471, %v9582
    %v9696 = vadd.f32 %v9472, %v9581
    %v9697 = vadd.f32 %v9473, %v9580
    %v9698 = vadd.f32 %v9474, %v9579
    %v9699 = vadd.f32 %v9475, %v9578
    %v9700 = vadd.f32 %v9476, %v9577
    %v9701 = vadd.f32 %v9477, %v9576
    %v9702 = vadd.f32 %v9478, %v9575
    %v9703 = vld [vmem:[%s3852] sm:$0xf]
    %v9704 = vld [vmem:[%s3852 + $0x4] sm:$0xf]
    %v9705 = vld [vmem:[%s3852 + $0x8] sm:$0xf]
    %v9706 = vld [vmem:[%s3852 + $0xc] sm:$0xf]
    %v9707 = vld [vmem:[%s3852 + $0x10] sm:$0xf]
    %v9708 = vld [vmem:[%s3852 + $0x14] sm:$0xf]
    %v9709 = vld [vmem:[%s3852 + $0x18] sm:$0xf]
    %v9710 = vld [vmem:[%s3852 + $0x1c] sm:$0xf]
    %v9711 = vld [vmem:[%s3852 + $0x20] sm:$0xf]
    %v9712 = vld [vmem:[%s3852 + $0x24] sm:$0xf]
    %v9713 = vld [vmem:[%s3852 + $0x28] sm:$0xf]
    %v9714 = vld [vmem:[%s3852 + $0x2c] sm:$0xf]
    %v9715 = vld [vmem:[%s3852 + $0x30] sm:$0xf]
    %v9716 = vld [vmem:[%s3852 + $0x34] sm:$0xf]
    %v9717 = vld [vmem:[%s3852 + $0x38] sm:$0xf]
    %v9718 = vld [vmem:[%s3852 + $0x3c] sm:$0xf]
    %v9719 = vld [vmem:[%s3852 + $0x40] sm:$0xf]
    %v9720 = vld [vmem:[%s3852 + $0x44] sm:$0xf]
    %v9721 = vld [vmem:[%s3852 + $0x48] sm:$0xf]
    %v9722 = vld [vmem:[%s3852 + $0x4c] sm:$0xf]
    %v9723 = vld [vmem:[%s3852 + $0x50] sm:$0xf]
    %v9724 = vld [vmem:[%s3852 + $0x54] sm:$0xf]
    %v9725 = vld [vmem:[%s3852 + $0x58] sm:$0xf]
    %v9726 = vld [vmem:[%s3852 + $0x5c] sm:$0xf]
    %v9727 = vld [vmem:[%s3852 + $0x60] sm:$0xf]
    %v9728 = vld [vmem:[%s3852 + $0x64] sm:$0xf]
    %v9729 = vld [vmem:[%s3852 + $0x68] sm:$0xf]
    %v9730 = vld [vmem:[%s3852 + $0x6c] sm:$0xf]
    %v9731 = vld [vmem:[%s3852 + $0x70] sm:$0xf]
    %v9732 = vld [vmem:[%s3852 + $0x74] sm:$0xf]
    %v9733 = vld [vmem:[%s3852 + $0x78] sm:$0xf]
    %v9734 = vld [vmem:[%s3852 + $0x7c] sm:$0xf]
    %v9735 = vld [vmem:[%s3852 + $0x80] sm:$0xf]
    %v9736 = vld [vmem:[%s3852 + $0x84] sm:$0xf]
    %v9737 = vld [vmem:[%s3852 + $0x88] sm:$0xf]
    %v9738 = vld [vmem:[%s3852 + $0x8c] sm:$0xf]
    %v9739 = vld [vmem:[%s3852 + $0x90] sm:$0xf]
    %v9740 = vld [vmem:[%s3852 + $0x94] sm:$0xf]
    %v9741 = vld [vmem:[%s3852 + $0x98] sm:$0xf]
    %v9742 = vld [vmem:[%s3852 + $0x9c] sm:$0xf]
    %v9743 = vld [vmem:[%s3852 + $0xa0] sm:$0xf]
    %v9744 = vld [vmem:[%s3852 + $0xa4] sm:$0xf]
    %v9745 = vld [vmem:[%s3852 + $0xa8] sm:$0xf]
    %v9746 = vld [vmem:[%s3852 + $0xac] sm:$0xf]
    %v9747 = vld [vmem:[%s3852 + $0xb0] sm:$0xf]
    %v9748 = vld [vmem:[%s3852 + $0xb4] sm:$0xf]
    %v9749 = vld [vmem:[%s3852 + $0xb8] sm:$0xf]
    %v9750 = vld [vmem:[%s3852 + $0xbc] sm:$0xf]
    %v9751 = vld [vmem:[%s3852 + $0xd8] sm:$0xf]
    %v9752 = vld [vmem:[%s3852 + $0xdc] sm:$0xf]
    %v9753 = vld [vmem:[%s3852 + $0xe0] sm:$0xf]
    %v9754 = vld [vmem:[%s3852 + $0xe4] sm:$0xf]
    %v9755 = vld [vmem:[%s3852 + $0xe8] sm:$0xf]
    %v9756 = vld [vmem:[%s3852 + $0xec] sm:$0xf]
    %v9757 = vld [vmem:[%s3852 + $0xf0] sm:$0xf]
    %v9758 = vld [vmem:[%s3852 + $0xf4] sm:$0xf]
    %v9759 = vld [vmem:[%s3852 + $0xf8] sm:$0xf]
    %v9760 = vld [vmem:[%s3852 + $0xfc] sm:$0xf]
    %v9761 = vld [vmem:[%s3852 + $0x100] sm:$0xf]
    %v9762 = vld [vmem:[%s3852 + $0x104] sm:$0xf]
    %v9763 = vld [vmem:[%s3852 + $0x108] sm:$0xf]
    %v9764 = vld [vmem:[%s3852 + $0x10c] sm:$0xf]
    %v9765 = vld [vmem:[%s3852 + $0x110] sm:$0xf]
    %v9766 = vld [vmem:[%s3852 + $0x114] sm:$0xf]
    %v9767 = vld [vmem:[%s3852 + $0x118] sm:$0xf]
    %v9768 = vld [vmem:[%s3852 + $0x11c] sm:$0xf]
    %v9769 = vld [vmem:[%s3852 + $0x120] sm:$0xf]
    %v9770 = vld [vmem:[%s3852 + $0x124] sm:$0xf]
    %v9771 = vld [vmem:[%s3852 + $0x128] sm:$0xf]
    %v9772 = vld [vmem:[%s3852 + $0x12c] sm:$0xf]
    %v9773 = vld [vmem:[%s3852 + $0x130] sm:$0xf]
    %v9774 = vld [vmem:[%s3852 + $0x134] sm:$0xf]
    %v9775 = vld [vmem:[%s3852 + $0x138] sm:$0xf]
    %v9776 = vld [vmem:[%s3852 + $0x13c] sm:$0xf]
    %v9777 = vld [vmem:[%s3852 + $0x140] sm:$0xf]
    %v9778 = vld [vmem:[%s3852 + $0x144] sm:$0xf]
    %v9779 = vld [vmem:[%s3852 + $0x148] sm:$0xf]
    %v9780 = vld [vmem:[%s3852 + $0x14c] sm:$0xf]
    %v9781 = vld [vmem:[%s3852 + $0x150] sm:$0xf]
    %v9782 = vld [vmem:[%s3852 + $0x154] sm:$0xf]
    %v9783 = vld [vmem:[%s3852 + $0x158] sm:$0xf]
    %v9784 = vld [vmem:[%s3852 + $0x15c] sm:$0xf]
    %v9785 = vld [vmem:[%s3852 + $0x160] sm:$0xf]
    %v9786 = vld [vmem:[%s3852 + $0x164] sm:$0xf]
    %v9787 = vld [vmem:[%s3852 + $0x168] sm:$0xf]
    %v9788 = vld [vmem:[%s3852 + $0x16c] sm:$0xf]
    %v9789 = vld [vmem:[%s3852 + $0x170] sm:$0xf]
    %v9790 = vld [vmem:[%s3852 + $0x174] sm:$0xf]
    %v9791 = vld [vmem:[%s3852 + $0x178] sm:$0xf]
    %v9792 = vld [vmem:[%s3852 + $0x17c] sm:$0xf]
    %v9793 = vld [vmem:[%s3852 + $0x180] sm:$0xf]
    %v9794 = vld [vmem:[%s3852 + $0x184] sm:$0xf]
    %v9795 = vld [vmem:[%s3852 + $0x188] sm:$0xf]
    %v9796 = vld [vmem:[%s3852 + $0x18c] sm:$0xf]
    %v9797 = vld [vmem:[%s3852 + $0x190] sm:$0xf]
    %v9798 = vld [vmem:[%s3852 + $0x194] sm:$0xf]
    %s9799 = scalar_lea.vmem [#allocation8], 384
    %v9800 = vld [vmem:[%s9799] sm:$0xff]
    %v9801 = vld [vmem:[%s9799 + $0x8] sm:$0xf]
    %v9802 = vld [vmem:[%s9799 + $0xc] sm:$0xff]
    %v9803 = vld [vmem:[%s9799 + $0x14] sm:$0xf]
    %v9804 = vld [vmem:[%s9799 + $0x18] sm:$0xff]
    %v9805 = vld [vmem:[%s9799 + $0x20] sm:$0xf]
    %v9806 = vld [vmem:[%s9799 + $0x24] sm:$0xff]
    %v9807 = vld [vmem:[%s9799 + $0x2c] sm:$0xf]
    %v9808 = vld [vmem:[%s9799 + $0x30] sm:$0xff]
    %v9809 = vld [vmem:[%s9799 + $0x38] sm:$0xf]
    %v9810 = vld [vmem:[%s9799 + $0x3c] sm:$0xff]
    %v9811 = vld [vmem:[%s9799 + $0x44] sm:$0xf]
    %v9812 = vld [vmem:[%s9799 + $0x48] sm:$0xff]
    %v9813 = vld [vmem:[%s9799 + $0x50] sm:$0xf]
    %v9814 = vld [vmem:[%s9799 + $0x54] sm:$0xff]
    %v9815 = vld [vmem:[%s9799 + $0x5c] sm:$0xf]
    %v9816 = vld [vmem:[%s9799 + $0x60] sm:$0xff]
    %v9817 = vld [vmem:[%s9799 + $0x68] sm:$0xf]
    %v9818 = vld [vmem:[%s9799 + $0x6c] sm:$0xff]
    %v9819 = vld [vmem:[%s9799 + $0x74] sm:$0xf]
    %v9820 = vld [vmem:[%s9799 + $0x78] sm:$0xff]
    %v9821 = vld [vmem:[%s9799 + $0x80] sm:$0xf]
    %v9822 = vld [vmem:[%s9799 + $0x84] sm:$0xff]
    %v9823 = vld [vmem:[%s9799 + $0x8c] sm:$0xf]
    %v9824 = vld [vmem:[%s9799 + $0x90] sm:$0xff]
    %v9825 = vld [vmem:[%s9799 + $0x98] sm:$0xf]
    %v9826 = vld [vmem:[%s9799 + $0x9c] sm:$0xff]
    %v9827 = vld [vmem:[%s9799 + $0xa4] sm:$0xf]
    %v9828 = vld [vmem:[%s9799 + $0xa8] sm:$0xff]
    %v9829 = vld [vmem:[%s9799 + $0xb0] sm:$0xf]
    %v9830 = vld [vmem:[%s9799 + $0xb4] sm:$0xff]
    %v9831 = vld [vmem:[%s9799 + $0xbc] sm:$0xf]
    %v9928 = vunpack.c.l.b16 %v9703
    %v9929 = vunpack.c.l.b16 %v9704
    %v9930 = vunpack.c.l.b16 %v9705
    %v9931 = vunpack.c.l.b16 %v9706
    %v9932 = vunpack.c.l.b16 %v9707
    %v9933 = vunpack.c.l.b16 %v9708
    %v9934 = vunpack.c.l.b16 %v9709
    %v9935 = vunpack.c.l.b16 %v9710
    %v9936 = vunpack.c.l.b16 %v9711
    %v9937 = vunpack.c.l.b16 %v9712
    %v9938 = vunpack.c.l.b16 %v9713
    %v9939 = vunpack.c.l.b16 %v9714
    %v9940 = vunpack.c.l.b16 %v9715
    %v9941 = vunpack.c.l.b16 %v9716
    %v9942 = vunpack.c.l.b16 %v9717
    %v9943 = vunpack.c.l.b16 %v9718
    %v9944 = vunpack.c.l.b16 %v9719
    %v9945 = vunpack.c.l.b16 %v9720
    %v9946 = vunpack.c.l.b16 %v9721
    %v9947 = vunpack.c.l.b16 %v9722
    %v9948 = vunpack.c.l.b16 %v9723
    %v9949 = vunpack.c.l.b16 %v9724
    %v9950 = vunpack.c.l.b16 %v9725
    %v9951 = vunpack.c.l.b16 %v9726
    %v9952 = vunpack.c.l.b16 %v9727
    %v9953 = vunpack.c.l.b16 %v9728
    %v9954 = vunpack.c.l.b16 %v9729
    %v9955 = vunpack.c.l.b16 %v9730
    %v9956 = vunpack.c.l.b16 %v9731
    %v9957 = vunpack.c.l.b16 %v9732
    %v9958 = vunpack.c.l.b16 %v9733
    %v9959 = vunpack.c.l.b16 %v9734
    %v9960 = vunpack.c.l.b16 %v9735
    %v9961 = vunpack.c.l.b16 %v9736
    %v9962 = vunpack.c.l.b16 %v9737
    %v9963 = vunpack.c.l.b16 %v9738
    %v9964 = vunpack.c.l.b16 %v9739
    %v9965 = vunpack.c.l.b16 %v9740
    %v9966 = vunpack.c.l.b16 %v9741
    %v9967 = vunpack.c.l.b16 %v9742
    %v9968 = vunpack.c.l.b16 %v9743
    %v9969 = vunpack.c.l.b16 %v9744
    %v9970 = vunpack.c.l.b16 %v9745
    %v9971 = vunpack.c.l.b16 %v9746
    %v9972 = vunpack.c.l.b16 %v9747
    %v9973 = vunpack.c.l.b16 %v9748
    %v9974 = vunpack.c.l.b16 %v9749
    %v9975 = vunpack.c.l.b16 %v9750
    %v9976 = vunpack.c.l.b16 %v9751
    %v9977 = vunpack.c.l.b16 %v9752
    %v9978 = vunpack.c.l.b16 %v9753
    %v9979 = vunpack.c.l.b16 %v9754
    %v9980 = vunpack.c.l.b16 %v9755
    %v9981 = vunpack.c.l.b16 %v9756
    %v9982 = vunpack.c.l.b16 %v9757
    %v9983 = vunpack.c.l.b16 %v9758
    %v9984 = vunpack.c.l.b16 %v9759
    %v9985 = vunpack.c.l.b16 %v9760
    %v9986 = vunpack.c.l.b16 %v9761
    %v9987 = vunpack.c.l.b16 %v9762
    %v9988 = vunpack.c.l.b16 %v9763
    %v9989 = vunpack.c.l.b16 %v9764
    %v9990 = vunpack.c.l.b16 %v9765
    %v9991 = vunpack.c.l.b16 %v9766
    %v9992 = vunpack.c.l.b16 %v9767
    %v9993 = vunpack.c.l.b16 %v9768
    %v9994 = vunpack.c.l.b16 %v9769
    %v9995 = vunpack.c.l.b16 %v9770
    %v9996 = vunpack.c.l.b16 %v9771
    %v9997 = vunpack.c.l.b16 %v9772
    %v9998 = vunpack.c.l.b16 %v9773
    %v9999 = vunpack.c.l.b16 %v9774
    %v10000 = vunpack.c.l.b16 %v9775
    %v10001 = vunpack.c.l.b16 %v9776
    %v10002 = vunpack.c.l.b16 %v9777
    %v10003 = vunpack.c.l.b16 %v9778
    %v10004 = vunpack.c.l.b16 %v9779
    %v10005 = vunpack.c.l.b16 %v9780
    %v10006 = vunpack.c.l.b16 %v9781
    %v10007 = vunpack.c.l.b16 %v9782
    %v10008 = vunpack.c.l.b16 %v9783
    %v10009 = vunpack.c.l.b16 %v9784
    %v10010 = vunpack.c.l.b16 %v9785
    %v10011 = vunpack.c.l.b16 %v9786
    %v10012 = vunpack.c.l.b16 %v9787
    %v10013 = vunpack.c.l.b16 %v9788
    %v10014 = vunpack.c.l.b16 %v9789
    %v10015 = vunpack.c.l.b16 %v9790
    %v10016 = vunpack.c.l.b16 %v9791
    %v10017 = vunpack.c.l.b16 %v9792
    %v10018 = vunpack.c.l.b16 %v9793
    %v10019 = vunpack.c.l.b16 %v9794
    %v10020 = vunpack.c.l.b16 %v9795
    %v10021 = vunpack.c.l.b16 %v9796
    %v10022 = vunpack.c.l.b16 %v9797
    %v10023 = vunpack.c.l.b16 %v9798
    %v10024 = vpack.c.b16 %v9929, %v9928
    %v10025 = vpack.c.b16 %v9931, %v9930
    %v10026 = vpack.c.b16 %v9933, %v9932
    %v10027 = vpack.c.b16 %v9935, %v9934
    %v10028 = vpack.c.b16 %v9937, %v9936
    %v10029 = vpack.c.b16 %v9939, %v9938
    %v10030 = vpack.c.b16 %v9941, %v9940
    %v10031 = vpack.c.b16 %v9943, %v9942
    %v10032 = vpack.c.b16 %v9945, %v9944
    %v10033 = vpack.c.b16 %v9947, %v9946
    %v10034 = vpack.c.b16 %v9949, %v9948
    %v10035 = vpack.c.b16 %v9951, %v9950
    %v10036 = vpack.c.b16 %v9953, %v9952
    %v10037 = vpack.c.b16 %v9955, %v9954
    %v10038 = vpack.c.b16 %v9957, %v9956
    %v10039 = vpack.c.b16 %v9959, %v9958
    %v10040 = vpack.c.b16 %v9961, %v9960
    %v10041 = vpack.c.b16 %v9963, %v9962
    %v10042 = vpack.c.b16 %v9965, %v9964
    %v10043 = vpack.c.b16 %v9967, %v9966
    %v10044 = vpack.c.b16 %v9969, %v9968
    %v10045 = vpack.c.b16 %v9971, %v9970
    %v10046 = vpack.c.b16 %v9973, %v9972
    %v10047 = vpack.c.b16 %v9975, %v9974
    %v10048 = vpack.c.b16 %v9977, %v9976
    %v10049 = vpack.c.b16 %v9979, %v9978
    %v10050 = vpack.c.b16 %v9981, %v9980
    %v10051 = vpack.c.b16 %v9983, %v9982
    %v10052 = vpack.c.b16 %v9985, %v9984
    %v10053 = vpack.c.b16 %v9987, %v9986
    %v10054 = vpack.c.b16 %v9989, %v9988
    %v10055 = vpack.c.b16 %v9991, %v9990
    %v10056 = vpack.c.b16 %v9993, %v9992
    %v10057 = vpack.c.b16 %v9995, %v9994
    %v10058 = vpack.c.b16 %v9997, %v9996
    %v10059 = vpack.c.b16 %v9999, %v9998
    %v10060 = vpack.c.b16 %v10001, %v10000
    %v10061 = vpack.c.b16 %v10003, %v10002
    %v10062 = vpack.c.b16 %v10005, %v10004
    %v10063 = vpack.c.b16 %v10007, %v10006
    %v10064 = vpack.c.b16 %v10009, %v10008
    %v10065 = vpack.c.b16 %v10011, %v10010
    %v10066 = vpack.c.b16 %v10013, %v10012
    %v10067 = vpack.c.b16 %v10015, %v10014
    %v10068 = vpack.c.b16 %v10017, %v10016
    %v10069 = vpack.c.b16 %v10019, %v10018
    %v10070 = vpack.c.b16 %v10021, %v10020
    %v10071 = vpack.c.b16 %v10023, %v10022
    %v10152 = vunpack.c.l.b16 %v9800
    %v10153 = vunpack.c.h.b16 %v9800
    %v10154 = vunpack.c.l.b16 %v9801
    %v10155 = vunpack.c.l.b16 %v9802
    %v10156 = vunpack.c.h.b16 %v9802
    %v10157 = vunpack.c.l.b16 %v9803
    %v10158 = vunpack.c.l.b16 %v9804
    %v10159 = vunpack.c.h.b16 %v9804
    %v10160 = vunpack.c.l.b16 %v9805
    %v10161 = vunpack.c.l.b16 %v9806
    %v10162 = vunpack.c.h.b16 %v9806
    %v10163 = vunpack.c.l.b16 %v9807
    %v10164 = vunpack.c.l.b16 %v9808
    %v10165 = vunpack.c.h.b16 %v9808
    %v10166 = vunpack.c.l.b16 %v9809
    %v10167 = vunpack.c.l.b16 %v9810
    %v10168 = vunpack.c.h.b16 %v9810
    %v10169 = vunpack.c.l.b16 %v9811
    %v10170 = vunpack.c.l.b16 %v9812
    %v10171 = vunpack.c.h.b16 %v9812
    %v10172 = vunpack.c.l.b16 %v9813
    %v10173 = vunpack.c.l.b16 %v9814
    %v10174 = vunpack.c.h.b16 %v9814
    %v10175 = vunpack.c.l.b16 %v9815
    %v10176 = vunpack.c.l.b16 %v9816
    %v10177 = vunpack.c.h.b16 %v9816
    %v10178 = vunpack.c.l.b16 %v9817
    %v10179 = vunpack.c.l.b16 %v9818
    %v10180 = vunpack.c.h.b16 %v9818
    %v10181 = vunpack.c.l.b16 %v9819
    %v10182 = vunpack.c.l.b16 %v9820
    %v10183 = vunpack.c.h.b16 %v9820
    %v10184 = vunpack.c.l.b16 %v9821
    %v10185 = vunpack.c.l.b16 %v9822
    %v10186 = vunpack.c.h.b16 %v9822
    %v10187 = vunpack.c.l.b16 %v9823
    %v10188 = vunpack.c.l.b16 %v9824
    %v10189 = vunpack.c.h.b16 %v9824
    %v10190 = vunpack.c.l.b16 %v9825
    %v10191 = vunpack.c.l.b16 %v9826
    %v10192 = vunpack.c.h.b16 %v9826
    %v10193 = vunpack.c.l.b16 %v9827
    %v10194 = vunpack.c.l.b16 %v9828
    %v10195 = vunpack.c.h.b16 %v9828
    %v10196 = vunpack.c.l.b16 %v9829
    %v10197 = vunpack.c.l.b16 %v9830
    %v10198 = vunpack.c.h.b16 %v9830
    %v10199 = vunpack.c.l.b16 %v9831
    %v10200 = vpack.c.b16 %v10155, %v10152
    %v10201 = vpack.c.b16 %v10156, %v10153
    %v10202 = vpack.c.b16 %v10157, %v10154
    %v10203 = vpack.c.b16 %v10161, %v10158
    %v10204 = vpack.c.b16 %v10162, %v10159
    %v10205 = vpack.c.b16 %v10163, %v10160
    %v10206 = vpack.c.b16 %v10167, %v10164
    %v10207 = vpack.c.b16 %v10168, %v10165
    %v10208 = vpack.c.b16 %v10169, %v10166
    %v10209 = vpack.c.b16 %v10173, %v10170
    %v10210 = vpack.c.b16 %v10174, %v10171
    %v10211 = vpack.c.b16 %v10175, %v10172
    %v10212 = vpack.c.b16 %v10179, %v10176
    %v10213 = vpack.c.b16 %v10180, %v10177
    %v10214 = vpack.c.b16 %v10181, %v10178
    %v10215 = vpack.c.b16 %v10185, %v10182
    %v10216 = vpack.c.b16 %v10186, %v10183
    %v10217 = vpack.c.b16 %v10187, %v10184
    %v10218 = vpack.c.b16 %v10191, %v10188
    %v10219 = vpack.c.b16 %v10192, %v10189
    %v10220 = vpack.c.b16 %v10193, %v10190
    %v10221 = vpack.c.b16 %v10197, %v10194
    %v10222 = vpack.c.b16 %v10198, %v10195
    %v10223 = vpack.c.b16 %v10199, %v10196
    %10248 = vmatpush.bf16.msra.mxu0 %v10221
    %10249 = vmatpush.bf16.msra.mxu0 %v10218
    %10250 = vmatpush.bf16.msra.mxu0 %v10215
    %10251 = vmatpush.bf16.msra.mxu0 %v10212
    %10252 = vmatpush.bf16.msra.mxu0 %v10209
    %10253 = vmatpush.bf16.msra.mxu0 %v10206
    %10254 = vmatpush.bf16.msra.mxu0 %v10203
    %10255 = vmatpush.bf16.msra.mxu0 %v10200
    %10256 = vmatmul.bf16.gmra.mxu0 %v10024
    %v10257 = vpop.f32.mrf.mxu0
    %v10258 = vadd.f32 0.0, %v10257
    %v10259 = vpop.f32.mrf.mxu0
    %v10260 = vadd.f32 0.0, %v10259
    %10261 = vmatmul.bf16.gmra.mxu0 %v10025
    %v10262 = vpop.f32.mrf.mxu0
    %v10263 = vadd.f32 0.0, %v10262
    %v10264 = vpop.f32.mrf.mxu0
    %v10265 = vadd.f32 0.0, %v10264
    %10266 = vmatmul.bf16.gmra.mxu0 %v10026
    %v10267 = vpop.f32.mrf.mxu0
    %v10268 = vadd.f32 0.0, %v10267
    %v10269 = vpop.f32.mrf.mxu0
    %v10270 = vadd.f32 0.0, %v10269
    %10271 = vmatmul.bf16.gmra.mxu0 %v10027
    %v10272 = vpop.f32.mrf.mxu0
    %v10273 = vadd.f32 0.0, %v10272
    %v10274 = vpop.f32.mrf.mxu0
    %v10275 = vadd.f32 0.0, %v10274
    %10276 = vmatmul.bf16.gmra.mxu0 %v10028
    %v10277 = vpop.f32.mrf.mxu0
    %v10278 = vadd.f32 0.0, %v10277
    %v10279 = vpop.f32.mrf.mxu0
    %v10280 = vadd.f32 0.0, %v10279
    %10281 = vmatmul.bf16.gmra.mxu0 %v10029
    %v10282 = vpop.f32.mrf.mxu0
    %v10283 = vadd.f32 0.0, %v10282
    %v10284 = vpop.f32.mrf.mxu0
    %v10285 = vadd.f32 0.0, %v10284
    %10286 = vmatmul.bf16.gmra.mxu0 %v10030
    %v10287 = vpop.f32.mrf.mxu0
    %v10288 = vadd.f32 0.0, %v10287
    %v10289 = vpop.f32.mrf.mxu0
    %v10290 = vadd.f32 0.0, %v10289
    %10291 = vmatmul.bf16.gmra.mxu0 %v10031
    %v10292 = vpop.f32.mrf.mxu0
    %v10293 = vadd.f32 0.0, %v10292
    %v10294 = vpop.f32.mrf.mxu0
    %v10295 = vadd.f32 0.0, %v10294
    %10296 = vmatmul.bf16.gmra.mxu0 %v10032
    %v10297 = vpop.f32.mrf.mxu0
    %v10298 = vadd.f32 0.0, %v10297
    %v10299 = vpop.f32.mrf.mxu0
    %v10300 = vadd.f32 0.0, %v10299
    %10301 = vmatmul.bf16.gmra.mxu0 %v10033
    %v10302 = vpop.f32.mrf.mxu0
    %v10303 = vadd.f32 0.0, %v10302
    %v10304 = vpop.f32.mrf.mxu0
    %v10305 = vadd.f32 0.0, %v10304
    %10306 = vmatmul.bf16.gmra.mxu0 %v10034
    %v10307 = vpop.f32.mrf.mxu0
    %v10308 = vadd.f32 0.0, %v10307
    %v10309 = vpop.f32.mrf.mxu0
    %v10310 = vadd.f32 0.0, %v10309
    %10311 = vmatmul.bf16.gmra.mxu0 %v10035
    %v10312 = vpop.f32.mrf.mxu0
    %v10313 = vadd.f32 0.0, %v10312
    %v10314 = vpop.f32.mrf.mxu0
    %v10315 = vadd.f32 0.0, %v10314
    %10316 = vmatmul.bf16.gmra.mxu0 %v10036
    %v10317 = vpop.f32.mrf.mxu0
    %v10318 = vadd.f32 0.0, %v10317
    %v10319 = vpop.f32.mrf.mxu0
    %v10320 = vadd.f32 0.0, %v10319
    %10321 = vmatmul.bf16.gmra.mxu0 %v10037
    %v10322 = vpop.f32.mrf.mxu0
    %v10323 = vadd.f32 0.0, %v10322
    %v10324 = vpop.f32.mrf.mxu0
    %v10325 = vadd.f32 0.0, %v10324
    %10326 = vmatmul.bf16.gmra.mxu0 %v10038
    %v10327 = vpop.f32.mrf.mxu0
    %v10328 = vadd.f32 0.0, %v10327
    %v10329 = vpop.f32.mrf.mxu0
    %v10330 = vadd.f32 0.0, %v10329
    %10331 = vmatmul.bf16.gmra.mxu0 %v10039
    %v10332 = vpop.f32.mrf.mxu0
    %v10333 = vadd.f32 0.0, %v10332
    %v10334 = vpop.f32.mrf.mxu0
    %v10335 = vadd.f32 0.0, %v10334
    %10336 = vmatmul.bf16.gmra.mxu0 %v10040
    %v10337 = vpop.f32.mrf.mxu0
    %v10338 = vadd.f32 0.0, %v10337
    %v10339 = vpop.f32.mrf.mxu0
    %v10340 = vadd.f32 0.0, %v10339
    %10341 = vmatmul.bf16.gmra.mxu0 %v10041
    %v10342 = vpop.f32.mrf.mxu0
    %v10343 = vadd.f32 0.0, %v10342
    %v10344 = vpop.f32.mrf.mxu0
    %v10345 = vadd.f32 0.0, %v10344
    %10346 = vmatmul.bf16.gmra.mxu0 %v10042
    %v10347 = vpop.f32.mrf.mxu0
    %v10348 = vadd.f32 0.0, %v10347
    %v10349 = vpop.f32.mrf.mxu0
    %v10350 = vadd.f32 0.0, %v10349
    %10351 = vmatmul.bf16.gmra.mxu0 %v10043
    %v10352 = vpop.f32.mrf.mxu0
    %v10353 = vadd.f32 0.0, %v10352
    %v10354 = vpop.f32.mrf.mxu0
    %v10355 = vadd.f32 0.0, %v10354
    %10356 = vmatmul.bf16.gmra.mxu0 %v10044
    %v10357 = vpop.f32.mrf.mxu0
    %v10358 = vadd.f32 0.0, %v10357
    %v10359 = vpop.f32.mrf.mxu0
    %v10360 = vadd.f32 0.0, %v10359
    %10361 = vmatmul.bf16.gmra.mxu0 %v10045
    %v10362 = vpop.f32.mrf.mxu0
    %v10363 = vadd.f32 0.0, %v10362
    %v10364 = vpop.f32.mrf.mxu0
    %v10365 = vadd.f32 0.0, %v10364
    %10366 = vmatmul.bf16.gmra.mxu0 %v10046
    %v10367 = vpop.f32.mrf.mxu0
    %v10368 = vadd.f32 0.0, %v10367
    %v10369 = vpop.f32.mrf.mxu0
    %v10370 = vadd.f32 0.0, %v10369
    %10371 = vmatmul.bf16.gmra.mxu0 %v10047
    %v10372 = vpop.f32.mrf.mxu0
    %v10373 = vadd.f32 0.0, %v10372
    %v10374 = vpop.f32.mrf.mxu0
    %v10375 = vadd.f32 0.0, %v10374
    %10376 = vmatmul.bf16.gmra.mxu0 %v10048
    %v10377 = vpop.f32.mrf.mxu0
    %v10378 = vadd.f32 0.0, %v10377
    %v10379 = vpop.f32.mrf.mxu0
    %v10380 = vadd.f32 0.0, %v10379
    %10381 = vmatmul.bf16.gmra.mxu0 %v10049
    %v10382 = vpop.f32.mrf.mxu0
    %v10383 = vadd.f32 0.0, %v10382
    %v10384 = vpop.f32.mrf.mxu0
    %v10385 = vadd.f32 0.0, %v10384
    %10386 = vmatmul.bf16.gmra.mxu0 %v10050
    %v10387 = vpop.f32.mrf.mxu0
    %v10388 = vadd.f32 0.0, %v10387
    %v10389 = vpop.f32.mrf.mxu0
    %v10390 = vadd.f32 0.0, %v10389
    %10391 = vmatmul.bf16.gmra.mxu0 %v10051
    %v10392 = vpop.f32.mrf.mxu0
    %v10393 = vadd.f32 0.0, %v10392
    %v10394 = vpop.f32.mrf.mxu0
    %v10395 = vadd.f32 0.0, %v10394
    %10396 = vmatmul.bf16.gmra.mxu0 %v10052
    %v10397 = vpop.f32.mrf.mxu0
    %v10398 = vadd.f32 0.0, %v10397
    %v10399 = vpop.f32.mrf.mxu0
    %v10400 = vadd.f32 0.0, %v10399
    %10401 = vmatmul.bf16.gmra.mxu0 %v10053
    %v10402 = vpop.f32.mrf.mxu0
    %v10403 = vadd.f32 0.0, %v10402
    %v10404 = vpop.f32.mrf.mxu0
    %v10405 = vadd.f32 0.0, %v10404
    %10406 = vmatmul.bf16.gmra.mxu0 %v10054
    %v10407 = vpop.f32.mrf.mxu0
    %v10408 = vadd.f32 0.0, %v10407
    %v10409 = vpop.f32.mrf.mxu0
    %v10410 = vadd.f32 0.0, %v10409
    %10411 = vmatmul.bf16.gmra.mxu0 %v10055
    %v10412 = vpop.f32.mrf.mxu0
    %v10413 = vadd.f32 0.0, %v10412
    %v10414 = vpop.f32.mrf.mxu0
    %v10415 = vadd.f32 0.0, %v10414
    %10416 = vmatmul.bf16.gmra.mxu0 %v10056
    %v10417 = vpop.f32.mrf.mxu0
    %v10418 = vadd.f32 0.0, %v10417
    %v10419 = vpop.f32.mrf.mxu0
    %v10420 = vadd.f32 0.0, %v10419
    %10421 = vmatmul.bf16.gmra.mxu0 %v10057
    %v10422 = vpop.f32.mrf.mxu0
    %v10423 = vadd.f32 0.0, %v10422
    %v10424 = vpop.f32.mrf.mxu0
    %v10425 = vadd.f32 0.0, %v10424
    %10426 = vmatmul.bf16.gmra.mxu0 %v10058
    %v10427 = vpop.f32.mrf.mxu0
    %v10428 = vadd.f32 0.0, %v10427
    %v10429 = vpop.f32.mrf.mxu0
    %v10430 = vadd.f32 0.0, %v10429
    %10431 = vmatmul.bf16.gmra.mxu0 %v10059
    %v10432 = vpop.f32.mrf.mxu0
    %v10433 = vadd.f32 0.0, %v10432
    %v10434 = vpop.f32.mrf.mxu0
    %v10435 = vadd.f32 0.0, %v10434
    %10436 = vmatmul.bf16.gmra.mxu0 %v10060
    %v10437 = vpop.f32.mrf.mxu0
    %v10438 = vadd.f32 0.0, %v10437
    %v10439 = vpop.f32.mrf.mxu0
    %v10440 = vadd.f32 0.0, %v10439
    %10441 = vmatmul.bf16.gmra.mxu0 %v10061
    %v10442 = vpop.f32.mrf.mxu0
    %v10443 = vadd.f32 0.0, %v10442
    %v10444 = vpop.f32.mrf.mxu0
    %v10445 = vadd.f32 0.0, %v10444
    %10446 = vmatmul.bf16.gmra.mxu0 %v10062
    %v10447 = vpop.f32.mrf.mxu0
    %v10448 = vadd.f32 0.0, %v10447
    %v10449 = vpop.f32.mrf.mxu0
    %v10450 = vadd.f32 0.0, %v10449
    %10451 = vmatmul.bf16.gmra.mxu0 %v10063
    %v10452 = vpop.f32.mrf.mxu0
    %v10453 = vadd.f32 0.0, %v10452
    %v10454 = vpop.f32.mrf.mxu0
    %v10455 = vadd.f32 0.0, %v10454
    %10456 = vmatmul.bf16.gmra.mxu0 %v10064
    %v10457 = vpop.f32.mrf.mxu0
    %v10458 = vadd.f32 0.0, %v10457
    %v10459 = vpop.f32.mrf.mxu0
    %v10460 = vadd.f32 0.0, %v10459
    %10461 = vmatmul.bf16.gmra.mxu0 %v10065
    %v10462 = vpop.f32.mrf.mxu0
    %v10463 = vadd.f32 0.0, %v10462
    %v10464 = vpop.f32.mrf.mxu0
    %v10465 = vadd.f32 0.0, %v10464
    %10466 = vmatmul.bf16.gmra.mxu0 %v10066
    %v10467 = vpop.f32.mrf.mxu0
    %v10468 = vadd.f32 0.0, %v10467
    %v10469 = vpop.f32.mrf.mxu0
    %v10470 = vadd.f32 0.0, %v10469
    %10471 = vmatmul.bf16.gmra.mxu0 %v10067
    %v10472 = vpop.f32.mrf.mxu0
    %v10473 = vadd.f32 0.0, %v10472
    %v10474 = vpop.f32.mrf.mxu0
    %v10475 = vadd.f32 0.0, %v10474
    %10476 = vmatmul.bf16.gmra.mxu0 %v10068
    %v10477 = vpop.f32.mrf.mxu0
    %v10478 = vadd.f32 0.0, %v10477
    %v10479 = vpop.f32.mrf.mxu0
    %v10480 = vadd.f32 0.0, %v10479
    %10481 = vmatmul.bf16.gmra.mxu0 %v10069
    %v10482 = vpop.f32.mrf.mxu0
    %v10483 = vadd.f32 0.0, %v10482
    %v10484 = vpop.f32.mrf.mxu0
    %v10485 = vadd.f32 0.0, %v10484
    %10486 = vmatmul.bf16.gmra.mxu0 %v10070
    %v10487 = vpop.f32.mrf.mxu0
    %v10488 = vadd.f32 0.0, %v10487
    %v10489 = vpop.f32.mrf.mxu0
    %v10490 = vadd.f32 0.0, %v10489
    %10491 = vmatmul.bf16.gmra.mxu0 %v10071
    %v10492 = vpop.f32.mrf.mxu0
    %v10493 = vadd.f32 0.0, %v10492
    %v10494 = vpop.f32.mrf.mxu0
    %v10495 = vadd.f32 0.0, %v10494
    %10496 = vdwg.mxu0
    %10497 = vmatpush.bf16.msra.mxu0 %v10222
    %10498 = vmatpush.bf16.msra.mxu0 %v10219
    %10499 = vmatpush.bf16.msra.mxu0 %v10216
    %10500 = vmatpush.bf16.msra.mxu0 %v10213
    %10501 = vmatpush.bf16.msra.mxu0 %v10210
    %10502 = vmatpush.bf16.msra.mxu0 %v10207
    %10503 = vmatpush.bf16.msra.mxu0 %v10204
    %10504 = vmatpush.bf16.msra.mxu0 %v10201
    %10505 = vmatmul.bf16.gmra.mxu0 %v10024
    %v10506 = vpop.f32.mrf.mxu0
    %v10507 = vadd.f32 0.0, %v10506
    %v10508 = vpop.f32.mrf.mxu0
    %v10509 = vadd.f32 0.0, %v10508
    %10510 = vmatmul.bf16.gmra.mxu0 %v10025
    %v10511 = vpop.f32.mrf.mxu0
    %v10512 = vpop.f32.mrf.mxu0
    %v10513 = vadd.f32 0.0, %v10512
    %10514 = vmatmul.bf16.gmra.mxu0 %v10026
    %v10515 = vpop.f32.mrf.mxu0
    %v10516 = vadd.f32 0.0, %v10515
    %v10517 = vpop.f32.mrf.mxu0
    %10518 = vmatmul.bf16.gmra.mxu0 %v10027
    %v10519 = vpop.f32.mrf.mxu0
    %v10520 = vadd.f32 0.0, %v10519
    %v10521 = vpop.f32.mrf.mxu0
    %v10522 = vadd.f32 0.0, %v10521
    %10523 = vmatmul.bf16.gmra.mxu0 %v10028
    %v10524 = vpop.f32.mrf.mxu0
    %v10525 = vpop.f32.mrf.mxu0
    %v10526 = vadd.f32 0.0, %v10525
    %10527 = vmatmul.bf16.gmra.mxu0 %v10029
    %v10528 = vpop.f32.mrf.mxu0
    %v10529 = vadd.f32 0.0, %v10528
    %v10530 = vpop.f32.mrf.mxu0
    %10531 = vmatmul.bf16.gmra.mxu0 %v10030
    %v10532 = vpop.f32.mrf.mxu0
    %v10533 = vadd.f32 0.0, %v10532
    %v10534 = vpop.f32.mrf.mxu0
    %v10535 = vadd.f32 0.0, %v10534
    %10536 = vmatmul.bf16.gmra.mxu0 %v10031
    %v10537 = vpop.f32.mrf.mxu0
    %v10538 = vpop.f32.mrf.mxu0
    %v10539 = vadd.f32 0.0, %v10538
    %10540 = vmatmul.bf16.gmra.mxu0 %v10032
    %v10541 = vpop.f32.mrf.mxu0
    %v10542 = vadd.f32 0.0, %v10541
    %v10543 = vpop.f32.mrf.mxu0
    %10544 = vmatmul.bf16.gmra.mxu0 %v10033
    %v10545 = vpop.f32.mrf.mxu0
    %v10546 = vadd.f32 0.0, %v10545
    %v10547 = vpop.f32.mrf.mxu0
    %v10548 = vadd.f32 0.0, %v10547
    %10549 = vmatmul.bf16.gmra.mxu0 %v10034
    %v10550 = vpop.f32.mrf.mxu0
    %v10551 = vpop.f32.mrf.mxu0
    %v10552 = vadd.f32 0.0, %v10551
    %10553 = vmatmul.bf16.gmra.mxu0 %v10035
    %v10554 = vpop.f32.mrf.mxu0
    %v10555 = vadd.f32 0.0, %v10554
    %v10556 = vpop.f32.mrf.mxu0
    %10557 = vmatmul.bf16.gmra.mxu0 %v10036
    %v10558 = vpop.f32.mrf.mxu0
    %v10559 = vadd.f32 0.0, %v10558
    %v10560 = vpop.f32.mrf.mxu0
    %v10561 = vadd.f32 0.0, %v10560
    %10562 = vmatmul.bf16.gmra.mxu0 %v10037
    %v10563 = vpop.f32.mrf.mxu0
    %v10564 = vpop.f32.mrf.mxu0
    %v10565 = vadd.f32 0.0, %v10564
    %10566 = vmatmul.bf16.gmra.mxu0 %v10038
    %v10567 = vpop.f32.mrf.mxu0
    %v10568 = vadd.f32 0.0, %v10567
    %v10569 = vpop.f32.mrf.mxu0
    %10570 = vmatmul.bf16.gmra.mxu0 %v10039
    %v10571 = vpop.f32.mrf.mxu0
    %v10572 = vadd.f32 0.0, %v10571
    %v10573 = vpop.f32.mrf.mxu0
    %v10574 = vadd.f32 0.0, %v10573
    %10575 = vmatmul.bf16.gmra.mxu0 %v10040
    %v10576 = vpop.f32.mrf.mxu0
    %v10577 = vpop.f32.mrf.mxu0
    %v10578 = vadd.f32 0.0, %v10577
    %10579 = vmatmul.bf16.gmra.mxu0 %v10041
    %v10580 = vpop.f32.mrf.mxu0
    %v10581 = vadd.f32 0.0, %v10580
    %v10582 = vpop.f32.mrf.mxu0
    %10583 = vmatmul.bf16.gmra.mxu0 %v10042
    %v10584 = vpop.f32.mrf.mxu0
    %v10585 = vadd.f32 0.0, %v10584
    %v10586 = vpop.f32.mrf.mxu0
    %v10587 = vadd.f32 0.0, %v10586
    %10588 = vmatmul.bf16.gmra.mxu0 %v10043
    %v10589 = vpop.f32.mrf.mxu0
    %v10590 = vpop.f32.mrf.mxu0
    %v10591 = vadd.f32 0.0, %v10590
    %10592 = vmatmul.bf16.gmra.mxu0 %v10044
    %v10593 = vpop.f32.mrf.mxu0
    %v10594 = vadd.f32 0.0, %v10593
    %v10595 = vpop.f32.mrf.mxu0
    %10596 = vmatmul.bf16.gmra.mxu0 %v10045
    %v10597 = vpop.f32.mrf.mxu0
    %v10598 = vadd.f32 0.0, %v10597
    %v10599 = vpop.f32.mrf.mxu0
    %v10600 = vadd.f32 0.0, %v10599
    %10601 = vmatmul.bf16.gmra.mxu0 %v10046
    %v10602 = vpop.f32.mrf.mxu0
    %v10603 = vpop.f32.mrf.mxu0
    %v10604 = vadd.f32 0.0, %v10603
    %10605 = vmatmul.bf16.gmra.mxu0 %v10047
    %v10606 = vpop.f32.mrf.mxu0
    %v10607 = vadd.f32 0.0, %v10606
    %v10608 = vpop.f32.mrf.mxu0
    %10609 = vmatmul.bf16.gmra.mxu0 %v10048
    %v10610 = vpop.f32.mrf.mxu0
    %v10611 = vadd.f32 0.0, %v10610
    %v10612 = vpop.f32.mrf.mxu0
    %v10613 = vadd.f32 0.0, %v10612
    %10614 = vmatmul.bf16.gmra.mxu0 %v10049
    %v10615 = vpop.f32.mrf.mxu0
    %v10616 = vpop.f32.mrf.mxu0
    %v10617 = vadd.f32 0.0, %v10616
    %10618 = vmatmul.bf16.gmra.mxu0 %v10050
    %v10619 = vpop.f32.mrf.mxu0
    %v10620 = vadd.f32 0.0, %v10619
    %v10621 = vpop.f32.mrf.mxu0
    %10622 = vmatmul.bf16.gmra.mxu0 %v10051
    %v10623 = vpop.f32.mrf.mxu0
    %v10624 = vadd.f32 0.0, %v10623
    %v10625 = vpop.f32.mrf.mxu0
    %v10626 = vadd.f32 0.0, %v10625
    %10627 = vmatmul.bf16.gmra.mxu0 %v10052
    %v10628 = vpop.f32.mrf.mxu0
    %v10629 = vpop.f32.mrf.mxu0
    %v10630 = vadd.f32 0.0, %v10629
    %10631 = vmatmul.bf16.gmra.mxu0 %v10053
    %v10632 = vpop.f32.mrf.mxu0
    %v10633 = vadd.f32 0.0, %v10632
    %v10634 = vpop.f32.mrf.mxu0
    %10635 = vmatmul.bf16.gmra.mxu0 %v10054
    %v10636 = vpop.f32.mrf.mxu0
    %v10637 = vadd.f32 0.0, %v10636
    %v10638 = vpop.f32.mrf.mxu0
    %v10639 = vadd.f32 0.0, %v10638
    %10640 = vmatmul.bf16.gmra.mxu0 %v10055
    %v10641 = vpop.f32.mrf.mxu0
    %v10642 = vpop.f32.mrf.mxu0
    %v10643 = vadd.f32 0.0, %v10642
    %10644 = vmatmul.bf16.gmra.mxu0 %v10056
    %v10645 = vpop.f32.mrf.mxu0
    %v10646 = vadd.f32 0.0, %v10645
    %v10647 = vpop.f32.mrf.mxu0
    %10648 = vmatmul.bf16.gmra.mxu0 %v10057
    %v10649 = vpop.f32.mrf.mxu0
    %v10650 = vadd.f32 0.0, %v10649
    %v10651 = vpop.f32.mrf.mxu0
    %v10652 = vadd.f32 0.0, %v10651
    %10653 = vmatmul.bf16.gmra.mxu0 %v10058
    %v10654 = vpop.f32.mrf.mxu0
    %v10655 = vpop.f32.mrf.mxu0
    %v10656 = vadd.f32 0.0, %v10655
    %10657 = vmatmul.bf16.gmra.mxu0 %v10059
    %v10658 = vpop.f32.mrf.mxu0
    %v10659 = vadd.f32 0.0, %v10658
    %v10660 = vpop.f32.mrf.mxu0
    %10661 = vmatmul.bf16.gmra.mxu0 %v10060
    %v10662 = vpop.f32.mrf.mxu0
    %v10663 = vadd.f32 0.0, %v10662
    %v10664 = vpop.f32.mrf.mxu0
    %v10665 = vadd.f32 0.0, %v10664
    %10666 = vmatmul.bf16.gmra.mxu0 %v10061
    %v10667 = vpop.f32.mrf.mxu0
    %v10668 = vpop.f32.mrf.mxu0
    %v10669 = vadd.f32 0.0, %v10668
    %10670 = vmatmul.bf16.gmra.mxu0 %v10062
    %v10671 = vpop.f32.mrf.mxu0
    %v10672 = vadd.f32 0.0, %v10671
    %v10673 = vpop.f32.mrf.mxu0
    %10674 = vmatmul.bf16.gmra.mxu0 %v10063
    %v10675 = vpop.f32.mrf.mxu0
    %v10676 = vadd.f32 0.0, %v10675
    %v10677 = vpop.f32.mrf.mxu0
    %v10678 = vadd.f32 0.0, %v10677
    %10679 = vmatmul.bf16.gmra.mxu0 %v10064
    %v10680 = vpop.f32.mrf.mxu0
    %v10681 = vpop.f32.mrf.mxu0
    %v10682 = vadd.f32 0.0, %v10681
    %10683 = vmatmul.bf16.gmra.mxu0 %v10065
    %v10684 = vpop.f32.mrf.mxu0
    %v10685 = vadd.f32 0.0, %v10684
    %v10686 = vpop.f32.mrf.mxu0
    %10687 = vmatmul.bf16.gmra.mxu0 %v10066
    %v10688 = vpop.f32.mrf.mxu0
    %v10689 = vadd.f32 0.0, %v10688
    %v10690 = vpop.f32.mrf.mxu0
    %v10691 = vadd.f32 0.0, %v10690
    %10692 = vmatmul.bf16.gmra.mxu0 %v10067
    %v10693 = vpop.f32.mrf.mxu0
    %v10694 = vpop.f32.mrf.mxu0
    %v10695 = vadd.f32 0.0, %v10694
    %10696 = vmatmul.bf16.gmra.mxu0 %v10068
    %v10697 = vpop.f32.mrf.mxu0
    %v10698 = vadd.f32 0.0, %v10697
    %v10699 = vpop.f32.mrf.mxu0
    %10700 = vmatmul.bf16.gmra.mxu0 %v10069
    %v10701 = vpop.f32.mrf.mxu0
    %v10702 = vadd.f32 0.0, %v10701
    %v10703 = vpop.f32.mrf.mxu0
    %v10704 = vadd.f32 0.0, %v10703
    %10705 = vmatmul.bf16.gmra.mxu0 %v10070
    %v10706 = vpop.f32.mrf.mxu0
    %v10707 = vpop.f32.mrf.mxu0
    %v10708 = vadd.f32 0.0, %v10707
    %10709 = vmatmul.bf16.gmra.mxu0 %v10071
    %v10710 = vpop.f32.mrf.mxu0
    %v10711 = vadd.f32 0.0, %v10710
    %v10712 = vpop.f32.mrf.mxu0
    %10713 = vdwg.mxu0
    %10714 = vmatpush.bf16.msra.mxu0 %v10223
    %10715 = vmatpush.bf16.msra.mxu0 %v10220
    %10716 = vmatpush.bf16.msra.mxu0 %v10217
    %10717 = vmatpush.bf16.msra.mxu0 %v10214
    %10718 = vmatpush.bf16.msra.mxu0 %v10211
    %10719 = vmatpush.bf16.msra.mxu0 %v10208
    %10720 = vmatpush.bf16.msra.mxu0 %v10205
    %10721 = vmatpush.bf16.msra.mxu0 %v10202
    %10722 = vmatmul.bf16.gmra.mxu0 %v10024
    %v10723 = vpop.f32.mrf.mxu0
    %v10724 = vadd.f32 0.0, %v10723
    %v10725 = vpop.f32.mrf.mxu0
    %v10726 = vadd.f32 0.0, %v10725
    %10727 = vmatmul.bf16.gmra.mxu0 %v10025
    %v10728 = vpop.f32.mrf.mxu0
    %v10729 = vadd.f32 0.0, %v10728
    %v10730 = vpop.f32.mrf.mxu0
    %v10731 = vadd.f32 0.0, %v10730
    %10732 = vmatmul.bf16.gmra.mxu0 %v10026
    %v10733 = vpop.f32.mrf.mxu0
    %v10734 = vadd.f32 0.0, %v10733
    %v10735 = vpop.f32.mrf.mxu0
    %v10736 = vadd.f32 0.0, %v10735
    %10737 = vmatmul.bf16.gmra.mxu0 %v10027
    %v10738 = vpop.f32.mrf.mxu0
    %v10739 = vadd.f32 0.0, %v10738
    %v10740 = vpop.f32.mrf.mxu0
    %v10741 = vadd.f32 0.0, %v10740
    %10742 = vmatmul.bf16.gmra.mxu0 %v10028
    %v10743 = vpop.f32.mrf.mxu0
    %v10744 = vadd.f32 0.0, %v10743
    %v10745 = vpop.f32.mrf.mxu0
    %v10746 = vadd.f32 0.0, %v10745
    %10747 = vmatmul.bf16.gmra.mxu0 %v10029
    %v10748 = vpop.f32.mrf.mxu0
    %v10749 = vadd.f32 0.0, %v10748
    %v10750 = vpop.f32.mrf.mxu0
    %v10751 = vadd.f32 0.0, %v10750
    %10752 = vmatmul.bf16.gmra.mxu0 %v10030
    %v10753 = vpop.f32.mrf.mxu0
    %v10754 = vadd.f32 0.0, %v10753
    %v10755 = vpop.f32.mrf.mxu0
    %v10756 = vadd.f32 0.0, %v10755
    %10757 = vmatmul.bf16.gmra.mxu0 %v10031
    %v10758 = vpop.f32.mrf.mxu0
    %v10759 = vadd.f32 0.0, %v10758
    %v10760 = vpop.f32.mrf.mxu0
    %v10761 = vadd.f32 0.0, %v10760
    %10762 = vmatmul.bf16.gmra.mxu0 %v10032
    %v10763 = vpop.f32.mrf.mxu0
    %v10764 = vadd.f32 0.0, %v10763
    %v10765 = vpop.f32.mrf.mxu0
    %v10766 = vadd.f32 0.0, %v10765
    %10767 = vmatmul.bf16.gmra.mxu0 %v10033
    %v10768 = vpop.f32.mrf.mxu0
    %v10769 = vadd.f32 0.0, %v10768
    %v10770 = vpop.f32.mrf.mxu0
    %v10771 = vadd.f32 0.0, %v10770
    %10772 = vmatmul.bf16.gmra.mxu0 %v10034
    %v10773 = vpop.f32.mrf.mxu0
    %v10774 = vadd.f32 0.0, %v10773
    %v10775 = vpop.f32.mrf.mxu0
    %v10776 = vadd.f32 0.0, %v10775
    %10777 = vmatmul.bf16.gmra.mxu0 %v10035
    %v10778 = vpop.f32.mrf.mxu0
    %v10779 = vadd.f32 0.0, %v10778
    %v10780 = vpop.f32.mrf.mxu0
    %v10781 = vadd.f32 0.0, %v10780
    %10782 = vmatmul.bf16.gmra.mxu0 %v10036
    %v10783 = vpop.f32.mrf.mxu0
    %v10784 = vadd.f32 0.0, %v10783
    %v10785 = vpop.f32.mrf.mxu0
    %v10786 = vadd.f32 0.0, %v10785
    %10787 = vmatmul.bf16.gmra.mxu0 %v10037
    %v10788 = vpop.f32.mrf.mxu0
    %v10789 = vadd.f32 0.0, %v10788
    %v10790 = vpop.f32.mrf.mxu0
    %v10791 = vadd.f32 0.0, %v10790
    %10792 = vmatmul.bf16.gmra.mxu0 %v10038
    %v10793 = vpop.f32.mrf.mxu0
    %v10794 = vadd.f32 0.0, %v10793
    %v10795 = vpop.f32.mrf.mxu0
    %v10796 = vadd.f32 0.0, %v10795
    %10797 = vmatmul.bf16.gmra.mxu0 %v10039
    %v10798 = vpop.f32.mrf.mxu0
    %v10799 = vadd.f32 0.0, %v10798
    %v10800 = vpop.f32.mrf.mxu0
    %v10801 = vadd.f32 0.0, %v10800
    %10802 = vmatmul.bf16.gmra.mxu0 %v10040
    %v10803 = vpop.f32.mrf.mxu0
    %v10804 = vadd.f32 0.0, %v10803
    %v10805 = vpop.f32.mrf.mxu0
    %v10806 = vadd.f32 0.0, %v10805
    %10807 = vmatmul.bf16.gmra.mxu0 %v10041
    %v10808 = vpop.f32.mrf.mxu0
    %v10809 = vadd.f32 0.0, %v10808
    %v10810 = vpop.f32.mrf.mxu0
    %v10811 = vadd.f32 0.0, %v10810
    %10812 = vmatmul.bf16.gmra.mxu0 %v10042
    %v10813 = vpop.f32.mrf.mxu0
    %v10814 = vadd.f32 0.0, %v10813
    %v10815 = vpop.f32.mrf.mxu0
    %v10816 = vadd.f32 0.0, %v10815
    %10817 = vmatmul.bf16.gmra.mxu0 %v10043
    %v10818 = vpop.f32.mrf.mxu0
    %v10819 = vadd.f32 0.0, %v10818
    %v10820 = vpop.f32.mrf.mxu0
    %v10821 = vadd.f32 0.0, %v10820
    %10822 = vmatmul.bf16.gmra.mxu0 %v10044
    %v10823 = vpop.f32.mrf.mxu0
    %v10824 = vadd.f32 0.0, %v10823
    %v10825 = vpop.f32.mrf.mxu0
    %v10826 = vadd.f32 0.0, %v10825
    %10827 = vmatmul.bf16.gmra.mxu0 %v10045
    %v10828 = vpop.f32.mrf.mxu0
    %v10829 = vadd.f32 0.0, %v10828
    %v10830 = vpop.f32.mrf.mxu0
    %v10831 = vadd.f32 0.0, %v10830
    %10832 = vmatmul.bf16.gmra.mxu0 %v10046
    %v10833 = vpop.f32.mrf.mxu0
    %v10834 = vadd.f32 0.0, %v10833
    %v10835 = vpop.f32.mrf.mxu0
    %v10836 = vadd.f32 0.0, %v10835
    %10837 = vmatmul.bf16.gmra.mxu0 %v10047
    %v10838 = vpop.f32.mrf.mxu0
    %v10839 = vadd.f32 0.0, %v10838
    %v10840 = vpop.f32.mrf.mxu0
    %v10841 = vadd.f32 0.0, %v10840
    %10842 = vmatmul.bf16.gmra.mxu0 %v10048
    %v10843 = vpop.f32.mrf.mxu0
    %v10844 = vadd.f32 0.0, %v10843
    %v10845 = vpop.f32.mrf.mxu0
    %v10846 = vadd.f32 0.0, %v10845
    %10847 = vmatmul.bf16.gmra.mxu0 %v10049
    %v10848 = vpop.f32.mrf.mxu0
    %v10849 = vadd.f32 0.0, %v10848
    %v10850 = vpop.f32.mrf.mxu0
    %v10851 = vadd.f32 0.0, %v10850
    %10852 = vmatmul.bf16.gmra.mxu0 %v10050
    %v10853 = vpop.f32.mrf.mxu0
    %v10854 = vadd.f32 0.0, %v10853
    %v10855 = vpop.f32.mrf.mxu0
    %v10856 = vadd.f32 0.0, %v10855
    %10857 = vmatmul.bf16.gmra.mxu0 %v10051
    %v10858 = vpop.f32.mrf.mxu0
    %v10859 = vadd.f32 0.0, %v10858
    %v10860 = vpop.f32.mrf.mxu0
    %v10861 = vadd.f32 0.0, %v10860
    %10862 = vmatmul.bf16.gmra.mxu0 %v10052
    %v10863 = vpop.f32.mrf.mxu0
    %v10864 = vadd.f32 0.0, %v10863
    %v10865 = vpop.f32.mrf.mxu0
    %v10866 = vadd.f32 0.0, %v10865
    %10867 = vmatmul.bf16.gmra.mxu0 %v10053
    %v10868 = vpop.f32.mrf.mxu0
    %v10869 = vadd.f32 0.0, %v10868
    %v10870 = vpop.f32.mrf.mxu0
    %v10871 = vadd.f32 0.0, %v10870
    %10872 = vmatmul.bf16.gmra.mxu0 %v10054
    %v10873 = vpop.f32.mrf.mxu0
    %v10874 = vadd.f32 0.0, %v10873
    %v10875 = vpop.f32.mrf.mxu0
    %v10876 = vadd.f32 0.0, %v10875
    %10877 = vmatmul.bf16.gmra.mxu0 %v10055
    %v10878 = vpop.f32.mrf.mxu0
    %v10879 = vadd.f32 0.0, %v10878
    %v10880 = vpop.f32.mrf.mxu0
    %v10881 = vadd.f32 0.0, %v10880
    %10882 = vmatmul.bf16.gmra.mxu0 %v10056
    %v10883 = vpop.f32.mrf.mxu0
    %v10884 = vadd.f32 0.0, %v10883
    %v10885 = vpop.f32.mrf.mxu0
    %v10886 = vadd.f32 0.0, %v10885
    %10887 = vmatmul.bf16.gmra.mxu0 %v10057
    %v10888 = vpop.f32.mrf.mxu0
    %v10889 = vadd.f32 0.0, %v10888
    %v10890 = vpop.f32.mrf.mxu0
    %v10891 = vadd.f32 0.0, %v10890
    %10892 = vmatmul.bf16.gmra.mxu0 %v10058
    %v10893 = vpop.f32.mrf.mxu0
    %v10894 = vadd.f32 0.0, %v10893
    %v10895 = vpop.f32.mrf.mxu0
    %v10896 = vadd.f32 0.0, %v10895
    %10897 = vmatmul.bf16.gmra.mxu0 %v10059
    %v10898 = vpop.f32.mrf.mxu0
    %v10899 = vadd.f32 0.0, %v10898
    %v10900 = vpop.f32.mrf.mxu0
    %v10901 = vadd.f32 0.0, %v10900
    %10902 = vmatmul.bf16.gmra.mxu0 %v10060
    %v10903 = vpop.f32.mrf.mxu0
    %v10904 = vadd.f32 0.0, %v10903
    %v10905 = vpop.f32.mrf.mxu0
    %v10906 = vadd.f32 0.0, %v10905
    %10907 = vmatmul.bf16.gmra.mxu0 %v10061
    %v10908 = vpop.f32.mrf.mxu0
    %v10909 = vadd.f32 0.0, %v10908
    %v10910 = vpop.f32.mrf.mxu0
    %v10911 = vadd.f32 0.0, %v10910
    %10912 = vmatmul.bf16.gmra.mxu0 %v10062
    %v10913 = vpop.f32.mrf.mxu0
    %v10914 = vadd.f32 0.0, %v10913
    %v10915 = vpop.f32.mrf.mxu0
    %v10916 = vadd.f32 0.0, %v10915
    %10917 = vmatmul.bf16.gmra.mxu0 %v10063
    %v10918 = vpop.f32.mrf.mxu0
    %v10919 = vadd.f32 0.0, %v10918
    %v10920 = vpop.f32.mrf.mxu0
    %v10921 = vadd.f32 0.0, %v10920
    %10922 = vmatmul.bf16.gmra.mxu0 %v10064
    %v10923 = vpop.f32.mrf.mxu0
    %v10924 = vadd.f32 0.0, %v10923
    %v10925 = vpop.f32.mrf.mxu0
    %v10926 = vadd.f32 0.0, %v10925
    %10927 = vmatmul.bf16.gmra.mxu0 %v10065
    %v10928 = vpop.f32.mrf.mxu0
    %v10929 = vadd.f32 0.0, %v10928
    %v10930 = vpop.f32.mrf.mxu0
    %v10931 = vadd.f32 0.0, %v10930
    %10932 = vmatmul.bf16.gmra.mxu0 %v10066
    %v10933 = vpop.f32.mrf.mxu0
    %v10934 = vadd.f32 0.0, %v10933
    %v10935 = vpop.f32.mrf.mxu0
    %v10936 = vadd.f32 0.0, %v10935
    %10937 = vmatmul.bf16.gmra.mxu0 %v10067
    %v10938 = vpop.f32.mrf.mxu0
    %v10939 = vadd.f32 0.0, %v10938
    %v10940 = vpop.f32.mrf.mxu0
    %v10941 = vadd.f32 0.0, %v10940
    %10942 = vmatmul.bf16.gmra.mxu0 %v10068
    %v10943 = vpop.f32.mrf.mxu0
    %v10944 = vadd.f32 0.0, %v10943
    %v10945 = vpop.f32.mrf.mxu0
    %v10946 = vadd.f32 0.0, %v10945
    %10947 = vmatmul.bf16.gmra.mxu0 %v10069
    %v10948 = vpop.f32.mrf.mxu0
    %v10949 = vadd.f32 0.0, %v10948
    %v10950 = vpop.f32.mrf.mxu0
    %v10951 = vadd.f32 0.0, %v10950
    %10952 = vmatmul.bf16.gmra.mxu0 %v10070
    %v10953 = vpop.f32.mrf.mxu0
    %v10954 = vadd.f32 0.0, %v10953
    %v10955 = vpop.f32.mrf.mxu0
    %v10956 = vadd.f32 0.0, %v10955
    %10957 = vmatmul.bf16.gmra.mxu0 %v10071
    %v10958 = vpop.f32.mrf.mxu0
    %v10959 = vadd.f32 0.0, %v10958
    %v10960 = vpop.f32.mrf.mxu0
    %v10961 = vadd.f32 0.0, %v10960
    %10962 = vdwg.mxu0
    %v10963 = vrot.slane %v10258, 7
    %v10964 = vrot.slane %v10260, 7
    %v10965 = vrot.slane %v10263, 7
    %v10966 = vrot.slane %v10265, 7
    %v10967 = vrot.slane %v10268, 7
    %v10968 = vrot.slane %v10270, 7
    %v10969 = vrot.slane %v10273, 7
    %v10970 = vrot.slane %v10275, 7
    %v10971 = vrot.slane %v10278, 7
    %v10972 = vrot.slane %v10280, 7
    %v10973 = vrot.slane %v10283, 7
    %v10974 = vrot.slane %v10285, 7
    %v10975 = vrot.slane %v10288, 7
    %v10976 = vrot.slane %v10290, 7
    %v10977 = vrot.slane %v10293, 7
    %v10978 = vrot.slane %v10295, 7
    %v10979 = vrot.slane %v10298, 7
    %v10980 = vrot.slane %v10300, 7
    %v10981 = vrot.slane %v10303, 7
    %v10982 = vrot.slane %v10305, 7
    %v10983 = vrot.slane %v10308, 7
    %v10984 = vrot.slane %v10310, 7
    %v10985 = vrot.slane %v10313, 7
    %v10986 = vrot.slane %v10315, 7
    %v10987 = vrot.slane %v10318, 7
    %v10988 = vrot.slane %v10320, 7
    %v10989 = vrot.slane %v10323, 7
    %v10990 = vrot.slane %v10325, 7
    %v10991 = vrot.slane %v10328, 7
    %v10992 = vrot.slane %v10330, 7
    %v10993 = vrot.slane %v10333, 7
    %v10994 = vrot.slane %v10335, 7
    %v10995 = vrot.slane %v10338, 7
    %v10996 = vrot.slane %v10340, 7
    %v10997 = vrot.slane %v10343, 7
    %v10998 = vrot.slane %v10345, 7
    %v10999 = vrot.slane %v10348, 7
    %v11000 = vrot.slane %v10350, 7
    %v11001 = vrot.slane %v10353, 7
    %v11002 = vrot.slane %v10355, 7
    %v11003 = vrot.slane %v10358, 7
    %v11004 = vrot.slane %v10360, 7
    %v11005 = vrot.slane %v10363, 7
    %v11006 = vrot.slane %v10365, 7
    %v11007 = vrot.slane %v10368, 7
    %v11008 = vrot.slane %v10370, 7
    %v11009 = vrot.slane %v10373, 7
    %v11010 = vrot.slane %v10375, 7
    %v11011 = vrot.slane %v10378, 7
    %v11012 = vrot.slane %v10380, 7
    %v11013 = vrot.slane %v10383, 7
    %v11014 = vrot.slane %v10385, 7
    %v11015 = vrot.slane %v10388, 7
    %v11016 = vrot.slane %v10390, 7
    %v11017 = vrot.slane %v10393, 7
    %v11018 = vrot.slane %v10395, 7
    %v11019 = vrot.slane %v10398, 7
    %v11020 = vrot.slane %v10400, 7
    %v11021 = vrot.slane %v10403, 7
    %v11022 = vrot.slane %v10405, 7
    %v11023 = vrot.slane %v10408, 7
    %v11024 = vrot.slane %v10410, 7
    %v11025 = vrot.slane %v10413, 7
    %v11026 = vrot.slane %v10415, 7
    %v11027 = vrot.slane %v10418, 7
    %v11028 = vrot.slane %v10420, 7
    %v11029 = vrot.slane %v10423, 7
    %v11030 = vrot.slane %v10425, 7
    %v11031 = vrot.slane %v10428, 7
    %v11032 = vrot.slane %v10430, 7
    %v11033 = vrot.slane %v10433, 7
    %v11034 = vrot.slane %v10435, 7
    %v11035 = vrot.slane %v10438, 7
    %v11036 = vrot.slane %v10440, 7
    %v11037 = vrot.slane %v10443, 7
    %v11038 = vrot.slane %v10445, 7
    %v11039 = vrot.slane %v10448, 7
    %v11040 = vrot.slane %v10450, 7
    %v11041 = vrot.slane %v10453, 7
    %v11042 = vrot.slane %v10455, 7
    %v11043 = vrot.slane %v10458, 7
    %v11044 = vrot.slane %v10460, 7
    %v11045 = vrot.slane %v10463, 7
    %v11046 = vrot.slane %v10465, 7
    %v11047 = vrot.slane %v10468, 7
    %v11048 = vrot.slane %v10470, 7
    %v11049 = vrot.slane %v10473, 7
    %v11050 = vrot.slane %v10475, 7
    %v11051 = vrot.slane %v10478, 7
    %v11052 = vrot.slane %v10480, 7
    %v11053 = vrot.slane %v10483, 7
    %v11054 = vrot.slane %v10485, 7
    %v11055 = vrot.slane %v10488, 7
    %v11056 = vrot.slane %v10490, 7
    %v11057 = vrot.slane %v10493, 7
    %v11058 = vrot.slane %v10495, 7
    %v11059 = vsel %vm1662, %v11056, %v11057
    %v11060 = vsel %vm1662, %v11055, %v11056
    %v11061 = vsel %vm1662, %v11053, %v11054
    %v11062 = vsel %vm1662, %v11052, %v11053
    %v11063 = vsel %vm1662, %v11050, %v11051
    %v11064 = vsel %vm1662, %v11049, %v11050
    %v11065 = vsel %vm1662, %v11047, %v11048
    %v11066 = vsel %vm1662, %v11046, %v11047
    %v11067 = vsel %vm1662, %v11044, %v11045
    %v11068 = vsel %vm1662, %v11043, %v11044
    %v11069 = vsel %vm1662, %v11041, %v11042
    %v11070 = vsel %vm1662, %v11040, %v11041
    %v11071 = vsel %vm1662, %v11038, %v11039
    %v11072 = vsel %vm1662, %v11037, %v11038
    %v11073 = vsel %vm1662, %v11035, %v11036
    %v11074 = vsel %vm1662, %v11034, %v11035
    %v11075 = vsel %vm1662, %v11032, %v11033
    %v11076 = vsel %vm1662, %v11031, %v11032
    %v11077 = vsel %vm1662, %v11029, %v11030
    %v11078 = vsel %vm1662, %v11028, %v11029
    %v11079 = vsel %vm1662, %v11026, %v11027
    %v11080 = vsel %vm1662, %v11025, %v11026
    %v11081 = vsel %vm1662, %v11023, %v11024
    %v11082 = vsel %vm1662, %v11022, %v11023
    %v11083 = vsel %vm1662, %v11020, %v11021
    %v11084 = vsel %vm1662, %v11019, %v11020
    %v11085 = vsel %vm1662, %v11017, %v11018
    %v11086 = vsel %vm1662, %v11016, %v11017
    %v11087 = vsel %vm1662, %v11014, %v11015
    %v11088 = vsel %vm1662, %v11013, %v11014
    %v11089 = vsel %vm1662, %v11011, %v11012
    %v11090 = vsel %vm1662, %v11010, %v11011
    %v11091 = vsel %vm1662, %v11008, %v11009
    %v11092 = vsel %vm1662, %v11007, %v11008
    %v11093 = vsel %vm1662, %v11005, %v11006
    %v11094 = vsel %vm1662, %v11004, %v11005
    %v11095 = vsel %vm1662, %v11002, %v11003
    %v11096 = vsel %vm1662, %v11001, %v11002
    %v11097 = vsel %vm1662, %v10999, %v11000
    %v11098 = vsel %vm1662, %v10998, %v10999
    %v11099 = vsel %vm1662, %v10996, %v10997
    %v11100 = vsel %vm1662, %v10995, %v10996
    %v11101 = vsel %vm1662, %v10993, %v10994
    %v11102 = vsel %vm1662, %v10992, %v10993
    %v11103 = vsel %vm1662, %v10990, %v10991
    %v11104 = vsel %vm1662, %v10989, %v10990
    %v11105 = vsel %vm1662, %v10987, %v10988
    %v11106 = vsel %vm1662, %v10986, %v10987
    %v11107 = vsel %vm1662, %v10984, %v10985
    %v11108 = vsel %vm1662, %v10983, %v10984
    %v11109 = vsel %vm1662, %v10981, %v10982
    %v11110 = vsel %vm1662, %v10980, %v10981
    %v11111 = vsel %vm1662, %v10978, %v10979
    %v11112 = vsel %vm1662, %v10977, %v10978
    %v11113 = vsel %vm1662, %v10975, %v10976
    %v11114 = vsel %vm1662, %v10974, %v10975
    %v11115 = vsel %vm1662, %v10972, %v10973
    %v11116 = vsel %vm1662, %v10971, %v10972
    %v11117 = vsel %vm1662, %v10969, %v10970
    %v11118 = vsel %vm1662, %v10968, %v10969
    %v11119 = vsel %vm1662, %v10966, %v10967
    %v11120 = vsel %vm1662, %v10965, %v10966
    %v11121 = vsel %vm1662, %v10963, %v10964
    %v11122 = vsel %vm1662, %v11058, %v10963
    %v11123 = vadd.f32 %v9639, %v11122
    %v11124 = vadd.f32 %v9640, %v11121
    %v11125 = vadd.f32 %v9641, %v11120
    %v11126 = vadd.f32 %v9642, %v11119
    %v11127 = vadd.f32 %v9643, %v11118
    %v11128 = vadd.f32 %v9644, %v11117
    %v11129 = vadd.f32 %v9645, %v11116
    %v11130 = vadd.f32 %v9646, %v11115
    %v11131 = vadd.f32 %v9647, %v11114
    %v11132 = vadd.f32 %v9648, %v11113
    %v11133 = vadd.f32 %v9649, %v11112
    %v11134 = vadd.f32 %v9650, %v11111
    %v11135 = vadd.f32 %v9651, %v11110
    %v11136 = vadd.f32 %v9652, %v11109
    %v11137 = vadd.f32 %v9653, %v11108
    %v11138 = vadd.f32 %v9654, %v11107
    %v11139 = vadd.f32 %v9655, %v11106
    %v11140 = vadd.f32 %v9656, %v11105
    %v11141 = vadd.f32 %v9657, %v11104
    %v11142 = vadd.f32 %v9658, %v11103
    %v11143 = vadd.f32 %v9659, %v11102
    %v11144 = vadd.f32 %v9660, %v11101
    %v11145 = vadd.f32 %v9661, %v11100
    %v11146 = vadd.f32 %v9662, %v11099
    %v11147 = vadd.f32 %v9663, %v11098
    %v11148 = vadd.f32 %v9664, %v11097
    %v11149 = vadd.f32 %v9665, %v11096
    %v11150 = vadd.f32 %v9666, %v11095
    %v11151 = vadd.f32 %v9667, %v11094
    %v11152 = vadd.f32 %v9668, %v11093
    %v11153 = vadd.f32 %v9669, %v11092
    %v11154 = vadd.f32 %v9670, %v11091
    %v11155 = vadd.f32 %v9671, %v11090
    %v11156 = vadd.f32 %v9672, %v11089
    %v11157 = vadd.f32 %v9673, %v11088
    %v11158 = vadd.f32 %v9674, %v11087
    %v11159 = vadd.f32 %v9675, %v11086
    %v11160 = vadd.f32 %v9676, %v11085
    %v11161 = vadd.f32 %v9677, %v11084
    %v11162 = vadd.f32 %v9678, %v11083
    %v11163 = vadd.f32 %v9679, %v11082
    %v11164 = vadd.f32 %v9680, %v11081
    %v11165 = vadd.f32 %v9681, %v11080
    %v11166 = vadd.f32 %v9682, %v11079
    %v11167 = vadd.f32 %v9683, %v11078
    %v11168 = vadd.f32 %v9684, %v11077
    %v11169 = vadd.f32 %v9685, %v11076
    %v11170 = vadd.f32 %v9686, %v11075
    %v11171 = vadd.f32 %v9687, %v11074
    %v11172 = vadd.f32 %v9688, %v11073
    %v11173 = vadd.f32 %v9689, %v11072
    %v11174 = vadd.f32 %v9690, %v11071
    %v11175 = vadd.f32 %v9691, %v11070
    %v11176 = vadd.f32 %v9692, %v11069
    %v11177 = vadd.f32 %v9693, %v11068
    %v11178 = vadd.f32 %v9694, %v11067
    %v11179 = vadd.f32 %v9695, %v11066
    %v11180 = vadd.f32 %v9696, %v11065
    %v11181 = vadd.f32 %v9697, %v11064
    %v11182 = vadd.f32 %v9698, %v11063
    %v11183 = vadd.f32 %v9699, %v11062
    %v11184 = vadd.f32 %v9700, %v11061
    %v11185 = vadd.f32 %v9701, %v11060
    %v11186 = vadd.f32 %v9702, %v11059
    %v11187 = vadd.f32 %v11123, %v10507
    %v11188 = vadd.f32 %v11124, %v10509
    %v11189 = vadd.f32 %v11125, %v10513
    %v11190 = vadd.f32 %v11126, %v10516
    %v11191 = vadd.f32 %v11127, %v10520
    %v11192 = vadd.f32 %v11128, %v10522
    %v11193 = vadd.f32 %v11129, %v10526
    %v11194 = vadd.f32 %v11130, %v10529
    %v11195 = vadd.f32 %v11131, %v10533
    %v11196 = vadd.f32 %v11132, %v10535
    %v11197 = vadd.f32 %v11133, %v10539
    %v11198 = vadd.f32 %v11134, %v10542
    %v11199 = vadd.f32 %v11135, %v10546
    %v11200 = vadd.f32 %v11136, %v10548
    %v11201 = vadd.f32 %v11137, %v10552
    %v11202 = vadd.f32 %v11138, %v10555
    %v11203 = vadd.f32 %v11139, %v10559
    %v11204 = vadd.f32 %v11140, %v10561
    %v11205 = vadd.f32 %v11141, %v10565
    %v11206 = vadd.f32 %v11142, %v10568
    %v11207 = vadd.f32 %v11143, %v10572
    %v11208 = vadd.f32 %v11144, %v10574
    %v11209 = vadd.f32 %v11145, %v10578
    %v11210 = vadd.f32 %v11146, %v10581
    %v11211 = vadd.f32 %v11147, %v10585
    %v11212 = vadd.f32 %v11148, %v10587
    %v11213 = vadd.f32 %v11149, %v10591
    %v11214 = vadd.f32 %v11150, %v10594
    %v11215 = vadd.f32 %v11151, %v10598
    %v11216 = vadd.f32 %v11152, %v10600
    %v11217 = vadd.f32 %v11153, %v10604
    %v11218 = vadd.f32 %v11154, %v10607
    %v11219 = vadd.f32 %v11155, %v10611
    %v11220 = vadd.f32 %v11156, %v10613
    %v11221 = vadd.f32 %v11157, %v10617
    %v11222 = vadd.f32 %v11158, %v10620
    %v11223 = vadd.f32 %v11159, %v10624
    %v11224 = vadd.f32 %v11160, %v10626
    %v11225 = vadd.f32 %v11161, %v10630
    %v11226 = vadd.f32 %v11162, %v10633
    %v11227 = vadd.f32 %v11163, %v10637
    %v11228 = vadd.f32 %v11164, %v10639
    %v11229 = vadd.f32 %v11165, %v10643
    %v11230 = vadd.f32 %v11166, %v10646
    %v11231 = vadd.f32 %v11167, %v10650
    %v11232 = vadd.f32 %v11168, %v10652
    %v11233 = vadd.f32 %v11169, %v10656
    %v11234 = vadd.f32 %v11170, %v10659
    %v11235 = vadd.f32 %v11171, %v10663
    %v11236 = vadd.f32 %v11172, %v10665
    %v11237 = vadd.f32 %v11173, %v10669
    %v11238 = vadd.f32 %v11174, %v10672
    %v11239 = vadd.f32 %v11175, %v10676
    %v11240 = vadd.f32 %v11176, %v10678
    %v11241 = vadd.f32 %v11177, %v10682
    %v11242 = vadd.f32 %v11178, %v10685
    %v11243 = vadd.f32 %v11179, %v10689
    %v11244 = vadd.f32 %v11180, %v10691
    %v11245 = vadd.f32 %v11181, %v10695
    %v11246 = vadd.f32 %v11182, %v10698
    %v11247 = vadd.f32 %v11183, %v10702
    %v11248 = vadd.f32 %v11184, %v10704
    %v11249 = vadd.f32 %v11185, %v10708
    %v11250 = vadd.f32 %v11186, %v10711
    %v11251 = vrot.slane %v10724, 1
    %v11252 = vrot.slane %v10726, 1
    %v11253 = vrot.slane %v10729, 1
    %v11254 = vrot.slane %v10731, 1
    %v11255 = vrot.slane %v10734, 1
    %v11256 = vrot.slane %v10736, 1
    %v11257 = vrot.slane %v10739, 1
    %v11258 = vrot.slane %v10741, 1
    %v11259 = vrot.slane %v10744, 1
    %v11260 = vrot.slane %v10746, 1
    %v11261 = vrot.slane %v10749, 1
    %v11262 = vrot.slane %v10751, 1
    %v11263 = vrot.slane %v10754, 1
    %v11264 = vrot.slane %v10756, 1
    %v11265 = vrot.slane %v10759, 1
    %v11266 = vrot.slane %v10761, 1
    %v11267 = vrot.slane %v10764, 1
    %v11268 = vrot.slane %v10766, 1
    %v11269 = vrot.slane %v10769, 1
    %v11270 = vrot.slane %v10771, 1
    %v11271 = vrot.slane %v10774, 1
    %v11272 = vrot.slane %v10776, 1
    %v11273 = vrot.slane %v10779, 1
    %v11274 = vrot.slane %v10781, 1
    %v11275 = vrot.slane %v10784, 1
    %v11276 = vrot.slane %v10786, 1
    %v11277 = vrot.slane %v10789, 1
    %v11278 = vrot.slane %v10791, 1
    %v11279 = vrot.slane %v10794, 1
    %v11280 = vrot.slane %v10796, 1
    %v11281 = vrot.slane %v10799, 1
    %v11282 = vrot.slane %v10801, 1
    %v11283 = vrot.slane %v10804, 1
    %v11284 = vrot.slane %v10806, 1
    %v11285 = vrot.slane %v10809, 1
    %v11286 = vrot.slane %v10811, 1
    %v11287 = vrot.slane %v10814, 1
    %v11288 = vrot.slane %v10816, 1
    %v11289 = vrot.slane %v10819, 1
    %v11290 = vrot.slane %v10821, 1
    %v11291 = vrot.slane %v10824, 1
    %v11292 = vrot.slane %v10826, 1
    %v11293 = vrot.slane %v10829, 1
    %v11294 = vrot.slane %v10831, 1
    %v11295 = vrot.slane %v10834, 1
    %v11296 = vrot.slane %v10836, 1
    %v11297 = vrot.slane %v10839, 1
    %v11298 = vrot.slane %v10841, 1
    %v11299 = vrot.slane %v10844, 1
    %v11300 = vrot.slane %v10846, 1
    %v11301 = vrot.slane %v10849, 1
    %v11302 = vrot.slane %v10851, 1
    %v11303 = vrot.slane %v10854, 1
    %v11304 = vrot.slane %v10856, 1
    %v11305 = vrot.slane %v10859, 1
    %v11306 = vrot.slane %v10861, 1
    %v11307 = vrot.slane %v10864, 1
    %v11308 = vrot.slane %v10866, 1
    %v11309 = vrot.slane %v10869, 1
    %v11310 = vrot.slane %v10871, 1
    %v11311 = vrot.slane %v10874, 1
    %v11312 = vrot.slane %v10876, 1
    %v11313 = vrot.slane %v10879, 1
    %v11314 = vrot.slane %v10881, 1
    %v11315 = vrot.slane %v10884, 1
    %v11316 = vrot.slane %v10886, 1
    %v11317 = vrot.slane %v10889, 1
    %v11318 = vrot.slane %v10891, 1
    %v11319 = vrot.slane %v10894, 1
    %v11320 = vrot.slane %v10896, 1
    %v11321 = vrot.slane %v10899, 1
    %v11322 = vrot.slane %v10901, 1
    %v11323 = vrot.slane %v10904, 1
    %v11324 = vrot.slane %v10906, 1
    %v11325 = vrot.slane %v10909, 1
    %v11326 = vrot.slane %v10911, 1
    %v11327 = vrot.slane %v10914, 1
    %v11328 = vrot.slane %v10916, 1
    %v11329 = vrot.slane %v10919, 1
    %v11330 = vrot.slane %v10921, 1
    %v11331 = vrot.slane %v10924, 1
    %v11332 = vrot.slane %v10926, 1
    %v11333 = vrot.slane %v10929, 1
    %v11334 = vrot.slane %v10931, 1
    %v11335 = vrot.slane %v10934, 1
    %v11336 = vrot.slane %v10936, 1
    %v11337 = vrot.slane %v10939, 1
    %v11338 = vrot.slane %v10941, 1
    %v11339 = vrot.slane %v10944, 1
    %v11340 = vrot.slane %v10946, 1
    %v11341 = vrot.slane %v10949, 1
    %v11342 = vrot.slane %v10951, 1
    %v11343 = vrot.slane %v10954, 1
    %v11344 = vrot.slane %v10956, 1
    %v11345 = vrot.slane %v10959, 1
    %v11346 = vrot.slane %v10961, 1
    %v11347 = vsel %vm1951, %v11345, %v11346
    %v11348 = vsel %vm1951, %v11344, %v11345
    %v11349 = vsel %vm1951, %v11342, %v11343
    %v11350 = vsel %vm1951, %v11341, %v11342
    %v11351 = vsel %vm1951, %v11339, %v11340
    %v11352 = vsel %vm1951, %v11338, %v11339
    %v11353 = vsel %vm1951, %v11336, %v11337
    %v11354 = vsel %vm1951, %v11335, %v11336
    %v11355 = vsel %vm1951, %v11333, %v11334
    %v11356 = vsel %vm1951, %v11332, %v11333
    %v11357 = vsel %vm1951, %v11330, %v11331
    %v11358 = vsel %vm1951, %v11329, %v11330
    %v11359 = vsel %vm1951, %v11327, %v11328
    %v11360 = vsel %vm1951, %v11326, %v11327
    %v11361 = vsel %vm1951, %v11324, %v11325
    %v11362 = vsel %vm1951, %v11323, %v11324
    %v11363 = vsel %vm1951, %v11321, %v11322
    %v11364 = vsel %vm1951, %v11320, %v11321
    %v11365 = vsel %vm1951, %v11318, %v11319
    %v11366 = vsel %vm1951, %v11317, %v11318
    %v11367 = vsel %vm1951, %v11315, %v11316
    %v11368 = vsel %vm1951, %v11314, %v11315
    %v11369 = vsel %vm1951, %v11312, %v11313
    %v11370 = vsel %vm1951, %v11311, %v11312
    %v11371 = vsel %vm1951, %v11309, %v11310
    %v11372 = vsel %vm1951, %v11308, %v11309
    %v11373 = vsel %vm1951, %v11306, %v11307
    %v11374 = vsel %vm1951, %v11305, %v11306
    %v11375 = vsel %vm1951, %v11303, %v11304
    %v11376 = vsel %vm1951, %v11302, %v11303
    %v11377 = vsel %vm1951, %v11300, %v11301
    %v11378 = vsel %vm1951, %v11299, %v11300
    %v11379 = vsel %vm1951, %v11297, %v11298
    %v11380 = vsel %vm1951, %v11296, %v11297
    %v11381 = vsel %vm1951, %v11294, %v11295
    %v11382 = vsel %vm1951, %v11293, %v11294
    %v11383 = vsel %vm1951, %v11291, %v11292
    %v11384 = vsel %vm1951, %v11290, %v11291
    %v11385 = vsel %vm1951, %v11288, %v11289
    %v11386 = vsel %vm1951, %v11287, %v11288
    %v11387 = vsel %vm1951, %v11285, %v11286
    %v11388 = vsel %vm1951, %v11284, %v11285
    %v11389 = vsel %vm1951, %v11282, %v11283
    %v11390 = vsel %vm1951, %v11281, %v11282
    %v11391 = vsel %vm1951, %v11279, %v11280
    %v11392 = vsel %vm1951, %v11278, %v11279
    %v11393 = vsel %vm1951, %v11276, %v11277
    %v11394 = vsel %vm1951, %v11275, %v11276
    %v11395 = vsel %vm1951, %v11273, %v11274
    %v11396 = vsel %vm1951, %v11272, %v11273
    %v11397 = vsel %vm1951, %v11270, %v11271
    %v11398 = vsel %vm1951, %v11269, %v11270
    %v11399 = vsel %vm1951, %v11267, %v11268
    %v11400 = vsel %vm1951, %v11266, %v11267
    %v11401 = vsel %vm1951, %v11264, %v11265
    %v11402 = vsel %vm1951, %v11263, %v11264
    %v11403 = vsel %vm1951, %v11261, %v11262
    %v11404 = vsel %vm1951, %v11260, %v11261
    %v11405 = vsel %vm1951, %v11258, %v11259
    %v11406 = vsel %vm1951, %v11257, %v11258
    %v11407 = vsel %vm1951, %v11255, %v11256
    %v11408 = vsel %vm1951, %v11254, %v11255
    %v11409 = vsel %vm1951, %v11252, %v11253
    %v11410 = vsel %vm1951, %v11251, %v11252
    %v11411 = vadd.f32 %v11187, %v11410
    %v11412 = vadd.f32 %v11188, %v11409
    %v11413 = vadd.f32 %v11189, %v11408
    %v11414 = vadd.f32 %v11190, %v11407
    %v11415 = vadd.f32 %v11191, %v11406
    %v11416 = vadd.f32 %v11192, %v11405
    %v11417 = vadd.f32 %v11193, %v11404
    %v11418 = vadd.f32 %v11194, %v11403
    %v11419 = vadd.f32 %v11195, %v11402
    %v11420 = vadd.f32 %v11196, %v11401
    %v11421 = vadd.f32 %v11197, %v11400
    %v11422 = vadd.f32 %v11198, %v11399
    %v11423 = vadd.f32 %v11199, %v11398
    %v11424 = vadd.f32 %v11200, %v11397
    %v11425 = vadd.f32 %v11201, %v11396
    %v11426 = vadd.f32 %v11202, %v11395
    %v11427 = vadd.f32 %v11203, %v11394
    %v11428 = vadd.f32 %v11204, %v11393
    %v11429 = vadd.f32 %v11205, %v11392
    %v11430 = vadd.f32 %v11206, %v11391
    %v11431 = vadd.f32 %v11207, %v11390
    %v11432 = vadd.f32 %v11208, %v11389
    %v11433 = vadd.f32 %v11209, %v11388
    %v11434 = vadd.f32 %v11210, %v11387
    %v11435 = vadd.f32 %v11211, %v11386
    %v11436 = vadd.f32 %v11212, %v11385
    %v11437 = vadd.f32 %v11213, %v11384
    %v11438 = vadd.f32 %v11214, %v11383
    %v11439 = vadd.f32 %v11215, %v11382
    %v11440 = vadd.f32 %v11216, %v11381
    %v11441 = vadd.f32 %v11217, %v11380
    %v11442 = vadd.f32 %v11218, %v11379
    %v11443 = vadd.f32 %v11219, %v11378
    %v11444 = vadd.f32 %v11220, %v11377
    %v11445 = vadd.f32 %v11221, %v11376
    %v11446 = vadd.f32 %v11222, %v11375
    %v11447 = vadd.f32 %v11223, %v11374
    %v11448 = vadd.f32 %v11224, %v11373
    %v11449 = vadd.f32 %v11225, %v11372
    %v11450 = vadd.f32 %v11226, %v11371
    %v11451 = vadd.f32 %v11227, %v11370
    %v11452 = vadd.f32 %v11228, %v11369
    %v11453 = vadd.f32 %v11229, %v11368
    %v11454 = vadd.f32 %v11230, %v11367
    %v11455 = vadd.f32 %v11231, %v11366
    %v11456 = vadd.f32 %v11232, %v11365
    %v11457 = vadd.f32 %v11233, %v11364
    %v11458 = vadd.f32 %v11234, %v11363
    %v11459 = vadd.f32 %v11235, %v11362
    %v11460 = vadd.f32 %v11236, %v11361
    %v11461 = vadd.f32 %v11237, %v11360
    %v11462 = vadd.f32 %v11238, %v11359
    %v11463 = vadd.f32 %v11239, %v11358
    %v11464 = vadd.f32 %v11240, %v11357
    %v11465 = vadd.f32 %v11241, %v11356
    %v11466 = vadd.f32 %v11242, %v11355
    %v11467 = vadd.f32 %v11243, %v11354
    %v11468 = vadd.f32 %v11244, %v11353
    %v11469 = vadd.f32 %v11245, %v11352
    %v11470 = vadd.f32 %v11246, %v11351
    %v11471 = vadd.f32 %v11247, %v11350
    %v11472 = vadd.f32 %v11248, %v11349
    %v11473 = vadd.f32 %v11249, %v11348
    %v11474 = vadd.f32 %v11250, %v11347
    %v11475 = vadd.f32 %v11411, %v11412
    %v11476 = vadd.f32 %v11475, %v11413
    %v11477 = vadd.f32 %v11476, %v11414
    %v11478 = vadd.f32 %v11477, %v11415
    %v11479 = vadd.f32 %v11478, %v11416
    %v11480 = vadd.f32 %v11479, %v11417
    %v11481 = vadd.f32 %v11480, %v11418
    %v11482 = vadd.f32 %v11481, %v11419
    %v11483 = vadd.f32 %v11482, %v11420
    %v11484 = vadd.f32 %v11483, %v11421
    %v11485 = vadd.f32 %v11484, %v11422
    %v11486 = vadd.f32 %v11485, %v11423
    %v11487 = vadd.f32 %v11486, %v11424
    %v11488 = vadd.f32 %v11487, %v11425
    %v11489 = vadd.f32 %v11488, %v11426
    %v11490 = vadd.f32 %v11489, %v11427
    %v11491 = vadd.f32 %v11490, %v11428
    %v11492 = vadd.f32 %v11491, %v11429
    %v11493 = vadd.f32 %v11492, %v11430
    %v11494 = vadd.f32 %v11493, %v11431
    %v11495 = vadd.f32 %v11494, %v11432
    %v11496 = vadd.f32 %v11495, %v11433
    %v11497 = vadd.f32 %v11496, %v11434
    %v11498 = vadd.f32 %v11497, %v11435
    %v11499 = vadd.f32 %v11498, %v11436
    %v11500 = vadd.f32 %v11499, %v11437
    %v11501 = vadd.f32 %v11500, %v11438
    %v11502 = vadd.f32 %v11501, %v11439
    %v11503 = vadd.f32 %v11502, %v11440
    %v11504 = vadd.f32 %v11503, %v11441
    %v11505 = vadd.f32 %v11504, %v11442
    %v11506 = vadd.f32 %v11505, %v11443
    %v11507 = vadd.f32 %v11506, %v11444
    %v11508 = vadd.f32 %v11507, %v11445
    %v11509 = vadd.f32 %v11508, %v11446
    %v11510 = vadd.f32 %v11509, %v11447
    %v11511 = vadd.f32 %v11510, %v11448
    %v11512 = vadd.f32 %v11511, %v11449
    %v11513 = vadd.f32 %v11512, %v11450
    %v11514 = vadd.f32 %v11513, %v11451
    %v11515 = vadd.f32 %v11514, %v11452
    %v11516 = vadd.f32 %v11515, %v11453
    %v11517 = vadd.f32 %v11516, %v11454
    %v11518 = vadd.f32 %v11517, %v11455
    %v11519 = vadd.f32 %v11518, %v11456
    %v11520 = vadd.f32 %v11519, %v11457
    %v11521 = vadd.f32 %v11520, %v11458
    %v11522 = vadd.f32 %v11521, %v11459
    %v11523 = vadd.f32 %v11522, %v11460
    %v11524 = vadd.f32 %v11523, %v11461
    %v11525 = vadd.f32 %v11524, %v11462
    %v11526 = vadd.f32 %v11525, %v11463
    %v11527 = vadd.f32 %v11526, %v11464
    %v11528 = vadd.f32 %v11527, %v11465
    %v11529 = vadd.f32 %v11528, %v11466
    %v11530 = vadd.f32 %v11529, %v11467
    %v11531 = vadd.f32 %v11530, %v11468
    %v11532 = vadd.f32 %v11531, %v11469
    %v11533 = vadd.f32 %v11532, %v11470
    %v11534 = vadd.f32 %v11533, %v11471
    %v11535 = vadd.f32 %v11534, %v11472
    %v11536 = vadd.f32 %v11535, %v11473
    %v11537 = vadd.f32 %v11536, %v11474
    %v11538 = vrot.slane %v11537, 4
    %v11539 = vadd.f32 %v11537, %v11538
    %v11540 = vrot.slane %v11539, 2
    %v11541 = vadd.f32 %v11539, %v11540
    %v11542 = vrot.slane %v11541, 1
    %v11543 = vadd.f32 %v11541, %v11542
    %v11544 = vmul.f32 %v11543, 0.001953125
    %v11545 = vsub.f32 %v11411, %v11544
    %v11546 = vsub.f32 %v11412, %v11544
    %v11547 = vsub.f32 %v11413, %v11544
    %v11548 = vsub.f32 %v11414, %v11544
    %v11549 = vsub.f32 %v11415, %v11544
    %v11550 = vsub.f32 %v11416, %v11544
    %v11551 = vsub.f32 %v11417, %v11544
    %v11552 = vsub.f32 %v11418, %v11544
    %v11553 = vsub.f32 %v11419, %v11544
    %v11554 = vsub.f32 %v11420, %v11544
    %v11555 = vsub.f32 %v11421, %v11544
    %v11556 = vsub.f32 %v11422, %v11544
    %v11557 = vsub.f32 %v11423, %v11544
    %v11558 = vsub.f32 %v11424, %v11544
    %v11559 = vsub.f32 %v11425, %v11544
    %v11560 = vsub.f32 %v11426, %v11544
    %v11561 = vsub.f32 %v11427, %v11544
    %v11562 = vsub.f32 %v11428, %v11544
    %v11563 = vsub.f32 %v11429, %v11544
    %v11564 = vsub.f32 %v11430, %v11544
    %v11565 = vsub.f32 %v11431, %v11544
    %v11566 = vsub.f32 %v11432, %v11544
    %v11567 = vsub.f32 %v11433, %v11544
    %v11568 = vsub.f32 %v11434, %v11544
    %v11569 = vsub.f32 %v11435, %v11544
    %v11570 = vsub.f32 %v11436, %v11544
    %v11571 = vsub.f32 %v11437, %v11544
    %v11572 = vsub.f32 %v11438, %v11544
    %v11573 = vsub.f32 %v11439, %v11544
    %v11574 = vsub.f32 %v11440, %v11544
    %v11575 = vsub.f32 %v11441, %v11544
    %v11576 = vsub.f32 %v11442, %v11544
    %v11577 = vsub.f32 %v11443, %v11544
    %v11578 = vsub.f32 %v11444, %v11544
    %v11579 = vsub.f32 %v11445, %v11544
    %v11580 = vsub.f32 %v11446, %v11544
    %v11581 = vsub.f32 %v11447, %v11544
    %v11582 = vsub.f32 %v11448, %v11544
    %v11583 = vsub.f32 %v11449, %v11544
    %v11584 = vsub.f32 %v11450, %v11544
    %v11585 = vsub.f32 %v11451, %v11544
    %v11586 = vsub.f32 %v11452, %v11544
    %v11587 = vsub.f32 %v11453, %v11544
    %v11588 = vsub.f32 %v11454, %v11544
    %v11589 = vsub.f32 %v11455, %v11544
    %v11590 = vsub.f32 %v11456, %v11544
    %v11591 = vsub.f32 %v11457, %v11544
    %v11592 = vsub.f32 %v11458, %v11544
    %v11593 = vsub.f32 %v11459, %v11544
    %v11594 = vsub.f32 %v11460, %v11544
    %v11595 = vsub.f32 %v11461, %v11544
    %v11596 = vsub.f32 %v11462, %v11544
    %v11597 = vsub.f32 %v11463, %v11544
    %v11598 = vsub.f32 %v11464, %v11544
    %v11599 = vsub.f32 %v11465, %v11544
    %v11600 = vsub.f32 %v11466, %v11544
    %v11601 = vsub.f32 %v11467, %v11544
    %v11602 = vsub.f32 %v11468, %v11544
    %v11603 = vsub.f32 %v11469, %v11544
    %v11604 = vsub.f32 %v11470, %v11544
    %v11605 = vsub.f32 %v11471, %v11544
    %v11606 = vsub.f32 %v11472, %v11544
    %v11607 = vsub.f32 %v11473, %v11544
    %v11608 = vsub.f32 %v11474, %v11544
    %v11609 = vmul.f32 %v11545, %v11545
    %v11610 = vmul.f32 %v11546, %v11546
    %v11611 = vmul.f32 %v11547, %v11547
    %v11612 = vmul.f32 %v11548, %v11548
    %v11613 = vmul.f32 %v11549, %v11549
    %v11614 = vmul.f32 %v11550, %v11550
    %v11615 = vmul.f32 %v11551, %v11551
    %v11616 = vmul.f32 %v11552, %v11552
    %v11617 = vmul.f32 %v11553, %v11553
    %v11618 = vmul.f32 %v11554, %v11554
    %v11619 = vmul.f32 %v11555, %v11555
    %v11620 = vmul.f32 %v11556, %v11556
    %v11621 = vmul.f32 %v11557, %v11557
    %v11622 = vmul.f32 %v11558, %v11558
    %v11623 = vmul.f32 %v11559, %v11559
    %v11624 = vmul.f32 %v11560, %v11560
    %v11625 = vmul.f32 %v11561, %v11561
    %v11626 = vmul.f32 %v11562, %v11562
    %v11627 = vmul.f32 %v11563, %v11563
    %v11628 = vmul.f32 %v11564, %v11564
    %v11629 = vmul.f32 %v11565, %v11565
    %v11630 = vmul.f32 %v11566, %v11566
    %v11631 = vmul.f32 %v11567, %v11567
    %v11632 = vmul.f32 %v11568, %v11568
    %v11633 = vmul.f32 %v11569, %v11569
    %v11634 = vmul.f32 %v11570, %v11570
    %v11635 = vmul.f32 %v11571, %v11571
    %v11636 = vmul.f32 %v11572, %v11572
    %v11637 = vmul.f32 %v11573, %v11573
    %v11638 = vmul.f32 %v11574, %v11574
    %v11639 = vmul.f32 %v11575, %v11575
    %v11640 = vmul.f32 %v11576, %v11576
    %v11641 = vmul.f32 %v11577, %v11577
    %v11642 = vmul.f32 %v11578, %v11578
    %v11643 = vmul.f32 %v11579, %v11579
    %v11644 = vmul.f32 %v11580, %v11580
    %v11645 = vmul.f32 %v11581, %v11581
    %v11646 = vmul.f32 %v11582, %v11582
    %v11647 = vmul.f32 %v11583, %v11583
    %v11648 = vmul.f32 %v11584, %v11584
    %v11649 = vmul.f32 %v11585, %v11585
    %v11650 = vmul.f32 %v11586, %v11586
    %v11651 = vmul.f32 %v11587, %v11587
    %v11652 = vmul.f32 %v11588, %v11588
    %v11653 = vmul.f32 %v11589, %v11589
    %v11654 = vmul.f32 %v11590, %v11590
    %v11655 = vmul.f32 %v11591, %v11591
    %v11656 = vmul.f32 %v11592, %v11592
    %v11657 = vmul.f32 %v11593, %v11593
    %v11658 = vmul.f32 %v11594, %v11594
    %v11659 = vmul.f32 %v11595, %v11595
    %v11660 = vmul.f32 %v11596, %v11596
    %v11661 = vmul.f32 %v11597, %v11597
    %v11662 = vmul.f32 %v11598, %v11598
    %v11663 = vmul.f32 %v11599, %v11599
    %v11664 = vmul.f32 %v11600, %v11600
    %v11665 = vmul.f32 %v11601, %v11601
    %v11666 = vmul.f32 %v11602, %v11602
    %v11667 = vmul.f32 %v11603, %v11603
    %v11668 = vmul.f32 %v11604, %v11604
    %v11669 = vmul.f32 %v11605, %v11605
    %v11670 = vmul.f32 %v11606, %v11606
    %v11671 = vmul.f32 %v11607, %v11607
    %v11672 = vmul.f32 %v11608, %v11608
    %v11673 = vadd.f32 %v11609, %v11610
    %v11674 = vadd.f32 %v11673, %v11611
    %v11675 = vadd.f32 %v11674, %v11612
    %v11676 = vadd.f32 %v11675, %v11613
    %v11677 = vadd.f32 %v11676, %v11614
    %v11678 = vadd.f32 %v11677, %v11615
    %v11679 = vadd.f32 %v11678, %v11616
    %v11680 = vadd.f32 %v11679, %v11617
    %v11681 = vadd.f32 %v11680, %v11618
    %v11682 = vadd.f32 %v11681, %v11619
    %v11683 = vadd.f32 %v11682, %v11620
    %v11684 = vadd.f32 %v11683, %v11621
    %v11685 = vadd.f32 %v11684, %v11622
    %v11686 = vadd.f32 %v11685, %v11623
    %v11687 = vadd.f32 %v11686, %v11624
    %v11688 = vadd.f32 %v11687, %v11625
    %v11689 = vadd.f32 %v11688, %v11626
    %v11690 = vadd.f32 %v11689, %v11627
    %v11691 = vadd.f32 %v11690, %v11628
    %v11692 = vadd.f32 %v11691, %v11629
    %v11693 = vadd.f32 %v11692, %v11630
    %v11694 = vadd.f32 %v11693, %v11631
    %v11695 = vadd.f32 %v11694, %v11632
    %v11696 = vadd.f32 %v11695, %v11633
    %v11697 = vadd.f32 %v11696, %v11634
    %v11698 = vadd.f32 %v11697, %v11635
    %v11699 = vadd.f32 %v11698, %v11636
    %v11700 = vadd.f32 %v11699, %v11637
    %v11701 = vadd.f32 %v11700, %v11638
    %v11702 = vadd.f32 %v11701, %v11639
    %v11703 = vadd.f32 %v11702, %v11640
    %v11704 = vadd.f32 %v11703, %v11641
    %v11705 = vadd.f32 %v11704, %v11642
    %v11706 = vadd.f32 %v11705, %v11643
    %v11707 = vadd.f32 %v11706, %v11644
    %v11708 = vadd.f32 %v11707, %v11645
    %v11709 = vadd.f32 %v11708, %v11646
    %v11710 = vadd.f32 %v11709, %v11647
    %v11711 = vadd.f32 %v11710, %v11648
    %v11712 = vadd.f32 %v11711, %v11649
    %v11713 = vadd.f32 %v11712, %v11650
    %v11714 = vadd.f32 %v11713, %v11651
    %v11715 = vadd.f32 %v11714, %v11652
    %v11716 = vadd.f32 %v11715, %v11653
    %v11717 = vadd.f32 %v11716, %v11654
    %v11718 = vadd.f32 %v11717, %v11655
    %v11719 = vadd.f32 %v11718, %v11656
    %v11720 = vadd.f32 %v11719, %v11657
    %v11721 = vadd.f32 %v11720, %v11658
    %v11722 = vadd.f32 %v11721, %v11659
    %v11723 = vadd.f32 %v11722, %v11660
    %v11724 = vadd.f32 %v11723, %v11661
    %v11725 = vadd.f32 %v11724, %v11662
    %v11726 = vadd.f32 %v11725, %v11663
    %v11727 = vadd.f32 %v11726, %v11664
    %v11728 = vadd.f32 %v11727, %v11665
    %v11729 = vadd.f32 %v11728, %v11666
    %v11730 = vadd.f32 %v11729, %v11667
    %v11731 = vadd.f32 %v11730, %v11668
    %v11732 = vadd.f32 %v11731, %v11669
    %v11733 = vadd.f32 %v11732, %v11670
    %v11734 = vadd.f32 %v11733, %v11671
    %v11735 = vadd.f32 %v11734, %v11672
    %v11736 = vrot.slane %v11735, 4
    %v11737 = vadd.f32 %v11735, %v11736
    %v11738 = vrot.slane %v11737, 2
    %v11739 = vadd.f32 %v11737, %v11738
    %v11740 = vrot.slane %v11739, 1
    %v11741 = vadd.f32 %v11739, %v11740
    %v11742 = vmul.f32 %v11741, 0.001953125
    %v11743 = vadd.f32 %v11742, 1e-05
    %v11744 = vrsqrt.pop %v11743
    %v11745 = vmul.f32 %v11744, %v11743
    %v11746 = vmul.f32 %v11745, %v11744
    %v11747 = vmul.f32 0.5, %v11746
    %v11748 = vsub.f32 1.5, %v11747
    %v11749 = vmul.f32 %v11744, %v11748
    %vm11750 = vweird.f32 %v11743
    %vm11751 = vweird.f32 %v11744
    %vm11752 = vmor %vm11750, %vm11751
    %v11753 = vsel %vm11752, %v11744, %v11749
    %v11754 = vmul.f32 %v11545, %v11753
    %v11755 = vmul.f32 %v11546, %v11753
    %v11756 = vmul.f32 %v11547, %v11753
    %v11757 = vmul.f32 %v11548, %v11753
    %v11758 = vmul.f32 %v11549, %v11753
    %v11759 = vmul.f32 %v11550, %v11753
    %v11760 = vmul.f32 %v11551, %v11753
    %v11761 = vmul.f32 %v11552, %v11753
    %v11762 = vmul.f32 %v11553, %v11753
    %v11763 = vmul.f32 %v11554, %v11753
    %v11764 = vmul.f32 %v11555, %v11753
    %v11765 = vmul.f32 %v11556, %v11753
    %v11766 = vmul.f32 %v11557, %v11753
    %v11767 = vmul.f32 %v11558, %v11753
    %v11768 = vmul.f32 %v11559, %v11753
    %v11769 = vmul.f32 %v11560, %v11753
    %v11770 = vmul.f32 %v11561, %v11753
    %v11771 = vmul.f32 %v11562, %v11753
    %v11772 = vmul.f32 %v11563, %v11753
    %v11773 = vmul.f32 %v11564, %v11753
    %v11774 = vmul.f32 %v11565, %v11753
    %v11775 = vmul.f32 %v11566, %v11753
    %v11776 = vmul.f32 %v11567, %v11753
    %v11777 = vmul.f32 %v11568, %v11753
    %v11778 = vmul.f32 %v11569, %v11753
    %v11779 = vmul.f32 %v11570, %v11753
    %v11780 = vmul.f32 %v11571, %v11753
    %v11781 = vmul.f32 %v11572, %v11753
    %v11782 = vmul.f32 %v11573, %v11753
    %v11783 = vmul.f32 %v11574, %v11753
    %v11784 = vmul.f32 %v11575, %v11753
    %v11785 = vmul.f32 %v11576, %v11753
    %v11786 = vmul.f32 %v11577, %v11753
    %v11787 = vmul.f32 %v11578, %v11753
    %v11788 = vmul.f32 %v11579, %v11753
    %v11789 = vmul.f32 %v11580, %v11753
    %v11790 = vmul.f32 %v11581, %v11753
    %v11791 = vmul.f32 %v11582, %v11753
    %v11792 = vmul.f32 %v11583, %v11753
    %v11793 = vmul.f32 %v11584, %v11753
    %v11794 = vmul.f32 %v11585, %v11753
    %v11795 = vmul.f32 %v11586, %v11753
    %v11796 = vmul.f32 %v11587, %v11753
    %v11797 = vmul.f32 %v11588, %v11753
    %v11798 = vmul.f32 %v11589, %v11753
    %v11799 = vmul.f32 %v11590, %v11753
    %v11800 = vmul.f32 %v11591, %v11753
    %v11801 = vmul.f32 %v11592, %v11753
    %v11802 = vmul.f32 %v11593, %v11753
    %v11803 = vmul.f32 %v11594, %v11753
    %v11804 = vmul.f32 %v11595, %v11753
    %v11805 = vmul.f32 %v11596, %v11753
    %v11806 = vmul.f32 %v11597, %v11753
    %v11807 = vmul.f32 %v11598, %v11753
    %v11808 = vmul.f32 %v11599, %v11753
    %v11809 = vmul.f32 %v11600, %v11753
    %v11810 = vmul.f32 %v11601, %v11753
    %v11811 = vmul.f32 %v11602, %v11753
    %v11812 = vmul.f32 %v11603, %v11753
    %v11813 = vmul.f32 %v11604, %v11753
    %v11814 = vmul.f32 %v11605, %v11753
    %v11815 = vmul.f32 %v11606, %v11753
    %v11816 = vmul.f32 %v11607, %v11753
    %v11817 = vmul.f32 %v11608, %v11753
    %v11818 = vadd.f32 %v11754, %v112
    %v11819 = vadd.f32 %v11755, %v113
    %v11820 = vadd.f32 %v11756, %v114
    %v11821 = vadd.f32 %v11757, %v115
    %v11822 = vadd.f32 %v11758, %v116
    %v11823 = vadd.f32 %v11759, %v117
    %v11824 = vadd.f32 %v11760, %v118
    %v11825 = vadd.f32 %v11761, %v119
    %v11826 = vadd.f32 %v11762, %v120
    %v11827 = vadd.f32 %v11763, %v121
    %v11828 = vadd.f32 %v11764, %v122
    %v11829 = vadd.f32 %v11765, %v123
    %v11830 = vadd.f32 %v11766, %v124
    %v11831 = vadd.f32 %v11767, %v125
    %v11832 = vadd.f32 %v11768, %v126
    %v11833 = vadd.f32 %v11769, %v127
    %v11834 = vadd.f32 %v11770, %v128
    %v11835 = vadd.f32 %v11771, %v129
    %v11836 = vadd.f32 %v11772, %v130
    %v11837 = vadd.f32 %v11773, %v131
    %v11838 = vadd.f32 %v11774, %v132
    %v11839 = vadd.f32 %v11775, %v133
    %v11840 = vadd.f32 %v11776, %v134
    %v11841 = vadd.f32 %v11777, %v135
    %v11842 = vadd.f32 %v11778, %v136
    %v11843 = vadd.f32 %v11779, %v137
    %v11844 = vadd.f32 %v11780, %v138
    %v11845 = vadd.f32 %v11781, %v139
    %v11846 = vadd.f32 %v11782, %v140
    %v11847 = vadd.f32 %v11783, %v141
    %v11848 = vadd.f32 %v11784, %v142
    %v11849 = vadd.f32 %v11785, %v143
    %v11850 = vadd.f32 %v11786, %v144
    %v11851 = vadd.f32 %v11787, %v145
    %v11852 = vadd.f32 %v11788, %v146
    %v11853 = vadd.f32 %v11789, %v147
    %v11854 = vadd.f32 %v11790, %v148
    %v11855 = vadd.f32 %v11791, %v149
    %v11856 = vadd.f32 %v11792, %v150
    %v11857 = vadd.f32 %v11793, %v151
    %v11858 = vadd.f32 %v11794, %v152
    %v11859 = vadd.f32 %v11795, %v153
    %v11860 = vadd.f32 %v11796, %v154
    %v11861 = vadd.f32 %v11797, %v155
    %v11862 = vadd.f32 %v11798, %v156
    %v11863 = vadd.f32 %v11799, %v157
    %v11864 = vadd.f32 %v11800, %v158
    %v11865 = vadd.f32 %v11801, %v159
    %v11866 = vadd.f32 %v11802, %v160
    %v11867 = vadd.f32 %v11803, %v161
    %v11868 = vadd.f32 %v11804, %v162
    %v11869 = vadd.f32 %v11805, %v163
    %v11870 = vadd.f32 %v11806, %v164
    %v11871 = vadd.f32 %v11807, %v165
    %v11872 = vadd.f32 %v11808, %v166
    %v11873 = vadd.f32 %v11809, %v167
    %v11874 = vadd.f32 %v11810, %v168
    %v11875 = vadd.f32 %v11811, %v169
    %v11876 = vadd.f32 %v11812, %v170
    %v11877 = vadd.f32 %v11813, %v171
    %v11878 = vadd.f32 %v11814, %v172
    %v11879 = vadd.f32 %v11815, %v173
    %v11880 = vadd.f32 %v11816, %v174
    %v11881 = vadd.f32 %v11817, %v175
    %v11882 = vmax.f32 %v11818, 0.0
    %v11883 = vmax.f32 %v11819, 0.0
    %v11884 = vmax.f32 %v11820, 0.0
    %v11885 = vmax.f32 %v11821, 0.0
    %v11886 = vmax.f32 %v11822, 0.0
    %v11887 = vmax.f32 %v11823, 0.0
    %v11888 = vmax.f32 %v11824, 0.0
    %v11889 = vmax.f32 %v11825, 0.0
    %v11890 = vmax.f32 %v11826, 0.0
    %v11891 = vmax.f32 %v11827, 0.0
    %v11892 = vmax.f32 %v11828, 0.0
    %v11893 = vmax.f32 %v11829, 0.0
    %v11894 = vmax.f32 %v11830, 0.0
    %v11895 = vmax.f32 %v11831, 0.0
    %v11896 = vmax.f32 %v11832, 0.0
    %v11897 = vmax.f32 %v11833, 0.0
    %v11898 = vmax.f32 %v11834, 0.0
    %v11899 = vmax.f32 %v11835, 0.0
    %v11900 = vmax.f32 %v11836, 0.0
    %v11901 = vmax.f32 %v11837, 0.0
    %v11902 = vmax.f32 %v11838, 0.0
    %v11903 = vmax.f32 %v11839, 0.0
    %v11904 = vmax.f32 %v11840, 0.0
    %v11905 = vmax.f32 %v11841, 0.0
    %v11906 = vmax.f32 %v11842, 0.0
    %v11907 = vmax.f32 %v11843, 0.0
    %v11908 = vmax.f32 %v11844, 0.0
    %v11909 = vmax.f32 %v11845, 0.0
    %v11910 = vmax.f32 %v11846, 0.0
    %v11911 = vmax.f32 %v11847, 0.0
    %v11912 = vmax.f32 %v11848, 0.0
    %v11913 = vmax.f32 %v11849, 0.0
    %v11914 = vmax.f32 %v11850, 0.0
    %v11915 = vmax.f32 %v11851, 0.0
    %v11916 = vmax.f32 %v11852, 0.0
    %v11917 = vmax.f32 %v11853, 0.0
    %v11918 = vmax.f32 %v11854, 0.0
    %v11919 = vmax.f32 %v11855, 0.0
    %v11920 = vmax.f32 %v11856, 0.0
    %v11921 = vmax.f32 %v11857, 0.0
    %v11922 = vmax.f32 %v11858, 0.0
    %v11923 = vmax.f32 %v11859, 0.0
    %v11924 = vmax.f32 %v11860, 0.0
    %v11925 = vmax.f32 %v11861, 0.0
    %v11926 = vmax.f32 %v11862, 0.0
    %v11927 = vmax.f32 %v11863, 0.0
    %v11928 = vmax.f32 %v11864, 0.0
    %v11929 = vmax.f32 %v11865, 0.0
    %v11930 = vmax.f32 %v11866, 0.0
    %v11931 = vmax.f32 %v11867, 0.0
    %v11932 = vmax.f32 %v11868, 0.0
    %v11933 = vmax.f32 %v11869, 0.0
    %v11934 = vmax.f32 %v11870, 0.0
    %v11935 = vmax.f32 %v11871, 0.0
    %v11936 = vmax.f32 %v11872, 0.0
    %v11937 = vmax.f32 %v11873, 0.0
    %v11938 = vmax.f32 %v11874, 0.0
    %v11939 = vmax.f32 %v11875, 0.0
    %v11940 = vmax.f32 %v11876, 0.0
    %v11941 = vmax.f32 %v11877, 0.0
    %v11942 = vmax.f32 %v11878, 0.0
    %v11943 = vmax.f32 %v11879, 0.0
    %v11944 = vmax.f32 %v11880, 0.0
    %v11945 = vmax.f32 %v11881, 0.0
    %11946 = vst [vmem:[#allocation9] sm:$0xff] %v11882
    %11947 = vst [vmem:[#allocation9 + $0x8] sm:$0xff] %v11883
    %11948 = vst [vmem:[#allocation9 + $0x10] sm:$0xff] %v11884
    %11949 = vst [vmem:[#allocation9 + $0x18] sm:$0xff] %v11885
    %11950 = vst [vmem:[#allocation9 + $0x20] sm:$0xff] %v11886
    %11951 = vst [vmem:[#allocation9 + $0x28] sm:$0xff] %v11887
    %11952 = vst [vmem:[#allocation9 + $0x30] sm:$0xff] %v11888
    %11953 = vst [vmem:[#allocation9 + $0x38] sm:$0xff] %v11889
    %11954 = vst [vmem:[#allocation9 + $0x40] sm:$0xff] %v11890
    %11955 = vst [vmem:[#allocation9 + $0x48] sm:$0xff] %v11891
    %11956 = vst [vmem:[#allocation9 + $0x50] sm:$0xff] %v11892
    %11957 = vst [vmem:[#allocation9 + $0x58] sm:$0xff] %v11893
    %11958 = vst [vmem:[#allocation9 + $0x60] sm:$0xff] %v11894
    %11959 = vst [vmem:[#allocation9 + $0x68] sm:$0xff] %v11895
    %11960 = vst [vmem:[#allocation9 + $0x70] sm:$0xff] %v11896
    %11961 = vst [vmem:[#allocation9 + $0x78] sm:$0xff] %v11897
    %11962 = vst [vmem:[#allocation9 + $0x80] sm:$0xff] %v11898
    %11963 = vst [vmem:[#allocation9 + $0x88] sm:$0xff] %v11899
    %11964 = vst [vmem:[#allocation9 + $0x90] sm:$0xff] %v11900
    %11965 = vst [vmem:[#allocation9 + $0x98] sm:$0xff] %v11901
    %11966 = vst [vmem:[#allocation9 + $0xa0] sm:$0xff] %v11902
    %11967 = vst [vmem:[#allocation9 + $0xa8] sm:$0xff] %v11903
    %11968 = vst [vmem:[#allocation9 + $0xb0] sm:$0xff] %v11904
    %11969 = vst [vmem:[#allocation9 + $0xb8] sm:$0xff] %v11905
    %11970 = vst [vmem:[#allocation9 + $0xc0] sm:$0xff] %v11906
    %11971 = vst [vmem:[#allocation9 + $0xc8] sm:$0xff] %v11907
    %11972 = vst [vmem:[#allocation9 + $0xd0] sm:$0xff] %v11908
    %11973 = vst [vmem:[#allocation9 + $0xd8] sm:$0xff] %v11909
    %11974 = vst [vmem:[#allocation9 + $0xe0] sm:$0xff] %v11910
    %11975 = vst [vmem:[#allocation9 + $0xe8] sm:$0xff] %v11911
    %11976 = vst [vmem:[#allocation9 + $0xf0] sm:$0xff] %v11912
    %11977 = vst [vmem:[#allocation9 + $0xf8] sm:$0xff] %v11913
    %11978 = vst [vmem:[#allocation9 + $0x100] sm:$0xff] %v11914
    %11979 = vst [vmem:[#allocation9 + $0x108] sm:$0xff] %v11915
    %11980 = vst [vmem:[#allocation9 + $0x110] sm:$0xff] %v11916
    %11981 = vst [vmem:[#allocation9 + $0x118] sm:$0xff] %v11917
    %11982 = vst [vmem:[#allocation9 + $0x120] sm:$0xff] %v11918
    %11983 = vst [vmem:[#allocation9 + $0x128] sm:$0xff] %v11919
    %11984 = vst [vmem:[#allocation9 + $0x130] sm:$0xff] %v11920
    %11985 = vst [vmem:[#allocation9 + $0x138] sm:$0xff] %v11921
    %11986 = vst [vmem:[#allocation9 + $0x140] sm:$0xff] %v11922
    %11987 = vst [vmem:[#allocation9 + $0x148] sm:$0xff] %v11923
    %11988 = vst [vmem:[#allocation9 + $0x150] sm:$0xff] %v11924
    %11989 = vst [vmem:[#allocation9 + $0x158] sm:$0xff] %v11925
    %11990 = vst [vmem:[#allocation9 + $0x160] sm:$0xff] %v11926
    %11991 = vst [vmem:[#allocation9 + $0x168] sm:$0xff] %v11927
    %11992 = vst [vmem:[#allocation9 + $0x170] sm:$0xff] %v11928
    %11993 = vst [vmem:[#allocation9 + $0x178] sm:$0xff] %v11929
    %11994 = vst [vmem:[#allocation9 + $0x180] sm:$0xff] %v11930
    %11995 = vst [vmem:[#allocation9 + $0x188] sm:$0xff] %v11931
    %11996 = vst [vmem:[#allocation9 + $0x190] sm:$0xff] %v11932
    %11997 = vst [vmem:[#allocation9 + $0x198] sm:$0xff] %v11933
    %11998 = vst [vmem:[#allocation9 + $0x1a0] sm:$0xff] %v11934
    %11999 = vst [vmem:[#allocation9 + $0x1a8] sm:$0xff] %v11935
    %12000 = vst [vmem:[#allocation9 + $0x1b0] sm:$0xff] %v11936
    %12001 = vst [vmem:[#allocation9 + $0x1b8] sm:$0xff] %v11937
    %12002 = vst [vmem:[#allocation9 + $0x1c0] sm:$0xff] %v11938
    %12003 = vst [vmem:[#allocation9 + $0x1c8] sm:$0xff] %v11939
    %12004 = vst [vmem:[#allocation9 + $0x1d0] sm:$0xff] %v11940
    %12005 = vst [vmem:[#allocation9 + $0x1d8] sm:$0xff] %v11941
    %12006 = vst [vmem:[#allocation9 + $0x1e0] sm:$0xff] %v11942
    %12007 = vst [vmem:[#allocation9 + $0x1e8] sm:$0xff] %v11943
    %12008 = vst [vmem:[#allocation9 + $0x1f0] sm:$0xff] %v11944
    %12009 = vst [vmem:[#allocation9 + $0x1f8] sm:$0xff] %v11945
    // Predicated region
    $region26: #{tpu_custom_call.1} parent=1 // pred_check
      _
    $region27: #{tpu_custom_call.1} parent=1 // pred_check_branch
      %12011 = sbr.rel (0) target = $region29
    $region28: #{tpu_custom_call.1} parent=1 // pred_region
      %12013 = vsyncadd [#allocation5], 0
      %s12014 = sshll.u32 [#allocation9], 4
      %s12015 = int_to_ptr.vmem [resolvable:$true] %s12014
      %s12016 = sshll.u32 %s3, 4
      %s12017 = int_to_ptr.hbm [resolvable:$true] %s12016
      %12022 = dma.vmem_to_hbm [thread:$0]  %s12015, 8192, %s12017, [#allocation5], 128, 128, 8
    $region29: #{tpu_custom_call.1} parent=1 // pred_fallthru
      _
    // Predicated region
    $region30: #{tpu_custom_call.1} parent=1 // pred_check
      _
    $region31: #{tpu_custom_call.1} parent=1 // pred_check_branch
      %12024 = sbr.rel (0) target = $region33
    $region32: #{tpu_custom_call.1} parent=1 // pred_region
      %12026 = dma.done [#allocation5], 8192
    $region33: #{tpu_custom_call.1} parent=1 // pred_fallthru
      _
    %12027 = vsyncpa [#allocation4], 1
    %12028 = vsyncpa [#allocation7], 1
    %12029 = vsyncpa [#allocation5], 1

</llo_original>
